<compile_context>
chip_gen: v7x
topology: tpu7x:2x2x1
jax: 0.10.0
libtpu: 0.0.40
codegen_flags: <defaults>
</compile_context>

<pallas_src>
import functools
import math

import jax
import jax.numpy as jnp
from jax import lax
from jax.experimental import pallas as pl
from jax.experimental.pallas import tpu as pltpu


# Opt-in (perf review): cast MXU operands to bf16 while keeping f32
# accumulation via preferred_element_type.  Default False = fp32 parity with
# the PyTorch reference numerics.
MXU_BF16 = False


# ----------------------------- helpers ------------------------------------

def _mm(a, b):
    if MXU_BF16:
        a = a.astype(jnp.bfloat16)
        b = b.astype(jnp.bfloat16)
    return jnp.dot(a, b, preferred_element_type=jnp.float32)


def _qkt(q, k):
    """q @ k^T with contraction on the last dim of both operands."""
    if MXU_BF16:
        q = q.astype(jnp.bfloat16)
        k = k.astype(jnp.bfloat16)
    return lax.dot_general(q, k, (((1,), (1,)), ((), ())),
                           preferred_element_type=jnp.float32)


def _choose_row_tile(M, cap=512):
    """Largest row tile (multiple of 8); whole matrix if it fits under `cap`."""
    if M <= cap:
        return ((M + 7) // 8) * 8
    return cap


def _pad_rows(x, tile):
    M = x.shape[0]
    Mp = -(-M // tile) * tile
    if Mp != M:
        x = jnp.pad(x, ((0, Mp - M), (0, 0)))
    return x, Mp


def _vmem_limit(step_bytes):
    """Scoped-VMEM request: 3x the per-step working set, clamped."""
    return int(min(max(3 * int(step_bytes), 32 * 1024 * 1024),
                   100 * 1024 * 1024))


def _layernorm(x, g, b, eps):
    mu = jnp.mean(x, axis=-1, keepdims=True)
    var = jnp.mean((x - mu) ** 2, axis=-1, keepdims=True)   # biased var (PyTorch LN)
    return (x - mu) * lax.rsqrt(var + eps) * g + b


_SQRT1_2 = 1.0 / math.sqrt(2.0)


def _erf_approx(x):
    """erf via Abramowitz & Stegun 7.1.26 (|err| < 1.5e-7).

    Built only from exp/abs/where so it always lowers in Pallas TPU (no
    dependence on an erf primitive lowering rule).
    """
    a1, a2, a3, a4, a5 = (0.254829592, -0.284496736, 1.421413741,
                          -1.453152027, 1.061405429)
    p = 0.3275911
    ax = jnp.abs(x)
    t = 1.0 / (1.0 + p * ax)
    poly = ((((a5 * t + a4) * t + a3) * t + a2) * t + a1) * t
    y = 1.0 - poly * jnp.exp(-ax * ax)
    return jnp.where(x < 0.0, -y, y)


def _gelu_exact(y):  # matches nn.GELU() (erf-based)
    return 0.5 * y * (1.0 + _erf_approx(y * _SQRT1_2))


# ----------------------------- Pallas kernels -----------------------------

def _linear_kernel(x_ref, w_ref, b_ref, o_ref):
    o_ref[...] = _mm(x_ref[...], w_ref[...]) + b_ref[...]


def pallas_linear(x, w_t, b2d):
    """y = x @ w_t + b.  Large row tiles; constant weight/bias single-buffered."""
    M, K = x.shape
    N = w_t.shape[1]
    tm = _choose_row_tile(M)
    xp, Mp = _pad_rows(x, tm)
    step_bytes = 4 * (2 * tm * K + K * N + N + 2 * tm * N)
    out = pl.pallas_call(
        _linear_kernel,
        out_shape=jax.ShapeDtypeStruct((Mp, N), jnp.float32),
        grid=(Mp // tm,),
        in_specs=[
            pl.BlockSpec((tm, K), lambda i: (i, 0)),
            pl.BlockSpec((K, N), lambda i: (0, 0), pipeline_mode=pl.Buffered(1)),
            pl.BlockSpec((1, N), lambda i: (0, 0), pipeline_mode=pl.Buffered(1)),
        ],
        out_specs=pl.BlockSpec((tm, N), lambda i: (i, 0)),
        compiler_params=pltpu.CompilerParams(
            dimension_semantics=("parallel",),
            vmem_limit_bytes=_vmem_limit(step_bytes)),
    )(xp, w_t, b2d)
    return out[:M]


def _encoder_layer_kernel(elen_ref, x_ref, bias_ref,
                          g1_ref, be1_ref,
                          wqkv_ref, wo_ref, bo_ref,
                          g2_ref, be2_ref,
                          w1_ref, bf1_ref, w2_ref, bf2_ref,
                          o_ref, *, heads, eps):
    """One full TransformerEncoderBlock for one batch element per grid step."""
    b = pl.program_id(0)
    x = x_ref[0]                                  # (L, E)
    L, E = x.shape
    D = E // heads
    scale = float(D) ** -0.5

    # ---- LayerNorm 1 ----
    xn = _layernorm(x, g1_ref[...], be1_ref[...], eps)

    # ---- validity mask from two thin iota compares (no (L,L) int32 temps) ----
    n_valid = elen_ref[b]
    row_ok = lax.broadcasted_iota(jnp.int32, (L, 1), 0) < n_valid
    col_ok = lax.broadcasted_iota(jnp.int32, (1, L), 1) < n_valid
    valid = jnp.logical_and(row_ok, col_ok)       # (L, L) bool via broadcast
    neg = -jnp.finfo(jnp.float32).max             # matches masked_fill(-finfo.max)

    # ---- fused QKV projection: one full-width (L,E)@(E,3E) MXU matmul ----
    qkv = _mm(xn, wqkv_ref[...])                  # (L, 3E) = [q | k | v]

    # ---- multi-head attention: per-head slices are VMEM-only ----
    # TODO(synk): at production L (~1000) switch to a fori_loop / head grid axis
    # to bound the live range of the per-head (L, L) tiles.
    head_outs = []
    for h in range(heads):                        # static unrolled loop
        qh = qkv[:, h * D:(h + 1) * D]                       # (L, D)
        kh = qkv[:, E + h * D:E + (h + 1) * D]
        vh = qkv[:, 2 * E + h * D:2 * E + (h + 1) * D]
        sim = _qkt(qh, kh) * scale + bias_ref[h]             # (L, L)
        sim = jnp.where(valid, sim, neg)
        m = jnp.max(sim, axis=-1, keepdims=True)
        p = jnp.exp(sim - m)
        denom = jnp.sum(p, axis=-1, keepdims=True)
        attn = p * pl.reciprocal(denom, approx=True)         # EUP recip, VPU mul
        head_outs.append(_mm(attn, vh))                      # (L, D)

    # ---- concat heads once, single full-width output projection + residual ----
    oh = jnp.concatenate(head_outs, axis=-1)                 # (L, E), head-major
    x = x + _mm(oh, wo_ref[...]) + bo_ref[...]               # dropout1 == identity

    # ---- LayerNorm 2 + FFN + residual (dropout2 == identity) ----
    # TODO(synk): tile the 4E hidden dim (emit_pipeline / extra grid axis) for
    # v7x-sized models so weights + (L,4E) GELU intermediate fit 64 MiB VMEM.
    xn = _layernorm(x, g2_ref[...], be2_ref[...], eps)
    hdn = _gelu_exact(_mm(xn, w1_ref[...]) + bf1_ref[...])
    o_ref[0] = x + _mm(hdn, w2_ref[...]) + bf2_ref[...]


def pallas_encoder_layer(x, bias, lengths, lp, heads, eps=1e-5):
    """x: (B, L, E); bias: (H, L, L); lengths: (B,) int32 (already * us_rate)."""
    B, L, E = x.shape
    H = heads
    FE_E = lp["w1_t"].shape[1]
    kern = functools.partial(_encoder_layer_kernel, heads=heads, eps=eps)

    c2 = lambda b, el: (0, 0)
    c3 = lambda b, el: (0, 0, 0)
    buf1 = pl.Buffered(1)   # constant-across-grid blocks: single-buffered

    def const2(shape):
        return pl.BlockSpec(shape, c2, pipeline_mode=buf1)

    def const3(shape):
        return pl.BlockSpec(shape, c3, pipeline_mode=buf1)

    step_bytes = 4 * (4 * L * E                 # double-buffered x in/out
                      + H * L * L               # rel-pos bias (single buffer)
                      + 3 * E * E + E * E       # Wqkv + Wo
                      + 2 * E * FE_E            # FFN weights
                      + L * 3 * E + H * L * L   # in-kernel qkv + attn temps
                      + L * FE_E)               # GELU intermediate

    return pl.pallas_call(
        kern,
        out_shape=jax.ShapeDtypeStruct((B, L, E), jnp.float32),
        grid_spec=pltpu.PrefetchScalarGridSpec(
            num_scalar_prefetch=1,
            grid=(B,),
            in_specs=[
                pl.BlockSpec((1, L, E), lambda b, el: (b, 0, 0)),   # x
                const3((H, L, L)),                                  # rel-pos bias
                const2((1, E)), const2((1, E)),                     # LN1 gamma/beta
                const2((E, 3 * E)),                                 # fused Wqkv
                const2((E, E)), const2((1, E)),                     # Wo, bo
                const2((1, E)), const2((1, E)),                     # LN2 gamma/beta
                const2((E, FE_E)), const2((1, FE_E)),               # FFN W1/b1
                const2((FE_E, E)), const2((1, E)),                  # FFN W2/b2
            ],
            out_specs=pl.BlockSpec((1, L, E), lambda b, el: (b, 0, 0)),
        ),
        # Batch axis is "parallel": on v7x the two TensorCores each take batch
        # elements; for B==1 add a query-row parallel axis (TODO above).
        compiler_params=pltpu.CompilerParams(
            dimension_semantics=("parallel",),
            vmem_limit_bytes=_vmem_limit(step_bytes)),
    )(lengths, x, bias,
      lp["ln1_g"], lp["ln1_b"],
      lp["wqkv_t"], lp["wo_t"], lp["bo"],
      lp["ln2_g"], lp["ln2_b"],
      lp["w1_t"], lp["b1"], lp["w2_t"], lp["b2"])


def _head_kernel(x_ref, g_ref, b_ref, wc_ref, bc_ref,
                 w0_ref, b0_ref, w1_ref, b1_ref, w2_ref, b2_ref,
                 logits_ref, ms_ref, *, eps):
    """Final LayerNorm + concatenated classifier heads + ms MLP chain, fused.

    Two separate outputs (logits slab, ms) instead of one narrow concatenated
    slab, so the wide logits output stays lane-dense.
    """
    xn = _layernorm(x_ref[...], g_ref[...], b_ref[...], eps)
    logits_ref[...] = _mm(xn, wc_ref[...]) + bc_ref[...]
    h = jnp.maximum(_mm(xn, w0_ref[...]) + b0_ref[...], 0.0)
    h = jnp.maximum(_mm(h, w1_ref[...]) + b1_ref[...], 0.0)
    ms_ref[...] = _mm(h, w2_ref[...]) + b2_ref[...]


def pallas_head(x2, p, eps=1e-5):
    M, E = x2.shape
    wc, bc = p["cls_w"], p["cls_b"]
    w0, b0 = p["ms0"]
    w1, b1 = p["ms1"]
    w2, b2 = p["ms2"]
    Wc = wc.shape[1]
    tm = _choose_row_tile(M)
    xp, Mp = _pad_rows(x2, tm)
    kern = functools.partial(_head_kernel, eps=eps)

    def cst(shape):
        return pl.BlockSpec(shape, lambda i: (0, 0), pipeline_mode=pl.Buffered(1))

    step_bytes = 4 * (2 * tm * E + E * Wc + E * (E // 2) + (E // 2) * (E // 4)
                      + 2 * tm * Wc + 2 * tm * 2 + tm * E)
    logits, ms = pl.pallas_call(
        kern,
        out_shape=(jax.ShapeDtypeStruct((Mp, Wc), jnp.float32),
                   jax.ShapeDtypeStruct((Mp, 2), jnp.float32)),
        grid=(Mp // tm,),
        in_specs=[
            pl.BlockSpec((tm, E), lambda i: (i, 0)),
            cst((1, E)), cst((1, E)),
            cst(wc.shape), cst(bc.shape),
            cst(w0.shape), cst(b0.shape),
            cst(w1.shape), cst(b1.shape),
            cst(w2.shape), cst(b2.shape),
        ],
        out_specs=(pl.BlockSpec((tm, Wc), lambda i: (i, 0)),
                   pl.BlockSpec((tm, 2), lambda i: (i, 0))),
        compiler_params=pltpu.CompilerParams(
            dimension_semantics=("parallel",),
            vmem_limit_bytes=_vmem_limit(step_bytes)),
    )(xp, p["ln_en_g"], p["ln_en_b"], wc, bc, w0, b0, w1, b1, w2, b2)
    return logits[:M], ms[:M]


# ----------------------------- JAX glue ------------------------------------

def linear_interpolate_1d(x, scale):
    """Matches F.interpolate(x.permute(0,2,1), scale_factor=scale, mode='linear',
    align_corners=False).permute(0,2,1). x: (B, T, C)."""
    B, T, C = x.shape
    out_t = T * scale
    src = (jnp.arange(out_t, dtype=jnp.float32) + 0.5) / scale - 0.5
    src = jnp.maximum(src, 0.0)
    lo = jnp.floor(src).astype(jnp.int32)
    hi = jnp.minimum(lo + 1, T - 1)
    w = (src - lo.astype(jnp.float32))[None, :, None]
    return x[:, lo, :] * (1.0 - w) + x[:, hi, :] * w


def rel_pos_bias_fn(rp_params, L, usi, usj):
    """RelativePositionBias.forward(i=L, j=L, usi, usj) -> (H, L, L). Tiny MLP glue."""
    usr = int(max(usi, usj))
    seql = L // usi
    i_pos = jnp.arange(L) * (usr // usi)
    j_pos = jnp.arange(L) * (usr // usj)
    rel_pos = i_pos[:, None] - j_pos[None, :] + seql * usr - 1
    x = jnp.arange(-seql * usr + 1, seql * usr, dtype=jnp.float32)[:, None] / usr
    for (W, b) in rp_params[:-1]:
        x = x @ W.T + b
        x = x * jax.nn.sigmoid(x)            # SiLU
    W, b = rp_params[-1]
    x = x @ W.T + b                          # (2*seql*usr-1, H)
    bias = x[rel_pos]                        # (L, L, H)
    return jnp.transpose(bias, (2, 0, 1))    # (H, L, L)


def code_predictor_forward(params, cfg, vfeat, effect_lengths):
    B, T, Cin = vfeat.shape
    E, H = cfg["embed_size"], cfg["heads"]
    NL, NC = cfg["n_labels"], cfg["n_classifiers"]

    if cfg["us_rate"] != 1:
        vfeat = linear_interpolate_1d(vfeat, cfg["us_rate"])
    L = vfeat.shape[1]

    # proj_in (fused matmul + bias)
    x = pallas_linear(vfeat.reshape(B * L, Cin), *params["proj_in"]).reshape(B, L, E)

    # relative position bias kept at (H, L, L) — shared across the batch inside the kernel
    us = L // cfg["seq_length"]
    bias = rel_pos_bias_fn(params["rel_pos"], L, us, us)

    # per-sample effective lengths (scaled) — the mask is built inside the kernel
    lengths = (effect_lengths * us).astype(jnp.int32)

    for lp in params["layers"]:
        x = pallas_encoder_layer(x, bias, lengths, lp, H)

    # fused final LN + classifier heads + ms MLP chain (two lane-dense outputs)
    logits_flat, ms_flat = pallas_head(x.reshape(B * L, E), params)
    seq_logits = [logits_flat[:, i * NL:(i + 1) * NL].reshape(B, L, NL) for i in range(NC)]
    ms_pred = ms_flat.reshape(B, L, 2)
    return seq_logits, ms_pred


# ----------------------------- parameter init ------------------------------

def init_params(key, cfg):
    E, H, Cin = cfg["embed_size"], cfg["heads"], cfg["input_size"]
    FE, NL, NC = cfg["forward_expansion"], cfg["n_labels"], cfg["n_classifiers"]
    dim = E // 2
    keys = iter(jax.random.split(key, 128))

    def lin(out_d, in_d, bias=True):
        W = jax.random.normal(next(keys), (out_d, in_d), jnp.float32) * 0.02
        b = (jax.random.normal(next(keys), (out_d,), jnp.float32) * 0.02) if bias \
            else jnp.zeros((out_d,), jnp.float32)
        return W, b

    def as_kernel(W, b):  # pre-transpose for the Pallas matmul kernels
        return jnp.asarray(W.T), b[None, :]

    ones = lambda n: jnp.ones((1, n), jnp.float32)
    zeros = lambda n: jnp.zeros((1, n), jnp.float32)

    p = {}
    p["proj_in"] = as_kernel(*lin(E, Cin))
    p["rel_pos"] = [lin(dim, 1), lin(dim, dim), lin(dim, dim), lin(H, dim)]

    layers = []
    for _ in range(cfg["n_layers"]):
        lp = {}
        Wq, _ = lin(E, E, bias=False)
        Wkv, _ = lin(2 * E, E, bias=False)
        Wo, bo = lin(E, E)
        W1, b1 = lin(FE * E, E)
        W2, b2 = lin(E, FE * E)
        # fused QKV weight, done ONCE here: (E, 3E) = [Wq^T | Wk^T | Wv^T]
        # (PyTorch head split 'b n (h d)' => head h lives in lanes h*D:(h+1)*D
        #  of each E-wide block, matching the in-kernel static slices)
        wqkv_t = jnp.concatenate([jnp.asarray(Wq.T), jnp.asarray(Wkv.T)], axis=1)
        lp["wqkv_t"] = wqkv_t                                        # (E, 3E)
        lp["wo_t"] = jnp.asarray(Wo.T)                               # (E, E)
        lp["bo"] = bo[None, :]
        lp["w1_t"], lp["b1"] = as_kernel(W1, b1)
        lp["w2_t"], lp["b2"] = as_kernel(W2, b2)
        lp["ln1_g"], lp["ln1_b"] = ones(E), zeros(E)
        lp["ln2_g"], lp["ln2_b"] = ones(E), zeros(E)
        layers.append(lp)
    p["layers"] = layers

    p["ln_en_g"], p["ln_en_b"] = ones(E), zeros(E)

    # fused classifier heads: one wide (E, NC*NL) matmul (lane-dense at prod sizes)
    cls = [lin(NL, E) for _ in range(NC)]
    p["cls_w"] = jnp.concatenate([jnp.asarray(W.T) for (W, _) in cls], axis=1)
    p["cls_b"] = jnp.concatenate([b for (_, b) in cls])[None, :]

    p["ms0"] = as_kernel(*lin(E // 2, E))
    p["ms1"] = as_kernel(*lin(E // 4, E // 2))
    p["ms2"] = as_kernel(*lin(2, E // 4))
    return p


# --------------------------------- main ------------------------------------

if __name__ == "__main__":
    cfg = dict(
        us_rate=2, n_classifiers=2, n_labels=16, n_layers=2,
        input_size=64, embed_size=128, heads=4, forward_expansion=4,
        seq_length=4,           # input T == seq_length, so L = T*us_rate, us = L/seq_length = 2
    )
    key = jax.random.PRNGKey(0)
    kp, kx = jax.random.split(key)
    params = init_params(kp, cfg)

    B, T = 2, 4
    vfeat = jax.random.normal(kx, (B, T, cfg["input_size"]), jnp.float32)
    effect_lengths = jnp.array([3, 4], dtype=jnp.int32)

    fwd = jax.jit(lambda p, v, el: code_predictor_forward(p, cfg, v, el))
    seq_logits, ms_pred = fwd(params, vfeat, effect_lengths)
    jax.block_until_ready(ms_pred)
    for s in seq_logits:
        jax.block_until_ready(s)

    L = T * cfg["us_rate"]
    assert len(seq_logits) == cfg["n_classifiers"]
    assert all(s.shape == (B, L, cfg["n_labels"]) for s in seq_logits)
    assert ms_pred.shape == (B, L, 2)
    assert all(bool(jnp.all(jnp.isfinite(s))) for s in seq_logits)
    assert bool(jnp.all(jnp.isfinite(ms_pred)))
    print("KERNEL_OK")
</pallas_src>

<mosaic_0001>
module attributes {stable_mosaic.version = 11 : i64} {
  func.func @_linear_kernel(%arg0: i32, %arg1: memref<16x64xf32, #tpu.memory_space<vmem>>, %arg2: memref<64x128xf32, #tpu.memory_space<vmem>>, %arg3: memref<1x128xf32, #tpu.memory_space<vmem>>, %arg4: memref<16x128xf32, #tpu.memory_space<vmem>>) attributes {dimension_semantics = [#tpu.dimension_semantics<parallel>], iteration_bounds = array<i64: 1>, scalar_prefetch = 0 : i64, scratch_operands = 0 : i64, tpu.core_type = #tpu.core_type<tc>, window_params = [{transform_indices = @transform_0, window_bounds = array<i64: 16, 64>}, {pipeline_mode = #tpu.pipeline_mode<synchronous>, transform_indices = @transform_1, window_bounds = array<i64: 64, 128>}, {pipeline_mode = #tpu.pipeline_mode<synchronous>, transform_indices = @transform_2, window_bounds = array<i64: 1, 128>}, {transform_indices = @transform_3, window_bounds = array<i64: 16, 128>}]} {
    %c0 = arith.constant 0 : index
    %c0_0 = arith.constant 0 : index
    %0 = vector.load %arg1[%c0, %c0_0] : memref<16x64xf32, #tpu.memory_space<vmem>>, vector<16x64xf32>
    %c0_1 = arith.constant 0 : index
    %c0_2 = arith.constant 0 : index
    %1 = vector.load %arg2[%c0_1, %c0_2] : memref<64x128xf32, #tpu.memory_space<vmem>>, vector<64x128xf32>
    %cst = arith.constant dense<0.000000e+00> : vector<16x128xf32>
    %2 = tpu.matmul %0, %1, %cst {dimension_numbers = #tpu.dot_dimension_numbers<[1], [0], [0], [1], [0, 0, 1, 1], [], []>} : vector<16x64xf32>, vector<64x128xf32>, vector<16x128xf32> -> vector<16x128xf32>
    %c0_3 = arith.constant 0 : index
    %c0_4 = arith.constant 0 : index
    %3 = vector.load %arg3[%c0_3, %c0_4] : memref<1x128xf32, #tpu.memory_space<vmem>>, vector<1x128xf32>
    %4 = vector.broadcast %3 : vector<1x128xf32> to vector<16x128xf32>
    %5 = arith.addf %2, %4 : vector<16x128xf32>
    %c0_5 = arith.constant 0 : index
    %c0_6 = arith.constant 0 : index
    %6 = vector.load %arg4[%c0_5, %c0_6] : memref<16x128xf32, #tpu.memory_space<vmem>>, vector<16x128xf32>
    tpu.vector_store %arg4[%c0_5, %c0_6], %5 {strides = array<i32>} : memref<16x128xf32, #tpu.memory_space<vmem>>, vector<16x128xf32>,
    return
  }
  func.func @transform_0(%arg0: i32) -> (i32, i32) {
    %c0_i32 = arith.constant 0 : i32
    %c0_i32_0 = arith.constant 0 : i32
    return %arg0, %c0_i32 : i32, i32
  }
  func.func @transform_1(%arg0: i32) -> (i32, i32) {
    %c0_i32 = arith.constant 0 : i32
    %c0_i32_0 = arith.constant 0 : i32
    %c0_i32_1 = arith.constant 0 : i32
    return %c0_i32, %c0_i32_0 : i32, i32
  }
  func.func @transform_2(%arg0: i32) -> (i32, i32) {
    %c0_i32 = arith.constant 0 : i32
    %c0_i32_0 = arith.constant 0 : i32
    %c0_i32_1 = arith.constant 0 : i32
    return %c0_i32, %c0_i32_0 : i32, i32
  }
  func.func @transform_3(%arg0: i32) -> (i32, i32) {
    %c0_i32 = arith.constant 0 : i32
    %c0_i32_0 = arith.constant 0 : i32
    return %arg0, %c0_i32 : i32, i32
  }
}

module attributes {stable_mosaic.version = 11 : i64} {
  func.func @_encoder_layer_kernel(%arg0: i32, %arg1: memref<2xi32, #tpu.memory_space<smem>>, %arg2: memref<1x8x128xf32, #tpu.memory_space<vmem>>, %arg3: memref<4x8x8xf32, #tpu.memory_space<vmem>>, %arg4: memref<1x128xf32, #tpu.memory_space<vmem>>, %arg5: memref<1x128xf32, #tpu.memory_space<vmem>>, %arg6: memref<128x384xf32, #tpu.memory_space<vmem>>, %arg7: memref<128x128xf32, #tpu.memory_space<vmem>>, %arg8: memref<1x128xf32, #tpu.memory_space<vmem>>, %arg9: memref<1x128xf32, #tpu.memory_space<vmem>>, %arg10: memref<1x128xf32, #tpu.memory_space<vmem>>, %arg11: memref<128x512xf32, #tpu.memory_space<vmem>>, %arg12: memref<1x512xf32, #tpu.memory_space<vmem>>, %arg13: memref<512x128xf32, #tpu.memory_space<vmem>>, %arg14: memref<1x128xf32, #tpu.memory_space<vmem>>, %arg15: memref<1x8x128xf32, #tpu.memory_space<vmem>>) attributes {dimension_semantics = [#tpu.dimension_semantics<parallel>], iteration_bounds = array<i64: 2>, scalar_prefetch = 1 : i64, scratch_operands = 0 : i64, tpu.core_type = #tpu.core_type<tc>, window_params = [{transform_indices = @transform_0, window_bounds = array<i64: 1, 8, 128>}, {pipeline_mode = #tpu.pipeline_mode<synchronous>, transform_indices = @transform_1, window_bounds = array<i64: 4, 8, 8>}, {pipeline_mode = #tpu.pipeline_mode<synchronous>, transform_indices = @transform_2, window_bounds = array<i64: 1, 128>}, {pipeline_mode = #tpu.pipeline_mode<synchronous>, transform_indices = @transform_3, window_bounds = array<i64: 1, 128>}, {pipeline_mode = #tpu.pipeline_mode<synchronous>, transform_indices = @transform_4, window_bounds = array<i64: 128, 384>}, {pipeline_mode = #tpu.pipeline_mode<synchronous>, transform_indices = @transform_5, window_bounds = array<i64: 128, 128>}, {pipeline_mode = #tpu.pipeline_mode<synchronous>, transform_indices = @transform_6, window_bounds = array<i64: 1, 128>}, {pipeline_mode = #tpu.pipeline_mode<synchronous>, transform_indices = @transform_7, window_bounds = array<i64: 1, 128>}, {pipeline_mode = #tpu.pipeline_mode<synchronous>, transform_indices = @transform_8, window_bounds = array<i64: 1, 128>}, {pipeline_mode = #tpu.pipeline_mode<synchronous>, transform_indices = @transform_9, window_bounds = array<i64: 128, 512>}, {pipeline_mode = #tpu.pipeline_mode<synchronous>, transform_indices = @transform_10, window_bounds = array<i64: 1, 512>}, {pipeline_mode = #tpu.pipeline_mode<synchronous>, transform_indices = @transform_11, window_bounds = array<i64: 512, 128>}, {pipeline_mode = #tpu.pipeline_mode<synchronous>, transform_indices = @transform_12, window_bounds = array<i64: 1, 128>}, {transform_indices = @transform_13, window_bounds = array<i64: 1, 8, 128>}]} {
    %c0 = arith.constant 0 : index
    %c0_0 = arith.constant 0 : index
    %c0_1 = arith.constant 0 : index
    %0 = vector.load %arg2[%c0, %c0_0, %c0_1] : memref<1x8x128xf32, #tpu.memory_space<vmem>>, vector<1x8x128xf32>
    %1 = vector.shape_cast %0 : vector<1x8x128xf32> to vector<8x128xf32>
    %c0_2 = arith.constant 0 : index
    %c0_3 = arith.constant 0 : index
    %2 = vector.load %arg4[%c0_2, %c0_3] : memref<1x128xf32, #tpu.memory_space<vmem>>, vector<1x128xf32>
    %c0_4 = arith.constant 0 : index
    %c0_5 = arith.constant 0 : index
    %3 = vector.load %arg5[%c0_4, %c0_5] : memref<1x128xf32, #tpu.memory_space<vmem>>, vector<1x128xf32>
    %cst = arith.constant dense<0.000000e+00> : vector<8xf32>
    %4 = vector.multi_reduction <add>, %1, %cst [1] : vector<8x128xf32> to vector<8xf32>
    %5 = vector.shape_cast %4 : vector<8xf32> to vector<8x1xf32>
    %cst_6 = arith.constant 1.280000e+02 : f32
    %6 = vector.broadcast %cst_6 : f32 to vector<8x1xf32>
    %7 = arith.divf %5, %6 : vector<8x1xf32>
    %8 = vector.broadcast %7 : vector<8x1xf32> to vector<8x128xf32>
    %9 = arith.subf %1, %8 : vector<8x128xf32>
    %10 = arith.mulf %9, %9 : vector<8x128xf32>
    %cst_7 = arith.constant dense<0.000000e+00> : vector<8xf32>
    %11 = vector.multi_reduction <add>, %10, %cst_7 [1] : vector<8x128xf32> to vector<8xf32>
    %12 = vector.shape_cast %11 : vector<8xf32> to vector<8x1xf32>
    %cst_8 = arith.constant 1.280000e+02 : f32
    %13 = vector.broadcast %cst_8 : f32 to vector<8x1xf32>
    %14 = arith.divf %12, %13 : vector<8x1xf32>
    %15 = vector.broadcast %7 : vector<8x1xf32> to vector<8x128xf32>
    %16 = arith.subf %1, %15 : vector<8x128xf32>
    %cst_9 = arith.constant 9.99999974E-6 : f32
    %17 = vector.broadcast %cst_9 : f32 to vector<8x1xf32>
    %18 = arith.addf %14, %17 : vector<8x1xf32>
    %19 = math.rsqrt %18 : vector<8x1xf32>
    %20 = vector.broadcast %19 : vector<8x1xf32> to vector<8x128xf32>
    %21 = arith.mulf %16, %20 : vector<8x128xf32>
    %22 = vector.broadcast %2 : vector<1x128xf32> to vector<8x128xf32>
    %23 = arith.mulf %21, %22 : vector<8x128xf32>
    %24 = vector.broadcast %3 : vector<1x128xf32> to vector<8x128xf32>
    %25 = arith.addf %23, %24 : vector<8x128xf32>
    %26 = arith.index_cast %arg0 : i32 to index
    %27 = memref.load %arg1[%26] : memref<2xi32, #tpu.memory_space<smem>>
    %28 = tpu.iota {dimensions = array<i32: 0>} : vector<8x1xi32>
    %29 = vector.broadcast %27 : i32 to vector<8x1xi32>
    %30 = arith.cmpi slt, %28, %29 : vector<8x1xi32>
    %31 = tpu.iota {dimensions = array<i32: 1>} : vector<1x8xi32>
    %32 = vector.broadcast %27 : i32 to vector<1x8xi32>
    %33 = arith.cmpi slt, %31, %32 : vector<1x8xi32>
    %34 = vector.broadcast %30 : vector<8x1xi1> to vector<8x8xi1>
    %35 = vector.broadcast %33 : vector<1x8xi1> to vector<8x8xi1>
    %36 = arith.andi %34, %35 : vector<8x8xi1>
    %c0_10 = arith.constant 0 : index
    %c0_11 = arith.constant 0 : index
    %37 = vector.load %arg6[%c0_10, %c0_11] : memref<128x384xf32, #tpu.memory_space<vmem>>, vector<128x384xf32>
    %cst_12 = arith.constant dense<0.000000e+00> : vector<8x384xf32>
    %38 = tpu.matmul %25, %37, %cst_12 {dimension_numbers = #tpu.dot_dimension_numbers<[1], [0], [0], [1], [0, 0, 1, 1], [], []>} : vector<8x128xf32>, vector<128x384xf32>, vector<8x384xf32> -> vector<8x384xf32>
    %39 = vector.extract_strided_slice %38 {offsets = [0, 0], sizes = [8, 32], strides = [1, 1]} : vector<8x384xf32> to vector<8x32xf32>
    %40 = vector.extract_strided_slice %38 {offsets = [0, 128], sizes = [8, 32], strides = [1, 1]} : vector<8x384xf32> to vector<8x32xf32>
    %41 = vector.extract_strided_slice %38 {offsets = [0, 256], sizes = [8, 32], strides = [1, 1]} : vector<8x384xf32> to vector<8x32xf32>
    %cst_13 = arith.constant dense<0.000000e+00> : vector<8x8xf32>
    %42 = tpu.matmul %39, %40, %cst_13 {dimension_numbers = #tpu.dot_dimension_numbers<[1], [1], [0], [0], [0, 0, 1, 0], [], []>} : vector<8x32xf32>, vector<8x32xf32>, vector<8x8xf32> -> vector<8x8xf32>
    %cst_14 = arith.constant 0.176776692 : f32
    %43 = vector.broadcast %cst_14 : f32 to vector<8x8xf32>
    %44 = arith.mulf %42, %43 : vector<8x8xf32>
    %c0_15 = arith.constant 0 : index
    %c0_16 = arith.constant 0 : index
    %c0_17 = arith.constant 0 : index
    %45 = vector.load %arg3[%c0_15, %c0_16, %c0_17] : memref<4x8x8xf32, #tpu.memory_space<vmem>>, vector<1x8x8xf32>
    %46 = vector.shape_cast %45 : vector<1x8x8xf32> to vector<8x8xf32>
    %47 = arith.addf %44, %46 : vector<8x8xf32>
    %cst_18 = arith.constant -3.40282347E+38 : f32
    %48 = vector.broadcast %cst_18 : f32 to vector<8x8xf32>
    %49 = arith.select %36, %47, %48 : vector<8x8xi1>, vector<8x8xf32>
    %cst_19 = arith.constant dense<0xFF800000> : vector<8xf32>
    %50 = vector.multi_reduction <maximumf>, %49, %cst_19 [1] : vector<8x8xf32> to vector<8xf32>
    %51 = vector.shape_cast %50 : vector<8xf32> to vector<8x1xf32>
    %52 = vector.broadcast %51 : vector<8x1xf32> to vector<8x8xf32>
    %53 = arith.subf %49, %52 : vector<8x8xf32>
    %54 = math.exp %53 : vector<8x8xf32>
    %cst_20 = arith.constant dense<0.000000e+00> : vector<8xf32>
    %55 = vector.multi_reduction <add>, %54, %cst_20 [1] : vector<8x8xf32> to vector<8xf32>
    %56 = vector.shape_cast %55 : vector<8xf32> to vector<8x1xf32>
    %57 = tpu.reciprocal %56 {approx = true} : vector<8x1xf32> -> vector<8x1xf32>
    %58 = vector.broadcast %57 : vector<8x1xf32> to vector<8x8xf32>
    %59 = arith.mulf %54, %58 : vector<8x8xf32>
    %cst_21 = arith.constant dense<0.000000e+00> : vector<8x32xf32>
    %60 = tpu.matmul %59, %41, %cst_21 {dimension_numbers = #tpu.dot_dimension_numbers<[1], [0], [0], [1], [0, 0, 1, 1], [], []>} : vector<8x8xf32>, vector<8x32xf32>, vector<8x32xf32> -> vector<8x32xf32>
    %61 = vector.extract_strided_slice %38 {offsets = [0, 32], sizes = [8, 32], strides = [1, 1]} : vector<8x384xf32> to vector<8x32xf32>
    %62 = vector.extract_strided_slice %38 {offsets = [0, 160], sizes = [8, 32], strides = [1, 1]} : vector<8x384xf32> to vector<8x32xf32>
    %63 = vector.extract_strided_slice %38 {offsets = [0, 288], sizes = [8, 32], strides = [1, 1]} : vector<8x384xf32> to vector<8x32xf32>
    %cst_22 = arith.constant dense<0.000000e+00> : vector<8x8xf32>
    %64 = tpu.matmul %61, %62, %cst_22 {dimension_numbers = #tpu.dot_dimension_numbers<[1], [1], [0], [0], [0, 0, 1, 0], [], []>} : vector<8x32xf32>, vector<8x32xf32>, vector<8x8xf32> -> vector<8x8xf32>
    %cst_23 = arith.constant 0.176776692 : f32
    %65 = vector.broadcast %cst_23 : f32 to vector<8x8xf32>
    %66 = arith.mulf %64, %65 : vector<8x8xf32>
    %c1 = arith.constant 1 : index
    %c0_24 = arith.constant 0 : index
    %c0_25 = arith.constant 0 : index
    %67 = vector.load %arg3[%c1, %c0_24, %c0_25] : memref<4x8x8xf32, #tpu.memory_space<vmem>>, vector<1x8x8xf32>
    %68 = vector.shape_cast %67 : vector<1x8x8xf32> to vector<8x8xf32>
    %69 = arith.addf %66, %68 : vector<8x8xf32>
    %cst_26 = arith.constant -3.40282347E+38 : f32
    %70 = vector.broadcast %cst_26 : f32 to vector<8x8xf32>
    %71 = arith.select %36, %69, %70 : vector<8x8xi1>, vector<8x8xf32>
    %cst_27 = arith.constant dense<0xFF800000> : vector<8xf32>
    %72 = vector.multi_reduction <maximumf>, %71, %cst_27 [1] : vector<8x8xf32> to vector<8xf32>
    %73 = vector.shape_cast %72 : vector<8xf32> to vector<8x1xf32>
    %74 = vector.broadcast %73 : vector<8x1xf32> to vector<8x8xf32>
    %75 = arith.subf %71, %74 : vector<8x8xf32>
    %76 = math.exp %75 : vector<8x8xf32>
    %cst_28 = arith.constant dense<0.000000e+00> : vector<8xf32>
    %77 = vector.multi_reduction <add>, %76, %cst_28 [1] : vector<8x8xf32> to vector<8xf32>
    %78 = vector.shape_cast %77 : vector<8xf32> to vector<8x1xf32>
    %79 = tpu.reciprocal %78 {approx = true} : vector<8x1xf32> -> vector<8x1xf32>
    %80 = vector.broadcast %79 : vector<8x1xf32> to vector<8x8xf32>
    %81 = arith.mulf %76, %80 : vector<8x8xf32>
    %cst_29 = arith.constant dense<0.000000e+00> : vector<8x32xf32>
    %82 = tpu.matmul %81, %63, %cst_29 {dimension_numbers = #tpu.dot_dimension_numbers<[1], [0], [0], [1], [0, 0, 1, 1], [], []>} : vector<8x8xf32>, vector<8x32xf32>, vector<8x32xf32> -> vector<8x32xf32>
    %83 = vector.extract_strided_slice %38 {offsets = [0, 64], sizes = [8, 32], strides = [1, 1]} : vector<8x384xf32> to vector<8x32xf32>
    %84 = vector.extract_strided_slice %38 {offsets = [0, 192], sizes = [8, 32], strides = [1, 1]} : vector<8x384xf32> to vector<8x32xf32>
    %85 = vector.extract_strided_slice %38 {offsets = [0, 320], sizes = [8, 32], strides = [1, 1]} : vector<8x384xf32> to vector<8x32xf32>
    %cst_30 = arith.constant dense<0.000000e+00> : vector<8x8xf32>
    %86 = tpu.matmul %83, %84, %cst_30 {dimension_numbers = #tpu.dot_dimension_numbers<[1], [1], [0], [0], [0, 0, 1, 0], [], []>} : vector<8x32xf32>, vector<8x32xf32>, vector<8x8xf32> -> vector<8x8xf32>
    %cst_31 = arith.constant 0.176776692 : f32
    %87 = vector.broadcast %cst_31 : f32 to vector<8x8xf32>
    %88 = arith.mulf %86, %87 : vector<8x8xf32>
    %c2 = arith.constant 2 : index
    %c0_32 = arith.constant 0 : index
    %c0_33 = arith.constant 0 : index
    %89 = vector.load %arg3[%c2, %c0_32, %c0_33] : memref<4x8x8xf32, #tpu.memory_space<vmem>>, vector<1x8x8xf32>
    %90 = vector.shape_cast %89 : vector<1x8x8xf32> to vector<8x8xf32>
    %91 = arith.addf %88, %90 : vector<8x8xf32>
    %cst_34 = arith.constant -3.40282347E+38 : f32
    %92 = vector.broadcast %cst_34 : f32 to vector<8x8xf32>
    %93 = arith.select %36, %91, %92 : vector<8x8xi1>, vector<8x8xf32>
    %cst_35 = arith.constant dense<0xFF800000> : vector<8xf32>
    %94 = vector.multi_reduction <maximumf>, %93, %cst_35 [1] : vector<8x8xf32> to vector<8xf32>
    %95 = vector.shape_cast %94 : vector<8xf32> to vector<8x1xf32>
    %96 = vector.broadcast %95 : vector<8x1xf32> to vector<8x8xf32>
    %97 = arith.subf %93, %96 : vector<8x8xf32>
    %98 = math.exp %97 : vector<8x8xf32>
    %cst_36 = arith.constant dense<0.000000e+00> : vector<8xf32>
    %99 = vector.multi_reduction <add>, %98, %cst_36 [1] : vector<8x8xf32> to vector<8xf32>
    %100 = vector.shape_cast %99 : vector<8xf32> to vector<8x1xf32>
    %101 = tpu.reciprocal %100 {approx = true} : vector<8x1xf32> -> vector<8x1xf32>
    %102 = vector.broadcast %101 : vector<8x1xf32> to vector<8x8xf32>
    %103 = arith.mulf %98, %102 : vector<8x8xf32>
    %cst_37 = arith.constant dense<0.000000e+00> : vector<8x32xf32>
    %104 = tpu.matmul %103, %85, %cst_37 {dimension_numbers = #tpu.dot_dimension_numbers<[1], [0], [0], [1], [0, 0, 1, 1], [], []>} : vector<8x8xf32>, vector<8x32xf32>, vector<8x32xf32> -> vector<8x32xf32>
    %105 = vector.extract_strided_slice %38 {offsets = [0, 96], sizes = [8, 32], strides = [1, 1]} : vector<8x384xf32> to vector<8x32xf32>
    %106 = vector.extract_strided_slice %38 {offsets = [0, 224], sizes = [8, 32], strides = [1, 1]} : vector<8x384xf32> to vector<8x32xf32>
    %107 = vector.extract_strided_slice %38 {offsets = [0, 352], sizes = [8, 32], strides = [1, 1]} : vector<8x384xf32> to vector<8x32xf32>
    %cst_38 = arith.constant dense<0.000000e+00> : vector<8x8xf32>
    %108 = tpu.matmul %105, %106, %cst_38 {dimension_numbers = #tpu.dot_dimension_numbers<[1], [1], [0], [0], [0, 0, 1, 0], [], []>} : vector<8x32xf32>, vector<8x32xf32>, vector<8x8xf32> -> vector<8x8xf32>
    %cst_39 = arith.constant 0.176776692 : f32
    %109 = vector.broadcast %cst_39 : f32 to vector<8x8xf32>
    %110 = arith.mulf %108, %109 : vector<8x8xf32>
    %c3 = arith.constant 3 : index
    %c0_40 = arith.constant 0 : index
    %c0_41 = arith.constant 0 : index
    %111 = vector.load %arg3[%c3, %c0_40, %c0_41] : memref<4x8x8xf32, #tpu.memory_space<vmem>>, vector<1x8x8xf32>
    %112 = vector.shape_cast %111 : vector<1x8x8xf32> to vector<8x8xf32>
    %113 = arith.addf %110, %112 : vector<8x8xf32>
    %cst_42 = arith.constant -3.40282347E+38 : f32
    %114 = vector.broadcast %cst_42 : f32 to vector<8x8xf32>
    %115 = arith.select %36, %113, %114 : vector<8x8xi1>, vector<8x8xf32>
    %cst_43 = arith.constant dense<0xFF800000> : vector<8xf32>
    %116 = vector.multi_reduction <maximumf>, %115, %cst_43 [1] : vector<8x8xf32> to vector<8xf32>
    %117 = vector.shape_cast %116 : vector<8xf32> to vector<8x1xf32>
    %118 = vector.broadcast %117 : vector<8x1xf32> to vector<8x8xf32>
    %119 = arith.subf %115, %118 : vector<8x8xf32>
    %120 = math.exp %119 : vector<8x8xf32>
    %cst_44 = arith.constant dense<0.000000e+00> : vector<8xf32>
    %121 = vector.multi_reduction <add>, %120, %cst_44 [1] : vector<8x8xf32> to vector<8xf32>
    %122 = vector.shape_cast %121 : vector<8xf32> to vector<8x1xf32>
    %123 = tpu.reciprocal %122 {approx = true} : vector<8x1xf32> -> vector<8x1xf32>
    %124 = vector.broadcast %123 : vector<8x1xf32> to vector<8x8xf32>
    %125 = arith.mulf %120, %124 : vector<8x8xf32>
    %cst_45 = arith.constant dense<0.000000e+00> : vector<8x32xf32>
    %126 = tpu.matmul %125, %107, %cst_45 {dimension_numbers = #tpu.dot_dimension_numbers<[1], [0], [0], [1], [0, 0, 1, 1], [], []>} : vector<8x8xf32>, vector<8x32xf32>, vector<8x32xf32> -> vector<8x32xf32>
    %127 = tpu.concatenate %60, %82, %104, %126 in 1 : vector<8x32xf32>, vector<8x32xf32>, vector<8x32xf32>, vector<8x32xf32> -> vector<8x128xf32>
    %c0_46 = arith.constant 0 : index
    %c0_47 = arith.constant 0 : index
    %128 = vector.load %arg7[%c0_46, %c0_47] : memref<128x128xf32, #tpu.memory_space<vmem>>, vector<128x128xf32>
    %cst_48 = arith.constant dense<0.000000e+00> : vector<8x128xf32>
    %129 = tpu.matmul %127, %128, %cst_48 {dimension_numbers = #tpu.dot_dimension_numbers<[1], [0], [0], [1], [0, 0, 1, 1], [], []>} : vector<8x128xf32>, vector<128x128xf32>, vector<8x128xf32> -> vector<8x128xf32>
    %130 = arith.addf %1, %129 : vector<8x128xf32>
    %c0_49 = arith.constant 0 : index
    %c0_50 = arith.constant 0 : index
    %131 = vector.load %arg8[%c0_49, %c0_50] : memref<1x128xf32, #tpu.memory_space<vmem>>, vector<1x128xf32>
    %132 = vector.broadcast %131 : vector<1x128xf32> to vector<8x128xf32>
    %133 = arith.addf %130, %132 : vector<8x128xf32>
    %c0_51 = arith.constant 0 : index
    %c0_52 = arith.constant 0 : index
    %134 = vector.load %arg9[%c0_51, %c0_52] : memref<1x128xf32, #tpu.memory_space<vmem>>, vector<1x128xf32>
    %c0_53 = arith.constant 0 : index
    %c0_54 = arith.constant 0 : index
    %135 = vector.load %arg10[%c0_53, %c0_54] : memref<1x128xf32, #tpu.memory_space<vmem>>, vector<1x128xf32>
    %cst_55 = arith.constant dense<0.000000e+00> : vector<8xf32>
    %136 = vector.multi_reduction <add>, %133, %cst_55 [1] : vector<8x128xf32> to vector<8xf32>
    %137 = vector.shape_cast %136 : vector<8xf32> to vector<8x1xf32>
    %cst_56 = arith.constant 1.280000e+02 : f32
    %138 = vector.broadcast %cst_56 : f32 to vector<8x1xf32>
    %139 = arith.divf %137, %138 : vector<8x1xf32>
    %140 = vector.broadcast %139 : vector<8x1xf32> to vector<8x128xf32>
    %141 = arith.subf %133, %140 : vector<8x128xf32>
    %142 = arith.mulf %141, %141 : vector<8x128xf32>
    %cst_57 = arith.constant dense<0.000000e+00> : vector<8xf32>
    %143 = vector.multi_reduction <add>, %142, %cst_57 [1] : vector<8x128xf32> to vector<8xf32>
    %144 = vector.shape_cast %143 : vector<8xf32> to vector<8x1xf32>
    %cst_58 = arith.constant 1.280000e+02 : f32
    %145 = vector.broadcast %cst_58 : f32 to vector<8x1xf32>
    %146 = arith.divf %144, %145 : vector<8x1xf32>
    %147 = vector.broadcast %139 : vector<8x1xf32> to vector<8x128xf32>
    %148 = arith.subf %133, %147 : vector<8x128xf32>
    %cst_59 = arith.constant 9.99999974E-6 : f32
    %149 = vector.broadcast %cst_59 : f32 to vector<8x1xf32>
    %150 = arith.addf %146, %149 : vector<8x1xf32>
    %151 = math.rsqrt %150 : vector<8x1xf32>
    %152 = vector.broadcast %151 : vector<8x1xf32> to vector<8x128xf32>
    %153 = arith.mulf %148, %152 : vector<8x128xf32>
    %154 = vector.broadcast %134 : vector<1x128xf32> to vector<8x128xf32>
    %155 = arith.mulf %153, %154 : vector<8x128xf32>
    %156 = vector.broadcast %135 : vector<1x128xf32> to vector<8x128xf32>
    %157 = arith.addf %155, %156 : vector<8x128xf32>
    %c0_60 = arith.constant 0 : index
    %c0_61 = arith.constant 0 : index
    %158 = vector.load %arg11[%c0_60, %c0_61] : memref<128x512xf32, #tpu.memory_space<vmem>>, vector<128x512xf32>
    %cst_62 = arith.constant dense<0.000000e+00> : vector<8x512xf32>
    %159 = tpu.matmul %157, %158, %cst_62 {dimension_numbers = #tpu.dot_dimension_numbers<[1], [0], [0], [1], [0, 0, 1, 1], [], []>} : vector<8x128xf32>, vector<128x512xf32>, vector<8x512xf32> -> vector<8x512xf32>
    %c0_63 = arith.constant 0 : index
    %c0_64 = arith.constant 0 : index
    %160 = vector.load %arg12[%c0_63, %c0_64] : memref<1x512xf32, #tpu.memory_space<vmem>>, vector<1x512xf32>
    %161 = vector.broadcast %160 : vector<1x512xf32> to vector<8x512xf32>
    %162 = arith.addf %159, %161 : vector<8x512xf32>
    %cst_65 = arith.constant 5.000000e-01 : f32
    %163 = vector.broadcast %cst_65 : f32 to vector<8x512xf32>
    %164 = arith.mulf %163, %162 : vector<8x512xf32>
    %cst_66 = arith.constant 0.707106769 : f32
    %165 = vector.broadcast %cst_66 : f32 to vector<8x512xf32>
    %166 = arith.mulf %162, %165 : vector<8x512xf32>
    %167 = math.absf %166 : vector<8x512xf32>
    %cst_67 = arith.constant 0.327591091 : f32
    %168 = vector.broadcast %cst_67 : f32 to vector<8x512xf32>
    %169 = arith.mulf %168, %167 : vector<8x512xf32>
    %cst_68 = arith.constant 1.000000e+00 : f32
    %170 = vector.broadcast %cst_68 : f32 to vector<8x512xf32>
    %171 = arith.addf %170, %169 : vector<8x512xf32>
    %cst_69 = arith.constant 1.000000e+00 : f32
    %172 = vector.broadcast %cst_69 : f32 to vector<8x512xf32>
    %173 = arith.divf %172, %171 : vector<8x512xf32>
    %cst_70 = arith.constant 1.06140542 : f32
    %174 = vector.broadcast %cst_70 : f32 to vector<8x512xf32>
    %175 = arith.mulf %174, %173 : vector<8x512xf32>
    %cst_71 = arith.constant -1.45315206 : f32
    %176 = vector.broadcast %cst_71 : f32 to vector<8x512xf32>
    %177 = arith.addf %175, %176 : vector<8x512xf32>
    %178 = arith.mulf %177, %173 : vector<8x512xf32>
    %cst_72 = arith.constant 1.42141378 : f32
    %179 = vector.broadcast %cst_72 : f32 to vector<8x512xf32>
    %180 = arith.addf %178, %179 : vector<8x512xf32>
    %181 = arith.mulf %180, %173 : vector<8x512xf32>
    %cst_73 = arith.constant -0.284496725 : f32
    %182 = vector.broadcast %cst_73 : f32 to vector<8x512xf32>
    %183 = arith.addf %181, %182 : vector<8x512xf32>
    %184 = arith.mulf %183, %173 : vector<8x512xf32>
    %cst_74 = arith.constant 0.254829586 : f32
    %185 = vector.broadcast %cst_74 : f32 to vector<8x512xf32>
    %186 = arith.addf %184, %185 : vector<8x512xf32>
    %187 = arith.mulf %186, %173 : vector<8x512xf32>
    %cst_75 = arith.constant 0.000000e+00 : f32
    %188 = vector.broadcast %cst_75 : f32 to vector<8x512xf32>
    %189 = arith.subf %188, %167 : vector<8x512xf32>
    %190 = arith.mulf %189, %167 : vector<8x512xf32>
    %191 = math.exp %190 : vector<8x512xf32>
    %192 = arith.mulf %187, %191 : vector<8x512xf32>
    %cst_76 = arith.constant 1.000000e+00 : f32
    %193 = vector.broadcast %cst_76 : f32 to vector<8x512xf32>
    %194 = arith.subf %193, %192 : vector<8x512xf32>
    %cst_77 = arith.constant 0.000000e+00 : f32
    %195 = vector.broadcast %cst_77 : f32 to vector<8x512xf32>
    %196 = arith.cmpf olt, %166, %195 : vector<8x512xf32>
    %cst_78 = arith.constant 0.000000e+00 : f32
    %197 = vector.broadcast %cst_78 : f32 to vector<8x512xf32>
    %198 = arith.subf %197, %194 : vector<8x512xf32>
    %199 = arith.select %196, %198, %194 : vector<8x512xi1>, vector<8x512xf32>
    %cst_79 = arith.constant 1.000000e+00 : f32
    %200 = vector.broadcast %cst_79 : f32 to vector<8x512xf32>
    %201 = arith.addf %200, %199 : vector<8x512xf32>
    %202 = arith.mulf %164, %201 : vector<8x512xf32>
    %c0_80 = arith.constant 0 : index
    %c0_81 = arith.constant 0 : index
    %203 = vector.load %arg13[%c0_80, %c0_81] : memref<512x128xf32, #tpu.memory_space<vmem>>, vector<512x128xf32>
    %cst_82 = arith.constant dense<0.000000e+00> : vector<8x128xf32>
    %204 = tpu.matmul %202, %203, %cst_82 {dimension_numbers = #tpu.dot_dimension_numbers<[1], [0], [0], [1], [0, 0, 1, 1], [], []>} : vector<8x512xf32>, vector<512x128xf32>, vector<8x128xf32> -> vector<8x128xf32>
    %205 = arith.addf %133, %204 : vector<8x128xf32>
    %c0_83 = arith.constant 0 : index
    %c0_84 = arith.constant 0 : index
    %206 = vector.load %arg14[%c0_83, %c0_84] : memref<1x128xf32, #tpu.memory_space<vmem>>, vector<1x128xf32>
    %207 = vector.broadcast %206 : vector<1x128xf32> to vector<8x128xf32>
    %208 = arith.addf %205, %207 : vector<8x128xf32>
    %c0_85 = arith.constant 0 : index
    %c0_86 = arith.constant 0 : index
    %c0_87 = arith.constant 0 : index
    %209 = vector.load %arg15[%c0_85, %c0_86, %c0_87] : memref<1x8x128xf32, #tpu.memory_space<vmem>>, vector<1x8x128xf32>
    %210 = vector.shape_cast %209 : vector<1x8x128xf32> to vector<8x128xf32>
    %211 = vector.shape_cast %208 : vector<8x128xf32> to vector<1x8x128xf32>
    tpu.vector_store %arg15[%c0_85, %c0_86, %c0_87], %211 {strides = array<i32>} : memref<1x8x128xf32, #tpu.memory_space<vmem>>, vector<1x8x128xf32>,
    return
  }
  func.func @transform_0(%arg0: i32, %arg1: memref<2xi32, #tpu.memory_space<smem>>) -> (i32, i32, i32) {
    %c0_i32 = arith.constant 0 : i32
    %c0_i32_0 = arith.constant 0 : i32
    %c0_i32_1 = arith.constant 0 : i32
    return %arg0, %c0_i32, %c0_i32_0 : i32, i32, i32
  }
  func.func @transform_1(%arg0: i32, %arg1: memref<2xi32, #tpu.memory_space<smem>>) -> (i32, i32, i32) {
    %c0_i32 = arith.constant 0 : i32
    %c0_i32_0 = arith.constant 0 : i32
    %c0_i32_1 = arith.constant 0 : i32
    %c0_i32_2 = arith.constant 0 : i32
    return %c0_i32, %c0_i32_0, %c0_i32_1 : i32, i32, i32
  }
  func.func @transform_2(%arg0: i32, %arg1: memref<2xi32, #tpu.memory_space<smem>>) -> (i32, i32) {
    %c0_i32 = arith.constant 0 : i32
    %c0_i32_0 = arith.constant 0 : i32
    %c0_i32_1 = arith.constant 0 : i32
    return %c0_i32, %c0_i32_0 : i32, i32
  }
  func.func @transform_3(%arg0: i32, %arg1: memref<2xi32, #tpu.memory_space<smem>>) -> (i32, i32) {
    %c0_i32 = arith.constant 0 : i32
    %c0_i32_0 = arith.constant 0 : i32
    %c0_i32_1 = arith.constant 0 : i32
    return %c0_i32, %c0_i32_0 : i32, i32
  }
  func.func @transform_4(%arg0: i32, %arg1: memref<2xi32, #tpu.memory_space<smem>>) -> (i32, i32) {
    %c0_i32 = arith.constant 0 : i32
    %c0_i32_0 = arith.constant 0 : i32
    %c0_i32_1 = arith.constant 0 : i32
    return %c0_i32, %c0_i32_0 : i32, i32
  }
  func.func @transform_5(%arg0: i32, %arg1: memref<2xi32, #tpu.memory_space<smem>>) -> (i32, i32) {
    %c0_i32 = arith.constant 0 : i32
    %c0_i32_0 = arith.constant 0 : i32
    %c0_i32_1 = arith.constant 0 : i32
    return %c0_i32, %c0_i32_0 : i32, i32
  }
  func.func @transform_6(%arg0: i32, %arg1: memref<2xi32, #tpu.memory_space<smem>>) -> (i32, i32) {
    %c0_i32 = arith.constant 0 : i32
    %c0_i32_0 = arith.constant 0 : i32
    %c0_i32_1 = arith.constant 0 : i32
    return %c0_i32, %c0_i32_0 : i32, i32
  }
  func.func @transform_7(%arg0: i32, %arg1: memref<2xi32, #tpu.memory_space<smem>>) -> (i32, i32) {
    %c0_i32 = arith.constant 0 : i32
    %c0_i32_0 = arith.constant 0 : i32
    %c0_i32_1 = arith.constant 0 : i32
    return %c0_i32, %c0_i32_0 : i32, i32
  }
  func.func @transform_8(%arg0: i32, %arg1: memref<2xi32, #tpu.memory_space<smem>>) -> (i32, i32) {
    %c0_i32 = arith.constant 0 : i32
    %c0_i32_0 = arith.constant 0 : i32
    %c0_i32_1 = arith.constant 0 : i32
    return %c0_i32, %c0_i32_0 : i32, i32
  }
  func.func @transform_9(%arg0: i32, %arg1: memref<2xi32, #tpu.memory_space<smem>>) -> (i32, i32) {
    %c0_i32 = arith.constant 0 : i32
    %c0_i32_0 = arith.constant 0 : i32
    %c0_i32_1 = arith.constant 0 : i32
    return %c0_i32, %c0_i32_0 : i32, i32
  }
  func.func @transform_10(%arg0: i32, %arg1: memref<2xi32, #tpu.memory_space<smem>>) -> (i32, i32) {
    %c0_i32 = arith.constant 0 : i32
    %c0_i32_0 = arith.constant 0 : i32
    %c0_i32_1 = arith.constant 0 : i32
    return %c0_i32, %c0_i32_0 : i32, i32
  }
  func.func @transform_11(%arg0: i32, %arg1: memref<2xi32, #tpu.memory_space<smem>>) -> (i32, i32) {
    %c0_i32 = arith.constant 0 : i32
    %c0_i32_0 = arith.constant 0 : i32
    %c0_i32_1 = arith.constant 0 : i32
    return %c0_i32, %c0_i32_0 : i32, i32
  }
  func.func @transform_12(%arg0: i32, %arg1: memref<2xi32, #tpu.memory_space<smem>>) -> (i32, i32) {
    %c0_i32 = arith.constant 0 : i32
    %c0_i32_0 = arith.constant 0 : i32
    %c0_i32_1 = arith.constant 0 : i32
    return %c0_i32, %c0_i32_0 : i32, i32
  }
  func.func @transform_13(%arg0: i32, %arg1: memref<2xi32, #tpu.memory_space<smem>>) -> (i32, i32, i32) {
    %c0_i32 = arith.constant 0 : i32
    %c0_i32_0 = arith.constant 0 : i32
    %c0_i32_1 = arith.constant 0 : i32
    return %arg0, %c0_i32, %c0_i32_0 : i32, i32, i32
  }
}

module attributes {stable_mosaic.version = 11 : i64} {
  func.func @_encoder_layer_kernel(%arg0: i32, %arg1: memref<2xi32, #tpu.memory_space<smem>>, %arg2: memref<1x8x128xf32, #tpu.memory_space<vmem>>, %arg3: memref<4x8x8xf32, #tpu.memory_space<vmem>>, %arg4: memref<1x128xf32, #tpu.memory_space<vmem>>, %arg5: memref<1x128xf32, #tpu.memory_space<vmem>>, %arg6: memref<128x384xf32, #tpu.memory_space<vmem>>, %arg7: memref<128x128xf32, #tpu.memory_space<vmem>>, %arg8: memref<1x128xf32, #tpu.memory_space<vmem>>, %arg9: memref<1x128xf32, #tpu.memory_space<vmem>>, %arg10: memref<1x128xf32, #tpu.memory_space<vmem>>, %arg11: memref<128x512xf32, #tpu.memory_space<vmem>>, %arg12: memref<1x512xf32, #tpu.memory_space<vmem>>, %arg13: memref<512x128xf32, #tpu.memory_space<vmem>>, %arg14: memref<1x128xf32, #tpu.memory_space<vmem>>, %arg15: memref<1x8x128xf32, #tpu.memory_space<vmem>>) attributes {dimension_semantics = [#tpu.dimension_semantics<parallel>], iteration_bounds = array<i64: 2>, scalar_prefetch = 1 : i64, scratch_operands = 0 : i64, tpu.core_type = #tpu.core_type<tc>, window_params = [{transform_indices = @transform_0, window_bounds = array<i64: 1, 8, 128>}, {pipeline_mode = #tpu.pipeline_mode<synchronous>, transform_indices = @transform_1, window_bounds = array<i64: 4, 8, 8>}, {pipeline_mode = #tpu.pipeline_mode<synchronous>, transform_indices = @transform_2, window_bounds = array<i64: 1, 128>}, {pipeline_mode = #tpu.pipeline_mode<synchronous>, transform_indices = @transform_3, window_bounds = array<i64: 1, 128>}, {pipeline_mode = #tpu.pipeline_mode<synchronous>, transform_indices = @transform_4, window_bounds = array<i64: 128, 384>}, {pipeline_mode = #tpu.pipeline_mode<synchronous>, transform_indices = @transform_5, window_bounds = array<i64: 128, 128>}, {pipeline_mode = #tpu.pipeline_mode<synchronous>, transform_indices = @transform_6, window_bounds = array<i64: 1, 128>}, {pipeline_mode = #tpu.pipeline_mode<synchronous>, transform_indices = @transform_7, window_bounds = array<i64: 1, 128>}, {pipeline_mode = #tpu.pipeline_mode<synchronous>, transform_indices = @transform_8, window_bounds = array<i64: 1, 128>}, {pipeline_mode = #tpu.pipeline_mode<synchronous>, transform_indices = @transform_9, window_bounds = array<i64: 128, 512>}, {pipeline_mode = #tpu.pipeline_mode<synchronous>, transform_indices = @transform_10, window_bounds = array<i64: 1, 512>}, {pipeline_mode = #tpu.pipeline_mode<synchronous>, transform_indices = @transform_11, window_bounds = array<i64: 512, 128>}, {pipeline_mode = #tpu.pipeline_mode<synchronous>, transform_indices = @transform_12, window_bounds = array<i64: 1, 128>}, {transform_indices = @transform_13, window_bounds = array<i64: 1, 8, 128>}]} {
    %c0 = arith.constant 0 : index
    %c0_0 = arith.constant 0 : index
    %c0_1 = arith.constant 0 : index
    %0 = vector.load %arg2[%c0, %c0_0, %c0_1] : memref<1x8x128xf32, #tpu.memory_space<vmem>>, vector<1x8x128xf32>
    %1 = vector.shape_cast %0 : vector<1x8x128xf32> to vector<8x128xf32>
    %c0_2 = arith.constant 0 : index
    %c0_3 = arith.constant 0 : index
    %2 = vector.load %arg4[%c0_2, %c0_3] : memref<1x128xf32, #tpu.memory_space<vmem>>, vector<1x128xf32>
    %c0_4 = arith.constant 0 : index
    %c0_5 = arith.constant 0 : index
    %3 = vector.load %arg5[%c0_4, %c0_5] : memref<1x128xf32, #tpu.memory_space<vmem>>, vector<1x128xf32>
    %cst = arith.constant dense<0.000000e+00> : vector<8xf32>
    %4 = vector.multi_reduction <add>, %1, %cst [1] : vector<8x128xf32> to vector<8xf32>
    %5 = vector.shape_cast %4 : vector<8xf32> to vector<8x1xf32>
    %cst_6 = arith.constant 1.280000e+02 : f32
    %6 = vector.broadcast %cst_6 : f32 to vector<8x1xf32>
    %7 = arith.divf %5, %6 : vector<8x1xf32>
    %8 = vector.broadcast %7 : vector<8x1xf32> to vector<8x128xf32>
    %9 = arith.subf %1, %8 : vector<8x128xf32>
    %10 = arith.mulf %9, %9 : vector<8x128xf32>
    %cst_7 = arith.constant dense<0.000000e+00> : vector<8xf32>
    %11 = vector.multi_reduction <add>, %10, %cst_7 [1] : vector<8x128xf32> to vector<8xf32>
    %12 = vector.shape_cast %11 : vector<8xf32> to vector<8x1xf32>
    %cst_8 = arith.constant 1.280000e+02 : f32
    %13 = vector.broadcast %cst_8 : f32 to vector<8x1xf32>
    %14 = arith.divf %12, %13 : vector<8x1xf32>
    %15 = vector.broadcast %7 : vector<8x1xf32> to vector<8x128xf32>
    %16 = arith.subf %1, %15 : vector<8x128xf32>
    %cst_9 = arith.constant 9.99999974E-6 : f32
    %17 = vector.broadcast %cst_9 : f32 to vector<8x1xf32>
    %18 = arith.addf %14, %17 : vector<8x1xf32>
    %19 = math.rsqrt %18 : vector<8x1xf32>
    %20 = vector.broadcast %19 : vector<8x1xf32> to vector<8x128xf32>
    %21 = arith.mulf %16, %20 : vector<8x128xf32>
    %22 = vector.broadcast %2 : vector<1x128xf32> to vector<8x128xf32>
    %23 = arith.mulf %21, %22 : vector<8x128xf32>
    %24 = vector.broadcast %3 : vector<1x128xf32> to vector<8x128xf32>
    %25 = arith.addf %23, %24 : vector<8x128xf32>
    %26 = arith.index_cast %arg0 : i32 to index
    %27 = memref.load %arg1[%26] : memref<2xi32, #tpu.memory_space<smem>>
    %28 = tpu.iota {dimensions = array<i32: 0>} : vector<8x1xi32>
    %29 = vector.broadcast %27 : i32 to vector<8x1xi32>
    %30 = arith.cmpi slt, %28, %29 : vector<8x1xi32>
    %31 = tpu.iota {dimensions = array<i32: 1>} : vector<1x8xi32>
    %32 = vector.broadcast %27 : i32 to vector<1x8xi32>
    %33 = arith.cmpi slt, %31, %32 : vector<1x8xi32>
    %34 = vector.broadcast %30 : vector<8x1xi1> to vector<8x8xi1>
    %35 = vector.broadcast %33 : vector<1x8xi1> to vector<8x8xi1>
    %36 = arith.andi %34, %35 : vector<8x8xi1>
    %c0_10 = arith.constant 0 : index
    %c0_11 = arith.constant 0 : index
    %37 = vector.load %arg6[%c0_10, %c0_11] : memref<128x384xf32, #tpu.memory_space<vmem>>, vector<128x384xf32>
    %cst_12 = arith.constant dense<0.000000e+00> : vector<8x384xf32>
    %38 = tpu.matmul %25, %37, %cst_12 {dimension_numbers = #tpu.dot_dimension_numbers<[1], [0], [0], [1], [0, 0, 1, 1], [], []>} : vector<8x128xf32>, vector<128x384xf32>, vector<8x384xf32> -> vector<8x384xf32>
    %39 = vector.extract_strided_slice %38 {offsets = [0, 0], sizes = [8, 32], strides = [1, 1]} : vector<8x384xf32> to vector<8x32xf32>
    %40 = vector.extract_strided_slice %38 {offsets = [0, 128], sizes = [8, 32], strides = [1, 1]} : vector<8x384xf32> to vector<8x32xf32>
    %41 = vector.extract_strided_slice %38 {offsets = [0, 256], sizes = [8, 32], strides = [1, 1]} : vector<8x384xf32> to vector<8x32xf32>
    %cst_13 = arith.constant dense<0.000000e+00> : vector<8x8xf32>
    %42 = tpu.matmul %39, %40, %cst_13 {dimension_numbers = #tpu.dot_dimension_numbers<[1], [1], [0], [0], [0, 0, 1, 0], [], []>} : vector<8x32xf32>, vector<8x32xf32>, vector<8x8xf32> -> vector<8x8xf32>
    %cst_14 = arith.constant 0.176776692 : f32
    %43 = vector.broadcast %cst_14 : f32 to vector<8x8xf32>
    %44 = arith.mulf %42, %43 : vector<8x8xf32>
    %c0_15 = arith.constant 0 : index
    %c0_16 = arith.constant 0 : index
    %c0_17 = arith.constant 0 : index
    %45 = vector.load %arg3[%c0_15, %c0_16, %c0_17] : memref<4x8x8xf32, #tpu.memory_space<vmem>>, vector<1x8x8xf32>
    %46 = vector.shape_cast %45 : vector<1x8x8xf32> to vector<8x8xf32>
    %47 = arith.addf %44, %46 : vector<8x8xf32>
    %cst_18 = arith.constant -3.40282347E+38 : f32
    %48 = vector.broadcast %cst_18 : f32 to vector<8x8xf32>
    %49 = arith.select %36, %47, %48 : vector<8x8xi1>, vector<8x8xf32>
    %cst_19 = arith.constant dense<0xFF800000> : vector<8xf32>
    %50 = vector.multi_reduction <maximumf>, %49, %cst_19 [1] : vector<8x8xf32> to vector<8xf32>
    %51 = vector.shape_cast %50 : vector<8xf32> to vector<8x1xf32>
    %52 = vector.broadcast %51 : vector<8x1xf32> to vector<8x8xf32>
    %53 = arith.subf %49, %52 : vector<8x8xf32>
    %54 = math.exp %53 : vector<8x8xf32>
    %cst_20 = arith.constant dense<0.000000e+00> : vector<8xf32>
    %55 = vector.multi_reduction <add>, %54, %cst_20 [1] : vector<8x8xf32> to vector<8xf32>
    %56 = vector.shape_cast %55 : vector<8xf32> to vector<8x1xf32>
    %57 = tpu.reciprocal %56 {approx = true} : vector<8x1xf32> -> vector<8x1xf32>
    %58 = vector.broadcast %57 : vector<8x1xf32> to vector<8x8xf32>
    %59 = arith.mulf %54, %58 : vector<8x8xf32>
    %cst_21 = arith.constant dense<0.000000e+00> : vector<8x32xf32>
    %60 = tpu.matmul %59, %41, %cst_21 {dimension_numbers = #tpu.dot_dimension_numbers<[1], [0], [0], [1], [0, 0, 1, 1], [], []>} : vector<8x8xf32>, vector<8x32xf32>, vector<8x32xf32> -> vector<8x32xf32>
    %61 = vector.extract_strided_slice %38 {offsets = [0, 32], sizes = [8, 32], strides = [1, 1]} : vector<8x384xf32> to vector<8x32xf32>
    %62 = vector.extract_strided_slice %38 {offsets = [0, 160], sizes = [8, 32], strides = [1, 1]} : vector<8x384xf32> to vector<8x32xf32>
    %63 = vector.extract_strided_slice %38 {offsets = [0, 288], sizes = [8, 32], strides = [1, 1]} : vector<8x384xf32> to vector<8x32xf32>
    %cst_22 = arith.constant dense<0.000000e+00> : vector<8x8xf32>
    %64 = tpu.matmul %61, %62, %cst_22 {dimension_numbers = #tpu.dot_dimension_numbers<[1], [1], [0], [0], [0, 0, 1, 0], [], []>} : vector<8x32xf32>, vector<8x32xf32>, vector<8x8xf32> -> vector<8x8xf32>
    %cst_23 = arith.constant 0.176776692 : f32
    %65 = vector.broadcast %cst_23 : f32 to vector<8x8xf32>
    %66 = arith.mulf %64, %65 : vector<8x8xf32>
    %c1 = arith.constant 1 : index
    %c0_24 = arith.constant 0 : index
    %c0_25 = arith.constant 0 : index
    %67 = vector.load %arg3[%c1, %c0_24, %c0_25] : memref<4x8x8xf32, #tpu.memory_space<vmem>>, vector<1x8x8xf32>
    %68 = vector.shape_cast %67 : vector<1x8x8xf32> to vector<8x8xf32>
    %69 = arith.addf %66, %68 : vector<8x8xf32>
    %cst_26 = arith.constant -3.40282347E+38 : f32
    %70 = vector.broadcast %cst_26 : f32 to vector<8x8xf32>
    %71 = arith.select %36, %69, %70 : vector<8x8xi1>, vector<8x8xf32>
    %cst_27 = arith.constant dense<0xFF800000> : vector<8xf32>
    %72 = vector.multi_reduction <maximumf>, %71, %cst_27 [1] : vector<8x8xf32> to vector<8xf32>
    %73 = vector.shape_cast %72 : vector<8xf32> to vector<8x1xf32>
    %74 = vector.broadcast %73 : vector<8x1xf32> to vector<8x8xf32>
    %75 = arith.subf %71, %74 : vector<8x8xf32>
    %76 = math.exp %75 : vector<8x8xf32>
    %cst_28 = arith.constant dense<0.000000e+00> : vector<8xf32>
    %77 = vector.multi_reduction <add>, %76, %cst_28 [1] : vector<8x8xf32> to vector<8xf32>
    %78 = vector.shape_cast %77 : vector<8xf32> to vector<8x1xf32>
    %79 = tpu.reciprocal %78 {approx = true} : vector<8x1xf32> -> vector<8x1xf32>
    %80 = vector.broadcast %79 : vector<8x1xf32> to vector<8x8xf32>
    %81 = arith.mulf %76, %80 : vector<8x8xf32>
    %cst_29 = arith.constant dense<0.000000e+00> : vector<8x32xf32>
    %82 = tpu.matmul %81, %63, %cst_29 {dimension_numbers = #tpu.dot_dimension_numbers<[1], [0], [0], [1], [0, 0, 1, 1], [], []>} : vector<8x8xf32>, vector<8x32xf32>, vector<8x32xf32> -> vector<8x32xf32>
    %83 = vector.extract_strided_slice %38 {offsets = [0, 64], sizes = [8, 32], strides = [1, 1]} : vector<8x384xf32> to vector<8x32xf32>
    %84 = vector.extract_strided_slice %38 {offsets = [0, 192], sizes = [8, 32], strides = [1, 1]} : vector<8x384xf32> to vector<8x32xf32>
    %85 = vector.extract_strided_slice %38 {offsets = [0, 320], sizes = [8, 32], strides = [1, 1]} : vector<8x384xf32> to vector<8x32xf32>
    %cst_30 = arith.constant dense<0.000000e+00> : vector<8x8xf32>
    %86 = tpu.matmul %83, %84, %cst_30 {dimension_numbers = #tpu.dot_dimension_numbers<[1], [1], [0], [0], [0, 0, 1, 0], [], []>} : vector<8x32xf32>, vector<8x32xf32>, vector<8x8xf32> -> vector<8x8xf32>
    %cst_31 = arith.constant 0.176776692 : f32
    %87 = vector.broadcast %cst_31 : f32 to vector<8x8xf32>
    %88 = arith.mulf %86, %87 : vector<8x8xf32>
    %c2 = arith.constant 2 : index
    %c0_32 = arith.constant 0 : index
    %c0_33 = arith.constant 0 : index
    %89 = vector.load %arg3[%c2, %c0_32, %c0_33] : memref<4x8x8xf32, #tpu.memory_space<vmem>>, vector<1x8x8xf32>
    %90 = vector.shape_cast %89 : vector<1x8x8xf32> to vector<8x8xf32>
    %91 = arith.addf %88, %90 : vector<8x8xf32>
    %cst_34 = arith.constant -3.40282347E+38 : f32
    %92 = vector.broadcast %cst_34 : f32 to vector<8x8xf32>
    %93 = arith.select %36, %91, %92 : vector<8x8xi1>, vector<8x8xf32>
    %cst_35 = arith.constant dense<0xFF800000> : vector<8xf32>
    %94 = vector.multi_reduction <maximumf>, %93, %cst_35 [1] : vector<8x8xf32> to vector<8xf32>
    %95 = vector.shape_cast %94 : vector<8xf32> to vector<8x1xf32>
    %96 = vector.broadcast %95 : vector<8x1xf32> to vector<8x8xf32>
    %97 = arith.subf %93, %96 : vector<8x8xf32>
    %98 = math.exp %97 : vector<8x8xf32>
    %cst_36 = arith.constant dense<0.000000e+00> : vector<8xf32>
    %99 = vector.multi_reduction <add>, %98, %cst_36 [1] : vector<8x8xf32> to vector<8xf32>
    %100 = vector.shape_cast %99 : vector<8xf32> to vector<8x1xf32>
    %101 = tpu.reciprocal %100 {approx = true} : vector<8x1xf32> -> vector<8x1xf32>
    %102 = vector.broadcast %101 : vector<8x1xf32> to vector<8x8xf32>
    %103 = arith.mulf %98, %102 : vector<8x8xf32>
    %cst_37 = arith.constant dense<0.000000e+00> : vector<8x32xf32>
    %104 = tpu.matmul %103, %85, %cst_37 {dimension_numbers = #tpu.dot_dimension_numbers<[1], [0], [0], [1], [0, 0, 1, 1], [], []>} : vector<8x8xf32>, vector<8x32xf32>, vector<8x32xf32> -> vector<8x32xf32>
    %105 = vector.extract_strided_slice %38 {offsets = [0, 96], sizes = [8, 32], strides = [1, 1]} : vector<8x384xf32> to vector<8x32xf32>
    %106 = vector.extract_strided_slice %38 {offsets = [0, 224], sizes = [8, 32], strides = [1, 1]} : vector<8x384xf32> to vector<8x32xf32>
    %107 = vector.extract_strided_slice %38 {offsets = [0, 352], sizes = [8, 32], strides = [1, 1]} : vector<8x384xf32> to vector<8x32xf32>
    %cst_38 = arith.constant dense<0.000000e+00> : vector<8x8xf32>
    %108 = tpu.matmul %105, %106, %cst_38 {dimension_numbers = #tpu.dot_dimension_numbers<[1], [1], [0], [0], [0, 0, 1, 0], [], []>} : vector<8x32xf32>, vector<8x32xf32>, vector<8x8xf32> -> vector<8x8xf32>
    %cst_39 = arith.constant 0.176776692 : f32
    %109 = vector.broadcast %cst_39 : f32 to vector<8x8xf32>
    %110 = arith.mulf %108, %109 : vector<8x8xf32>
    %c3 = arith.constant 3 : index
    %c0_40 = arith.constant 0 : index
    %c0_41 = arith.constant 0 : index
    %111 = vector.load %arg3[%c3, %c0_40, %c0_41] : memref<4x8x8xf32, #tpu.memory_space<vmem>>, vector<1x8x8xf32>
    %112 = vector.shape_cast %111 : vector<1x8x8xf32> to vector<8x8xf32>
    %113 = arith.addf %110, %112 : vector<8x8xf32>
    %cst_42 = arith.constant -3.40282347E+38 : f32
    %114 = vector.broadcast %cst_42 : f32 to vector<8x8xf32>
    %115 = arith.select %36, %113, %114 : vector<8x8xi1>, vector<8x8xf32>
    %cst_43 = arith.constant dense<0xFF800000> : vector<8xf32>
    %116 = vector.multi_reduction <maximumf>, %115, %cst_43 [1] : vector<8x8xf32> to vector<8xf32>
    %117 = vector.shape_cast %116 : vector<8xf32> to vector<8x1xf32>
    %118 = vector.broadcast %117 : vector<8x1xf32> to vector<8x8xf32>
    %119 = arith.subf %115, %118 : vector<8x8xf32>
    %120 = math.exp %119 : vector<8x8xf32>
    %cst_44 = arith.constant dense<0.000000e+00> : vector<8xf32>
    %121 = vector.multi_reduction <add>, %120, %cst_44 [1] : vector<8x8xf32> to vector<8xf32>
    %122 = vector.shape_cast %121 : vector<8xf32> to vector<8x1xf32>
    %123 = tpu.reciprocal %122 {approx = true} : vector<8x1xf32> -> vector<8x1xf32>
    %124 = vector.broadcast %123 : vector<8x1xf32> to vector<8x8xf32>
    %125 = arith.mulf %120, %124 : vector<8x8xf32>
    %cst_45 = arith.constant dense<0.000000e+00> : vector<8x32xf32>
    %126 = tpu.matmul %125, %107, %cst_45 {dimension_numbers = #tpu.dot_dimension_numbers<[1], [0], [0], [1], [0, 0, 1, 1], [], []>} : vector<8x8xf32>, vector<8x32xf32>, vector<8x32xf32> -> vector<8x32xf32>
    %127 = tpu.concatenate %60, %82, %104, %126 in 1 : vector<8x32xf32>, vector<8x32xf32>, vector<8x32xf32>, vector<8x32xf32> -> vector<8x128xf32>
    %c0_46 = arith.constant 0 : index
    %c0_47 = arith.constant 0 : index
    %128 = vector.load %arg7[%c0_46, %c0_47] : memref<128x128xf32, #tpu.memory_space<vmem>>, vector<128x128xf32>
    %cst_48 = arith.constant dense<0.000000e+00> : vector<8x128xf32>
    %129 = tpu.matmul %127, %128, %cst_48 {dimension_numbers = #tpu.dot_dimension_numbers<[1], [0], [0], [1], [0, 0, 1, 1], [], []>} : vector<8x128xf32>, vector<128x128xf32>, vector<8x128xf32> -> vector<8x128xf32>
    %130 = arith.addf %1, %129 : vector<8x128xf32>
    %c0_49 = arith.constant 0 : index
    %c0_50 = arith.constant 0 : index
    %131 = vector.load %arg8[%c0_49, %c0_50] : memref<1x128xf32, #tpu.memory_space<vmem>>, vector<1x128xf32>
    %132 = vector.broadcast %131 : vector<1x128xf32> to vector<8x128xf32>
    %133 = arith.addf %130, %132 : vector<8x128xf32>
    %c0_51 = arith.constant 0 : index
    %c0_52 = arith.constant 0 : index
    %134 = vector.load %arg9[%c0_51, %c0_52] : memref<1x128xf32, #tpu.memory_space<vmem>>, vector<1x128xf32>
    %c0_53 = arith.constant 0 : index
    %c0_54 = arith.constant 0 : index
    %135 = vector.load %arg10[%c0_53, %c0_54] : memref<1x128xf32, #tpu.memory_space<vmem>>, vector<1x128xf32>
    %cst_55 = arith.constant dense<0.000000e+00> : vector<8xf32>
    %136 = vector.multi_reduction <add>, %133, %cst_55 [1] : vector<8x128xf32> to vector<8xf32>
    %137 = vector.shape_cast %136 : vector<8xf32> to vector<8x1xf32>
    %cst_56 = arith.constant 1.280000e+02 : f32
    %138 = vector.broadcast %cst_56 : f32 to vector<8x1xf32>
    %139 = arith.divf %137, %138 : vector<8x1xf32>
    %140 = vector.broadcast %139 : vector<8x1xf32> to vector<8x128xf32>
    %141 = arith.subf %133, %140 : vector<8x128xf32>
    %142 = arith.mulf %141, %141 : vector<8x128xf32>
    %cst_57 = arith.constant dense<0.000000e+00> : vector<8xf32>
    %143 = vector.multi_reduction <add>, %142, %cst_57 [1] : vector<8x128xf32> to vector<8xf32>
    %144 = vector.shape_cast %143 : vector<8xf32> to vector<8x1xf32>
    %cst_58 = arith.constant 1.280000e+02 : f32
    %145 = vector.broadcast %cst_58 : f32 to vector<8x1xf32>
    %146 = arith.divf %144, %145 : vector<8x1xf32>
    %147 = vector.broadcast %139 : vector<8x1xf32> to vector<8x128xf32>
    %148 = arith.subf %133, %147 : vector<8x128xf32>
    %cst_59 = arith.constant 9.99999974E-6 : f32
    %149 = vector.broadcast %cst_59 : f32 to vector<8x1xf32>
    %150 = arith.addf %146, %149 : vector<8x1xf32>
    %151 = math.rsqrt %150 : vector<8x1xf32>
    %152 = vector.broadcast %151 : vector<8x1xf32> to vector<8x128xf32>
    %153 = arith.mulf %148, %152 : vector<8x128xf32>
    %154 = vector.broadcast %134 : vector<1x128xf32> to vector<8x128xf32>
    %155 = arith.mulf %153, %154 : vector<8x128xf32>
    %156 = vector.broadcast %135 : vector<1x128xf32> to vector<8x128xf32>
    %157 = arith.addf %155, %156 : vector<8x128xf32>
    %c0_60 = arith.constant 0 : index
    %c0_61 = arith.constant 0 : index
    %158 = vector.load %arg11[%c0_60, %c0_61] : memref<128x512xf32, #tpu.memory_space<vmem>>, vector<128x512xf32>
    %cst_62 = arith.constant dense<0.000000e+00> : vector<8x512xf32>
    %159 = tpu.matmul %157, %158, %cst_62 {dimension_numbers = #tpu.dot_dimension_numbers<[1], [0], [0], [1], [0, 0, 1, 1], [], []>} : vector<8x128xf32>, vector<128x512xf32>, vector<8x512xf32> -> vector<8x512xf32>
    %c0_63 = arith.constant 0 : index
    %c0_64 = arith.constant 0 : index
    %160 = vector.load %arg12[%c0_63, %c0_64] : memref<1x512xf32, #tpu.memory_space<vmem>>, vector<1x512xf32>
    %161 = vector.broadcast %160 : vector<1x512xf32> to vector<8x512xf32>
    %162 = arith.addf %159, %161 : vector<8x512xf32>
    %cst_65 = arith.constant 5.000000e-01 : f32
    %163 = vector.broadcast %cst_65 : f32 to vector<8x512xf32>
    %164 = arith.mulf %163, %162 : vector<8x512xf32>
    %cst_66 = arith.constant 0.707106769 : f32
    %165 = vector.broadcast %cst_66 : f32 to vector<8x512xf32>
    %166 = arith.mulf %162, %165 : vector<8x512xf32>
    %167 = math.absf %166 : vector<8x512xf32>
    %cst_67 = arith.constant 0.327591091 : f32
    %168 = vector.broadcast %cst_67 : f32 to vector<8x512xf32>
    %169 = arith.mulf %168, %167 : vector<8x512xf32>
    %cst_68 = arith.constant 1.000000e+00 : f32
    %170 = vector.broadcast %cst_68 : f32 to vector<8x512xf32>
    %171 = arith.addf %170, %169 : vector<8x512xf32>
    %cst_69 = arith.constant 1.000000e+00 : f32
    %172 = vector.broadcast %cst_69 : f32 to vector<8x512xf32>
    %173 = arith.divf %172, %171 : vector<8x512xf32>
    %cst_70 = arith.constant 1.06140542 : f32
    %174 = vector.broadcast %cst_70 : f32 to vector<8x512xf32>
    %175 = arith.mulf %174, %173 : vector<8x512xf32>
    %cst_71 = arith.constant -1.45315206 : f32
    %176 = vector.broadcast %cst_71 : f32 to vector<8x512xf32>
    %177 = arith.addf %175, %176 : vector<8x512xf32>
    %178 = arith.mulf %177, %173 : vector<8x512xf32>
    %cst_72 = arith.constant 1.42141378 : f32
    %179 = vector.broadcast %cst_72 : f32 to vector<8x512xf32>
    %180 = arith.addf %178, %179 : vector<8x512xf32>
    %181 = arith.mulf %180, %173 : vector<8x512xf32>
    %cst_73 = arith.constant -0.284496725 : f32
    %182 = vector.broadcast %cst_73 : f32 to vector<8x512xf32>
    %183 = arith.addf %181, %182 : vector<8x512xf32>
    %184 = arith.mulf %183, %173 : vector<8x512xf32>
    %cst_74 = arith.constant 0.254829586 : f32
    %185 = vector.broadcast %cst_74 : f32 to vector<8x512xf32>
    %186 = arith.addf %184, %185 : vector<8x512xf32>
    %187 = arith.mulf %186, %173 : vector<8x512xf32>
    %cst_75 = arith.constant 0.000000e+00 : f32
    %188 = vector.broadcast %cst_75 : f32 to vector<8x512xf32>
    %189 = arith.subf %188, %167 : vector<8x512xf32>
    %190 = arith.mulf %189, %167 : vector<8x512xf32>
    %191 = math.exp %190 : vector<8x512xf32>
    %192 = arith.mulf %187, %191 : vector<8x512xf32>
    %cst_76 = arith.constant 1.000000e+00 : f32
    %193 = vector.broadcast %cst_76 : f32 to vector<8x512xf32>
    %194 = arith.subf %193, %192 : vector<8x512xf32>
    %cst_77 = arith.constant 0.000000e+00 : f32
    %195 = vector.broadcast %cst_77 : f32 to vector<8x512xf32>
    %196 = arith.cmpf olt, %166, %195 : vector<8x512xf32>
    %cst_78 = arith.constant 0.000000e+00 : f32
    %197 = vector.broadcast %cst_78 : f32 to vector<8x512xf32>
    %198 = arith.subf %197, %194 : vector<8x512xf32>
    %199 = arith.select %196, %198, %194 : vector<8x512xi1>, vector<8x512xf32>
    %cst_79 = arith.constant 1.000000e+00 : f32
    %200 = vector.broadcast %cst_79 : f32 to vector<8x512xf32>
    %201 = arith.addf %200, %199 : vector<8x512xf32>
    %202 = arith.mulf %164, %201 : vector<8x512xf32>
    %c0_80 = arith.constant 0 : index
    %c0_81 = arith.constant 0 : index
    %203 = vector.load %arg13[%c0_80, %c0_81] : memref<512x128xf32, #tpu.memory_space<vmem>>, vector<512x128xf32>
    %cst_82 = arith.constant dense<0.000000e+00> : vector<8x128xf32>
    %204 = tpu.matmul %202, %203, %cst_82 {dimension_numbers = #tpu.dot_dimension_numbers<[1], [0], [0], [1], [0, 0, 1, 1], [], []>} : vector<8x512xf32>, vector<512x128xf32>, vector<8x128xf32> -> vector<8x128xf32>
    %205 = arith.addf %133, %204 : vector<8x128xf32>
    %c0_83 = arith.constant 0 : index
    %c0_84 = arith.constant 0 : index
    %206 = vector.load %arg14[%c0_83, %c0_84] : memref<1x128xf32, #tpu.memory_space<vmem>>, vector<1x128xf32>
    %207 = vector.broadcast %206 : vector<1x128xf32> to vector<8x128xf32>
    %208 = arith.addf %205, %207 : vector<8x128xf32>
    %c0_85 = arith.constant 0 : index
    %c0_86 = arith.constant 0 : index
    %c0_87 = arith.constant 0 : index
    %209 = vector.load %arg15[%c0_85, %c0_86, %c0_87] : memref<1x8x128xf32, #tpu.memory_space<vmem>>, vector<1x8x128xf32>
    %210 = vector.shape_cast %209 : vector<1x8x128xf32> to vector<8x128xf32>
    %211 = vector.shape_cast %208 : vector<8x128xf32> to vector<1x8x128xf32>
    tpu.vector_store %arg15[%c0_85, %c0_86, %c0_87], %211 {strides = array<i32>} : memref<1x8x128xf32, #tpu.memory_space<vmem>>, vector<1x8x128xf32>,
    return
  }
  func.func @transform_0(%arg0: i32, %arg1: memref<2xi32, #tpu.memory_space<smem>>) -> (i32, i32, i32) {
    %c0_i32 = arith.constant 0 : i32
    %c0_i32_0 = arith.constant 0 : i32
    %c0_i32_1 = arith.constant 0 : i32
    return %arg0, %c0_i32, %c0_i32_0 : i32, i32, i32
  }
  func.func @transform_1(%arg0: i32, %arg1: memref<2xi32, #tpu.memory_space<smem>>) -> (i32, i32, i32) {
    %c0_i32 = arith.constant 0 : i32
    %c0_i32_0 = arith.constant 0 : i32
    %c0_i32_1 = arith.constant 0 : i32
    %c0_i32_2 = arith.constant 0 : i32
    return %c0_i32, %c0_i32_0, %c0_i32_1 : i32, i32, i32
  }
  func.func @transform_2(%arg0: i32, %arg1: memref<2xi32, #tpu.memory_space<smem>>) -> (i32, i32) {
    %c0_i32 = arith.constant 0 : i32
    %c0_i32_0 = arith.constant 0 : i32
    %c0_i32_1 = arith.constant 0 : i32
    return %c0_i32, %c0_i32_0 : i32, i32
  }
  func.func @transform_3(%arg0: i32, %arg1: memref<2xi32, #tpu.memory_space<smem>>) -> (i32, i32) {
    %c0_i32 = arith.constant 0 : i32
    %c0_i32_0 = arith.constant 0 : i32
    %c0_i32_1 = arith.constant 0 : i32
    return %c0_i32, %c0_i32_0 : i32, i32
  }
  func.func @transform_4(%arg0: i32, %arg1: memref<2xi32, #tpu.memory_space<smem>>) -> (i32, i32) {
    %c0_i32 = arith.constant 0 : i32
    %c0_i32_0 = arith.constant 0 : i32
    %c0_i32_1 = arith.constant 0 : i32
    return %c0_i32, %c0_i32_0 : i32, i32
  }
  func.func @transform_5(%arg0: i32, %arg1: memref<2xi32, #tpu.memory_space<smem>>) -> (i32, i32) {
    %c0_i32 = arith.constant 0 : i32
    %c0_i32_0 = arith.constant 0 : i32
    %c0_i32_1 = arith.constant 0 : i32
    return %c0_i32, %c0_i32_0 : i32, i32
  }
  func.func @transform_6(%arg0: i32, %arg1: memref<2xi32, #tpu.memory_space<smem>>) -> (i32, i32) {
    %c0_i32 = arith.constant 0 : i32
    %c0_i32_0 = arith.constant 0 : i32
    %c0_i32_1 = arith.constant 0 : i32
    return %c0_i32, %c0_i32_0 : i32, i32
  }
  func.func @transform_7(%arg0: i32, %arg1: memref<2xi32, #tpu.memory_space<smem>>) -> (i32, i32) {
    %c0_i32 = arith.constant 0 : i32
    %c0_i32_0 = arith.constant 0 : i32
    %c0_i32_1 = arith.constant 0 : i32
    return %c0_i32, %c0_i32_0 : i32, i32
  }
  func.func @transform_8(%arg0: i32, %arg1: memref<2xi32, #tpu.memory_space<smem>>) -> (i32, i32) {
    %c0_i32 = arith.constant 0 : i32
    %c0_i32_0 = arith.constant 0 : i32
    %c0_i32_1 = arith.constant 0 : i32
    return %c0_i32, %c0_i32_0 : i32, i32
  }
  func.func @transform_9(%arg0: i32, %arg1: memref<2xi32, #tpu.memory_space<smem>>) -> (i32, i32) {
    %c0_i32 = arith.constant 0 : i32
    %c0_i32_0 = arith.constant 0 : i32
    %c0_i32_1 = arith.constant 0 : i32
    return %c0_i32, %c0_i32_0 : i32, i32
  }
  func.func @transform_10(%arg0: i32, %arg1: memref<2xi32, #tpu.memory_space<smem>>) -> (i32, i32) {
    %c0_i32 = arith.constant 0 : i32
    %c0_i32_0 = arith.constant 0 : i32
    %c0_i32_1 = arith.constant 0 : i32
    return %c0_i32, %c0_i32_0 : i32, i32
  }
  func.func @transform_11(%arg0: i32, %arg1: memref<2xi32, #tpu.memory_space<smem>>) -> (i32, i32) {
    %c0_i32 = arith.constant 0 : i32
    %c0_i32_0 = arith.constant 0 : i32
    %c0_i32_1 = arith.constant 0 : i32
    return %c0_i32, %c0_i32_0 : i32, i32
  }
  func.func @transform_12(%arg0: i32, %arg1: memref<2xi32, #tpu.memory_space<smem>>) -> (i32, i32) {
    %c0_i32 = arith.constant 0 : i32
    %c0_i32_0 = arith.constant 0 : i32
    %c0_i32_1 = arith.constant 0 : i32
    return %c0_i32, %c0_i32_0 : i32, i32
  }
  func.func @transform_13(%arg0: i32, %arg1: memref<2xi32, #tpu.memory_space<smem>>) -> (i32, i32, i32) {
    %c0_i32 = arith.constant 0 : i32
    %c0_i32_0 = arith.constant 0 : i32
    %c0_i32_1 = arith.constant 0 : i32
    return %arg0, %c0_i32, %c0_i32_0 : i32, i32, i32
  }
}

module attributes {stable_mosaic.version = 11 : i64} {
  func.func @_head_kernel(%arg0: i32, %arg1: memref<16x128xf32, #tpu.memory_space<vmem>>, %arg2: memref<1x128xf32, #tpu.memory_space<vmem>>, %arg3: memref<1x128xf32, #tpu.memory_space<vmem>>, %arg4: memref<128x32xf32, #tpu.memory_space<vmem>>, %arg5: memref<1x32xf32, #tpu.memory_space<vmem>>, %arg6: memref<128x64xf32, #tpu.memory_space<vmem>>, %arg7: memref<1x64xf32, #tpu.memory_space<vmem>>, %arg8: memref<64x32xf32, #tpu.memory_space<vmem>>, %arg9: memref<1x32xf32, #tpu.memory_space<vmem>>, %arg10: memref<32x2xf32, #tpu.memory_space<vmem>>, %arg11: memref<1x2xf32, #tpu.memory_space<vmem>>, %arg12: memref<16x32xf32, #tpu.memory_space<vmem>>, %arg13: memref<16x2xf32, #tpu.memory_space<vmem>>) attributes {dimension_semantics = [#tpu.dimension_semantics<parallel>], iteration_bounds = array<i64: 1>, scalar_prefetch = 0 : i64, scratch_operands = 0 : i64, tpu.core_type = #tpu.core_type<tc>, window_params = [{transform_indices = @transform_0, window_bounds = array<i64: 16, 128>}, {pipeline_mode = #tpu.pipeline_mode<synchronous>, transform_indices = @transform_1, window_bounds = array<i64: 1, 128>}, {pipeline_mode = #tpu.pipeline_mode<synchronous>, transform_indices = @transform_2, window_bounds = array<i64: 1, 128>}, {pipeline_mode = #tpu.pipeline_mode<synchronous>, transform_indices = @transform_3, window_bounds = array<i64: 128, 32>}, {pipeline_mode = #tpu.pipeline_mode<synchronous>, transform_indices = @transform_4, window_bounds = array<i64: 1, 32>}, {pipeline_mode = #tpu.pipeline_mode<synchronous>, transform_indices = @transform_5, window_bounds = array<i64: 128, 64>}, {pipeline_mode = #tpu.pipeline_mode<synchronous>, transform_indices = @transform_6, window_bounds = array<i64: 1, 64>}, {pipeline_mode = #tpu.pipeline_mode<synchronous>, transform_indices = @transform_7, window_bounds = array<i64: 64, 32>}, {pipeline_mode = #tpu.pipeline_mode<synchronous>, transform_indices = @transform_8, window_bounds = array<i64: 1, 32>}, {pipeline_mode = #tpu.pipeline_mode<synchronous>, transform_indices = @transform_9, window_bounds = array<i64: 32, 2>}, {pipeline_mode = #tpu.pipeline_mode<synchronous>, transform_indices = @transform_10, window_bounds = array<i64: 1, 2>}, {transform_indices = @transform_11, window_bounds = array<i64: 16, 32>}, {transform_indices = @transform_12, window_bounds = array<i64: 16, 2>}]} {
    %c0 = arith.constant 0 : index
    %c0_0 = arith.constant 0 : index
    %0 = vector.load %arg1[%c0, %c0_0] : memref<16x128xf32, #tpu.memory_space<vmem>>, vector<16x128xf32>
    %c0_1 = arith.constant 0 : index
    %c0_2 = arith.constant 0 : index
    %1 = vector.load %arg2[%c0_1, %c0_2] : memref<1x128xf32, #tpu.memory_space<vmem>>, vector<1x128xf32>
    %c0_3 = arith.constant 0 : index
    %c0_4 = arith.constant 0 : index
    %2 = vector.load %arg3[%c0_3, %c0_4] : memref<1x128xf32, #tpu.memory_space<vmem>>, vector<1x128xf32>
    %cst = arith.constant dense<0.000000e+00> : vector<16xf32>
    %3 = vector.multi_reduction <add>, %0, %cst [1] : vector<16x128xf32> to vector<16xf32>
    %4 = vector.shape_cast %3 : vector<16xf32> to vector<16x1xf32>
    %cst_5 = arith.constant 1.280000e+02 : f32
    %5 = vector.broadcast %cst_5 : f32 to vector<16x1xf32>
    %6 = arith.divf %4, %5 : vector<16x1xf32>
    %7 = vector.broadcast %6 : vector<16x1xf32> to vector<16x128xf32>
    %8 = arith.subf %0, %7 : vector<16x128xf32>
    %9 = arith.mulf %8, %8 : vector<16x128xf32>
    %cst_6 = arith.constant dense<0.000000e+00> : vector<16xf32>
    %10 = vector.multi_reduction <add>, %9, %cst_6 [1] : vector<16x128xf32> to vector<16xf32>
    %11 = vector.shape_cast %10 : vector<16xf32> to vector<16x1xf32>
    %cst_7 = arith.constant 1.280000e+02 : f32
    %12 = vector.broadcast %cst_7 : f32 to vector<16x1xf32>
    %13 = arith.divf %11, %12 : vector<16x1xf32>
    %14 = vector.broadcast %6 : vector<16x1xf32> to vector<16x128xf32>
    %15 = arith.subf %0, %14 : vector<16x128xf32>
    %cst_8 = arith.constant 9.99999974E-6 : f32
    %16 = vector.broadcast %cst_8 : f32 to vector<16x1xf32>
    %17 = arith.addf %13, %16 : vector<16x1xf32>
    %18 = math.rsqrt %17 : vector<16x1xf32>
    %19 = vector.broadcast %18 : vector<16x1xf32> to vector<16x128xf32>
    %20 = arith.mulf %15, %19 : vector<16x128xf32>
    %21 = vector.broadcast %1 : vector<1x128xf32> to vector<16x128xf32>
    %22 = arith.mulf %20, %21 : vector<16x128xf32>
    %23 = vector.broadcast %2 : vector<1x128xf32> to vector<16x128xf32>
    %24 = arith.addf %22, %23 : vector<16x128xf32>
    %c0_9 = arith.constant 0 : index
    %c0_10 = arith.constant 0 : index
    %25 = vector.load %arg4[%c0_9, %c0_10] : memref<128x32xf32, #tpu.memory_space<vmem>>, vector<128x32xf32>
    %cst_11 = arith.constant dense<0.000000e+00> : vector<16x32xf32>
    %26 = tpu.matmul %24, %25, %cst_11 {dimension_numbers = #tpu.dot_dimension_numbers<[1], [0], [0], [1], [0, 0, 1, 1], [], []>} : vector<16x128xf32>, vector<128x32xf32>, vector<16x32xf32> -> vector<16x32xf32>
    %c0_12 = arith.constant 0 : index
    %c0_13 = arith.constant 0 : index
    %27 = vector.load %arg5[%c0_12, %c0_13] : memref<1x32xf32, #tpu.memory_space<vmem>>, vector<1x32xf32>
    %28 = vector.broadcast %27 : vector<1x32xf32> to vector<16x32xf32>
    %29 = arith.addf %26, %28 : vector<16x32xf32>
    %c0_14 = arith.constant 0 : index
    %c0_15 = arith.constant 0 : index
    %30 = vector.load %arg12[%c0_14, %c0_15] : memref<16x32xf32, #tpu.memory_space<vmem>>, vector<16x32xf32>
    tpu.vector_store %arg12[%c0_14, %c0_15], %29 {strides = array<i32>} : memref<16x32xf32, #tpu.memory_space<vmem>>, vector<16x32xf32>,
    %c0_16 = arith.constant 0 : index
    %c0_17 = arith.constant 0 : index
    %31 = vector.load %arg6[%c0_16, %c0_17] : memref<128x64xf32, #tpu.memory_space<vmem>>, vector<128x64xf32>
    %cst_18 = arith.constant dense<0.000000e+00> : vector<16x64xf32>
    %32 = tpu.matmul %24, %31, %cst_18 {dimension_numbers = #tpu.dot_dimension_numbers<[1], [0], [0], [1], [0, 0, 1, 1], [], []>} : vector<16x128xf32>, vector<128x64xf32>, vector<16x64xf32> -> vector<16x64xf32>
    %c0_19 = arith.constant 0 : index
    %c0_20 = arith.constant 0 : index
    %33 = vector.load %arg7[%c0_19, %c0_20] : memref<1x64xf32, #tpu.memory_space<vmem>>, vector<1x64xf32>
    %34 = vector.broadcast %33 : vector<1x64xf32> to vector<16x64xf32>
    %35 = arith.addf %32, %34 : vector<16x64xf32>
    %cst_21 = arith.constant 0.000000e+00 : f32
    %36 = vector.broadcast %cst_21 : f32 to vector<16x64xf32>
    %37 = arith.maximumf %35, %36 : vector<16x64xf32>
    %c0_22 = arith.constant 0 : index
    %c0_23 = arith.constant 0 : index
    %38 = vector.load %arg8[%c0_22, %c0_23] : memref<64x32xf32, #tpu.memory_space<vmem>>, vector<64x32xf32>
    %cst_24 = arith.constant dense<0.000000e+00> : vector<16x32xf32>
    %39 = tpu.matmul %37, %38, %cst_24 {dimension_numbers = #tpu.dot_dimension_numbers<[1], [0], [0], [1], [0, 0, 1, 1], [], []>} : vector<16x64xf32>, vector<64x32xf32>, vector<16x32xf32> -> vector<16x32xf32>
    %c0_25 = arith.constant 0 : index
    %c0_26 = arith.constant 0 : index
    %40 = vector.load %arg9[%c0_25, %c0_26] : memref<1x32xf32, #tpu.memory_space<vmem>>, vector<1x32xf32>
    %41 = vector.broadcast %40 : vector<1x32xf32> to vector<16x32xf32>
    %42 = arith.addf %39, %41 : vector<16x32xf32>
    %cst_27 = arith.constant 0.000000e+00 : f32
    %43 = vector.broadcast %cst_27 : f32 to vector<16x32xf32>
    %44 = arith.maximumf %42, %43 : vector<16x32xf32>
    %c0_28 = arith.constant 0 : index
    %c0_29 = arith.constant 0 : index
    %45 = vector.load %arg10[%c0_28, %c0_29] : memref<32x2xf32, #tpu.memory_space<vmem>>, vector<32x2xf32>
    %cst_30 = arith.constant dense<0.000000e+00> : vector<16x2xf32>
    %46 = tpu.matmul %44, %45, %cst_30 {dimension_numbers = #tpu.dot_dimension_numbers<[1], [0], [0], [1], [0, 0, 1, 1], [], []>} : vector<16x32xf32>, vector<32x2xf32>, vector<16x2xf32> -> vector<16x2xf32>
    %c0_31 = arith.constant 0 : index
    %c0_32 = arith.constant 0 : index
    %47 = vector.load %arg11[%c0_31, %c0_32] : memref<1x2xf32, #tpu.memory_space<vmem>>, vector<1x2xf32>
    %48 = vector.broadcast %47 : vector<1x2xf32> to vector<16x2xf32>
    %49 = arith.addf %46, %48 : vector<16x2xf32>
    %c0_33 = arith.constant 0 : index
    %c0_34 = arith.constant 0 : index
    %50 = vector.load %arg13[%c0_33, %c0_34] : memref<16x2xf32, #tpu.memory_space<vmem>>, vector<16x2xf32>
    tpu.vector_store %arg13[%c0_33, %c0_34], %49 {strides = array<i32>} : memref<16x2xf32, #tpu.memory_space<vmem>>, vector<16x2xf32>,
    return
  }
  func.func @transform_0(%arg0: i32) -> (i32, i32) {
    %c0_i32 = arith.constant 0 : i32
    %c0_i32_0 = arith.constant 0 : i32
    return %arg0, %c0_i32 : i32, i32
  }
  func.func @transform_1(%arg0: i32) -> (i32, i32) {
    %c0_i32 = arith.constant 0 : i32
    %c0_i32_0 = arith.constant 0 : i32
    %c0_i32_1 = arith.constant 0 : i32
    return %c0_i32, %c0_i32_0 : i32, i32
  }
  func.func @transform_2(%arg0: i32) -> (i32, i32) {
    %c0_i32 = arith.constant 0 : i32
    %c0_i32_0 = arith.constant 0 : i32
    %c0_i32_1 = arith.constant 0 : i32
    return %c0_i32, %c0_i32_0 : i32, i32
  }
  func.func @transform_3(%arg0: i32) -> (i32, i32) {
    %c0_i32 = arith.constant 0 : i32
    %c0_i32_0 = arith.constant 0 : i32
    %c0_i32_1 = arith.constant 0 : i32
    return %c0_i32, %c0_i32_0 : i32, i32
  }
  func.func @transform_4(%arg0: i32) -> (i32, i32) {
    %c0_i32 = arith.constant 0 : i32
    %c0_i32_0 = arith.constant 0 : i32
    %c0_i32_1 = arith.constant 0 : i32
    return %c0_i32, %c0_i32_0 : i32, i32
  }
  func.func @transform_5(%arg0: i32) -> (i32, i32) {
    %c0_i32 = arith.constant 0 : i32
    %c0_i32_0 = arith.constant 0 : i32
    %c0_i32_1 = arith.constant 0 : i32
    return %c0_i32, %c0_i32_0 : i32, i32
  }
  func.func @transform_6(%arg0: i32) -> (i32, i32) {
    %c0_i32 = arith.constant 0 : i32
    %c0_i32_0 = arith.constant 0 : i32
    %c0_i32_1 = arith.constant 0 : i32
    return %c0_i32, %c0_i32_0 : i32, i32
  }
  func.func @transform_7(%arg0: i32) -> (i32, i32) {
    %c0_i32 = arith.constant 0 : i32
    %c0_i32_0 = arith.constant 0 : i32
    %c0_i32_1 = arith.constant 0 : i32
    return %c0_i32, %c0_i32_0 : i32, i32
  }
  func.func @transform_8(%arg0: i32) -> (i32, i32) {
    %c0_i32 = arith.constant 0 : i32
    %c0_i32_0 = arith.constant 0 : i32
    %c0_i32_1 = arith.constant 0 : i32
    return %c0_i32, %c0_i32_0 : i32, i32
  }
  func.func @transform_9(%arg0: i32) -> (i32, i32) {
    %c0_i32 = arith.constant 0 : i32
    %c0_i32_0 = arith.constant 0 : i32
    %c0_i32_1 = arith.constant 0 : i32
    return %c0_i32, %c0_i32_0 : i32, i32
  }
  func.func @transform_10(%arg0: i32) -> (i32, i32) {
    %c0_i32 = arith.constant 0 : i32
    %c0_i32_0 = arith.constant 0 : i32
    %c0_i32_1 = arith.constant 0 : i32
    return %c0_i32, %c0_i32_0 : i32, i32
  }
  func.func @transform_11(%arg0: i32) -> (i32, i32) {
    %c0_i32 = arith.constant 0 : i32
    %c0_i32_0 = arith.constant 0 : i32
    return %arg0, %c0_i32 : i32, i32
  }
  func.func @transform_12(%arg0: i32) -> (i32, i32) {
    %c0_i32 = arith.constant 0 : i32
    %c0_i32_0 = arith.constant 0 : i32
    return %arg0, %c0_i32 : i32, i32
  }
}

</mosaic_0001>

<llo_original>
// kernel: _lambda_.4
$region0: #{_lambda_.4}
  #allocation0 [shape = 'u32[]', space=smem, size = 0x4, offset = 0x4, fixed_abs, tag = 'smem constant byte address 0x4 - core index']
  #allocation1 [shape = 'u32[144,128]{1,0:T(1,128)}', space=vmem, size = 0x12000, scoped, tag = 'internal scratch']
  %s0 = inlined_call_operand.vmem [shape: f32[16,64], index: 0, kind: input, shape index: {}]
  %s1 = inlined_call_operand.vmem [shape: f32[64,128], index: 1, kind: input, shape index: {}]
  %s2 = inlined_call_operand.vmem [shape: f32[1,128], index: 2, kind: input, shape index: {}]
  %s3 = inlined_call_operand.vmem [shape: f32[16,128], index: 3, kind: output, shape index: {}]
  %s4 = sld [smem:[#allocation0]]
  $region22: #{_lambda_.4} parent=0
    _
  %s6 = ssub.s32 1, %s4
  %s7 = scalar_select 0, %s6, %s4
  // Predicated region
  $region2: #{_lambda_.4} parent=0 // pred_check
    _
  $region3: #{_lambda_.4} parent=0 // pred_check_branch
    %9 = sbr.rel (0) target = $region5
  $region4: #{_lambda_.4} parent=0 // pred_region
    _
  $region5: #{_lambda_.4} parent=0 // pred_fallthru
    _
  // Predicated region
  $region6: #{_lambda_.4} parent=0 // pred_check
    _
  $region7: #{_lambda_.4} parent=0 // pred_check_branch
    %11 = sbr.rel (0) target = $region9
  $region8: #{_lambda_.4} parent=0 // pred_region
    _
  $region9: #{_lambda_.4} parent=0 // pred_fallthru
    _
  // Predicated region
  $region10: #{_lambda_.4} parent=0 // pred_check
    _
  $region11: #{_lambda_.4} parent=0 // pred_check_branch
    %13 = sbr.rel (0) target = $region13
  $region12: #{_lambda_.4} parent=0 // pred_region
    _
  $region13: #{_lambda_.4} parent=0 // pred_fallthru
    _
  %v14 = vld [vmem:[%s0] sm:$0xff]
  %v15 = vld [vmem:[%s0 + $0x8] sm:$0xff]
  %v16 = vld [vmem:[%s1] sm:$0xff]
  %v17 = vld [vmem:[%s1 + $0x8] sm:$0xff]
  %v18 = vld [vmem:[%s1 + $0x10] sm:$0xff]
  %v19 = vld [vmem:[%s1 + $0x18] sm:$0xff]
  %v20 = vld [vmem:[%s1 + $0x20] sm:$0xff]
  %v21 = vld [vmem:[%s1 + $0x28] sm:$0xff]
  %v22 = vld [vmem:[%s1 + $0x30] sm:$0xff]
  %v23 = vld [vmem:[%s1 + $0x38] sm:$0xff]
  %v24 = vld [vmem:[%s2] sm:$0x1]
  %v26 = vlaneseq
  %v27 = vshrl.u32 %v26, 7
  %v28 = vsub.s32 0, %v27
  %v29 = vrot.slane %v24, %v28
  %vm31 = vcmask 523264
  %v33 = vsel %vm31, %v14, 0
  %v36 = vsel %vm31, %v15, 0
  %38 = vmatprep.subr.mxu0 0.0
  %39 = vmatpush1.msra.mxu0 %v16
  %40 = vmatprep.subr.mxu0 0.0
  %41 = vmatpush1.msra.mxu0 %v17
  %42 = vmatprep.subr.mxu0 0.0
  %43 = vmatpush1.msra.mxu0 %v18
  %44 = vmatprep.subr.mxu0 0.0
  %45 = vmatpush1.msra.mxu0 %v19
  %46 = vmatprep.subr.mxu0 0.0
  %47 = vmatpush1.msra.mxu0 %v20
  %48 = vmatprep.subr.mxu0 0.0
  %49 = vmatpush1.msra.mxu0 %v21
  %50 = vmatprep.subr.mxu0 0.0
  %51 = vmatpush1.msra.mxu0 %v22
  %52 = vmatprep.subr.mxu0 0.0
  %53 = vmatpush1.msra.mxu0 %v23
  %54 = vmatprep.subr.mxu0 0.0
  %55 = vmatpush1.msra.mxu0 0.0
  %56 = vmatprep.subr.mxu0 0.0
  %57 = vmatpush1.msra.mxu0 0.0
  %58 = vmatprep.subr.mxu0 0.0
  %59 = vmatpush1.msra.mxu0 0.0
  %60 = vmatprep.subr.mxu0 0.0
  %61 = vmatpush1.msra.mxu0 0.0
  %62 = vmatprep.subr.mxu0 0.0
  %63 = vmatpush1.msra.mxu0 0.0
  %64 = vmatprep.subr.mxu0 0.0
  %65 = vmatpush1.msra.mxu0 0.0
  %66 = vmatprep.subr.mxu0 0.0
  %67 = vmatpush1.msra.mxu0 0.0
  %68 = vmatprep.subr.mxu0 0.0
  %69 = vmatpush1.msra.mxu0 0.0
  %70 = vmatprep.subr.mxu0 0.0
  %71 = vmatpush1.msra.mxu0 0.0
  %72 = vmatprep.subr.mxu0 0.0
  %73 = vmatpush1.msra.mxu0 0.0
  %74 = vmatprep.subr.mxu0 0.0
  %75 = vmatpush1.msra.mxu0 0.0
  %76 = vmatprep.subr.mxu0 0.0
  %77 = vmatpush1.msra.mxu0 0.0
  %78 = vmatprep.subr.mxu0 0.0
  %79 = vmatpush1.msra.mxu0 0.0
  %80 = vmatprep.subr.mxu0 0.0
  %81 = vmatpush1.msra.mxu0 0.0
  %82 = vmatprep.subr.mxu0 0.0
  %83 = vmatpush1.msra.mxu0 0.0
  %84 = vmatprep.subr.mxu0 0.0
  %85 = vmatpush1.msra.mxu0 0.0
  %86 = vmatprep.subr.mxu0 0.0
  %87 = vmatpush1.msra.mxu0 0.0
  %88 = vmatprep.subr.mxu0 0.0
  %89 = vmatpush1.msra.mxu0 0.0
  %90 = vmatprep.subr.mxu0 0.0
  %91 = vmatpush1.msra.mxu0 0.0
  %92 = vmatprep.subr.mxu0 0.0
  %93 = vmatpush1.msra.mxu0 0.0
  %94 = vmatprep.subr.mxu0 0.0
  %95 = vmatpush1.msra.mxu0 0.0
  %96 = vmatprep.subr.mxu0 0.0
  %97 = vmatpush1.msra.mxu0 0.0
  %98 = vmatprep.subr.mxu0 0.0
  %99 = vmatpush1.msra.mxu0 0.0
  %100 = vmatprep.subr.mxu0 0.0
  %101 = vmatpush1.msra.mxu0 0.0
  %102 = vmatprep.mubr.f32.mxu0 0.0
  %103 = vmatmul.mubr.f32.gmra.mrb[0].mxu0 %v33
  %v104 = vpop.f32.mrb[0].mxu0
  %v105 = vadd.f32 %v29, %v104
  %v106 = vpop.f32.mrb[0].mxu0
  %107 = vmatprep.mubr.f32.mxu0 0.0
  %108 = vmatmul.mubr.f32.gmra.mrb[0].mxu0 %v36
  %v109 = vpop.f32.mrb[0].mxu0
  %v110 = vadd.f32 %v29, %v109
  %v111 = vpop.f32.mrb[0].mxu0
  %112 = vdwg.mxu0
  %113 = vst [vmem:[%s3] sm:$0xff] %v105
  %114 = vst [vmem:[%s3 + $0x8] sm:$0xff] %v110
  // Predicated region
  $region14: #{_lambda_.4} parent=0 // pred_check
    _
  $region15: #{_lambda_.4} parent=0 // pred_check_branch
    %116 = sbr.rel (0) target = $region17
  $region16: #{_lambda_.4} parent=0 // pred_region
    _
  $region17: #{_lambda_.4} parent=0 // pred_fallthru
    _
  // Predicated region
  $region18: #{_lambda_.4} parent=0 // pred_check
    _
  $region19: #{_lambda_.4} parent=0 // pred_check_branch
    %118 = sbr.rel (0) target = $region21
  $region20: #{_lambda_.4} parent=0 // pred_region
    _
  $region21: #{_lambda_.4} parent=0 // pred_fallthru
    _

// kernel: _lambda_.7
$region0: #{_lambda_.7}
  #allocation0 [shape = 'u32[]', space=smem, size = 0x4, offset = 0x4, fixed_abs, tag = 'smem constant byte address 0x4 - core index']
  #allocation1 [shape = 'u32[144,128]{1,0:T(1,128)}', space=vmem, size = 0x12000, scoped, tag = 'internal scratch']
  %s0 = inlined_call_operand.vmem [shape: f32[16,128], index: 0, kind: input, shape index: {}]
  %s1 = inlined_call_operand.vmem [shape: f32[1,128], index: 1, kind: input, shape index: {}]
  %s2 = inlined_call_operand.vmem [shape: f32[1,128], index: 2, kind: input, shape index: {}]
  %s3 = inlined_call_operand.vmem [shape: f32[128,32], index: 3, kind: input, shape index: {}]
  %s4 = inlined_call_operand.vmem [shape: f32[1,32], index: 4, kind: input, shape index: {}]
  %s5 = inlined_call_operand.vmem [shape: f32[128,64], index: 5, kind: input, shape index: {}]
  %s6 = inlined_call_operand.vmem [shape: f32[1,64], index: 6, kind: input, shape index: {}]
  %s7 = inlined_call_operand.vmem [shape: f32[64,32], index: 7, kind: input, shape index: {}]
  %s8 = inlined_call_operand.vmem [shape: f32[1,32], index: 8, kind: input, shape index: {}]
  %s9 = inlined_call_operand.vmem [shape: f32[32,2], index: 9, kind: input, shape index: {}]
  %s10 = inlined_call_operand.vmem [shape: f32[1,2], index: 10, kind: input, shape index: {}]
  %s11 = inlined_call_operand.vmem [shape: f32[16,32], index: 11, kind: output, shape index: {0}]
  %s12 = inlined_call_operand.vmem [shape: f32[16,2], index: 12, kind: output, shape index: {1}]
  %13 = xla_tuple %s11, %s12
  %s14 = sld [smem:[#allocation0]]
  $region62: #{_lambda_.7} parent=0
    _
  %s16 = ssub.s32 1, %s14
  %s17 = scalar_select 0, %s16, %s14
  // Predicated region
  $region2: #{_lambda_.7} parent=0 // pred_check
    _
  $region3: #{_lambda_.7} parent=0 // pred_check_branch
    %19 = sbr.rel (0) target = $region5
  $region4: #{_lambda_.7} parent=0 // pred_region
    _
  $region5: #{_lambda_.7} parent=0 // pred_fallthru
    _
  // Predicated region
  $region6: #{_lambda_.7} parent=0 // pred_check
    _
  $region7: #{_lambda_.7} parent=0 // pred_check_branch
    %21 = sbr.rel (0) target = $region9
  $region8: #{_lambda_.7} parent=0 // pred_region
    _
  $region9: #{_lambda_.7} parent=0 // pred_fallthru
    _
  // Predicated region
  $region10: #{_lambda_.7} parent=0 // pred_check
    _
  $region11: #{_lambda_.7} parent=0 // pred_check_branch
    %23 = sbr.rel (0) target = $region13
  $region12: #{_lambda_.7} parent=0 // pred_region
    _
  $region13: #{_lambda_.7} parent=0 // pred_fallthru
    _
  // Predicated region
  $region14: #{_lambda_.7} parent=0 // pred_check
    _
  $region15: #{_lambda_.7} parent=0 // pred_check_branch
    %25 = sbr.rel (0) target = $region17
  $region16: #{_lambda_.7} parent=0 // pred_region
    _
  $region17: #{_lambda_.7} parent=0 // pred_fallthru
    _
  // Predicated region
  $region18: #{_lambda_.7} parent=0 // pred_check
    _
  $region19: #{_lambda_.7} parent=0 // pred_check_branch
    %27 = sbr.rel (0) target = $region21
  $region20: #{_lambda_.7} parent=0 // pred_region
    _
  $region21: #{_lambda_.7} parent=0 // pred_fallthru
    _
  // Predicated region
  $region22: #{_lambda_.7} parent=0 // pred_check
    _
  $region23: #{_lambda_.7} parent=0 // pred_check_branch
    %29 = sbr.rel (0) target = $region25
  $region24: #{_lambda_.7} parent=0 // pred_region
    _
  $region25: #{_lambda_.7} parent=0 // pred_fallthru
    _
  // Predicated region
  $region26: #{_lambda_.7} parent=0 // pred_check
    _
  $region27: #{_lambda_.7} parent=0 // pred_check_branch
    %31 = sbr.rel (0) target = $region29
  $region28: #{_lambda_.7} parent=0 // pred_region
    _
  $region29: #{_lambda_.7} parent=0 // pred_fallthru
    _
  // Predicated region
  $region30: #{_lambda_.7} parent=0 // pred_check
    _
  $region31: #{_lambda_.7} parent=0 // pred_check_branch
    %33 = sbr.rel (0) target = $region33
  $region32: #{_lambda_.7} parent=0 // pred_region
    _
  $region33: #{_lambda_.7} parent=0 // pred_fallthru
    _
  // Predicated region
  $region34: #{_lambda_.7} parent=0 // pred_check
    _
  $region35: #{_lambda_.7} parent=0 // pred_check_branch
    %35 = sbr.rel (0) target = $region37
  $region36: #{_lambda_.7} parent=0 // pred_region
    _
  $region37: #{_lambda_.7} parent=0 // pred_fallthru
    _
  // Predicated region
  $region38: #{_lambda_.7} parent=0 // pred_check
    _
  $region39: #{_lambda_.7} parent=0 // pred_check_branch
    %37 = sbr.rel (0) target = $region41
  $region40: #{_lambda_.7} parent=0 // pred_region
    _
  $region41: #{_lambda_.7} parent=0 // pred_fallthru
    _
  // Predicated region
  $region42: #{_lambda_.7} parent=0 // pred_check
    _
  $region43: #{_lambda_.7} parent=0 // pred_check_branch
    %39 = sbr.rel (0) target = $region45
  $region44: #{_lambda_.7} parent=0 // pred_region
    _
  $region45: #{_lambda_.7} parent=0 // pred_fallthru
    _
  %v40 = vld [vmem:[%s0] sm:$0xff]
  %v41 = vld [vmem:[%s0 + $0x8] sm:$0xff]
  %v42 = vld [vmem:[%s1] sm:$0x1]
  %v43 = vld [vmem:[%s2] sm:$0x1]
  %44 = vadd.xlane.f32.xlu0 %v40
  %v45 = vpop.xlane.xlu0 %44
  %46 = vadd.xlane.f32.xlu0 %v41
  %v47 = vpop.xlane.xlu0 %46
  %v48 = vrcp.pop 128.0
  %v49 = vmul.f32 %v45, %v48
  %v50 = vmul.f32 %v47, %v48
  %v51 = vsub.f32 %v40, %v49
  %v52 = vsub.f32 %v41, %v50
  %v53 = vmul.f32 %v51, %v51
  %v54 = vmul.f32 %v52, %v52
  %55 = vadd.xlane.f32.xlu0 %v53
  %v56 = vpop.xlane.xlu0 %55
  %57 = vadd.xlane.f32.xlu0 %v54
  %v58 = vpop.xlane.xlu0 %57
  %v59 = vmul.f32 %v56, %v48
  %v60 = vmul.f32 %v58, %v48
  %v61 = vadd.f32 %v59, 1e-05
  %v62 = vadd.f32 %v60, 1e-05
  %v63 = vrsqrt.pop %v61
  %v64 = vrsqrt.pop %v62
  %v65 = vmul.f32 %v51, %v63
  %v66 = vmul.f32 %v52, %v64
  %v68 = vlaneseq
  %v69 = vshrl.u32 %v68, 7
  %v70 = vsub.s32 0, %v69
  %v71 = vrot.slane %v42, %v70
  %v73 = vmul.f32 %v65, %v71
  %v74 = vmul.f32 %v66, %v71
  %v76 = vlaneseq
  %v77 = vshrl.u32 %v76, 7
  %v78 = vsub.s32 0, %v77
  %v79 = vrot.slane %v43, %v78
  %v81 = vadd.f32 %v73, %v79
  %v82 = vadd.f32 %v74, %v79
  %v83 = vld [vmem:[%s3] sm:$0xff]
  %v84 = vld [vmem:[%s3 + $0x8] sm:$0xff]
  %v85 = vld [vmem:[%s3 + $0x10] sm:$0xff]
  %v86 = vld [vmem:[%s3 + $0x18] sm:$0xff]
  %v87 = vld [vmem:[%s3 + $0x20] sm:$0xff]
  %v88 = vld [vmem:[%s3 + $0x28] sm:$0xff]
  %v89 = vld [vmem:[%s3 + $0x30] sm:$0xff]
  %v90 = vld [vmem:[%s3 + $0x38] sm:$0xff]
  %v91 = vld [vmem:[%s3 + $0x40] sm:$0xff]
  %v92 = vld [vmem:[%s3 + $0x48] sm:$0xff]
  %v93 = vld [vmem:[%s3 + $0x50] sm:$0xff]
  %v94 = vld [vmem:[%s3 + $0x58] sm:$0xff]
  %v95 = vld [vmem:[%s3 + $0x60] sm:$0xff]
  %v96 = vld [vmem:[%s3 + $0x68] sm:$0xff]
  %v97 = vld [vmem:[%s3 + $0x70] sm:$0xff]
  %v98 = vld [vmem:[%s3 + $0x78] sm:$0xff]
  %v99 = vld [vmem:[%s4] sm:$0x1]
  %v101 = vlaneseq
  %v102 = vshrl.u32 %v101, 7
  %v103 = vsub.s32 0, %v102
  %v104 = vrot.slane %v99, %v103
  %106 = vmatprep.subr.mxu0 0.0
  %107 = vmatpush1.msra.mxu0 %v83
  %108 = vmatprep.subr.mxu0 0.0
  %109 = vmatpush1.msra.mxu0 %v84
  %110 = vmatprep.subr.mxu0 0.0
  %111 = vmatpush1.msra.mxu0 %v85
  %112 = vmatprep.subr.mxu0 0.0
  %113 = vmatpush1.msra.mxu0 %v86
  %114 = vmatprep.subr.mxu0 0.0
  %115 = vmatpush1.msra.mxu0 %v87
  %116 = vmatprep.subr.mxu0 0.0
  %117 = vmatpush1.msra.mxu0 %v88
  %118 = vmatprep.subr.mxu0 0.0
  %119 = vmatpush1.msra.mxu0 %v89
  %120 = vmatprep.subr.mxu0 0.0
  %121 = vmatpush1.msra.mxu0 %v90
  %122 = vmatprep.subr.mxu0 0.0
  %123 = vmatpush1.msra.mxu0 %v91
  %124 = vmatprep.subr.mxu0 0.0
  %125 = vmatpush1.msra.mxu0 %v92
  %126 = vmatprep.subr.mxu0 0.0
  %127 = vmatpush1.msra.mxu0 %v93
  %128 = vmatprep.subr.mxu0 0.0
  %129 = vmatpush1.msra.mxu0 %v94
  %130 = vmatprep.subr.mxu0 0.0
  %131 = vmatpush1.msra.mxu0 %v95
  %132 = vmatprep.subr.mxu0 0.0
  %133 = vmatpush1.msra.mxu0 %v96
  %134 = vmatprep.subr.mxu0 0.0
  %135 = vmatpush1.msra.mxu0 %v97
  %136 = vmatprep.subr.mxu0 0.0
  %137 = vmatpush1.msra.mxu0 %v98
  %138 = vmatprep.subr.mxu0 0.0
  %139 = vmatpush1.msra.mxu0 0.0
  %140 = vmatprep.subr.mxu0 0.0
  %141 = vmatpush1.msra.mxu0 0.0
  %142 = vmatprep.subr.mxu0 0.0
  %143 = vmatpush1.msra.mxu0 0.0
  %144 = vmatprep.subr.mxu0 0.0
  %145 = vmatpush1.msra.mxu0 0.0
  %146 = vmatprep.subr.mxu0 0.0
  %147 = vmatpush1.msra.mxu0 0.0
  %148 = vmatprep.subr.mxu0 0.0
  %149 = vmatpush1.msra.mxu0 0.0
  %150 = vmatprep.subr.mxu0 0.0
  %151 = vmatpush1.msra.mxu0 0.0
  %152 = vmatprep.subr.mxu0 0.0
  %153 = vmatpush1.msra.mxu0 0.0
  %154 = vmatprep.subr.mxu0 0.0
  %155 = vmatpush1.msra.mxu0 0.0
  %156 = vmatprep.subr.mxu0 0.0
  %157 = vmatpush1.msra.mxu0 0.0
  %158 = vmatprep.subr.mxu0 0.0
  %159 = vmatpush1.msra.mxu0 0.0
  %160 = vmatprep.subr.mxu0 0.0
  %161 = vmatpush1.msra.mxu0 0.0
  %162 = vmatprep.subr.mxu0 0.0
  %163 = vmatpush1.msra.mxu0 0.0
  %164 = vmatprep.subr.mxu0 0.0
  %165 = vmatpush1.msra.mxu0 0.0
  %166 = vmatprep.subr.mxu0 0.0
  %167 = vmatpush1.msra.mxu0 0.0
  %168 = vmatprep.subr.mxu0 0.0
  %169 = vmatpush1.msra.mxu0 0.0
  %170 = vmatprep.mubr.f32.mxu0 0.0
  %171 = vmatmul.mubr.f32.gmra.mrb[0].mxu0 %v81
  %v172 = vpop.f32.mrb[0].mxu0
  %v173 = vadd.f32 %v104, %v172
  %v174 = vpop.f32.mrb[0].mxu0
  %175 = vmatprep.mubr.f32.mxu0 0.0
  %176 = vmatmul.mubr.f32.gmra.mrb[0].mxu0 %v82
  %v177 = vpop.f32.mrb[0].mxu0
  %v178 = vadd.f32 %v104, %v177
  %v179 = vpop.f32.mrb[0].mxu0
  %180 = vdwg.mxu0
  %vm181 = vcmask 261120
  %182 = vst.msk [vmem:[%s11] sm:$0xff] %vm181, %v173
  %183 = vst.msk [vmem:[%s11 + $0x8] sm:$0xff] %vm181, %v178
  %v184 = vld [vmem:[%s5] sm:$0xff]
  %v185 = vld [vmem:[%s5 + $0x8] sm:$0xff]
  %v186 = vld [vmem:[%s5 + $0x10] sm:$0xff]
  %v187 = vld [vmem:[%s5 + $0x18] sm:$0xff]
  %v188 = vld [vmem:[%s5 + $0x20] sm:$0xff]
  %v189 = vld [vmem:[%s5 + $0x28] sm:$0xff]
  %v190 = vld [vmem:[%s5 + $0x30] sm:$0xff]
  %v191 = vld [vmem:[%s5 + $0x38] sm:$0xff]
  %v192 = vld [vmem:[%s5 + $0x40] sm:$0xff]
  %v193 = vld [vmem:[%s5 + $0x48] sm:$0xff]
  %v194 = vld [vmem:[%s5 + $0x50] sm:$0xff]
  %v195 = vld [vmem:[%s5 + $0x58] sm:$0xff]
  %v196 = vld [vmem:[%s5 + $0x60] sm:$0xff]
  %v197 = vld [vmem:[%s5 + $0x68] sm:$0xff]
  %v198 = vld [vmem:[%s5 + $0x70] sm:$0xff]
  %v199 = vld [vmem:[%s5 + $0x78] sm:$0xff]
  %v200 = vld [vmem:[%s6] sm:$0x1]
  %v202 = vlaneseq
  %v203 = vshrl.u32 %v202, 7
  %v204 = vsub.s32 0, %v203
  %v205 = vrot.slane %v200, %v204
  %207 = vmatprep.subr.mxu0 0.0
  %208 = vmatpush1.msra.mxu0 %v184
  %209 = vmatprep.subr.mxu0 0.0
  %210 = vmatpush1.msra.mxu0 %v185
  %211 = vmatprep.subr.mxu0 0.0
  %212 = vmatpush1.msra.mxu0 %v186
  %213 = vmatprep.subr.mxu0 0.0
  %214 = vmatpush1.msra.mxu0 %v187
  %215 = vmatprep.subr.mxu0 0.0
  %216 = vmatpush1.msra.mxu0 %v188
  %217 = vmatprep.subr.mxu0 0.0
  %218 = vmatpush1.msra.mxu0 %v189
  %219 = vmatprep.subr.mxu0 0.0
  %220 = vmatpush1.msra.mxu0 %v190
  %221 = vmatprep.subr.mxu0 0.0
  %222 = vmatpush1.msra.mxu0 %v191
  %223 = vmatprep.subr.mxu0 0.0
  %224 = vmatpush1.msra.mxu0 %v192
  %225 = vmatprep.subr.mxu0 0.0
  %226 = vmatpush1.msra.mxu0 %v193
  %227 = vmatprep.subr.mxu0 0.0
  %228 = vmatpush1.msra.mxu0 %v194
  %229 = vmatprep.subr.mxu0 0.0
  %230 = vmatpush1.msra.mxu0 %v195
  %231 = vmatprep.subr.mxu0 0.0
  %232 = vmatpush1.msra.mxu0 %v196
  %233 = vmatprep.subr.mxu0 0.0
  %234 = vmatpush1.msra.mxu0 %v197
  %235 = vmatprep.subr.mxu0 0.0
  %236 = vmatpush1.msra.mxu0 %v198
  %237 = vmatprep.subr.mxu0 0.0
  %238 = vmatpush1.msra.mxu0 %v199
  %239 = vmatprep.subr.mxu0 0.0
  %240 = vmatpush1.msra.mxu0 0.0
  %241 = vmatprep.subr.mxu0 0.0
  %242 = vmatpush1.msra.mxu0 0.0
  %243 = vmatprep.subr.mxu0 0.0
  %244 = vmatpush1.msra.mxu0 0.0
  %245 = vmatprep.subr.mxu0 0.0
  %246 = vmatpush1.msra.mxu0 0.0
  %247 = vmatprep.subr.mxu0 0.0
  %248 = vmatpush1.msra.mxu0 0.0
  %249 = vmatprep.subr.mxu0 0.0
  %250 = vmatpush1.msra.mxu0 0.0
  %251 = vmatprep.subr.mxu0 0.0
  %252 = vmatpush1.msra.mxu0 0.0
  %253 = vmatprep.subr.mxu0 0.0
  %254 = vmatpush1.msra.mxu0 0.0
  %255 = vmatprep.subr.mxu0 0.0
  %256 = vmatpush1.msra.mxu0 0.0
  %257 = vmatprep.subr.mxu0 0.0
  %258 = vmatpush1.msra.mxu0 0.0
  %259 = vmatprep.subr.mxu0 0.0
  %260 = vmatpush1.msra.mxu0 0.0
  %261 = vmatprep.subr.mxu0 0.0
  %262 = vmatpush1.msra.mxu0 0.0
  %263 = vmatprep.subr.mxu0 0.0
  %264 = vmatpush1.msra.mxu0 0.0
  %265 = vmatprep.subr.mxu0 0.0
  %266 = vmatpush1.msra.mxu0 0.0
  %267 = vmatprep.subr.mxu0 0.0
  %268 = vmatpush1.msra.mxu0 0.0
  %269 = vmatprep.subr.mxu0 0.0
  %270 = vmatpush1.msra.mxu0 0.0
  %271 = vmatprep.mubr.f32.mxu0 0.0
  %272 = vmatmul.mubr.f32.gmra.mrb[0].mxu0 %v81
  %v273 = vpop.f32.mrb[0].mxu0
  %v274 = vadd.f32 %v205, %v273
  %v275 = vpop.f32.mrb[0].mxu0
  %276 = vmatprep.mubr.f32.mxu0 0.0
  %277 = vmatmul.mubr.f32.gmra.mrb[0].mxu0 %v82
  %v278 = vpop.f32.mrb[0].mxu0
  %v279 = vadd.f32 %v205, %v278
  %v280 = vpop.f32.mrb[0].mxu0
  %281 = vdwg.mxu0
  %v282 = vmax.f32 %v274, 0.0
  %v283 = vmax.f32 %v279, 0.0
  %v284 = vld [vmem:[%s7] sm:$0xff]
  %v285 = vld [vmem:[%s7 + $0x8] sm:$0xff]
  %v286 = vld [vmem:[%s7 + $0x10] sm:$0xff]
  %v287 = vld [vmem:[%s7 + $0x18] sm:$0xff]
  %v288 = vld [vmem:[%s7 + $0x20] sm:$0xff]
  %v289 = vld [vmem:[%s7 + $0x28] sm:$0xff]
  %v290 = vld [vmem:[%s7 + $0x30] sm:$0xff]
  %v291 = vld [vmem:[%s7 + $0x38] sm:$0xff]
  %v292 = vld [vmem:[%s8] sm:$0x1]
  %v294 = vlaneseq
  %v295 = vshrl.u32 %v294, 7
  %v296 = vsub.s32 0, %v295
  %v297 = vrot.slane %v292, %v296
  %vm299 = vcmask 523264
  %v301 = vsel %vm299, %v282, 0
  %v304 = vsel %vm299, %v283, 0
  %306 = vmatprep.subr.mxu0 0.0
  %307 = vmatpush1.msra.mxu0 %v284
  %308 = vmatprep.subr.mxu0 0.0
  %309 = vmatpush1.msra.mxu0 %v285
  %310 = vmatprep.subr.mxu0 0.0
  %311 = vmatpush1.msra.mxu0 %v286
  %312 = vmatprep.subr.mxu0 0.0
  %313 = vmatpush1.msra.mxu0 %v287
  %314 = vmatprep.subr.mxu0 0.0
  %315 = vmatpush1.msra.mxu0 %v288
  %316 = vmatprep.subr.mxu0 0.0
  %317 = vmatpush1.msra.mxu0 %v289
  %318 = vmatprep.subr.mxu0 0.0
  %319 = vmatpush1.msra.mxu0 %v290
  %320 = vmatprep.subr.mxu0 0.0
  %321 = vmatpush1.msra.mxu0 %v291
  %322 = vmatprep.subr.mxu0 0.0
  %323 = vmatpush1.msra.mxu0 0.0
  %324 = vmatprep.subr.mxu0 0.0
  %325 = vmatpush1.msra.mxu0 0.0
  %326 = vmatprep.subr.mxu0 0.0
  %327 = vmatpush1.msra.mxu0 0.0
  %328 = vmatprep.subr.mxu0 0.0
  %329 = vmatpush1.msra.mxu0 0.0
  %330 = vmatprep.subr.mxu0 0.0
  %331 = vmatpush1.msra.mxu0 0.0
  %332 = vmatprep.subr.mxu0 0.0
  %333 = vmatpush1.msra.mxu0 0.0
  %334 = vmatprep.subr.mxu0 0.0
  %335 = vmatpush1.msra.mxu0 0.0
  %336 = vmatprep.subr.mxu0 0.0
  %337 = vmatpush1.msra.mxu0 0.0
  %338 = vmatprep.subr.mxu0 0.0
  %339 = vmatpush1.msra.mxu0 0.0
  %340 = vmatprep.subr.mxu0 0.0
  %341 = vmatpush1.msra.mxu0 0.0
  %342 = vmatprep.subr.mxu0 0.0
  %343 = vmatpush1.msra.mxu0 0.0
  %344 = vmatprep.subr.mxu0 0.0
  %345 = vmatpush1.msra.mxu0 0.0
  %346 = vmatprep.subr.mxu0 0.0
  %347 = vmatpush1.msra.mxu0 0.0
  %348 = vmatprep.subr.mxu0 0.0
  %349 = vmatpush1.msra.mxu0 0.0
  %350 = vmatprep.subr.mxu0 0.0
  %351 = vmatpush1.msra.mxu0 0.0
  %352 = vmatprep.subr.mxu0 0.0
  %353 = vmatpush1.msra.mxu0 0.0
  %354 = vmatprep.subr.mxu0 0.0
  %355 = vmatpush1.msra.mxu0 0.0
  %356 = vmatprep.subr.mxu0 0.0
  %357 = vmatpush1.msra.mxu0 0.0
  %358 = vmatprep.subr.mxu0 0.0
  %359 = vmatpush1.msra.mxu0 0.0
  %360 = vmatprep.subr.mxu0 0.0
  %361 = vmatpush1.msra.mxu0 0.0
  %362 = vmatprep.subr.mxu0 0.0
  %363 = vmatpush1.msra.mxu0 0.0
  %364 = vmatprep.subr.mxu0 0.0
  %365 = vmatpush1.msra.mxu0 0.0
  %366 = vmatprep.subr.mxu0 0.0
  %367 = vmatpush1.msra.mxu0 0.0
  %368 = vmatprep.subr.mxu0 0.0
  %369 = vmatpush1.msra.mxu0 0.0
  %370 = vmatprep.mubr.f32.mxu0 0.0
  %371 = vmatmul.mubr.f32.gmra.mrb[0].mxu0 %v301
  %v372 = vpop.f32.mrb[0].mxu0
  %v373 = vadd.f32 %v297, %v372
  %v374 = vpop.f32.mrb[0].mxu0
  %375 = vmatprep.mubr.f32.mxu0 0.0
  %376 = vmatmul.mubr.f32.gmra.mrb[0].mxu0 %v304
  %v377 = vpop.f32.mrb[0].mxu0
  %v378 = vadd.f32 %v297, %v377
  %v379 = vpop.f32.mrb[0].mxu0
  %380 = vdwg.mxu0
  %v381 = vmax.f32 %v373, 0.0
  %v382 = vmax.f32 %v378, 0.0
  %v383 = vld [vmem:[%s9] sm:$0xff]
  %v384 = vld [vmem:[%s9 + $0x8] sm:$0xff]
  %v385 = vld [vmem:[%s9 + $0x10] sm:$0xff]
  %v386 = vld [vmem:[%s9 + $0x18] sm:$0xff]
  %v387 = vld [vmem:[%s10] sm:$0x1]
  %v389 = vlaneseq
  %v390 = vshrl.u32 %v389, 7
  %v391 = vsub.s32 0, %v390
  %v392 = vrot.slane %v387, %v391
  %v395 = vsel %vm181, %v381, 0
  %v398 = vsel %vm181, %v382, 0
  %400 = vmatprep.subr.mxu0 0.0
  %401 = vmatpush1.msra.mxu0 %v383
  %402 = vmatprep.subr.mxu0 0.0
  %403 = vmatpush1.msra.mxu0 %v384
  %404 = vmatprep.subr.mxu0 0.0
  %405 = vmatpush1.msra.mxu0 %v385
  %406 = vmatprep.subr.mxu0 0.0
  %407 = vmatpush1.msra.mxu0 %v386
  %408 = vmatprep.subr.mxu0 0.0
  %409 = vmatpush1.msra.mxu0 0.0
  %410 = vmatprep.subr.mxu0 0.0
  %411 = vmatpush1.msra.mxu0 0.0
  %412 = vmatprep.subr.mxu0 0.0
  %413 = vmatpush1.msra.mxu0 0.0
  %414 = vmatprep.subr.mxu0 0.0
  %415 = vmatpush1.msra.mxu0 0.0
  %416 = vmatprep.subr.mxu0 0.0
  %417 = vmatpush1.msra.mxu0 0.0
  %418 = vmatprep.subr.mxu0 0.0
  %419 = vmatpush1.msra.mxu0 0.0
  %420 = vmatprep.subr.mxu0 0.0
  %421 = vmatpush1.msra.mxu0 0.0
  %422 = vmatprep.subr.mxu0 0.0
  %423 = vmatpush1.msra.mxu0 0.0
  %424 = vmatprep.subr.mxu0 0.0
  %425 = vmatpush1.msra.mxu0 0.0
  %426 = vmatprep.subr.mxu0 0.0
  %427 = vmatpush1.msra.mxu0 0.0
  %428 = vmatprep.subr.mxu0 0.0
  %429 = vmatpush1.msra.mxu0 0.0
  %430 = vmatprep.subr.mxu0 0.0
  %431 = vmatpush1.msra.mxu0 0.0
  %432 = vmatprep.subr.mxu0 0.0
  %433 = vmatpush1.msra.mxu0 0.0
  %434 = vmatprep.subr.mxu0 0.0
  %435 = vmatpush1.msra.mxu0 0.0
  %436 = vmatprep.subr.mxu0 0.0
  %437 = vmatpush1.msra.mxu0 0.0
  %438 = vmatprep.subr.mxu0 0.0
  %439 = vmatpush1.msra.mxu0 0.0
  %440 = vmatprep.subr.mxu0 0.0
  %441 = vmatpush1.msra.mxu0 0.0
  %442 = vmatprep.subr.mxu0 0.0
  %443 = vmatpush1.msra.mxu0 0.0
  %444 = vmatprep.subr.mxu0 0.0
  %445 = vmatpush1.msra.mxu0 0.0
  %446 = vmatprep.subr.mxu0 0.0
  %447 = vmatpush1.msra.mxu0 0.0
  %448 = vmatprep.subr.mxu0 0.0
  %449 = vmatpush1.msra.mxu0 0.0
  %450 = vmatprep.subr.mxu0 0.0
  %451 = vmatpush1.msra.mxu0 0.0
  %452 = vmatprep.subr.mxu0 0.0
  %453 = vmatpush1.msra.mxu0 0.0
  %454 = vmatprep.subr.mxu0 0.0
  %455 = vmatpush1.msra.mxu0 0.0
  %456 = vmatprep.subr.mxu0 0.0
  %457 = vmatpush1.msra.mxu0 0.0
  %458 = vmatprep.subr.mxu0 0.0
  %459 = vmatpush1.msra.mxu0 0.0
  %460 = vmatprep.subr.mxu0 0.0
  %461 = vmatpush1.msra.mxu0 0.0
  %462 = vmatprep.subr.mxu0 0.0
  %463 = vmatpush1.msra.mxu0 0.0
  %464 = vmatprep.mubr.f32.mxu0 0.0
  %465 = vmatmul.mubr.f32.gmra.mrb[0].mxu0 %v395
  %v466 = vpop.f32.mrb[0].mxu0
  %v467 = vadd.f32 %v392, %v466
  %v468 = vpop.f32.mrb[0].mxu0
  %469 = vmatprep.mubr.f32.mxu0 0.0
  %470 = vmatmul.mubr.f32.gmra.mrb[0].mxu0 %v398
  %v471 = vpop.f32.mrb[0].mxu0
  %v472 = vadd.f32 %v392, %v471
  %v473 = vpop.f32.mrb[0].mxu0
  %474 = vdwg.mxu0
  %vm475 = vcmask 15360
  %476 = vst.msk [vmem:[%s12] sm:$0xff] %vm475, %v467
  %477 = vst.msk [vmem:[%s12 + $0x8] sm:$0xff] %vm475, %v472
  // Predicated region
  $region46: #{_lambda_.7} parent=0 // pred_check
    _
  $region47: #{_lambda_.7} parent=0 // pred_check_branch
    %479 = sbr.rel (0) target = $region49
  $region48: #{_lambda_.7} parent=0 // pred_region
    _
  $region49: #{_lambda_.7} parent=0 // pred_fallthru
    _
  // Predicated region
  $region50: #{_lambda_.7} parent=0 // pred_check
    _
  $region51: #{_lambda_.7} parent=0 // pred_check_branch
    %481 = sbr.rel (0) target = $region53
  $region52: #{_lambda_.7} parent=0 // pred_region
    _
  $region53: #{_lambda_.7} parent=0 // pred_fallthru
    _
  // Predicated region
  $region54: #{_lambda_.7} parent=0 // pred_check
    _
  $region55: #{_lambda_.7} parent=0 // pred_check_branch
    %483 = sbr.rel (0) target = $region57
  $region56: #{_lambda_.7} parent=0 // pred_region
    _
  $region57: #{_lambda_.7} parent=0 // pred_fallthru
    _
  // Predicated region
  $region58: #{_lambda_.7} parent=0 // pred_check
    _
  $region59: #{_lambda_.7} parent=0 // pred_check_branch
    %485 = sbr.rel (0) target = $region61
  $region60: #{_lambda_.7} parent=0 // pred_region
    _
  $region61: #{_lambda_.7} parent=0 // pred_fallthru
    _

// kernel: _lambda_.6
$region0: #{_lambda_.6}
  #allocation0 [shape = 'u32[]', space=smem, size = 0x4, offset = 0x4, fixed_abs, tag = 'smem constant byte address 0x4 - core index']
  #allocation1 [shape = 'u32[144,128]{1,0:T(1,128)}', space=vmem, size = 0x12000, scoped, tag = 'internal scratch']
  #allocation2 [shape = 's32[1]{0}', space=sflag, size = 0x4, scoped, tag = 'scoped memory for _lambda_.6']
  #allocation3 [shape = 'u8[512]{0}', space=smem, size = 0x200, scoped, tag = 'prefetched SMEM operand 0']
  %s0 = inlined_call_operand.vmem [shape: s32[2], index: 0, kind: input, shape index: {}]
  %s1 = inlined_call_operand.vmem [shape: f32[2,8,128], index: 1, kind: input, shape index: {}]
  %s2 = inlined_call_operand.vmem [shape: f32[4,8,8], index: 2, kind: input, shape index: {}]
  %s3 = inlined_call_operand.vmem [shape: f32[1,128], index: 3, kind: input, shape index: {}]
  %s4 = inlined_call_operand.vmem [shape: f32[1,128], index: 4, kind: input, shape index: {}]
  %s5 = inlined_call_operand.vmem [shape: f32[128,384], index: 5, kind: input, shape index: {}]
  %s6 = inlined_call_operand.vmem [shape: f32[128,128], index: 6, kind: input, shape index: {}]
  %s7 = inlined_call_operand.vmem [shape: f32[1,128], index: 7, kind: input, shape index: {}]
  %s8 = inlined_call_operand.vmem [shape: f32[1,128], index: 8, kind: input, shape index: {}]
  %s9 = inlined_call_operand.vmem [shape: f32[1,128], index: 9, kind: input, shape index: {}]
  %s10 = inlined_call_operand.vmem [shape: f32[128,512], index: 10, kind: input, shape index: {}]
  %s11 = inlined_call_operand.vmem [shape: f32[1,512], index: 11, kind: input, shape index: {}]
  %s12 = inlined_call_operand.vmem [shape: f32[512,128], index: 12, kind: input, shape index: {}]
  %s13 = inlined_call_operand.vmem [shape: f32[1,128], index: 13, kind: input, shape index: {}]
  %s14 = inlined_call_operand.vmem [shape: f32[2,8,128], index: 14, kind: output, shape index: {}]
  %s15 = sld [smem:[#allocation0]]
  $region85: #{_lambda_.6} parent=0
    _
  %s17 = ssub.s32 1, %s15
  %s18 = scalar_select 0, %s17, %s15
  %s19 = sshll.u32 %s0, 4
  %s20 = int_to_ptr.vmem [resolvable:$true] %s19
  %22 = dma.vmem_to_smem %s20, 16, [#allocation3], [#allocation2]
  %23 = dma.done [#allocation2], 16
  %24 = sfence
  loop: start=0, step=1, limit=4
  $region2: #{_lambda_.6} parent=0 // loop_pre_header
    _
  $region3: #{_lambda_.6} parent=0 // loop_header
    %s26 = sphi 0, %s30
    %p27 = scmp.ge.s32.totalorder %s26, 4
    %s36 = sphi 0, %s38
    %s39 = sphi 0, %s36
    %s40 = sphi 0, %s39
    %s56 = sphi 0, %s40
    %s60 = sphi 0, %s60
    %s62 = sphi 0, %s60
    %s63 = sphi 0, %s62
    %s77 = sphi 0, %s63
    %s81 = sphi 0, %s81
    %s83 = sphi 0, %s81
    %s84 = sphi 0, %s83
    %s98 = sphi 0, %s84
    %s102 = sphi 0, %s102
    %s104 = sphi 0, %s102
    %s105 = sphi 0, %s104
    %s119 = sphi 0, %s105
    %s123 = sphi 0, %s123
    %s125 = sphi 0, %s123
    %s126 = sphi 0, %s125
    %s140 = sphi 0, %s126
    %s144 = sphi 0, %s144
    %s146 = sphi 0, %s144
    %s147 = sphi 0, %s146
    %s161 = sphi 0, %s147
    %s165 = sphi 0, %s165
    %s167 = sphi 0, %s165
    %s168 = sphi 0, %s167
    %s182 = sphi 0, %s168
    %s186 = sphi 0, %s186
    %s188 = sphi 0, %s186
    %s189 = sphi 0, %s188
    %s203 = sphi 0, %s189
    %s207 = sphi 0, %s207
    %s209 = sphi 0, %s207
    %s210 = sphi 0, %s209
    %s224 = sphi 0, %s210
    %s228 = sphi 0, %s228
    %s230 = sphi 0, %s228
    %s231 = sphi 0, %s230
    %s245 = sphi 0, %s231
    %s249 = sphi 0, %s249
    %s251 = sphi 0, %s249
    %s252 = sphi 0, %s251
    %s266 = sphi 0, %s252
    %s270 = sphi 0, %s270
    %s272 = sphi 0, %s270
    %s273 = sphi 0, %s272
    %s287 = sphi 0, %s273
    %s291 = sphi 0, %s291
    %s293 = sphi 0, %s291
    %s294 = sphi 0, %s293
    %s308 = sphi 0, %s294
    %s314 = sphi 0, %s316
    %s317 = sphi 0, %s314
    %s318 = sphi 0, %s317
    %s334 = sphi 0, %s318
  $region4: #{_lambda_.6} parent=0 // loop_header_branch
    %29 = sbr.rel (%p27) target = $region8
  $region5: #{_lambda_.6} parent=0 // loop_body
    %s31 = ssub.s32 %s26, 1
    %s32 = ssub.s32 %s26, 2
    %s33 = sadd.s32 %s26, 1
    %s34 = ssub.s32 %s26, %s33
    %p35 = scmp.eq.s32.totalorder %s34, 0
    %s37 = sadd.s32 %s36, 1
    %s38 = scalar_select %p35, %s36, %s37
    %p41 = pneg %p35
    %p42 = scmp.eq.s32.totalorder %s26, 1
    %p43 = por %p41, %p42
    %p44 = scmp.ne.s32.totalorder %s36, %s39
    %p45 = scmp.eq.s32.totalorder %s26, 0
    %p46 = por %p44, %p45
    %p47 = scmp.ne.s32.totalorder %s36, %s39
    %p48 = scmp.eq.s32.totalorder %s31, 1
    %p49 = por %p47, %p48
    %p50 = scmp.ne.s32.totalorder %s39, %s40
    %p51 = scmp.eq.s32.totalorder %s31, 0
    %p52 = por %p50, %p51
    %p53 = scmp.ne.s32.totalorder %s39, %s40
    %p54 = scmp.eq.s32.totalorder %s32, 1
    %p55 = por %p53, %p54
    %p57 = scmp.ne.s32.totalorder %s40, %s56
    %p58 = scmp.eq.s32.totalorder %s32, 0
    %p59 = por %p57, %p58
    %s61 = sadd.s32 %s60, 1
    %p64 = scmp.eq.s32.totalorder %s26, 1
    %p65 = scmp.ne.s32.totalorder %s60, %s62
    %p66 = scmp.eq.s32.totalorder %s26, 0
    %p67 = por %p65, %p66
    %p68 = scmp.ne.s32.totalorder %s60, %s62
    %p69 = scmp.eq.s32.totalorder %s31, 1
    %p70 = por %p68, %p69
    %p71 = scmp.ne.s32.totalorder %s62, %s63
    %p72 = scmp.eq.s32.totalorder %s31, 0
    %p73 = por %p71, %p72
    %p74 = scmp.ne.s32.totalorder %s62, %s63
    %p75 = scmp.eq.s32.totalorder %s32, 1
    %p76 = por %p74, %p75
    %p78 = scmp.ne.s32.totalorder %s63, %s77
    %p79 = scmp.eq.s32.totalorder %s32, 0
    %p80 = por %p78, %p79
    %s82 = sadd.s32 %s81, 1
    %p85 = scmp.eq.s32.totalorder %s26, 1
    %p86 = scmp.ne.s32.totalorder %s81, %s83
    %p87 = scmp.eq.s32.totalorder %s26, 0
    %p88 = por %p86, %p87
    %p89 = scmp.ne.s32.totalorder %s81, %s83
    %p90 = scmp.eq.s32.totalorder %s31, 1
    %p91 = por %p89, %p90
    %p92 = scmp.ne.s32.totalorder %s83, %s84
    %p93 = scmp.eq.s32.totalorder %s31, 0
    %p94 = por %p92, %p93
    %p95 = scmp.ne.s32.totalorder %s83, %s84
    %p96 = scmp.eq.s32.totalorder %s32, 1
    %p97 = por %p95, %p96
    %p99 = scmp.ne.s32.totalorder %s84, %s98
    %p100 = scmp.eq.s32.totalorder %s32, 0
    %p101 = por %p99, %p100
    %s103 = sadd.s32 %s102, 1
    %p106 = scmp.eq.s32.totalorder %s26, 1
    %p107 = scmp.ne.s32.totalorder %s102, %s104
    %p108 = scmp.eq.s32.totalorder %s26, 0
    %p109 = por %p107, %p108
    %p110 = scmp.ne.s32.totalorder %s102, %s104
    %p111 = scmp.eq.s32.totalorder %s31, 1
    %p112 = por %p110, %p111
    %p113 = scmp.ne.s32.totalorder %s104, %s105
    %p114 = scmp.eq.s32.totalorder %s31, 0
    %p115 = por %p113, %p114
    %p116 = scmp.ne.s32.totalorder %s104, %s105
    %p117 = scmp.eq.s32.totalorder %s32, 1
    %p118 = por %p116, %p117
    %p120 = scmp.ne.s32.totalorder %s105, %s119
    %p121 = scmp.eq.s32.totalorder %s32, 0
    %p122 = por %p120, %p121
    %s124 = sadd.s32 %s123, 1
    %p127 = scmp.eq.s32.totalorder %s26, 1
    %p128 = scmp.ne.s32.totalorder %s123, %s125
    %p129 = scmp.eq.s32.totalorder %s26, 0
    %p130 = por %p128, %p129
    %p131 = scmp.ne.s32.totalorder %s123, %s125
    %p132 = scmp.eq.s32.totalorder %s31, 1
    %p133 = por %p131, %p132
    %p134 = scmp.ne.s32.totalorder %s125, %s126
    %p135 = scmp.eq.s32.totalorder %s31, 0
    %p136 = por %p134, %p135
    %p137 = scmp.ne.s32.totalorder %s125, %s126
    %p138 = scmp.eq.s32.totalorder %s32, 1
    %p139 = por %p137, %p138
    %p141 = scmp.ne.s32.totalorder %s126, %s140
    %p142 = scmp.eq.s32.totalorder %s32, 0
    %p143 = por %p141, %p142
    %s145 = sadd.s32 %s144, 1
    %p148 = scmp.eq.s32.totalorder %s26, 1
    %p149 = scmp.ne.s32.totalorder %s144, %s146
    %p150 = scmp.eq.s32.totalorder %s26, 0
    %p151 = por %p149, %p150
    %p152 = scmp.ne.s32.totalorder %s144, %s146
    %p153 = scmp.eq.s32.totalorder %s31, 1
    %p154 = por %p152, %p153
    %p155 = scmp.ne.s32.totalorder %s146, %s147
    %p156 = scmp.eq.s32.totalorder %s31, 0
    %p157 = por %p155, %p156
    %p158 = scmp.ne.s32.totalorder %s146, %s147
    %p159 = scmp.eq.s32.totalorder %s32, 1
    %p160 = por %p158, %p159
    %p162 = scmp.ne.s32.totalorder %s147, %s161
    %p163 = scmp.eq.s32.totalorder %s32, 0
    %p164 = por %p162, %p163
    %s166 = sadd.s32 %s165, 1
    %p169 = scmp.eq.s32.totalorder %s26, 1
    %p170 = scmp.ne.s32.totalorder %s165, %s167
    %p171 = scmp.eq.s32.totalorder %s26, 0
    %p172 = por %p170, %p171
    %p173 = scmp.ne.s32.totalorder %s165, %s167
    %p174 = scmp.eq.s32.totalorder %s31, 1
    %p175 = por %p173, %p174
    %p176 = scmp.ne.s32.totalorder %s167, %s168
    %p177 = scmp.eq.s32.totalorder %s31, 0
    %p178 = por %p176, %p177
    %p179 = scmp.ne.s32.totalorder %s167, %s168
    %p180 = scmp.eq.s32.totalorder %s32, 1
    %p181 = por %p179, %p180
    %p183 = scmp.ne.s32.totalorder %s168, %s182
    %p184 = scmp.eq.s32.totalorder %s32, 0
    %p185 = por %p183, %p184
    %s187 = sadd.s32 %s186, 1
    %p190 = scmp.eq.s32.totalorder %s26, 1
    %p191 = scmp.ne.s32.totalorder %s186, %s188
    %p192 = scmp.eq.s32.totalorder %s26, 0
    %p193 = por %p191, %p192
    %p194 = scmp.ne.s32.totalorder %s186, %s188
    %p195 = scmp.eq.s32.totalorder %s31, 1
    %p196 = por %p194, %p195
    %p197 = scmp.ne.s32.totalorder %s188, %s189
    %p198 = scmp.eq.s32.totalorder %s31, 0
    %p199 = por %p197, %p198
    %p200 = scmp.ne.s32.totalorder %s188, %s189
    %p201 = scmp.eq.s32.totalorder %s32, 1
    %p202 = por %p200, %p201
    %p204 = scmp.ne.s32.totalorder %s189, %s203
    %p205 = scmp.eq.s32.totalorder %s32, 0
    %p206 = por %p204, %p205
    %s208 = sadd.s32 %s207, 1
    %p211 = scmp.eq.s32.totalorder %s26, 1
    %p212 = scmp.ne.s32.totalorder %s207, %s209
    %p213 = scmp.eq.s32.totalorder %s26, 0
    %p214 = por %p212, %p213
    %p215 = scmp.ne.s32.totalorder %s207, %s209
    %p216 = scmp.eq.s32.totalorder %s31, 1
    %p217 = por %p215, %p216
    %p218 = scmp.ne.s32.totalorder %s209, %s210
    %p219 = scmp.eq.s32.totalorder %s31, 0
    %p220 = por %p218, %p219
    %p221 = scmp.ne.s32.totalorder %s209, %s210
    %p222 = scmp.eq.s32.totalorder %s32, 1
    %p223 = por %p221, %p222
    %p225 = scmp.ne.s32.totalorder %s210, %s224
    %p226 = scmp.eq.s32.totalorder %s32, 0
    %p227 = por %p225, %p226
    %s229 = sadd.s32 %s228, 1
    %p232 = scmp.eq.s32.totalorder %s26, 1
    %p233 = scmp.ne.s32.totalorder %s228, %s230
    %p234 = scmp.eq.s32.totalorder %s26, 0
    %p235 = por %p233, %p234
    %p236 = scmp.ne.s32.totalorder %s228, %s230
    %p237 = scmp.eq.s32.totalorder %s31, 1
    %p238 = por %p236, %p237
    %p239 = scmp.ne.s32.totalorder %s230, %s231
    %p240 = scmp.eq.s32.totalorder %s31, 0
    %p241 = por %p239, %p240
    %p242 = scmp.ne.s32.totalorder %s230, %s231
    %p243 = scmp.eq.s32.totalorder %s32, 1
    %p244 = por %p242, %p243
    %p246 = scmp.ne.s32.totalorder %s231, %s245
    %p247 = scmp.eq.s32.totalorder %s32, 0
    %p248 = por %p246, %p247
    %s250 = sadd.s32 %s249, 1
    %p253 = scmp.eq.s32.totalorder %s26, 1
    %p254 = scmp.ne.s32.totalorder %s249, %s251
    %p255 = scmp.eq.s32.totalorder %s26, 0
    %p256 = por %p254, %p255
    %p257 = scmp.ne.s32.totalorder %s249, %s251
    %p258 = scmp.eq.s32.totalorder %s31, 1
    %p259 = por %p257, %p258
    %p260 = scmp.ne.s32.totalorder %s251, %s252
    %p261 = scmp.eq.s32.totalorder %s31, 0
    %p262 = por %p260, %p261
    %p263 = scmp.ne.s32.totalorder %s251, %s252
    %p264 = scmp.eq.s32.totalorder %s32, 1
    %p265 = por %p263, %p264
    %p267 = scmp.ne.s32.totalorder %s252, %s266
    %p268 = scmp.eq.s32.totalorder %s32, 0
    %p269 = por %p267, %p268
    %s271 = sadd.s32 %s270, 1
    %p274 = scmp.eq.s32.totalorder %s26, 1
    %p275 = scmp.ne.s32.totalorder %s270, %s272
    %p276 = scmp.eq.s32.totalorder %s26, 0
    %p277 = por %p275, %p276
    %p278 = scmp.ne.s32.totalorder %s270, %s272
    %p279 = scmp.eq.s32.totalorder %s31, 1
    %p280 = por %p278, %p279
    %p281 = scmp.ne.s32.totalorder %s272, %s273
    %p282 = scmp.eq.s32.totalorder %s31, 0
    %p283 = por %p281, %p282
    %p284 = scmp.ne.s32.totalorder %s272, %s273
    %p285 = scmp.eq.s32.totalorder %s32, 1
    %p286 = por %p284, %p285
    %p288 = scmp.ne.s32.totalorder %s273, %s287
    %p289 = scmp.eq.s32.totalorder %s32, 0
    %p290 = por %p288, %p289
    %s292 = sadd.s32 %s291, 1
    %p295 = scmp.eq.s32.totalorder %s26, 1
    %p296 = scmp.ne.s32.totalorder %s291, %s293
    %p297 = scmp.eq.s32.totalorder %s26, 0
    %p298 = por %p296, %p297
    %p299 = scmp.ne.s32.totalorder %s291, %s293
    %p300 = scmp.eq.s32.totalorder %s31, 1
    %p301 = por %p299, %p300
    %p302 = scmp.ne.s32.totalorder %s293, %s294
    %p303 = scmp.eq.s32.totalorder %s31, 0
    %p304 = por %p302, %p303
    %p305 = scmp.ne.s32.totalorder %s293, %s294
    %p306 = scmp.eq.s32.totalorder %s32, 1
    %p307 = por %p305, %p306
    %p309 = scmp.ne.s32.totalorder %s294, %s308
    %p310 = scmp.eq.s32.totalorder %s32, 0
    %p311 = por %p309, %p310
    %s312 = ssub.s32 %s26, %s33
    %p313 = scmp.eq.s32.totalorder %s312, 0
    %s315 = sadd.s32 %s314, 1
    %s316 = scalar_select %p313, %s314, %s315
    %p319 = pneg %p313
    %p320 = scmp.eq.s32.totalorder %s26, 1
    %p321 = por %p319, %p320
    %p322 = scmp.ne.s32.totalorder %s314, %s317
    %p323 = scmp.eq.s32.totalorder %s26, 0
    %p324 = por %p322, %p323
    %p325 = scmp.ne.s32.totalorder %s314, %s317
    %p326 = scmp.eq.s32.totalorder %s31, 1
    %p327 = por %p325, %p326
    %p328 = scmp.ne.s32.totalorder %s317, %s318
    %p329 = scmp.eq.s32.totalorder %s31, 0
    %p330 = por %p328, %p329
    %p331 = scmp.ne.s32.totalorder %s317, %s318
    %p332 = scmp.eq.s32.totalorder %s32, 1
    %p333 = por %p331, %p332
    %p335 = scmp.ne.s32.totalorder %s318, %s334
    %p336 = scmp.eq.s32.totalorder %s32, 0
    %p337 = por %p335, %p336
    %p338 = scmp.le.s32.totalorder 1, %s26
    %p339 = scmp.lt.s32.totalorder %s26, 3
    %p340 = pnand %p338, %p339
    %p341 = pneg %p340
    // Predicated region
    $region9: #{_lambda_.6} parent=5 // pred_check
      _
    $region10: #{_lambda_.6} parent=5 // pred_check_branch
      %343 = sbr.rel (%p340) target = $region12
    $region11: #{_lambda_.6} parent=5 // pred_region
      %s344 = ssub.s32 %s26, 1
      // Predicated region
      $region13: #{_lambda_.6} parent=11 // pred_check
        %p345 = pneg %p73
      $region14: #{_lambda_.6} parent=11 // pred_check_branch
        %347 = sbr.rel (%p345) target = $region16
      $region15: #{_lambda_.6} parent=11 // pred_region
        _
      $region16: #{_lambda_.6} parent=11 // pred_fallthru
        _
      // Predicated region
      $region17: #{_lambda_.6} parent=11 // pred_check
        %p348 = pneg %p94
      $region18: #{_lambda_.6} parent=11 // pred_check_branch
        %350 = sbr.rel (%p348) target = $region20
      $region19: #{_lambda_.6} parent=11 // pred_region
        _
      $region20: #{_lambda_.6} parent=11 // pred_fallthru
        _
      // Predicated region
      $region21: #{_lambda_.6} parent=11 // pred_check
        %p351 = pneg %p115
      $region22: #{_lambda_.6} parent=11 // pred_check_branch
        %353 = sbr.rel (%p351) target = $region24
      $region23: #{_lambda_.6} parent=11 // pred_region
        _
      $region24: #{_lambda_.6} parent=11 // pred_fallthru
        _
      // Predicated region
      $region25: #{_lambda_.6} parent=11 // pred_check
        %p354 = pneg %p136
      $region26: #{_lambda_.6} parent=11 // pred_check_branch
        %356 = sbr.rel (%p354) target = $region28
      $region27: #{_lambda_.6} parent=11 // pred_region
        _
      $region28: #{_lambda_.6} parent=11 // pred_fallthru
        _
      // Predicated region
      $region29: #{_lambda_.6} parent=11 // pred_check
        %p357 = pneg %p157
      $region30: #{_lambda_.6} parent=11 // pred_check_branch
        %359 = sbr.rel (%p357) target = $region32
      $region31: #{_lambda_.6} parent=11 // pred_region
        _
      $region32: #{_lambda_.6} parent=11 // pred_fallthru
        _
      // Predicated region
      $region33: #{_lambda_.6} parent=11 // pred_check
        %p360 = pneg %p178
      $region34: #{_lambda_.6} parent=11 // pred_check_branch
        %362 = sbr.rel (%p360) target = $region36
      $region35: #{_lambda_.6} parent=11 // pred_region
        _
      $region36: #{_lambda_.6} parent=11 // pred_fallthru
        _
      // Predicated region
      $region37: #{_lambda_.6} parent=11 // pred_check
        %p363 = pneg %p199
      $region38: #{_lambda_.6} parent=11 // pred_check_branch
        %365 = sbr.rel (%p363) target = $region40
      $region39: #{_lambda_.6} parent=11 // pred_region
        _
      $region40: #{_lambda_.6} parent=11 // pred_fallthru
        _
      // Predicated region
      $region41: #{_lambda_.6} parent=11 // pred_check
        %p366 = pneg %p220
      $region42: #{_lambda_.6} parent=11 // pred_check_branch
        %368 = sbr.rel (%p366) target = $region44
      $region43: #{_lambda_.6} parent=11 // pred_region
        _
      $region44: #{_lambda_.6} parent=11 // pred_fallthru
        _
      // Predicated region
      $region45: #{_lambda_.6} parent=11 // pred_check
        %p369 = pneg %p241
      $region46: #{_lambda_.6} parent=11 // pred_check_branch
        %371 = sbr.rel (%p369) target = $region48
      $region47: #{_lambda_.6} parent=11 // pred_region
        _
      $region48: #{_lambda_.6} parent=11 // pred_fallthru
        _
      // Predicated region
      $region49: #{_lambda_.6} parent=11 // pred_check
        %p372 = pneg %p262
      $region50: #{_lambda_.6} parent=11 // pred_check_branch
        %374 = sbr.rel (%p372) target = $region52
      $region51: #{_lambda_.6} parent=11 // pred_region
        _
      $region52: #{_lambda_.6} parent=11 // pred_fallthru
        _
      // Predicated region
      $region53: #{_lambda_.6} parent=11 // pred_check
        %p375 = pneg %p283
      $region54: #{_lambda_.6} parent=11 // pred_check_branch
        %377 = sbr.rel (%p375) target = $region56
      $region55: #{_lambda_.6} parent=11 // pred_region
        _
      $region56: #{_lambda_.6} parent=11 // pred_fallthru
        _
      // Predicated region
      $region57: #{_lambda_.6} parent=11 // pred_check
        %p378 = pneg %p304
      $region58: #{_lambda_.6} parent=11 // pred_check_branch
        %380 = sbr.rel (%p378) target = $region60
      $region59: #{_lambda_.6} parent=11 // pred_region
        _
      $region60: #{_lambda_.6} parent=11 // pred_fallthru
        _
    $region12: #{_lambda_.6} parent=5 // pred_fallthru
      _
    %p381 = scmp.lt.s32.totalorder %s26, 2
    // Predicated region
    $region61: #{_lambda_.6} parent=5 // pred_check
      %p382 = pneg %p381
    $region62: #{_lambda_.6} parent=5 // pred_check_branch
      %384 = sbr.rel (%p382) target = $region64
    $region63: #{_lambda_.6} parent=5 // pred_region
      // Predicated region
      $region65: #{_lambda_.6} parent=63 // pred_check
        %p385 = pneg %p46
      $region66: #{_lambda_.6} parent=63 // pred_check_branch
        %387 = sbr.rel (%p385) target = $region68
      $region67: #{_lambda_.6} parent=63 // pred_region
        %p388 = scmp.lt.s32.totalorder %s26, 1
        %s389 = scalar_select %p388, %s26, 1
        %s390 = smul.addr %s389, 8
        %s391 = scalar_lea.vmem %s1, %s390
      $region68: #{_lambda_.6} parent=63 // pred_fallthru
        _
    $region64: #{_lambda_.6} parent=5 // pred_fallthru
      _
    %p392 = scmp.le.s32.totalorder 1, %s26
    %p393 = scmp.lt.s32.totalorder %s26, 3
    %p394 = pnand %p392, %p393
    %p395 = pneg %p394
    // Predicated region
    $region69: #{_lambda_.6} parent=5 // pred_check
      _
    $region70: #{_lambda_.6} parent=5 // pred_check_branch
      %397 = sbr.rel (%p394) target = $region72
    $region71: #{_lambda_.6} parent=5 // pred_region
      %s398 = ssub.s32 %s26, 1
      %p399 = scmp.lt.s32.totalorder %s31, 1
      %s400 = scalar_select %p399, %s31, 1
      %s401 = smul.addr %s400, 8
      %s402 = scalar_lea.vmem %s1, %s401
      %p403 = pneg %p52
      %p404 = pneg %p49
      %p405 = pneg %p73
      %p406 = pneg %p70
      %p407 = pneg %p94
      %p408 = pneg %p91
      %p409 = pneg %p115
      %p410 = pneg %p112
      %p411 = pneg %p136
      %p412 = pneg %p133
      %p413 = pneg %p157
      %p414 = pneg %p154
      %p415 = pneg %p178
      %p416 = pneg %p175
      %p417 = pneg %p199
      %p418 = pneg %p196
      %p419 = pneg %p220
      %p420 = pneg %p217
      %p421 = pneg %p241
      %p422 = pneg %p238
      %p423 = pneg %p262
      %p424 = pneg %p259
      %p425 = pneg %p283
      %p426 = pneg %p280
      %p427 = pneg %p304
      %p428 = pneg %p301
      %p429 = pneg %p330
      %p430 = pneg %p327
      %p431 = scmp.lt.s32.totalorder %s31, 1
      %s432 = scalar_select %p431, %s31, 1
      %s433 = smul.addr %s432, 8
      %s434 = scalar_lea.vmem %s14, %s433
      %p435 = scmp.lt.s32.totalorder %s31, 1
      %s436 = scalar_select %p435, %s31, 1
      %s437 = smul.addr %s436, 8
      %s438 = scalar_lea.vmem %s1, %s437
      %p439 = scmp.lt.s32.totalorder %s31, 1
      %s440 = scalar_select %p439, %s31, 1
      %s441 = smul.addr %s440, 8
      %s442 = scalar_lea.vmem %s14, %s441
      %v443 = vld [vmem:[%s438] sm:$0xff]
      %v444 = vld [vmem:[%s3] sm:$0x1]
      %v445 = vld [vmem:[%s4] sm:$0x1]
      %446 = vadd.xlane.f32.xlu0 %v443
      %v447 = vpop.xlane.xlu0 %446
      %v448 = vrcp.pop 128.0
      %v449 = vmul.f32 %v447, %v448
      %v450 = vsub.f32 %v443, %v449
      %v451 = vmul.f32 %v450, %v450
      %452 = vadd.xlane.f32.xlu0 %v451
      %v453 = vpop.xlane.xlu0 %452
      %v454 = vmul.f32 %v453, %v448
      %v455 = vadd.f32 %v454, 1e-05
      %v456 = vrsqrt.pop %v455
      %v457 = vmul.f32 %v450, %v456
      %v459 = vlaneseq
      %v460 = vshrl.u32 %v459, 7
      %v461 = vsub.s32 0, %v460
      %v462 = vrot.slane %v444, %v461
      %v464 = vmul.f32 %v457, %v462
      %v466 = vlaneseq
      %v467 = vshrl.u32 %v466, 7
      %v468 = vsub.s32 0, %v467
      %v469 = vrot.slane %v445, %v468
      %v471 = vadd.f32 %v464, %v469
      %s472 = sld [smem:[#allocation3 + %s31]]
      %v473 = vlaneseq
      %v474 = vshrl.u32 %v473, 7
      %v475 = vstv %s472
      %vm476 = vcmp.lt.s32.totalorder %v474, %v475
      %v477 = vlaneseq
      %v478 = vand.u32 %v477, 127
      %vm479 = vcmp.lt.s32.totalorder %v478, %v475
      %v480 = vsel %vm476, 1, 0
      %vm481 = vcmp.eq.s32.totalorder %v480, 1
      %v482 = vsel %vm479, 1, 0
      %vm483 = vcmp.eq.s32.totalorder %v482, 1
      %vm484 = vmand %vm481, %vm483
      %v485 = vld [vmem:[%s5] sm:$0xff]
      %v486 = vld [vmem:[%s5 + $0x8] sm:$0xff]
      %v487 = vld [vmem:[%s5 + $0x10] sm:$0xff]
      %v488 = vld [vmem:[%s5 + $0x18] sm:$0xff]
      %v489 = vld [vmem:[%s5 + $0x20] sm:$0xff]
      %v490 = vld [vmem:[%s5 + $0x28] sm:$0xff]
      %v491 = vld [vmem:[%s5 + $0x30] sm:$0xff]
      %v492 = vld [vmem:[%s5 + $0x38] sm:$0xff]
      %v493 = vld [vmem:[%s5 + $0x40] sm:$0xff]
      %v494 = vld [vmem:[%s5 + $0x48] sm:$0xff]
      %v495 = vld [vmem:[%s5 + $0x50] sm:$0xff]
      %v496 = vld [vmem:[%s5 + $0x58] sm:$0xff]
      %v497 = vld [vmem:[%s5 + $0x60] sm:$0xff]
      %v498 = vld [vmem:[%s5 + $0x68] sm:$0xff]
      %v499 = vld [vmem:[%s5 + $0x70] sm:$0xff]
      %v500 = vld [vmem:[%s5 + $0x78] sm:$0xff]
      %v501 = vld [vmem:[%s5 + $0x80] sm:$0xff]
      %v502 = vld [vmem:[%s5 + $0x88] sm:$0xff]
      %v503 = vld [vmem:[%s5 + $0x90] sm:$0xff]
      %v504 = vld [vmem:[%s5 + $0x98] sm:$0xff]
      %v505 = vld [vmem:[%s5 + $0xa0] sm:$0xff]
      %v506 = vld [vmem:[%s5 + $0xa8] sm:$0xff]
      %v507 = vld [vmem:[%s5 + $0xb0] sm:$0xff]
      %v508 = vld [vmem:[%s5 + $0xb8] sm:$0xff]
      %v509 = vld [vmem:[%s5 + $0xc0] sm:$0xff]
      %v510 = vld [vmem:[%s5 + $0xc8] sm:$0xff]
      %v511 = vld [vmem:[%s5 + $0xd0] sm:$0xff]
      %v512 = vld [vmem:[%s5 + $0xd8] sm:$0xff]
      %v513 = vld [vmem:[%s5 + $0xe0] sm:$0xff]
      %v514 = vld [vmem:[%s5 + $0xe8] sm:$0xff]
      %v515 = vld [vmem:[%s5 + $0xf0] sm:$0xff]
      %v516 = vld [vmem:[%s5 + $0xf8] sm:$0xff]
      %v517 = vld [vmem:[%s5 + $0x100] sm:$0xff]
      %v518 = vld [vmem:[%s5 + $0x108] sm:$0xff]
      %v519 = vld [vmem:[%s5 + $0x110] sm:$0xff]
      %v520 = vld [vmem:[%s5 + $0x118] sm:$0xff]
      %v521 = vld [vmem:[%s5 + $0x120] sm:$0xff]
      %v522 = vld [vmem:[%s5 + $0x128] sm:$0xff]
      %v523 = vld [vmem:[%s5 + $0x130] sm:$0xff]
      %v524 = vld [vmem:[%s5 + $0x138] sm:$0xff]
      %v525 = vld [vmem:[%s5 + $0x140] sm:$0xff]
      %v526 = vld [vmem:[%s5 + $0x148] sm:$0xff]
      %v527 = vld [vmem:[%s5 + $0x150] sm:$0xff]
      %v528 = vld [vmem:[%s5 + $0x158] sm:$0xff]
      %v529 = vld [vmem:[%s5 + $0x160] sm:$0xff]
      %v530 = vld [vmem:[%s5 + $0x168] sm:$0xff]
      %v531 = vld [vmem:[%s5 + $0x170] sm:$0xff]
      %v532 = vld [vmem:[%s5 + $0x178] sm:$0xff]
      %533 = vmatprep.subr.mxu0 %v486
      %534 = vmatpush1.msra.mxu0 %v485
      %535 = vmatprep.subr.mxu0 %v489
      %536 = vmatpush1.msra.mxu0 %v488
      %537 = vmatprep.subr.mxu0 %v492
      %538 = vmatpush1.msra.mxu0 %v491
      %539 = vmatprep.subr.mxu0 %v495
      %540 = vmatpush1.msra.mxu0 %v494
      %541 = vmatprep.subr.mxu0 %v498
      %542 = vmatpush1.msra.mxu0 %v497
      %543 = vmatprep.subr.mxu0 %v501
      %544 = vmatpush1.msra.mxu0 %v500
      %545 = vmatprep.subr.mxu0 %v504
      %546 = vmatpush1.msra.mxu0 %v503
      %547 = vmatprep.subr.mxu0 %v507
      %548 = vmatpush1.msra.mxu0 %v506
      %549 = vmatprep.subr.mxu0 %v510
      %550 = vmatpush1.msra.mxu0 %v509
      %551 = vmatprep.subr.mxu0 %v513
      %552 = vmatpush1.msra.mxu0 %v512
      %553 = vmatprep.subr.mxu0 %v516
      %554 = vmatpush1.msra.mxu0 %v515
      %555 = vmatprep.subr.mxu0 %v519
      %556 = vmatpush1.msra.mxu0 %v518
      %557 = vmatprep.subr.mxu0 %v522
      %558 = vmatpush1.msra.mxu0 %v521
      %559 = vmatprep.subr.mxu0 %v525
      %560 = vmatpush1.msra.mxu0 %v524
      %561 = vmatprep.subr.mxu0 %v528
      %562 = vmatpush1.msra.mxu0 %v527
      %563 = vmatprep.subr.mxu0 %v531
      %564 = vmatpush1.msra.mxu0 %v530
      %565 = vmatprep.subr.mxu0 0.0
      %566 = vmatpush1.msra.mxu0 0.0
      %567 = vmatprep.subr.mxu0 0.0
      %568 = vmatpush1.msra.mxu0 0.0
      %569 = vmatprep.subr.mxu0 0.0
      %570 = vmatpush1.msra.mxu0 0.0
      %571 = vmatprep.subr.mxu0 0.0
      %572 = vmatpush1.msra.mxu0 0.0
      %573 = vmatprep.subr.mxu0 0.0
      %574 = vmatpush1.msra.mxu0 0.0
      %575 = vmatprep.subr.mxu0 0.0
      %576 = vmatpush1.msra.mxu0 0.0
      %577 = vmatprep.subr.mxu0 0.0
      %578 = vmatpush1.msra.mxu0 0.0
      %579 = vmatprep.subr.mxu0 0.0
      %580 = vmatpush1.msra.mxu0 0.0
      %581 = vmatprep.subr.mxu0 0.0
      %582 = vmatpush1.msra.mxu0 0.0
      %583 = vmatprep.subr.mxu0 0.0
      %584 = vmatpush1.msra.mxu0 0.0
      %585 = vmatprep.subr.mxu0 0.0
      %586 = vmatpush1.msra.mxu0 0.0
      %587 = vmatprep.subr.mxu0 0.0
      %588 = vmatpush1.msra.mxu0 0.0
      %589 = vmatprep.subr.mxu0 0.0
      %590 = vmatpush1.msra.mxu0 0.0
      %591 = vmatprep.subr.mxu0 0.0
      %592 = vmatpush1.msra.mxu0 0.0
      %593 = vmatprep.subr.mxu0 0.0
      %594 = vmatpush1.msra.mxu0 0.0
      %595 = vmatprep.subr.mxu0 0.0
      %596 = vmatpush1.msra.mxu0 0.0
      %597 = vmatprep.mubr.f32.mxu0 0.0
      %598 = vmatmul.mubr.f32.gmra.mrb[0].mxu0 %v471
      %v599 = vpop.f32.mrb[0].mxu0
      %v600 = vadd.f32 0.0, %v599
      %v601 = vpop.f32.mrb[0].mxu0
      %v602 = vadd.f32 0.0, %v601
      %603 = vdwg.mxu0
      %604 = vmatprep.subr.mxu0 0.0
      %605 = vmatpush1.msra.mxu0 %v487
      %606 = vmatprep.subr.mxu0 0.0
      %607 = vmatpush1.msra.mxu0 %v490
      %608 = vmatprep.subr.mxu0 0.0
      %609 = vmatpush1.msra.mxu0 %v493
      %610 = vmatprep.subr.mxu0 0.0
      %611 = vmatpush1.msra.mxu0 %v496
      %612 = vmatprep.subr.mxu0 0.0
      %613 = vmatpush1.msra.mxu0 %v499
      %614 = vmatprep.subr.mxu0 0.0
      %615 = vmatpush1.msra.mxu0 %v502
      %616 = vmatprep.subr.mxu0 0.0
      %617 = vmatpush1.msra.mxu0 %v505
      %618 = vmatprep.subr.mxu0 0.0
      %619 = vmatpush1.msra.mxu0 %v508
      %620 = vmatprep.subr.mxu0 0.0
      %621 = vmatpush1.msra.mxu0 %v511
      %622 = vmatprep.subr.mxu0 0.0
      %623 = vmatpush1.msra.mxu0 %v514
      %624 = vmatprep.subr.mxu0 0.0
      %625 = vmatpush1.msra.mxu0 %v517
      %626 = vmatprep.subr.mxu0 0.0
      %627 = vmatpush1.msra.mxu0 %v520
      %628 = vmatprep.subr.mxu0 0.0
      %629 = vmatpush1.msra.mxu0 %v523
      %630 = vmatprep.subr.mxu0 0.0
      %631 = vmatpush1.msra.mxu0 %v526
      %632 = vmatprep.subr.mxu0 0.0
      %633 = vmatpush1.msra.mxu0 %v529
      %634 = vmatprep.subr.mxu0 0.0
      %635 = vmatpush1.msra.mxu0 %v532
      %636 = vmatprep.subr.mxu0 0.0
      %637 = vmatpush1.msra.mxu0 0.0
      %638 = vmatprep.subr.mxu0 0.0
      %639 = vmatpush1.msra.mxu0 0.0
      %640 = vmatprep.subr.mxu0 0.0
      %641 = vmatpush1.msra.mxu0 0.0
      %642 = vmatprep.subr.mxu0 0.0
      %643 = vmatpush1.msra.mxu0 0.0
      %644 = vmatprep.subr.mxu0 0.0
      %645 = vmatpush1.msra.mxu0 0.0
      %646 = vmatprep.subr.mxu0 0.0
      %647 = vmatpush1.msra.mxu0 0.0
      %648 = vmatprep.subr.mxu0 0.0
      %649 = vmatpush1.msra.mxu0 0.0
      %650 = vmatprep.subr.mxu0 0.0
      %651 = vmatpush1.msra.mxu0 0.0
      %652 = vmatprep.subr.mxu0 0.0
      %653 = vmatpush1.msra.mxu0 0.0
      %654 = vmatprep.subr.mxu0 0.0
      %655 = vmatpush1.msra.mxu0 0.0
      %656 = vmatprep.subr.mxu0 0.0
      %657 = vmatpush1.msra.mxu0 0.0
      %658 = vmatprep.subr.mxu0 0.0
      %659 = vmatpush1.msra.mxu0 0.0
      %660 = vmatprep.subr.mxu0 0.0
      %661 = vmatpush1.msra.mxu0 0.0
      %662 = vmatprep.subr.mxu0 0.0
      %663 = vmatpush1.msra.mxu0 0.0
      %664 = vmatprep.subr.mxu0 0.0
      %665 = vmatpush1.msra.mxu0 0.0
      %666 = vmatprep.subr.mxu0 0.0
      %667 = vmatpush1.msra.mxu0 0.0
      %668 = vmatprep.mubr.f32.mxu0 0.0
      %669 = vmatmul.mubr.f32.gmra.mrb[0].mxu0 %v471
      %v670 = vpop.f32.mrb[0].mxu0
      %v671 = vadd.f32 0.0, %v670
      %v672 = vpop.f32.mrb[0].mxu0
      %673 = vdwg.mxu0
      %vm674 = vcmask 261120
      %v676 = vsel %vm674, %v600, 0
      %v679 = vsel %vm674, %v602, 0
      %681 = vmatprep.subr.mxu0 0.0
      %682 = vmatpush1.xpose.msra.mxu0 %v679
      %683 = vmatprep.subr.mxu0 0.0
      %684 = vmatpush1.xpose.msra.mxu0 0.0
      %685 = vmatprep.subr.mxu0 0.0
      %686 = vmatpush1.xpose.msra.mxu0 0.0
      %687 = vmatprep.subr.mxu0 0.0
      %688 = vmatpush1.xpose.msra.mxu0 0.0
      %689 = vmatprep.subr.mxu0 0.0
      %690 = vmatpush1.xpose.msra.mxu0 0.0
      %691 = vmatprep.subr.mxu0 0.0
      %692 = vmatpush1.xpose.msra.mxu0 0.0
      %693 = vmatprep.subr.mxu0 0.0
      %694 = vmatpush1.xpose.msra.mxu0 0.0
      %695 = vmatprep.subr.mxu0 0.0
      %696 = vmatpush1.xpose.msra.mxu0 0.0
      %697 = vmatprep.subr.mxu0 0.0
      %698 = vmatpush1.xpose.msra.mxu0 0.0
      %699 = vmatprep.subr.mxu0 0.0
      %700 = vmatpush1.xpose.msra.mxu0 0.0
      %701 = vmatprep.subr.mxu0 0.0
      %702 = vmatpush1.xpose.msra.mxu0 0.0
      %703 = vmatprep.subr.mxu0 0.0
      %704 = vmatpush1.xpose.msra.mxu0 0.0
      %705 = vmatprep.subr.mxu0 0.0
      %706 = vmatpush1.xpose.msra.mxu0 0.0
      %707 = vmatprep.subr.mxu0 0.0
      %708 = vmatpush1.xpose.msra.mxu0 0.0
      %709 = vmatprep.subr.mxu0 0.0
      %710 = vmatpush1.xpose.msra.mxu0 0.0
      %711 = vmatprep.subr.mxu0 0.0
      %712 = vmatpush1.xpose.msra.mxu0 0.0
      %713 = vmatprep.subr.mxu0 0.0
      %714 = vmatpush1.xpose.msra.mxu0 0.0
      %715 = vmatprep.subr.mxu0 0.0
      %716 = vmatpush1.xpose.msra.mxu0 0.0
      %717 = vmatprep.subr.mxu0 0.0
      %718 = vmatpush1.xpose.msra.mxu0 0.0
      %719 = vmatprep.subr.mxu0 0.0
      %720 = vmatpush1.xpose.msra.mxu0 0.0
      %721 = vmatprep.subr.mxu0 0.0
      %722 = vmatpush1.xpose.msra.mxu0 0.0
      %723 = vmatprep.subr.mxu0 0.0
      %724 = vmatpush1.xpose.msra.mxu0 0.0
      %725 = vmatprep.subr.mxu0 0.0
      %726 = vmatpush1.xpose.msra.mxu0 0.0
      %727 = vmatprep.subr.mxu0 0.0
      %728 = vmatpush1.xpose.msra.mxu0 0.0
      %729 = vmatprep.subr.mxu0 0.0
      %730 = vmatpush1.xpose.msra.mxu0 0.0
      %731 = vmatprep.subr.mxu0 0.0
      %732 = vmatpush1.xpose.msra.mxu0 0.0
      %733 = vmatprep.subr.mxu0 0.0
      %734 = vmatpush1.xpose.msra.mxu0 0.0
      %735 = vmatprep.subr.mxu0 0.0
      %736 = vmatpush1.xpose.msra.mxu0 0.0
      %737 = vmatprep.subr.mxu0 0.0
      %738 = vmatpush1.xpose.msra.mxu0 0.0
      %739 = vmatprep.subr.mxu0 0.0
      %740 = vmatpush1.xpose.msra.mxu0 0.0
      %741 = vmatprep.subr.mxu0 0.0
      %742 = vmatpush1.xpose.msra.mxu0 0.0
      %743 = vmatprep.subr.mxu0 0.0
      %744 = vmatpush1.xpose.msra.mxu0 0.0
      %745 = vmatprep.mubr.f32.mxu0 0.0
      %746 = vmatmul.mubr.f32.gmra.mrb[0].mxu0 %v676
      %v747 = vpop.f32.mrb[0].mxu0
      %v748 = vadd.f32 0.0, %v747
      %v749 = vpop.f32.mrb[0].mxu0
      %750 = vdwg.mxu0
      %v751 = vmul.f32 %v748, 0.17677669
      %v752 = vld [vmem:[%s2] sm:$0xff]
      %v753 = vadd.f32 %v751, %v752
      %v754 = vsel %vm484, %v753, -3.4028235e+38
      %vm755 = vcmask 64512
      %v756 = vsel %vm755, %v754, -inf
      %757 = vmax.xlane.f32.xlu0 %v756
      %v758 = vpop.xlane.xlu0 %757
      %v759 = vsub.f32 %v754, %v758
      %v760 = vmul.f32 %v759, 1.442695
      %v761 = vpow.pop %v760
      %v762 = vsel %vm755, %v761, 0.0
      %763 = vadd.xlane.f32.xlu0 %v762
      %v764 = vpop.xlane.xlu0 %763
      %v765 = vrcp.pop %v764
      %v766 = vmul.f32 %v761, %v765
      %v768 = vsel %vm755, %v766, 0
      %770 = vmatprep.subr.mxu0 0.0
      %771 = vmatpush1.msra.mxu0 %v671
      %772 = vmatprep.subr.mxu0 0.0
      %773 = vmatpush1.msra.mxu0 0.0
      %774 = vmatprep.subr.mxu0 0.0
      %775 = vmatpush1.msra.mxu0 0.0
      %776 = vmatprep.subr.mxu0 0.0
      %777 = vmatpush1.msra.mxu0 0.0
      %778 = vmatprep.subr.mxu0 0.0
      %779 = vmatpush1.msra.mxu0 0.0
      %780 = vmatprep.subr.mxu0 0.0
      %781 = vmatpush1.msra.mxu0 0.0
      %782 = vmatprep.subr.mxu0 0.0
      %783 = vmatpush1.msra.mxu0 0.0
      %784 = vmatprep.subr.mxu0 0.0
      %785 = vmatpush1.msra.mxu0 0.0
      %786 = vmatprep.subr.mxu0 0.0
      %787 = vmatpush1.msra.mxu0 0.0
      %788 = vmatprep.subr.mxu0 0.0
      %789 = vmatpush1.msra.mxu0 0.0
      %790 = vmatprep.subr.mxu0 0.0
      %791 = vmatpush1.msra.mxu0 0.0
      %792 = vmatprep.subr.mxu0 0.0
      %793 = vmatpush1.msra.mxu0 0.0
      %794 = vmatprep.subr.mxu0 0.0
      %795 = vmatpush1.msra.mxu0 0.0
      %796 = vmatprep.subr.mxu0 0.0
      %797 = vmatpush1.msra.mxu0 0.0
      %798 = vmatprep.subr.mxu0 0.0
      %799 = vmatpush1.msra.mxu0 0.0
      %800 = vmatprep.subr.mxu0 0.0
      %801 = vmatpush1.msra.mxu0 0.0
      %802 = vmatprep.subr.mxu0 0.0
      %803 = vmatpush1.msra.mxu0 0.0
      %804 = vmatprep.subr.mxu0 0.0
      %805 = vmatpush1.msra.mxu0 0.0
      %806 = vmatprep.subr.mxu0 0.0
      %807 = vmatpush1.msra.mxu0 0.0
      %808 = vmatprep.subr.mxu0 0.0
      %809 = vmatpush1.msra.mxu0 0.0
      %810 = vmatprep.subr.mxu0 0.0
      %811 = vmatpush1.msra.mxu0 0.0
      %812 = vmatprep.subr.mxu0 0.0
      %813 = vmatpush1.msra.mxu0 0.0
      %814 = vmatprep.subr.mxu0 0.0
      %815 = vmatpush1.msra.mxu0 0.0
      %816 = vmatprep.subr.mxu0 0.0
      %817 = vmatpush1.msra.mxu0 0.0
      %818 = vmatprep.subr.mxu0 0.0
      %819 = vmatpush1.msra.mxu0 0.0
      %820 = vmatprep.subr.mxu0 0.0
      %821 = vmatpush1.msra.mxu0 0.0
      %822 = vmatprep.subr.mxu0 0.0
      %823 = vmatpush1.msra.mxu0 0.0
      %824 = vmatprep.subr.mxu0 0.0
      %825 = vmatpush1.msra.mxu0 0.0
      %826 = vmatprep.subr.mxu0 0.0
      %827 = vmatpush1.msra.mxu0 0.0
      %828 = vmatprep.subr.mxu0 0.0
      %829 = vmatpush1.msra.mxu0 0.0
      %830 = vmatprep.subr.mxu0 0.0
      %831 = vmatpush1.msra.mxu0 0.0
      %832 = vmatprep.subr.mxu0 0.0
      %833 = vmatpush1.msra.mxu0 0.0
      %834 = vmatprep.mubr.f32.mxu0 0.0
      %835 = vmatmul.mubr.f32.gmra.mrb[0].mxu0 %v768
      %v836 = vpop.f32.mrb[0].mxu0
      %v837 = vadd.f32 0.0, %v836
      %v838 = vpop.f32.mrb[0].mxu0
      %839 = vdwg.mxu0
      %840 = vrot.lane.b32.xlu0 %v600, 96
      %v841 = vpop.permute.xlu0 %840
      %842 = vrot.lane.b32.xlu0 %v602, 96
      %v843 = vpop.permute.xlu0 %842
      %v844 = vsel %vm674, %v841, 0
      %v846 = vsel %vm674, %v843, 0
      %848 = vmatprep.subr.mxu0 0.0
      %849 = vmatpush1.xpose.msra.mxu0 %v846
      %850 = vmatprep.subr.mxu0 0.0
      %851 = vmatpush1.xpose.msra.mxu0 0.0
      %852 = vmatprep.subr.mxu0 0.0
      %853 = vmatpush1.xpose.msra.mxu0 0.0
      %854 = vmatprep.subr.mxu0 0.0
      %855 = vmatpush1.xpose.msra.mxu0 0.0
      %856 = vmatprep.subr.mxu0 0.0
      %857 = vmatpush1.xpose.msra.mxu0 0.0
      %858 = vmatprep.subr.mxu0 0.0
      %859 = vmatpush1.xpose.msra.mxu0 0.0
      %860 = vmatprep.subr.mxu0 0.0
      %861 = vmatpush1.xpose.msra.mxu0 0.0
      %862 = vmatprep.subr.mxu0 0.0
      %863 = vmatpush1.xpose.msra.mxu0 0.0
      %864 = vmatprep.subr.mxu0 0.0
      %865 = vmatpush1.xpose.msra.mxu0 0.0
      %866 = vmatprep.subr.mxu0 0.0
      %867 = vmatpush1.xpose.msra.mxu0 0.0
      %868 = vmatprep.subr.mxu0 0.0
      %869 = vmatpush1.xpose.msra.mxu0 0.0
      %870 = vmatprep.subr.mxu0 0.0
      %871 = vmatpush1.xpose.msra.mxu0 0.0
      %872 = vmatprep.subr.mxu0 0.0
      %873 = vmatpush1.xpose.msra.mxu0 0.0
      %874 = vmatprep.subr.mxu0 0.0
      %875 = vmatpush1.xpose.msra.mxu0 0.0
      %876 = vmatprep.subr.mxu0 0.0
      %877 = vmatpush1.xpose.msra.mxu0 0.0
      %878 = vmatprep.subr.mxu0 0.0
      %879 = vmatpush1.xpose.msra.mxu0 0.0
      %880 = vmatprep.subr.mxu0 0.0
      %881 = vmatpush1.xpose.msra.mxu0 0.0
      %882 = vmatprep.subr.mxu0 0.0
      %883 = vmatpush1.xpose.msra.mxu0 0.0
      %884 = vmatprep.subr.mxu0 0.0
      %885 = vmatpush1.xpose.msra.mxu0 0.0
      %886 = vmatprep.subr.mxu0 0.0
      %887 = vmatpush1.xpose.msra.mxu0 0.0
      %888 = vmatprep.subr.mxu0 0.0
      %889 = vmatpush1.xpose.msra.mxu0 0.0
      %890 = vmatprep.subr.mxu0 0.0
      %891 = vmatpush1.xpose.msra.mxu0 0.0
      %892 = vmatprep.subr.mxu0 0.0
      %893 = vmatpush1.xpose.msra.mxu0 0.0
      %894 = vmatprep.subr.mxu0 0.0
      %895 = vmatpush1.xpose.msra.mxu0 0.0
      %896 = vmatprep.subr.mxu0 0.0
      %897 = vmatpush1.xpose.msra.mxu0 0.0
      %898 = vmatprep.subr.mxu0 0.0
      %899 = vmatpush1.xpose.msra.mxu0 0.0
      %900 = vmatprep.subr.mxu0 0.0
      %901 = vmatpush1.xpose.msra.mxu0 0.0
      %902 = vmatprep.subr.mxu0 0.0
      %903 = vmatpush1.xpose.msra.mxu0 0.0
      %904 = vmatprep.subr.mxu0 0.0
      %905 = vmatpush1.xpose.msra.mxu0 0.0
      %906 = vmatprep.subr.mxu0 0.0
      %907 = vmatpush1.xpose.msra.mxu0 0.0
      %908 = vmatprep.subr.mxu0 0.0
      %909 = vmatpush1.xpose.msra.mxu0 0.0
      %910 = vmatprep.subr.mxu0 0.0
      %911 = vmatpush1.xpose.msra.mxu0 0.0
      %912 = vmatprep.mubr.f32.mxu0 0.0
      %913 = vmatmul.mubr.f32.gmra.mrb[0].mxu0 %v844
      %v914 = vpop.f32.mrb[0].mxu0
      %v915 = vadd.f32 0.0, %v914
      %v916 = vpop.f32.mrb[0].mxu0
      %917 = vdwg.mxu0
      %v918 = vmul.f32 %v915, 0.17677669
      %s919 = scalar_lea.vmem %s2, 8
      %v920 = vld [vmem:[%s919] sm:$0xff]
      %v921 = vadd.f32 %v918, %v920
      %v922 = vsel %vm484, %v921, -3.4028235e+38
      %v923 = vsel %vm755, %v922, -inf
      %924 = vmax.xlane.f32.xlu0 %v923
      %v925 = vpop.xlane.xlu0 %924
      %v926 = vsub.f32 %v922, %v925
      %v927 = vmul.f32 %v926, 1.442695
      %v928 = vpow.pop %v927
      %v929 = vsel %vm755, %v928, 0.0
      %930 = vadd.xlane.f32.xlu0 %v929
      %v931 = vpop.xlane.xlu0 %930
      %v932 = vrcp.pop %v931
      %v933 = vmul.f32 %v928, %v932
      %935 = vrot.lane.b32.xlu0 %v671, 96
      %v936 = vpop.permute.xlu0 %935
      %v939 = vsel %vm755, %v933, 0
      %941 = vmatprep.subr.mxu0 0.0
      %942 = vmatpush1.msra.mxu0 %v936
      %943 = vmatprep.subr.mxu0 0.0
      %944 = vmatpush1.msra.mxu0 0.0
      %945 = vmatprep.subr.mxu0 0.0
      %946 = vmatpush1.msra.mxu0 0.0
      %947 = vmatprep.subr.mxu0 0.0
      %948 = vmatpush1.msra.mxu0 0.0
      %949 = vmatprep.subr.mxu0 0.0
      %950 = vmatpush1.msra.mxu0 0.0
      %951 = vmatprep.subr.mxu0 0.0
      %952 = vmatpush1.msra.mxu0 0.0
      %953 = vmatprep.subr.mxu0 0.0
      %954 = vmatpush1.msra.mxu0 0.0
      %955 = vmatprep.subr.mxu0 0.0
      %956 = vmatpush1.msra.mxu0 0.0
      %957 = vmatprep.subr.mxu0 0.0
      %958 = vmatpush1.msra.mxu0 0.0
      %959 = vmatprep.subr.mxu0 0.0
      %960 = vmatpush1.msra.mxu0 0.0
      %961 = vmatprep.subr.mxu0 0.0
      %962 = vmatpush1.msra.mxu0 0.0
      %963 = vmatprep.subr.mxu0 0.0
      %964 = vmatpush1.msra.mxu0 0.0
      %965 = vmatprep.subr.mxu0 0.0
      %966 = vmatpush1.msra.mxu0 0.0
      %967 = vmatprep.subr.mxu0 0.0
      %968 = vmatpush1.msra.mxu0 0.0
      %969 = vmatprep.subr.mxu0 0.0
      %970 = vmatpush1.msra.mxu0 0.0
      %971 = vmatprep.subr.mxu0 0.0
      %972 = vmatpush1.msra.mxu0 0.0
      %973 = vmatprep.subr.mxu0 0.0
      %974 = vmatpush1.msra.mxu0 0.0
      %975 = vmatprep.subr.mxu0 0.0
      %976 = vmatpush1.msra.mxu0 0.0
      %977 = vmatprep.subr.mxu0 0.0
      %978 = vmatpush1.msra.mxu0 0.0
      %979 = vmatprep.subr.mxu0 0.0
      %980 = vmatpush1.msra.mxu0 0.0
      %981 = vmatprep.subr.mxu0 0.0
      %982 = vmatpush1.msra.mxu0 0.0
      %983 = vmatprep.subr.mxu0 0.0
      %984 = vmatpush1.msra.mxu0 0.0
      %985 = vmatprep.subr.mxu0 0.0
      %986 = vmatpush1.msra.mxu0 0.0
      %987 = vmatprep.subr.mxu0 0.0
      %988 = vmatpush1.msra.mxu0 0.0
      %989 = vmatprep.subr.mxu0 0.0
      %990 = vmatpush1.msra.mxu0 0.0
      %991 = vmatprep.subr.mxu0 0.0
      %992 = vmatpush1.msra.mxu0 0.0
      %993 = vmatprep.subr.mxu0 0.0
      %994 = vmatpush1.msra.mxu0 0.0
      %995 = vmatprep.subr.mxu0 0.0
      %996 = vmatpush1.msra.mxu0 0.0
      %997 = vmatprep.subr.mxu0 0.0
      %998 = vmatpush1.msra.mxu0 0.0
      %999 = vmatprep.subr.mxu0 0.0
      %1000 = vmatpush1.msra.mxu0 0.0
      %1001 = vmatprep.subr.mxu0 0.0
      %1002 = vmatpush1.msra.mxu0 0.0
      %1003 = vmatprep.subr.mxu0 0.0
      %1004 = vmatpush1.msra.mxu0 0.0
      %1005 = vmatprep.mubr.f32.mxu0 0.0
      %1006 = vmatmul.mubr.f32.gmra.mrb[0].mxu0 %v939
      %v1007 = vpop.f32.mrb[0].mxu0
      %v1008 = vadd.f32 0.0, %v1007
      %v1009 = vpop.f32.mrb[0].mxu0
      %1010 = vdwg.mxu0
      %1011 = vrot.lane.b32.xlu0 %v600, 64
      %v1012 = vpop.permute.xlu0 %1011
      %1013 = vrot.lane.b32.xlu0 %v602, 64
      %v1014 = vpop.permute.xlu0 %1013
      %v1015 = vsel %vm674, %v1012, 0
      %v1017 = vsel %vm674, %v1014, 0
      %1019 = vmatprep.subr.mxu0 0.0
      %1020 = vmatpush1.xpose.msra.mxu0 %v1017
      %1021 = vmatprep.subr.mxu0 0.0
      %1022 = vmatpush1.xpose.msra.mxu0 0.0
      %1023 = vmatprep.subr.mxu0 0.0
      %1024 = vmatpush1.xpose.msra.mxu0 0.0
      %1025 = vmatprep.subr.mxu0 0.0
      %1026 = vmatpush1.xpose.msra.mxu0 0.0
      %1027 = vmatprep.subr.mxu0 0.0
      %1028 = vmatpush1.xpose.msra.mxu0 0.0
      %1029 = vmatprep.subr.mxu0 0.0
      %1030 = vmatpush1.xpose.msra.mxu0 0.0
      %1031 = vmatprep.subr.mxu0 0.0
      %1032 = vmatpush1.xpose.msra.mxu0 0.0
      %1033 = vmatprep.subr.mxu0 0.0
      %1034 = vmatpush1.xpose.msra.mxu0 0.0
      %1035 = vmatprep.subr.mxu0 0.0
      %1036 = vmatpush1.xpose.msra.mxu0 0.0
      %1037 = vmatprep.subr.mxu0 0.0
      %1038 = vmatpush1.xpose.msra.mxu0 0.0
      %1039 = vmatprep.subr.mxu0 0.0
      %1040 = vmatpush1.xpose.msra.mxu0 0.0
      %1041 = vmatprep.subr.mxu0 0.0
      %1042 = vmatpush1.xpose.msra.mxu0 0.0
      %1043 = vmatprep.subr.mxu0 0.0
      %1044 = vmatpush1.xpose.msra.mxu0 0.0
      %1045 = vmatprep.subr.mxu0 0.0
      %1046 = vmatpush1.xpose.msra.mxu0 0.0
      %1047 = vmatprep.subr.mxu0 0.0
      %1048 = vmatpush1.xpose.msra.mxu0 0.0
      %1049 = vmatprep.subr.mxu0 0.0
      %1050 = vmatpush1.xpose.msra.mxu0 0.0
      %1051 = vmatprep.subr.mxu0 0.0
      %1052 = vmatpush1.xpose.msra.mxu0 0.0
      %1053 = vmatprep.subr.mxu0 0.0
      %1054 = vmatpush1.xpose.msra.mxu0 0.0
      %1055 = vmatprep.subr.mxu0 0.0
      %1056 = vmatpush1.xpose.msra.mxu0 0.0
      %1057 = vmatprep.subr.mxu0 0.0
      %1058 = vmatpush1.xpose.msra.mxu0 0.0
      %1059 = vmatprep.subr.mxu0 0.0
      %1060 = vmatpush1.xpose.msra.mxu0 0.0
      %1061 = vmatprep.subr.mxu0 0.0
      %1062 = vmatpush1.xpose.msra.mxu0 0.0
      %1063 = vmatprep.subr.mxu0 0.0
      %1064 = vmatpush1.xpose.msra.mxu0 0.0
      %1065 = vmatprep.subr.mxu0 0.0
      %1066 = vmatpush1.xpose.msra.mxu0 0.0
      %1067 = vmatprep.subr.mxu0 0.0
      %1068 = vmatpush1.xpose.msra.mxu0 0.0
      %1069 = vmatprep.subr.mxu0 0.0
      %1070 = vmatpush1.xpose.msra.mxu0 0.0
      %1071 = vmatprep.subr.mxu0 0.0
      %1072 = vmatpush1.xpose.msra.mxu0 0.0
      %1073 = vmatprep.subr.mxu0 0.0
      %1074 = vmatpush1.xpose.msra.mxu0 0.0
      %1075 = vmatprep.subr.mxu0 0.0
      %1076 = vmatpush1.xpose.msra.mxu0 0.0
      %1077 = vmatprep.subr.mxu0 0.0
      %1078 = vmatpush1.xpose.msra.mxu0 0.0
      %1079 = vmatprep.subr.mxu0 0.0
      %1080 = vmatpush1.xpose.msra.mxu0 0.0
      %1081 = vmatprep.subr.mxu0 0.0
      %1082 = vmatpush1.xpose.msra.mxu0 0.0
      %1083 = vmatprep.mubr.f32.mxu0 0.0
      %1084 = vmatmul.mubr.f32.gmra.mrb[0].mxu0 %v1015
      %v1085 = vpop.f32.mrb[0].mxu0
      %v1086 = vadd.f32 0.0, %v1085
      %v1087 = vpop.f32.mrb[0].mxu0
      %1088 = vdwg.mxu0
      %v1089 = vmul.f32 %v1086, 0.17677669
      %s1090 = scalar_lea.vmem %s2, 16
      %v1091 = vld [vmem:[%s1090] sm:$0xff]
      %v1092 = vadd.f32 %v1089, %v1091
      %v1093 = vsel %vm484, %v1092, -3.4028235e+38
      %v1094 = vsel %vm755, %v1093, -inf
      %1095 = vmax.xlane.f32.xlu0 %v1094
      %v1096 = vpop.xlane.xlu0 %1095
      %v1097 = vsub.f32 %v1093, %v1096
      %v1098 = vmul.f32 %v1097, 1.442695
      %v1099 = vpow.pop %v1098
      %v1100 = vsel %vm755, %v1099, 0.0
      %1101 = vadd.xlane.f32.xlu0 %v1100
      %v1102 = vpop.xlane.xlu0 %1101
      %v1103 = vrcp.pop %v1102
      %v1104 = vmul.f32 %v1099, %v1103
      %1105 = vrot.lane.b32.xlu0 %v671, 64
      %v1106 = vpop.permute.xlu0 %1105
      %v1109 = vsel %vm755, %v1104, 0
      %1111 = vmatprep.subr.mxu0 0.0
      %1112 = vmatpush1.msra.mxu0 %v1106
      %1113 = vmatprep.subr.mxu0 0.0
      %1114 = vmatpush1.msra.mxu0 0.0
      %1115 = vmatprep.subr.mxu0 0.0
      %1116 = vmatpush1.msra.mxu0 0.0
      %1117 = vmatprep.subr.mxu0 0.0
      %1118 = vmatpush1.msra.mxu0 0.0
      %1119 = vmatprep.subr.mxu0 0.0
      %1120 = vmatpush1.msra.mxu0 0.0
      %1121 = vmatprep.subr.mxu0 0.0
      %1122 = vmatpush1.msra.mxu0 0.0
      %1123 = vmatprep.subr.mxu0 0.0
      %1124 = vmatpush1.msra.mxu0 0.0
      %1125 = vmatprep.subr.mxu0 0.0
      %1126 = vmatpush1.msra.mxu0 0.0
      %1127 = vmatprep.subr.mxu0 0.0
      %1128 = vmatpush1.msra.mxu0 0.0
      %1129 = vmatprep.subr.mxu0 0.0
      %1130 = vmatpush1.msra.mxu0 0.0
      %1131 = vmatprep.subr.mxu0 0.0
      %1132 = vmatpush1.msra.mxu0 0.0
      %1133 = vmatprep.subr.mxu0 0.0
      %1134 = vmatpush1.msra.mxu0 0.0
      %1135 = vmatprep.subr.mxu0 0.0
      %1136 = vmatpush1.msra.mxu0 0.0
      %1137 = vmatprep.subr.mxu0 0.0
      %1138 = vmatpush1.msra.mxu0 0.0
      %1139 = vmatprep.subr.mxu0 0.0
      %1140 = vmatpush1.msra.mxu0 0.0
      %1141 = vmatprep.subr.mxu0 0.0
      %1142 = vmatpush1.msra.mxu0 0.0
      %1143 = vmatprep.subr.mxu0 0.0
      %1144 = vmatpush1.msra.mxu0 0.0
      %1145 = vmatprep.subr.mxu0 0.0
      %1146 = vmatpush1.msra.mxu0 0.0
      %1147 = vmatprep.subr.mxu0 0.0
      %1148 = vmatpush1.msra.mxu0 0.0
      %1149 = vmatprep.subr.mxu0 0.0
      %1150 = vmatpush1.msra.mxu0 0.0
      %1151 = vmatprep.subr.mxu0 0.0
      %1152 = vmatpush1.msra.mxu0 0.0
      %1153 = vmatprep.subr.mxu0 0.0
      %1154 = vmatpush1.msra.mxu0 0.0
      %1155 = vmatprep.subr.mxu0 0.0
      %1156 = vmatpush1.msra.mxu0 0.0
      %1157 = vmatprep.subr.mxu0 0.0
      %1158 = vmatpush1.msra.mxu0 0.0
      %1159 = vmatprep.subr.mxu0 0.0
      %1160 = vmatpush1.msra.mxu0 0.0
      %1161 = vmatprep.subr.mxu0 0.0
      %1162 = vmatpush1.msra.mxu0 0.0
      %1163 = vmatprep.subr.mxu0 0.0
      %1164 = vmatpush1.msra.mxu0 0.0
      %1165 = vmatprep.subr.mxu0 0.0
      %1166 = vmatpush1.msra.mxu0 0.0
      %1167 = vmatprep.subr.mxu0 0.0
      %1168 = vmatpush1.msra.mxu0 0.0
      %1169 = vmatprep.subr.mxu0 0.0
      %1170 = vmatpush1.msra.mxu0 0.0
      %1171 = vmatprep.subr.mxu0 0.0
      %1172 = vmatpush1.msra.mxu0 0.0
      %1173 = vmatprep.subr.mxu0 0.0
      %1174 = vmatpush1.msra.mxu0 0.0
      %1175 = vmatprep.mubr.f32.mxu0 0.0
      %1176 = vmatmul.mubr.f32.gmra.mrb[0].mxu0 %v1109
      %v1177 = vpop.f32.mrb[0].mxu0
      %v1178 = vadd.f32 0.0, %v1177
      %v1179 = vpop.f32.mrb[0].mxu0
      %1180 = vdwg.mxu0
      %1181 = vrot.lane.b32.xlu0 %v600, 32
      %v1182 = vpop.permute.xlu0 %1181
      %1183 = vrot.lane.b32.xlu0 %v602, 32
      %v1184 = vpop.permute.xlu0 %1183
      %v1185 = vsel %vm674, %v1182, 0
      %v1187 = vsel %vm674, %v1184, 0
      %1189 = vmatprep.subr.mxu0 0.0
      %1190 = vmatpush1.xpose.msra.mxu0 %v1187
      %1191 = vmatprep.subr.mxu0 0.0
      %1192 = vmatpush1.xpose.msra.mxu0 0.0
      %1193 = vmatprep.subr.mxu0 0.0
      %1194 = vmatpush1.xpose.msra.mxu0 0.0
      %1195 = vmatprep.subr.mxu0 0.0
      %1196 = vmatpush1.xpose.msra.mxu0 0.0
      %1197 = vmatprep.subr.mxu0 0.0
      %1198 = vmatpush1.xpose.msra.mxu0 0.0
      %1199 = vmatprep.subr.mxu0 0.0
      %1200 = vmatpush1.xpose.msra.mxu0 0.0
      %1201 = vmatprep.subr.mxu0 0.0
      %1202 = vmatpush1.xpose.msra.mxu0 0.0
      %1203 = vmatprep.subr.mxu0 0.0
      %1204 = vmatpush1.xpose.msra.mxu0 0.0
      %1205 = vmatprep.subr.mxu0 0.0
      %1206 = vmatpush1.xpose.msra.mxu0 0.0
      %1207 = vmatprep.subr.mxu0 0.0
      %1208 = vmatpush1.xpose.msra.mxu0 0.0
      %1209 = vmatprep.subr.mxu0 0.0
      %1210 = vmatpush1.xpose.msra.mxu0 0.0
      %1211 = vmatprep.subr.mxu0 0.0
      %1212 = vmatpush1.xpose.msra.mxu0 0.0
      %1213 = vmatprep.subr.mxu0 0.0
      %1214 = vmatpush1.xpose.msra.mxu0 0.0
      %1215 = vmatprep.subr.mxu0 0.0
      %1216 = vmatpush1.xpose.msra.mxu0 0.0
      %1217 = vmatprep.subr.mxu0 0.0
      %1218 = vmatpush1.xpose.msra.mxu0 0.0
      %1219 = vmatprep.subr.mxu0 0.0
      %1220 = vmatpush1.xpose.msra.mxu0 0.0
      %1221 = vmatprep.subr.mxu0 0.0
      %1222 = vmatpush1.xpose.msra.mxu0 0.0
      %1223 = vmatprep.subr.mxu0 0.0
      %1224 = vmatpush1.xpose.msra.mxu0 0.0
      %1225 = vmatprep.subr.mxu0 0.0
      %1226 = vmatpush1.xpose.msra.mxu0 0.0
      %1227 = vmatprep.subr.mxu0 0.0
      %1228 = vmatpush1.xpose.msra.mxu0 0.0
      %1229 = vmatprep.subr.mxu0 0.0
      %1230 = vmatpush1.xpose.msra.mxu0 0.0
      %1231 = vmatprep.subr.mxu0 0.0
      %1232 = vmatpush1.xpose.msra.mxu0 0.0
      %1233 = vmatprep.subr.mxu0 0.0
      %1234 = vmatpush1.xpose.msra.mxu0 0.0
      %1235 = vmatprep.subr.mxu0 0.0
      %1236 = vmatpush1.xpose.msra.mxu0 0.0
      %1237 = vmatprep.subr.mxu0 0.0
      %1238 = vmatpush1.xpose.msra.mxu0 0.0
      %1239 = vmatprep.subr.mxu0 0.0
      %1240 = vmatpush1.xpose.msra.mxu0 0.0
      %1241 = vmatprep.subr.mxu0 0.0
      %1242 = vmatpush1.xpose.msra.mxu0 0.0
      %1243 = vmatprep.subr.mxu0 0.0
      %1244 = vmatpush1.xpose.msra.mxu0 0.0
      %1245 = vmatprep.subr.mxu0 0.0
      %1246 = vmatpush1.xpose.msra.mxu0 0.0
      %1247 = vmatprep.subr.mxu0 0.0
      %1248 = vmatpush1.xpose.msra.mxu0 0.0
      %1249 = vmatprep.subr.mxu0 0.0
      %1250 = vmatpush1.xpose.msra.mxu0 0.0
      %1251 = vmatprep.subr.mxu0 0.0
      %1252 = vmatpush1.xpose.msra.mxu0 0.0
      %1253 = vmatprep.mubr.f32.mxu0 0.0
      %1254 = vmatmul.mubr.f32.gmra.mrb[0].mxu0 %v1185
      %v1255 = vpop.f32.mrb[0].mxu0
      %v1256 = vadd.f32 0.0, %v1255
      %v1257 = vpop.f32.mrb[0].mxu0
      %1258 = vdwg.mxu0
      %v1259 = vmul.f32 %v1256, 0.17677669
      %s1260 = scalar_lea.vmem %s2, 24
      %v1261 = vld [vmem:[%s1260] sm:$0xff]
      %v1262 = vadd.f32 %v1259, %v1261
      %v1263 = vsel %vm484, %v1262, -3.4028235e+38
      %v1264 = vsel %vm755, %v1263, -inf
      %1265 = vmax.xlane.f32.xlu0 %v1264
      %v1266 = vpop.xlane.xlu0 %1265
      %v1267 = vsub.f32 %v1263, %v1266
      %v1268 = vmul.f32 %v1267, 1.442695
      %v1269 = vpow.pop %v1268
      %v1270 = vsel %vm755, %v1269, 0.0
      %1271 = vadd.xlane.f32.xlu0 %v1270
      %v1272 = vpop.xlane.xlu0 %1271
      %v1273 = vrcp.pop %v1272
      %v1274 = vmul.f32 %v1269, %v1273
      %1275 = vrot.lane.b32.xlu0 %v671, 32
      %v1276 = vpop.permute.xlu0 %1275
      %v1279 = vsel %vm755, %v1274, 0
      %1281 = vmatprep.subr.mxu0 0.0
      %1282 = vmatpush1.msra.mxu0 %v1276
      %1283 = vmatprep.subr.mxu0 0.0
      %1284 = vmatpush1.msra.mxu0 0.0
      %1285 = vmatprep.subr.mxu0 0.0
      %1286 = vmatpush1.msra.mxu0 0.0
      %1287 = vmatprep.subr.mxu0 0.0
      %1288 = vmatpush1.msra.mxu0 0.0
      %1289 = vmatprep.subr.mxu0 0.0
      %1290 = vmatpush1.msra.mxu0 0.0
      %1291 = vmatprep.subr.mxu0 0.0
      %1292 = vmatpush1.msra.mxu0 0.0
      %1293 = vmatprep.subr.mxu0 0.0
      %1294 = vmatpush1.msra.mxu0 0.0
      %1295 = vmatprep.subr.mxu0 0.0
      %1296 = vmatpush1.msra.mxu0 0.0
      %1297 = vmatprep.subr.mxu0 0.0
      %1298 = vmatpush1.msra.mxu0 0.0
      %1299 = vmatprep.subr.mxu0 0.0
      %1300 = vmatpush1.msra.mxu0 0.0
      %1301 = vmatprep.subr.mxu0 0.0
      %1302 = vmatpush1.msra.mxu0 0.0
      %1303 = vmatprep.subr.mxu0 0.0
      %1304 = vmatpush1.msra.mxu0 0.0
      %1305 = vmatprep.subr.mxu0 0.0
      %1306 = vmatpush1.msra.mxu0 0.0
      %1307 = vmatprep.subr.mxu0 0.0
      %1308 = vmatpush1.msra.mxu0 0.0
      %1309 = vmatprep.subr.mxu0 0.0
      %1310 = vmatpush1.msra.mxu0 0.0
      %1311 = vmatprep.subr.mxu0 0.0
      %1312 = vmatpush1.msra.mxu0 0.0
      %1313 = vmatprep.subr.mxu0 0.0
      %1314 = vmatpush1.msra.mxu0 0.0
      %1315 = vmatprep.subr.mxu0 0.0
      %1316 = vmatpush1.msra.mxu0 0.0
      %1317 = vmatprep.subr.mxu0 0.0
      %1318 = vmatpush1.msra.mxu0 0.0
      %1319 = vmatprep.subr.mxu0 0.0
      %1320 = vmatpush1.msra.mxu0 0.0
      %1321 = vmatprep.subr.mxu0 0.0
      %1322 = vmatpush1.msra.mxu0 0.0
      %1323 = vmatprep.subr.mxu0 0.0
      %1324 = vmatpush1.msra.mxu0 0.0
      %1325 = vmatprep.subr.mxu0 0.0
      %1326 = vmatpush1.msra.mxu0 0.0
      %1327 = vmatprep.subr.mxu0 0.0
      %1328 = vmatpush1.msra.mxu0 0.0
      %1329 = vmatprep.subr.mxu0 0.0
      %1330 = vmatpush1.msra.mxu0 0.0
      %1331 = vmatprep.subr.mxu0 0.0
      %1332 = vmatpush1.msra.mxu0 0.0
      %1333 = vmatprep.subr.mxu0 0.0
      %1334 = vmatpush1.msra.mxu0 0.0
      %1335 = vmatprep.subr.mxu0 0.0
      %1336 = vmatpush1.msra.mxu0 0.0
      %1337 = vmatprep.subr.mxu0 0.0
      %1338 = vmatpush1.msra.mxu0 0.0
      %1339 = vmatprep.subr.mxu0 0.0
      %1340 = vmatpush1.msra.mxu0 0.0
      %1341 = vmatprep.subr.mxu0 0.0
      %1342 = vmatpush1.msra.mxu0 0.0
      %1343 = vmatprep.subr.mxu0 0.0
      %1344 = vmatpush1.msra.mxu0 0.0
      %1345 = vmatprep.mubr.f32.mxu0 0.0
      %1346 = vmatmul.mubr.f32.gmra.mrb[0].mxu0 %v1279
      %v1347 = vpop.f32.mrb[0].mxu0
      %v1348 = vadd.f32 0.0, %v1347
      %v1349 = vpop.f32.mrb[0].mxu0
      %1350 = vdwg.mxu0
      %1352 = vrot.lane.b32.xlu0 %v1008, 32
      %v1353 = vpop.permute.xlu0 %1352
      %1356 = vrot.lane.b32.xlu0 %v1178, 64
      %v1357 = vpop.permute.xlu0 %1356
      %1360 = vrot.lane.b32.xlu0 %v1348, 96
      %v1361 = vpop.permute.xlu0 %1360
      %v1363 = vsel %vm674, %v837, %v1353
      %vm1364 = vcmask 523264
      %v1365 = vsel %vm1364, %v1363, %v1357
      %vm1366 = vcmask 785408
      %v1367 = vsel %vm1366, %v1365, %v1361
      %v1368 = vld [vmem:[%s6] sm:$0xff]
      %v1369 = vld [vmem:[%s6 + $0x8] sm:$0xff]
      %v1370 = vld [vmem:[%s6 + $0x10] sm:$0xff]
      %v1371 = vld [vmem:[%s6 + $0x18] sm:$0xff]
      %v1372 = vld [vmem:[%s6 + $0x20] sm:$0xff]
      %v1373 = vld [vmem:[%s6 + $0x28] sm:$0xff]
      %v1374 = vld [vmem:[%s6 + $0x30] sm:$0xff]
      %v1375 = vld [vmem:[%s6 + $0x38] sm:$0xff]
      %v1376 = vld [vmem:[%s6 + $0x40] sm:$0xff]
      %v1377 = vld [vmem:[%s6 + $0x48] sm:$0xff]
      %v1378 = vld [vmem:[%s6 + $0x50] sm:$0xff]
      %v1379 = vld [vmem:[%s6 + $0x58] sm:$0xff]
      %v1380 = vld [vmem:[%s6 + $0x60] sm:$0xff]
      %v1381 = vld [vmem:[%s6 + $0x68] sm:$0xff]
      %v1382 = vld [vmem:[%s6 + $0x70] sm:$0xff]
      %v1383 = vld [vmem:[%s6 + $0x78] sm:$0xff]
      %1384 = vmatprep.subr.mxu0 0.0
      %1385 = vmatpush1.msra.mxu0 %v1368
      %1386 = vmatprep.subr.mxu0 0.0
      %1387 = vmatpush1.msra.mxu0 %v1369
      %1388 = vmatprep.subr.mxu0 0.0
      %1389 = vmatpush1.msra.mxu0 %v1370
      %1390 = vmatprep.subr.mxu0 0.0
      %1391 = vmatpush1.msra.mxu0 %v1371
      %1392 = vmatprep.subr.mxu0 0.0
      %1393 = vmatpush1.msra.mxu0 %v1372
      %1394 = vmatprep.subr.mxu0 0.0
      %1395 = vmatpush1.msra.mxu0 %v1373
      %1396 = vmatprep.subr.mxu0 0.0
      %1397 = vmatpush1.msra.mxu0 %v1374
      %1398 = vmatprep.subr.mxu0 0.0
      %1399 = vmatpush1.msra.mxu0 %v1375
      %1400 = vmatprep.subr.mxu0 0.0
      %1401 = vmatpush1.msra.mxu0 %v1376
      %1402 = vmatprep.subr.mxu0 0.0
      %1403 = vmatpush1.msra.mxu0 %v1377
      %1404 = vmatprep.subr.mxu0 0.0
      %1405 = vmatpush1.msra.mxu0 %v1378
      %1406 = vmatprep.subr.mxu0 0.0
      %1407 = vmatpush1.msra.mxu0 %v1379
      %1408 = vmatprep.subr.mxu0 0.0
      %1409 = vmatpush1.msra.mxu0 %v1380
      %1410 = vmatprep.subr.mxu0 0.0
      %1411 = vmatpush1.msra.mxu0 %v1381
      %1412 = vmatprep.subr.mxu0 0.0
      %1413 = vmatpush1.msra.mxu0 %v1382
      %1414 = vmatprep.subr.mxu0 0.0
      %1415 = vmatpush1.msra.mxu0 %v1383
      %1416 = vmatprep.subr.mxu0 0.0
      %1417 = vmatpush1.msra.mxu0 0.0
      %1418 = vmatprep.subr.mxu0 0.0
      %1419 = vmatpush1.msra.mxu0 0.0
      %1420 = vmatprep.subr.mxu0 0.0
      %1421 = vmatpush1.msra.mxu0 0.0
      %1422 = vmatprep.subr.mxu0 0.0
      %1423 = vmatpush1.msra.mxu0 0.0
      %1424 = vmatprep.subr.mxu0 0.0
      %1425 = vmatpush1.msra.mxu0 0.0
      %1426 = vmatprep.subr.mxu0 0.0
      %1427 = vmatpush1.msra.mxu0 0.0
      %1428 = vmatprep.subr.mxu0 0.0
      %1429 = vmatpush1.msra.mxu0 0.0
      %1430 = vmatprep.subr.mxu0 0.0
      %1431 = vmatpush1.msra.mxu0 0.0
      %1432 = vmatprep.subr.mxu0 0.0
      %1433 = vmatpush1.msra.mxu0 0.0
      %1434 = vmatprep.subr.mxu0 0.0
      %1435 = vmatpush1.msra.mxu0 0.0
      %1436 = vmatprep.subr.mxu0 0.0
      %1437 = vmatpush1.msra.mxu0 0.0
      %1438 = vmatprep.subr.mxu0 0.0
      %1439 = vmatpush1.msra.mxu0 0.0
      %1440 = vmatprep.subr.mxu0 0.0
      %1441 = vmatpush1.msra.mxu0 0.0
      %1442 = vmatprep.subr.mxu0 0.0
      %1443 = vmatpush1.msra.mxu0 0.0
      %1444 = vmatprep.subr.mxu0 0.0
      %1445 = vmatpush1.msra.mxu0 0.0
      %1446 = vmatprep.subr.mxu0 0.0
      %1447 = vmatpush1.msra.mxu0 0.0
      %1448 = vmatprep.mubr.f32.mxu0 0.0
      %1449 = vmatmul.mubr.f32.gmra.mrb[0].mxu0 %v1367
      %v1450 = vpop.f32.mrb[0].mxu0
      %v1451 = vadd.f32 0.0, %v1450
      %v1452 = vpop.f32.mrb[0].mxu0
      %1453 = vdwg.mxu0
      %v1454 = vadd.f32 %v443, %v1451
      %v1455 = vld [vmem:[%s7] sm:$0x1]
      %v1457 = vlaneseq
      %v1458 = vshrl.u32 %v1457, 7
      %v1459 = vsub.s32 0, %v1458
      %v1460 = vrot.slane %v1455, %v1459
      %v1462 = vadd.f32 %v1454, %v1460
      %v1463 = vld [vmem:[%s8] sm:$0x1]
      %v1464 = vld [vmem:[%s9] sm:$0x1]
      %1465 = vadd.xlane.f32.xlu0 %v1462
      %v1466 = vpop.xlane.xlu0 %1465
      %v1467 = vmul.f32 %v1466, %v448
      %v1468 = vsub.f32 %v1462, %v1467
      %v1469 = vmul.f32 %v1468, %v1468
      %1470 = vadd.xlane.f32.xlu0 %v1469
      %v1471 = vpop.xlane.xlu0 %1470
      %v1472 = vmul.f32 %v1471, %v448
      %v1473 = vadd.f32 %v1472, 1e-05
      %v1474 = vrsqrt.pop %v1473
      %v1475 = vmul.f32 %v1468, %v1474
      %v1477 = vlaneseq
      %v1478 = vshrl.u32 %v1477, 7
      %v1479 = vsub.s32 0, %v1478
      %v1480 = vrot.slane %v1463, %v1479
      %v1482 = vmul.f32 %v1475, %v1480
      %v1484 = vlaneseq
      %v1485 = vshrl.u32 %v1484, 7
      %v1486 = vsub.s32 0, %v1485
      %v1487 = vrot.slane %v1464, %v1486
      %v1489 = vadd.f32 %v1482, %v1487
      %v1490 = vld [vmem:[%s10] sm:$0xff]
      %v1491 = vld [vmem:[%s10 + $0x8] sm:$0xff]
      %v1492 = vld [vmem:[%s10 + $0x10] sm:$0xff]
      %v1493 = vld [vmem:[%s10 + $0x18] sm:$0xff]
      %v1494 = vld [vmem:[%s10 + $0x20] sm:$0xff]
      %v1495 = vld [vmem:[%s10 + $0x28] sm:$0xff]
      %v1496 = vld [vmem:[%s10 + $0x30] sm:$0xff]
      %v1497 = vld [vmem:[%s10 + $0x38] sm:$0xff]
      %v1498 = vld [vmem:[%s10 + $0x40] sm:$0xff]
      %v1499 = vld [vmem:[%s10 + $0x48] sm:$0xff]
      %v1500 = vld [vmem:[%s10 + $0x50] sm:$0xff]
      %v1501 = vld [vmem:[%s10 + $0x58] sm:$0xff]
      %v1502 = vld [vmem:[%s10 + $0x60] sm:$0xff]
      %v1503 = vld [vmem:[%s10 + $0x68] sm:$0xff]
      %v1504 = vld [vmem:[%s10 + $0x70] sm:$0xff]
      %v1505 = vld [vmem:[%s10 + $0x78] sm:$0xff]
      %v1506 = vld [vmem:[%s10 + $0x80] sm:$0xff]
      %v1507 = vld [vmem:[%s10 + $0x88] sm:$0xff]
      %v1508 = vld [vmem:[%s10 + $0x90] sm:$0xff]
      %v1509 = vld [vmem:[%s10 + $0x98] sm:$0xff]
      %v1510 = vld [vmem:[%s10 + $0xa0] sm:$0xff]
      %v1511 = vld [vmem:[%s10 + $0xa8] sm:$0xff]
      %v1512 = vld [vmem:[%s10 + $0xb0] sm:$0xff]
      %v1513 = vld [vmem:[%s10 + $0xb8] sm:$0xff]
      %v1514 = vld [vmem:[%s10 + $0xc0] sm:$0xff]
      %v1515 = vld [vmem:[%s10 + $0xc8] sm:$0xff]
      %v1516 = vld [vmem:[%s10 + $0xd0] sm:$0xff]
      %v1517 = vld [vmem:[%s10 + $0xd8] sm:$0xff]
      %v1518 = vld [vmem:[%s10 + $0xe0] sm:$0xff]
      %v1519 = vld [vmem:[%s10 + $0xe8] sm:$0xff]
      %v1520 = vld [vmem:[%s10 + $0xf0] sm:$0xff]
      %v1521 = vld [vmem:[%s10 + $0xf8] sm:$0xff]
      %v1522 = vld [vmem:[%s10 + $0x100] sm:$0xff]
      %v1523 = vld [vmem:[%s10 + $0x108] sm:$0xff]
      %v1524 = vld [vmem:[%s10 + $0x110] sm:$0xff]
      %v1525 = vld [vmem:[%s10 + $0x118] sm:$0xff]
      %v1526 = vld [vmem:[%s10 + $0x120] sm:$0xff]
      %v1527 = vld [vmem:[%s10 + $0x128] sm:$0xff]
      %v1528 = vld [vmem:[%s10 + $0x130] sm:$0xff]
      %v1529 = vld [vmem:[%s10 + $0x138] sm:$0xff]
      %v1530 = vld [vmem:[%s10 + $0x140] sm:$0xff]
      %v1531 = vld [vmem:[%s10 + $0x148] sm:$0xff]
      %v1532 = vld [vmem:[%s10 + $0x150] sm:$0xff]
      %v1533 = vld [vmem:[%s10 + $0x158] sm:$0xff]
      %v1534 = vld [vmem:[%s10 + $0x160] sm:$0xff]
      %v1535 = vld [vmem:[%s10 + $0x168] sm:$0xff]
      %v1536 = vld [vmem:[%s10 + $0x170] sm:$0xff]
      %v1537 = vld [vmem:[%s10 + $0x178] sm:$0xff]
      %v1538 = vld [vmem:[%s10 + $0x180] sm:$0xff]
      %v1539 = vld [vmem:[%s10 + $0x188] sm:$0xff]
      %v1540 = vld [vmem:[%s10 + $0x190] sm:$0xff]
      %v1541 = vld [vmem:[%s10 + $0x198] sm:$0xff]
      %v1542 = vld [vmem:[%s10 + $0x1a0] sm:$0xff]
      %v1543 = vld [vmem:[%s10 + $0x1a8] sm:$0xff]
      %v1544 = vld [vmem:[%s10 + $0x1b0] sm:$0xff]
      %v1545 = vld [vmem:[%s10 + $0x1b8] sm:$0xff]
      %v1546 = vld [vmem:[%s10 + $0x1c0] sm:$0xff]
      %v1547 = vld [vmem:[%s10 + $0x1c8] sm:$0xff]
      %v1548 = vld [vmem:[%s10 + $0x1d0] sm:$0xff]
      %v1549 = vld [vmem:[%s10 + $0x1d8] sm:$0xff]
      %v1550 = vld [vmem:[%s10 + $0x1e0] sm:$0xff]
      %v1551 = vld [vmem:[%s10 + $0x1e8] sm:$0xff]
      %v1552 = vld [vmem:[%s10 + $0x1f0] sm:$0xff]
      %v1553 = vld [vmem:[%s10 + $0x1f8] sm:$0xff]
      %v1554 = vld [vmem:[%s11] sm:$0xf]
      %v1556 = vlaneseq
      %v1557 = vshrl.u32 %v1556, 7
      %v1558 = vsub.s32 0, %v1557
      %v1559 = vrot.slane %v1554, %v1558
      %v1560 = vlaneseq
      %v1561 = vshrl.u32 %v1560, 7
      %v1562 = vsub.s32 1, %v1561
      %v1563 = vrot.slane %v1554, %v1562
      %v1564 = vlaneseq
      %v1565 = vshrl.u32 %v1564, 7
      %v1566 = vsub.s32 2, %v1565
      %v1567 = vrot.slane %v1554, %v1566
      %v1568 = vlaneseq
      %v1569 = vshrl.u32 %v1568, 7
      %v1570 = vsub.s32 3, %v1569
      %v1571 = vrot.slane %v1554, %v1570
      %1576 = vmatprep.subr.mxu0 %v1491
      %1577 = vmatpush1.msra.mxu0 %v1490
      %1578 = vmatprep.subr.mxu0 %v1495
      %1579 = vmatpush1.msra.mxu0 %v1494
      %1580 = vmatprep.subr.mxu0 %v1499
      %1581 = vmatpush1.msra.mxu0 %v1498
      %1582 = vmatprep.subr.mxu0 %v1503
      %1583 = vmatpush1.msra.mxu0 %v1502
      %1584 = vmatprep.subr.mxu0 %v1507
      %1585 = vmatpush1.msra.mxu0 %v1506
      %1586 = vmatprep.subr.mxu0 %v1511
      %1587 = vmatpush1.msra.mxu0 %v1510
      %1588 = vmatprep.subr.mxu0 %v1515
      %1589 = vmatpush1.msra.mxu0 %v1514
      %1590 = vmatprep.subr.mxu0 %v1519
      %1591 = vmatpush1.msra.mxu0 %v1518
      %1592 = vmatprep.subr.mxu0 %v1523
      %1593 = vmatpush1.msra.mxu0 %v1522
      %1594 = vmatprep.subr.mxu0 %v1527
      %1595 = vmatpush1.msra.mxu0 %v1526
      %1596 = vmatprep.subr.mxu0 %v1531
      %1597 = vmatpush1.msra.mxu0 %v1530
      %1598 = vmatprep.subr.mxu0 %v1535
      %1599 = vmatpush1.msra.mxu0 %v1534
      %1600 = vmatprep.subr.mxu0 %v1539
      %1601 = vmatpush1.msra.mxu0 %v1538
      %1602 = vmatprep.subr.mxu0 %v1543
      %1603 = vmatpush1.msra.mxu0 %v1542
      %1604 = vmatprep.subr.mxu0 %v1547
      %1605 = vmatpush1.msra.mxu0 %v1546
      %1606 = vmatprep.subr.mxu0 %v1551
      %1607 = vmatpush1.msra.mxu0 %v1550
      %1608 = vmatprep.subr.mxu0 0.0
      %1609 = vmatpush1.msra.mxu0 0.0
      %1610 = vmatprep.subr.mxu0 0.0
      %1611 = vmatpush1.msra.mxu0 0.0
      %1612 = vmatprep.subr.mxu0 0.0
      %1613 = vmatpush1.msra.mxu0 0.0
      %1614 = vmatprep.subr.mxu0 0.0
      %1615 = vmatpush1.msra.mxu0 0.0
      %1616 = vmatprep.subr.mxu0 0.0
      %1617 = vmatpush1.msra.mxu0 0.0
      %1618 = vmatprep.subr.mxu0 0.0
      %1619 = vmatpush1.msra.mxu0 0.0
      %1620 = vmatprep.subr.mxu0 0.0
      %1621 = vmatpush1.msra.mxu0 0.0
      %1622 = vmatprep.subr.mxu0 0.0
      %1623 = vmatpush1.msra.mxu0 0.0
      %1624 = vmatprep.subr.mxu0 0.0
      %1625 = vmatpush1.msra.mxu0 0.0
      %1626 = vmatprep.subr.mxu0 0.0
      %1627 = vmatpush1.msra.mxu0 0.0
      %1628 = vmatprep.subr.mxu0 0.0
      %1629 = vmatpush1.msra.mxu0 0.0
      %1630 = vmatprep.subr.mxu0 0.0
      %1631 = vmatpush1.msra.mxu0 0.0
      %1632 = vmatprep.subr.mxu0 0.0
      %1633 = vmatpush1.msra.mxu0 0.0
      %1634 = vmatprep.subr.mxu0 0.0
      %1635 = vmatpush1.msra.mxu0 0.0
      %1636 = vmatprep.subr.mxu0 0.0
      %1637 = vmatpush1.msra.mxu0 0.0
      %1638 = vmatprep.subr.mxu0 0.0
      %1639 = vmatpush1.msra.mxu0 0.0
      %1640 = vmatprep.mubr.f32.mxu0 0.0
      %1641 = vmatmul.mubr.f32.gmra.mrb[0].mxu0 %v1489
      %v1642 = vpop.f32.mrb[0].mxu0
      %v1643 = vadd.f32 %v1559, %v1642
      %v1644 = vpop.f32.mrb[0].mxu0
      %v1645 = vadd.f32 %v1563, %v1644
      %1646 = vdwg.mxu0
      %1647 = vmatprep.subr.mxu0 %v1493
      %1648 = vmatpush1.msra.mxu0 %v1492
      %1649 = vmatprep.subr.mxu0 %v1497
      %1650 = vmatpush1.msra.mxu0 %v1496
      %1651 = vmatprep.subr.mxu0 %v1501
      %1652 = vmatpush1.msra.mxu0 %v1500
      %1653 = vmatprep.subr.mxu0 %v1505
      %1654 = vmatpush1.msra.mxu0 %v1504
      %1655 = vmatprep.subr.mxu0 %v1509
      %1656 = vmatpush1.msra.mxu0 %v1508
      %1657 = vmatprep.subr.mxu0 %v1513
      %1658 = vmatpush1.msra.mxu0 %v1512
      %1659 = vmatprep.subr.mxu0 %v1517
      %1660 = vmatpush1.msra.mxu0 %v1516
      %1661 = vmatprep.subr.mxu0 %v1521
      %1662 = vmatpush1.msra.mxu0 %v1520
      %1663 = vmatprep.subr.mxu0 %v1525
      %1664 = vmatpush1.msra.mxu0 %v1524
      %1665 = vmatprep.subr.mxu0 %v1529
      %1666 = vmatpush1.msra.mxu0 %v1528
      %1667 = vmatprep.subr.mxu0 %v1533
      %1668 = vmatpush1.msra.mxu0 %v1532
      %1669 = vmatprep.subr.mxu0 %v1537
      %1670 = vmatpush1.msra.mxu0 %v1536
      %1671 = vmatprep.subr.mxu0 %v1541
      %1672 = vmatpush1.msra.mxu0 %v1540
      %1673 = vmatprep.subr.mxu0 %v1545
      %1674 = vmatpush1.msra.mxu0 %v1544
      %1675 = vmatprep.subr.mxu0 %v1549
      %1676 = vmatpush1.msra.mxu0 %v1548
      %1677 = vmatprep.subr.mxu0 %v1553
      %1678 = vmatpush1.msra.mxu0 %v1552
      %1679 = vmatprep.subr.mxu0 0.0
      %1680 = vmatpush1.msra.mxu0 0.0
      %1681 = vmatprep.subr.mxu0 0.0
      %1682 = vmatpush1.msra.mxu0 0.0
      %1683 = vmatprep.subr.mxu0 0.0
      %1684 = vmatpush1.msra.mxu0 0.0
      %1685 = vmatprep.subr.mxu0 0.0
      %1686 = vmatpush1.msra.mxu0 0.0
      %1687 = vmatprep.subr.mxu0 0.0
      %1688 = vmatpush1.msra.mxu0 0.0
      %1689 = vmatprep.subr.mxu0 0.0
      %1690 = vmatpush1.msra.mxu0 0.0
      %1691 = vmatprep.subr.mxu0 0.0
      %1692 = vmatpush1.msra.mxu0 0.0
      %1693 = vmatprep.subr.mxu0 0.0
      %1694 = vmatpush1.msra.mxu0 0.0
      %1695 = vmatprep.subr.mxu0 0.0
      %1696 = vmatpush1.msra.mxu0 0.0
      %1697 = vmatprep.subr.mxu0 0.0
      %1698 = vmatpush1.msra.mxu0 0.0
      %1699 = vmatprep.subr.mxu0 0.0
      %1700 = vmatpush1.msra.mxu0 0.0
      %1701 = vmatprep.subr.mxu0 0.0
      %1702 = vmatpush1.msra.mxu0 0.0
      %1703 = vmatprep.subr.mxu0 0.0
      %1704 = vmatpush1.msra.mxu0 0.0
      %1705 = vmatprep.subr.mxu0 0.0
      %1706 = vmatpush1.msra.mxu0 0.0
      %1707 = vmatprep.subr.mxu0 0.0
      %1708 = vmatpush1.msra.mxu0 0.0
      %1709 = vmatprep.subr.mxu0 0.0
      %1710 = vmatpush1.msra.mxu0 0.0
      %1711 = vmatprep.mubr.f32.mxu0 0.0
      %1712 = vmatmul.mubr.f32.gmra.mrb[0].mxu0 %v1489
      %v1713 = vpop.f32.mrb[0].mxu0
      %v1714 = vadd.f32 %v1567, %v1713
      %v1715 = vpop.f32.mrb[0].mxu0
      %v1716 = vadd.f32 %v1571, %v1715
      %1717 = vdwg.mxu0
      %v1718 = vmul.f32 %v1643, 0.5
      %v1719 = vmul.f32 %v1645, 0.5
      %v1720 = vmul.f32 %v1714, 0.5
      %v1721 = vmul.f32 %v1716, 0.5
      %v1722 = vmul.f32 %v1643, 0.70710677
      %v1723 = vmul.f32 %v1645, 0.70710677
      %v1724 = vmul.f32 %v1714, 0.70710677
      %v1725 = vmul.f32 %v1716, 0.70710677
      %v1726 = vand.u32 2147483647, %v1722
      %v1727 = vand.u32 2147483647, %v1723
      %v1728 = vand.u32 2147483647, %v1724
      %v1729 = vand.u32 2147483647, %v1725
      %v1730 = vmul.f32 %v1726, 0.3275911
      %v1731 = vmul.f32 %v1727, 0.3275911
      %v1732 = vmul.f32 %v1728, 0.3275911
      %v1733 = vmul.f32 %v1729, 0.3275911
      %v1734 = vadd.f32 %v1730, 1.0
      %v1735 = vadd.f32 %v1731, 1.0
      %v1736 = vadd.f32 %v1732, 1.0
      %v1737 = vadd.f32 %v1733, 1.0
      %v1738 = vrcp.pop %v1734
      %v1739 = vmul.f32 1.0, %v1738
      %v1740 = vrcp.pop %v1735
      %v1741 = vmul.f32 1.0, %v1740
      %v1742 = vrcp.pop %v1736
      %v1743 = vmul.f32 1.0, %v1742
      %v1744 = vrcp.pop %v1737
      %v1745 = vmul.f32 1.0, %v1744
      %v1746 = vmul.f32 %v1739, 1.0614054
      %v1747 = vmul.f32 %v1741, 1.0614054
      %v1748 = vmul.f32 %v1743, 1.0614054
      %v1749 = vmul.f32 %v1745, 1.0614054
      %v1750 = vadd.f32 %v1746, -1.4531521
      %v1751 = vadd.f32 %v1747, -1.4531521
      %v1752 = vadd.f32 %v1748, -1.4531521
      %v1753 = vadd.f32 %v1749, -1.4531521
      %v1754 = vmul.f32 %v1750, %v1739
      %v1755 = vmul.f32 %v1751, %v1741
      %v1756 = vmul.f32 %v1752, %v1743
      %v1757 = vmul.f32 %v1753, %v1745
      %v1758 = vadd.f32 %v1754, 1.4214138
      %v1759 = vadd.f32 %v1755, 1.4214138
      %v1760 = vadd.f32 %v1756, 1.4214138
      %v1761 = vadd.f32 %v1757, 1.4214138
      %v1762 = vmul.f32 %v1758, %v1739
      %v1763 = vmul.f32 %v1759, %v1741
      %v1764 = vmul.f32 %v1760, %v1743
      %v1765 = vmul.f32 %v1761, %v1745
      %v1766 = vadd.f32 %v1762, -0.28449672
      %v1767 = vadd.f32 %v1763, -0.28449672
      %v1768 = vadd.f32 %v1764, -0.28449672
      %v1769 = vadd.f32 %v1765, -0.28449672
      %v1770 = vmul.f32 %v1766, %v1739
      %v1771 = vmul.f32 %v1767, %v1741
      %v1772 = vmul.f32 %v1768, %v1743
      %v1773 = vmul.f32 %v1769, %v1745
      %v1774 = vadd.f32 %v1770, 0.2548296
      %v1775 = vadd.f32 %v1771, 0.2548296
      %v1776 = vadd.f32 %v1772, 0.2548296
      %v1777 = vadd.f32 %v1773, 0.2548296
      %v1778 = vmul.f32 %v1774, %v1739
      %v1779 = vmul.f32 %v1775, %v1741
      %v1780 = vmul.f32 %v1776, %v1743
      %v1781 = vmul.f32 %v1777, %v1745
      %v1782 = vsub.f32 0.0, %v1726
      %v1783 = vsub.f32 0.0, %v1727
      %v1784 = vsub.f32 0.0, %v1728
      %v1785 = vsub.f32 0.0, %v1729
      %v1786 = vmul.f32 %v1782, %v1726
      %v1787 = vmul.f32 %v1783, %v1727
      %v1788 = vmul.f32 %v1784, %v1728
      %v1789 = vmul.f32 %v1785, %v1729
      %v1790 = vmul.f32 %v1786, 1.442695
      %v1791 = vpow.pop %v1790
      %v1792 = vmul.f32 %v1787, 1.442695
      %v1793 = vpow.pop %v1792
      %v1794 = vmul.f32 %v1788, 1.442695
      %v1795 = vpow.pop %v1794
      %v1796 = vmul.f32 %v1789, 1.442695
      %v1797 = vpow.pop %v1796
      %v1798 = vmul.f32 %v1778, %v1791
      %v1799 = vmul.f32 %v1779, %v1793
      %v1800 = vmul.f32 %v1780, %v1795
      %v1801 = vmul.f32 %v1781, %v1797
      %v1802 = vsub.f32 1.0, %v1798
      %v1803 = vsub.f32 1.0, %v1799
      %v1804 = vsub.f32 1.0, %v1800
      %v1805 = vsub.f32 1.0, %v1801
      %vm1806 = vcmp.lt.f32.partialorder %v1722, 0.0
      %vm1807 = vcmp.lt.f32.partialorder %v1723, 0.0
      %vm1808 = vcmp.lt.f32.partialorder %v1724, 0.0
      %vm1809 = vcmp.lt.f32.partialorder %v1725, 0.0
      %v1810 = vsub.f32 0.0, %v1802
      %v1811 = vsub.f32 0.0, %v1803
      %v1812 = vsub.f32 0.0, %v1804
      %v1813 = vsub.f32 0.0, %v1805
      %v1814 = vsel %vm1806, %v1810, %v1802
      %v1815 = vsel %vm1807, %v1811, %v1803
      %v1816 = vsel %vm1808, %v1812, %v1804
      %v1817 = vsel %vm1809, %v1813, %v1805
      %v1818 = vadd.f32 %v1814, 1.0
      %v1819 = vadd.f32 %v1815, 1.0
      %v1820 = vadd.f32 %v1816, 1.0
      %v1821 = vadd.f32 %v1817, 1.0
      %v1822 = vmul.f32 %v1718, %v1818
      %v1823 = vmul.f32 %v1719, %v1819
      %v1824 = vmul.f32 %v1720, %v1820
      %v1825 = vmul.f32 %v1721, %v1821
      %v1826 = vld [vmem:[%s12] sm:$0xff]
      %v1827 = vld [vmem:[%s12 + $0x8] sm:$0xff]
      %v1828 = vld [vmem:[%s12 + $0x10] sm:$0xff]
      %v1829 = vld [vmem:[%s12 + $0x18] sm:$0xff]
      %v1830 = vld [vmem:[%s12 + $0x20] sm:$0xff]
      %v1831 = vld [vmem:[%s12 + $0x28] sm:$0xff]
      %v1832 = vld [vmem:[%s12 + $0x30] sm:$0xff]
      %v1833 = vld [vmem:[%s12 + $0x38] sm:$0xff]
      %v1834 = vld [vmem:[%s12 + $0x40] sm:$0xff]
      %v1835 = vld [vmem:[%s12 + $0x48] sm:$0xff]
      %v1836 = vld [vmem:[%s12 + $0x50] sm:$0xff]
      %v1837 = vld [vmem:[%s12 + $0x58] sm:$0xff]
      %v1838 = vld [vmem:[%s12 + $0x60] sm:$0xff]
      %v1839 = vld [vmem:[%s12 + $0x68] sm:$0xff]
      %v1840 = vld [vmem:[%s12 + $0x70] sm:$0xff]
      %v1841 = vld [vmem:[%s12 + $0x78] sm:$0xff]
      %v1842 = vld [vmem:[%s12 + $0x80] sm:$0xff]
      %v1843 = vld [vmem:[%s12 + $0x88] sm:$0xff]
      %v1844 = vld [vmem:[%s12 + $0x90] sm:$0xff]
      %v1845 = vld [vmem:[%s12 + $0x98] sm:$0xff]
      %v1846 = vld [vmem:[%s12 + $0xa0] sm:$0xff]
      %v1847 = vld [vmem:[%s12 + $0xa8] sm:$0xff]
      %v1848 = vld [vmem:[%s12 + $0xb0] sm:$0xff]
      %v1849 = vld [vmem:[%s12 + $0xb8] sm:$0xff]
      %v1850 = vld [vmem:[%s12 + $0xc0] sm:$0xff]
      %v1851 = vld [vmem:[%s12 + $0xc8] sm:$0xff]
      %v1852 = vld [vmem:[%s12 + $0xd0] sm:$0xff]
      %v1853 = vld [vmem:[%s12 + $0xd8] sm:$0xff]
      %v1854 = vld [vmem:[%s12 + $0xe0] sm:$0xff]
      %v1855 = vld [vmem:[%s12 + $0xe8] sm:$0xff]
      %v1856 = vld [vmem:[%s12 + $0xf0] sm:$0xff]
      %v1857 = vld [vmem:[%s12 + $0xf8] sm:$0xff]
      %v1858 = vld [vmem:[%s12 + $0x100] sm:$0xff]
      %v1859 = vld [vmem:[%s12 + $0x108] sm:$0xff]
      %v1860 = vld [vmem:[%s12 + $0x110] sm:$0xff]
      %v1861 = vld [vmem:[%s12 + $0x118] sm:$0xff]
      %v1862 = vld [vmem:[%s12 + $0x120] sm:$0xff]
      %v1863 = vld [vmem:[%s12 + $0x128] sm:$0xff]
      %v1864 = vld [vmem:[%s12 + $0x130] sm:$0xff]
      %v1865 = vld [vmem:[%s12 + $0x138] sm:$0xff]
      %v1866 = vld [vmem:[%s12 + $0x140] sm:$0xff]
      %v1867 = vld [vmem:[%s12 + $0x148] sm:$0xff]
      %v1868 = vld [vmem:[%s12 + $0x150] sm:$0xff]
      %v1869 = vld [vmem:[%s12 + $0x158] sm:$0xff]
      %v1870 = vld [vmem:[%s12 + $0x160] sm:$0xff]
      %v1871 = vld [vmem:[%s12 + $0x168] sm:$0xff]
      %v1872 = vld [vmem:[%s12 + $0x170] sm:$0xff]
      %v1873 = vld [vmem:[%s12 + $0x178] sm:$0xff]
      %v1874 = vld [vmem:[%s12 + $0x180] sm:$0xff]
      %v1875 = vld [vmem:[%s12 + $0x188] sm:$0xff]
      %v1876 = vld [vmem:[%s12 + $0x190] sm:$0xff]
      %v1877 = vld [vmem:[%s12 + $0x198] sm:$0xff]
      %v1878 = vld [vmem:[%s12 + $0x1a0] sm:$0xff]
      %v1879 = vld [vmem:[%s12 + $0x1a8] sm:$0xff]
      %v1880 = vld [vmem:[%s12 + $0x1b0] sm:$0xff]
      %v1881 = vld [vmem:[%s12 + $0x1b8] sm:$0xff]
      %v1882 = vld [vmem:[%s12 + $0x1c0] sm:$0xff]
      %v1883 = vld [vmem:[%s12 + $0x1c8] sm:$0xff]
      %v1884 = vld [vmem:[%s12 + $0x1d0] sm:$0xff]
      %v1885 = vld [vmem:[%s12 + $0x1d8] sm:$0xff]
      %v1886 = vld [vmem:[%s12 + $0x1e0] sm:$0xff]
      %v1887 = vld [vmem:[%s12 + $0x1e8] sm:$0xff]
      %v1888 = vld [vmem:[%s12 + $0x1f0] sm:$0xff]
      %v1889 = vld [vmem:[%s12 + $0x1f8] sm:$0xff]
      %1890 = vmatprep.subr.mxu0 0.0
      %1891 = vmatpush1.msra.mxu0 %v1826
      %1892 = vmatprep.subr.mxu0 0.0
      %1893 = vmatpush1.msra.mxu0 %v1827
      %1894 = vmatprep.subr.mxu0 0.0
      %1895 = vmatpush1.msra.mxu0 %v1828
      %1896 = vmatprep.subr.mxu0 0.0
      %1897 = vmatpush1.msra.mxu0 %v1829
      %1898 = vmatprep.subr.mxu0 0.0
      %1899 = vmatpush1.msra.mxu0 %v1830
      %1900 = vmatprep.subr.mxu0 0.0
      %1901 = vmatpush1.msra.mxu0 %v1831
      %1902 = vmatprep.subr.mxu0 0.0
      %1903 = vmatpush1.msra.mxu0 %v1832
      %1904 = vmatprep.subr.mxu0 0.0
      %1905 = vmatpush1.msra.mxu0 %v1833
      %1906 = vmatprep.subr.mxu0 0.0
      %1907 = vmatpush1.msra.mxu0 %v1834
      %1908 = vmatprep.subr.mxu0 0.0
      %1909 = vmatpush1.msra.mxu0 %v1835
      %1910 = vmatprep.subr.mxu0 0.0
      %1911 = vmatpush1.msra.mxu0 %v1836
      %1912 = vmatprep.subr.mxu0 0.0
      %1913 = vmatpush1.msra.mxu0 %v1837
      %1914 = vmatprep.subr.mxu0 0.0
      %1915 = vmatpush1.msra.mxu0 %v1838
      %1916 = vmatprep.subr.mxu0 0.0
      %1917 = vmatpush1.msra.mxu0 %v1839
      %1918 = vmatprep.subr.mxu0 0.0
      %1919 = vmatpush1.msra.mxu0 %v1840
      %1920 = vmatprep.subr.mxu0 0.0
      %1921 = vmatpush1.msra.mxu0 %v1841
      %1922 = vmatprep.subr.mxu0 0.0
      %1923 = vmatpush1.msra.mxu0 %v1842
      %1924 = vmatprep.subr.mxu0 0.0
      %1925 = vmatpush1.msra.mxu0 %v1843
      %1926 = vmatprep.subr.mxu0 0.0
      %1927 = vmatpush1.msra.mxu0 %v1844
      %1928 = vmatprep.subr.mxu0 0.0
      %1929 = vmatpush1.msra.mxu0 %v1845
      %1930 = vmatprep.subr.mxu0 0.0
      %1931 = vmatpush1.msra.mxu0 %v1846
      %1932 = vmatprep.subr.mxu0 0.0
      %1933 = vmatpush1.msra.mxu0 %v1847
      %1934 = vmatprep.subr.mxu0 0.0
      %1935 = vmatpush1.msra.mxu0 %v1848
      %1936 = vmatprep.subr.mxu0 0.0
      %1937 = vmatpush1.msra.mxu0 %v1849
      %1938 = vmatprep.subr.mxu0 0.0
      %1939 = vmatpush1.msra.mxu0 %v1850
      %1940 = vmatprep.subr.mxu0 0.0
      %1941 = vmatpush1.msra.mxu0 %v1851
      %1942 = vmatprep.subr.mxu0 0.0
      %1943 = vmatpush1.msra.mxu0 %v1852
      %1944 = vmatprep.subr.mxu0 0.0
      %1945 = vmatpush1.msra.mxu0 %v1853
      %1946 = vmatprep.subr.mxu0 0.0
      %1947 = vmatpush1.msra.mxu0 %v1854
      %1948 = vmatprep.subr.mxu0 0.0
      %1949 = vmatpush1.msra.mxu0 %v1855
      %1950 = vmatprep.subr.mxu0 0.0
      %1951 = vmatpush1.msra.mxu0 %v1856
      %1952 = vmatprep.subr.mxu0 0.0
      %1953 = vmatpush1.msra.mxu0 %v1857
      %1954 = vmatprep.mubr.f32.mxu0 %v1823
      %1955 = vmatmul.mubr.f32.gmra.mrb[0].mxu0 %v1822
      %v1956 = vpop.f32.mrb[0].mxu0
      %v1957 = vadd.f32 0.0, %v1956
      %v1958 = vpop.f32.mrb[0].mxu0
      %1959 = vdwg.mxu0
      %1960 = vmatprep.subr.mxu0 0.0
      %1961 = vmatpush1.msra.mxu0 %v1858
      %1962 = vmatprep.subr.mxu0 0.0
      %1963 = vmatpush1.msra.mxu0 %v1859
      %1964 = vmatprep.subr.mxu0 0.0
      %1965 = vmatpush1.msra.mxu0 %v1860
      %1966 = vmatprep.subr.mxu0 0.0
      %1967 = vmatpush1.msra.mxu0 %v1861
      %1968 = vmatprep.subr.mxu0 0.0
      %1969 = vmatpush1.msra.mxu0 %v1862
      %1970 = vmatprep.subr.mxu0 0.0
      %1971 = vmatpush1.msra.mxu0 %v1863
      %1972 = vmatprep.subr.mxu0 0.0
      %1973 = vmatpush1.msra.mxu0 %v1864
      %1974 = vmatprep.subr.mxu0 0.0
      %1975 = vmatpush1.msra.mxu0 %v1865
      %1976 = vmatprep.subr.mxu0 0.0
      %1977 = vmatpush1.msra.mxu0 %v1866
      %1978 = vmatprep.subr.mxu0 0.0
      %1979 = vmatpush1.msra.mxu0 %v1867
      %1980 = vmatprep.subr.mxu0 0.0
      %1981 = vmatpush1.msra.mxu0 %v1868
      %1982 = vmatprep.subr.mxu0 0.0
      %1983 = vmatpush1.msra.mxu0 %v1869
      %1984 = vmatprep.subr.mxu0 0.0
      %1985 = vmatpush1.msra.mxu0 %v1870
      %1986 = vmatprep.subr.mxu0 0.0
      %1987 = vmatpush1.msra.mxu0 %v1871
      %1988 = vmatprep.subr.mxu0 0.0
      %1989 = vmatpush1.msra.mxu0 %v1872
      %1990 = vmatprep.subr.mxu0 0.0
      %1991 = vmatpush1.msra.mxu0 %v1873
      %1992 = vmatprep.subr.mxu0 0.0
      %1993 = vmatpush1.msra.mxu0 %v1874
      %1994 = vmatprep.subr.mxu0 0.0
      %1995 = vmatpush1.msra.mxu0 %v1875
      %1996 = vmatprep.subr.mxu0 0.0
      %1997 = vmatpush1.msra.mxu0 %v1876
      %1998 = vmatprep.subr.mxu0 0.0
      %1999 = vmatpush1.msra.mxu0 %v1877
      %2000 = vmatprep.subr.mxu0 0.0
      %2001 = vmatpush1.msra.mxu0 %v1878
      %2002 = vmatprep.subr.mxu0 0.0
      %2003 = vmatpush1.msra.mxu0 %v1879
      %2004 = vmatprep.subr.mxu0 0.0
      %2005 = vmatpush1.msra.mxu0 %v1880
      %2006 = vmatprep.subr.mxu0 0.0
      %2007 = vmatpush1.msra.mxu0 %v1881
      %2008 = vmatprep.subr.mxu0 0.0
      %2009 = vmatpush1.msra.mxu0 %v1882
      %2010 = vmatprep.subr.mxu0 0.0
      %2011 = vmatpush1.msra.mxu0 %v1883
      %2012 = vmatprep.subr.mxu0 0.0
      %2013 = vmatpush1.msra.mxu0 %v1884
      %2014 = vmatprep.subr.mxu0 0.0
      %2015 = vmatpush1.msra.mxu0 %v1885
      %2016 = vmatprep.subr.mxu0 0.0
      %2017 = vmatpush1.msra.mxu0 %v1886
      %2018 = vmatprep.subr.mxu0 0.0
      %2019 = vmatpush1.msra.mxu0 %v1887
      %2020 = vmatprep.subr.mxu0 0.0
      %2021 = vmatpush1.msra.mxu0 %v1888
      %2022 = vmatprep.subr.mxu0 0.0
      %2023 = vmatpush1.msra.mxu0 %v1889
      %2024 = vmatprep.mubr.f32.mxu0 %v1825
      %2025 = vmatmul.mubr.f32.gmra.mrb[0].mxu0 %v1824
      %v2026 = vpop.f32.mrb[0].mxu0
      %v2027 = vadd.f32 %v1957, %v2026
      %v2028 = vpop.f32.mrb[0].mxu0
      %2029 = vdwg.mxu0
      %v2030 = vadd.f32 %v1462, %v2027
      %v2031 = vld [vmem:[%s13] sm:$0x1]
      %v2033 = vlaneseq
      %v2034 = vshrl.u32 %v2033, 7
      %v2035 = vsub.s32 0, %v2034
      %v2036 = vrot.slane %v2031, %v2035
      %v2038 = vadd.f32 %v2030, %v2036
      %2039 = vst [vmem:[%s442] sm:$0xff] %v2038
      %p2040 = scmp.lt.s32.totalorder %s31, 1
      %s2041 = scalar_select %p2040, %s31, 1
      %s2042 = smul.addr %s2041, 8
      %s2043 = scalar_lea.vmem %s14, %s2042
      // Predicated region
      $region73: #{_lambda_.6} parent=71 // pred_check
        %p2044 = pneg %p327
      $region74: #{_lambda_.6} parent=71 // pred_check_branch
        %2046 = sbr.rel (%p2044) target = $region76
      $region75: #{_lambda_.6} parent=71 // pred_region
        _
      $region76: #{_lambda_.6} parent=71 // pred_fallthru
        _
    $region72: #{_lambda_.6} parent=5 // pred_fallthru
      _
    %p2047 = scmp.le.s32.totalorder 2, %s26
    // Predicated region
    $region77: #{_lambda_.6} parent=5 // pred_check
      %p2048 = pneg %p2047
    $region78: #{_lambda_.6} parent=5 // pred_check_branch
      %2050 = sbr.rel (%p2048) target = $region80
    $region79: #{_lambda_.6} parent=5 // pred_region
      %s2051 = ssub.s32 %s26, 2
      // Predicated region
      $region81: #{_lambda_.6} parent=79 // pred_check
        %p2052 = pneg %p333
      $region82: #{_lambda_.6} parent=79 // pred_check_branch
        %2054 = sbr.rel (%p2052) target = $region84
      $region83: #{_lambda_.6} parent=79 // pred_region
        %p2055 = scmp.lt.s32.totalorder %s32, 1
        %s2056 = scalar_select %p2055, %s32, 1
        %s2057 = smul.addr %s2056, 8
        %s2058 = scalar_lea.vmem %s14, %s2057
      $region84: #{_lambda_.6} parent=79 // pred_fallthru
        _
    $region80: #{_lambda_.6} parent=5 // pred_fallthru
      _
  $region6: #{_lambda_.6} parent=0 // loop_footer
    %s30 = sadd.s32 1, %s26
  $region7: #{_lambda_.6} parent=0 // loop_footer_branch
    %25 = sbr.rel target = $region3
  $region8: #{_lambda_.6} parent=0 // loop_exit
    _

// kernel: _lambda_.5
$region0: #{_lambda_.5}
  #allocation0 [shape = 'u32[]', space=smem, size = 0x4, offset = 0x4, fixed_abs, tag = 'smem constant byte address 0x4 - core index']
  #allocation1 [shape = 'u32[144,128]{1,0:T(1,128)}', space=vmem, size = 0x12000, scoped, tag = 'internal scratch']
  #allocation2 [shape = 's32[1]{0}', space=sflag, size = 0x4, scoped, tag = 'scoped memory for _lambda_.5']
  #allocation3 [shape = 'u8[512]{0}', space=smem, size = 0x200, scoped, tag = 'prefetched SMEM operand 0']
  %s0 = inlined_call_operand.vmem [shape: s32[2], index: 0, kind: input, shape index: {}]
  %s1 = inlined_call_operand.vmem [shape: f32[2,8,128], index: 1, kind: input, shape index: {}]
  %s2 = inlined_call_operand.vmem [shape: f32[4,8,8], index: 2, kind: input, shape index: {}]
  %s3 = inlined_call_operand.vmem [shape: f32[1,128], index: 3, kind: input, shape index: {}]
  %s4 = inlined_call_operand.vmem [shape: f32[1,128], index: 4, kind: input, shape index: {}]
  %s5 = inlined_call_operand.hbm [shape: f32[128,384], index: 5, kind: input, shape index: {}]
  %s6 = inlined_call_operand.vmem [shape: f32[128,128], index: 6, kind: input, shape index: {}]
  %s7 = inlined_call_operand.vmem [shape: f32[1,128], index: 7, kind: input, shape index: {}]
  %s8 = inlined_call_operand.vmem [shape: f32[1,128], index: 8, kind: input, shape index: {}]
  %s9 = inlined_call_operand.vmem [shape: f32[1,128], index: 9, kind: input, shape index: {}]
  %s10 = inlined_call_operand.vmem [shape: f32[128,512], index: 10, kind: input, shape index: {}]
  %s11 = inlined_call_operand.vmem [shape: f32[1,512], index: 11, kind: input, shape index: {}]
  %s12 = inlined_call_operand.vmem [shape: f32[512,128], index: 12, kind: input, shape index: {}]
  %s13 = inlined_call_operand.vmem [shape: f32[1,128], index: 13, kind: input, shape index: {}]
  %s14 = inlined_call_operand.vmem [shape: f32[2,8,128], index: 14, kind: output, shape index: {}]
  %s15 = sld [smem:[#allocation0]]
  $region89: #{_lambda_.5} parent=0
    _
  %s17 = ssub.s32 1, %s15
  %s18 = scalar_select 0, %s17, %s15
  %s19 = sshll.u32 %s0, 4
  %s20 = int_to_ptr.vmem [resolvable:$true] %s19
  %22 = dma.vmem_to_smem %s20, 16, [#allocation3], [#allocation2]
  %23 = dma.done [#allocation2], 16
  %24 = sfence
  $region1: #{_lambda_.5} parent=0
    #allocation4 [shape = 'u8[196608]{0}', space=vmem, size = 0x30000, scoped, tag = 'input window, operand 5, single buffered']
    #allocation5 [shape = 's32[2]{0}', space=sflag, size = 0x8, scoped, tag = 'scoped memory for _lambda_.5']
    %25 = vsyncpa [#allocation5], 0
    loop: start=0, step=1, limit=4
    $region2: #{_lambda_.5} parent=1 // loop_pre_header
      _
    $region3: #{_lambda_.5} parent=1 // loop_header
      %s27 = sphi 0, %s31
      %p28 = scmp.ge.s32.totalorder %s27, 4
      %s37 = sphi 0, %s39
      %s40 = sphi 0, %s37
      %s41 = sphi 0, %s40
      %s57 = sphi 0, %s41
      %s61 = sphi 0, %s61
      %s63 = sphi 0, %s61
      %s64 = sphi 0, %s63
      %s78 = sphi 0, %s64
      %s82 = sphi 0, %s82
      %s84 = sphi 0, %s82
      %s85 = sphi 0, %s84
      %s99 = sphi 0, %s85
      %s103 = sphi 0, %s103
      %s105 = sphi 0, %s103
      %s106 = sphi 0, %s105
      %s120 = sphi 0, %s106
      %s124 = sphi 0, %s124
      %s126 = sphi 0, %s124
      %s127 = sphi 0, %s126
      %s141 = sphi 0, %s127
      %s145 = sphi 0, %s145
      %s147 = sphi 0, %s145
      %s148 = sphi 0, %s147
      %s162 = sphi 0, %s148
      %s166 = sphi 0, %s166
      %s168 = sphi 0, %s166
      %s169 = sphi 0, %s168
      %s183 = sphi 0, %s169
      %s187 = sphi 0, %s187
      %s189 = sphi 0, %s187
      %s190 = sphi 0, %s189
      %s204 = sphi 0, %s190
      %s208 = sphi 0, %s208
      %s210 = sphi 0, %s208
      %s211 = sphi 0, %s210
      %s225 = sphi 0, %s211
      %s229 = sphi 0, %s229
      %s231 = sphi 0, %s229
      %s232 = sphi 0, %s231
      %s246 = sphi 0, %s232
      %s250 = sphi 0, %s250
      %s252 = sphi 0, %s250
      %s253 = sphi 0, %s252
      %s267 = sphi 0, %s253
      %s271 = sphi 0, %s271
      %s273 = sphi 0, %s271
      %s274 = sphi 0, %s273
      %s288 = sphi 0, %s274
      %s292 = sphi 0, %s292
      %s294 = sphi 0, %s292
      %s295 = sphi 0, %s294
      %s309 = sphi 0, %s295
      %s315 = sphi 0, %s317
      %s318 = sphi 0, %s315
      %s319 = sphi 0, %s318
      %s335 = sphi 0, %s319
    $region4: #{_lambda_.5} parent=1 // loop_header_branch
      %30 = sbr.rel (%p28) target = $region8
    $region5: #{_lambda_.5} parent=1 // loop_body
      %s32 = ssub.s32 %s27, 1
      %s33 = ssub.s32 %s27, 2
      %s34 = sadd.s32 %s27, 1
      %s35 = ssub.s32 %s27, %s34
      %p36 = scmp.eq.s32.totalorder %s35, 0
      %s38 = sadd.s32 %s37, 1
      %s39 = scalar_select %p36, %s37, %s38
      %p42 = pneg %p36
      %p43 = scmp.eq.s32.totalorder %s27, 1
      %p44 = por %p42, %p43
      %p45 = scmp.ne.s32.totalorder %s37, %s40
      %p46 = scmp.eq.s32.totalorder %s27, 0
      %p47 = por %p45, %p46
      %p48 = scmp.ne.s32.totalorder %s37, %s40
      %p49 = scmp.eq.s32.totalorder %s32, 1
      %p50 = por %p48, %p49
      %p51 = scmp.ne.s32.totalorder %s40, %s41
      %p52 = scmp.eq.s32.totalorder %s32, 0
      %p53 = por %p51, %p52
      %p54 = scmp.ne.s32.totalorder %s40, %s41
      %p55 = scmp.eq.s32.totalorder %s33, 1
      %p56 = por %p54, %p55
      %p58 = scmp.ne.s32.totalorder %s41, %s57
      %p59 = scmp.eq.s32.totalorder %s33, 0
      %p60 = por %p58, %p59
      %s62 = sadd.s32 %s61, 1
      %p65 = scmp.eq.s32.totalorder %s27, 1
      %p66 = scmp.ne.s32.totalorder %s61, %s63
      %p67 = scmp.eq.s32.totalorder %s27, 0
      %p68 = por %p66, %p67
      %p69 = scmp.ne.s32.totalorder %s61, %s63
      %p70 = scmp.eq.s32.totalorder %s32, 1
      %p71 = por %p69, %p70
      %p72 = scmp.ne.s32.totalorder %s63, %s64
      %p73 = scmp.eq.s32.totalorder %s32, 0
      %p74 = por %p72, %p73
      %p75 = scmp.ne.s32.totalorder %s63, %s64
      %p76 = scmp.eq.s32.totalorder %s33, 1
      %p77 = por %p75, %p76
      %p79 = scmp.ne.s32.totalorder %s64, %s78
      %p80 = scmp.eq.s32.totalorder %s33, 0
      %p81 = por %p79, %p80
      %s83 = sadd.s32 %s82, 1
      %p86 = scmp.eq.s32.totalorder %s27, 1
      %p87 = scmp.ne.s32.totalorder %s82, %s84
      %p88 = scmp.eq.s32.totalorder %s27, 0
      %p89 = por %p87, %p88
      %p90 = scmp.ne.s32.totalorder %s82, %s84
      %p91 = scmp.eq.s32.totalorder %s32, 1
      %p92 = por %p90, %p91
      %p93 = scmp.ne.s32.totalorder %s84, %s85
      %p94 = scmp.eq.s32.totalorder %s32, 0
      %p95 = por %p93, %p94
      %p96 = scmp.ne.s32.totalorder %s84, %s85
      %p97 = scmp.eq.s32.totalorder %s33, 1
      %p98 = por %p96, %p97
      %p100 = scmp.ne.s32.totalorder %s85, %s99
      %p101 = scmp.eq.s32.totalorder %s33, 0
      %p102 = por %p100, %p101
      %s104 = sadd.s32 %s103, 1
      %p107 = scmp.eq.s32.totalorder %s27, 1
      %p108 = scmp.ne.s32.totalorder %s103, %s105
      %p109 = scmp.eq.s32.totalorder %s27, 0
      %p110 = por %p108, %p109
      %p111 = scmp.ne.s32.totalorder %s103, %s105
      %p112 = scmp.eq.s32.totalorder %s32, 1
      %p113 = por %p111, %p112
      %p114 = scmp.ne.s32.totalorder %s105, %s106
      %p115 = scmp.eq.s32.totalorder %s32, 0
      %p116 = por %p114, %p115
      %p117 = scmp.ne.s32.totalorder %s105, %s106
      %p118 = scmp.eq.s32.totalorder %s33, 1
      %p119 = por %p117, %p118
      %p121 = scmp.ne.s32.totalorder %s106, %s120
      %p122 = scmp.eq.s32.totalorder %s33, 0
      %p123 = por %p121, %p122
      %s125 = sadd.s32 %s124, 1
      %p128 = scmp.eq.s32.totalorder %s27, 1
      %p129 = scmp.ne.s32.totalorder %s124, %s126
      %p130 = scmp.eq.s32.totalorder %s27, 0
      %p131 = por %p129, %p130
      %p132 = scmp.ne.s32.totalorder %s124, %s126
      %p133 = scmp.eq.s32.totalorder %s32, 1
      %p134 = por %p132, %p133
      %p135 = scmp.ne.s32.totalorder %s126, %s127
      %p136 = scmp.eq.s32.totalorder %s32, 0
      %p137 = por %p135, %p136
      %p138 = scmp.ne.s32.totalorder %s126, %s127
      %p139 = scmp.eq.s32.totalorder %s33, 1
      %p140 = por %p138, %p139
      %p142 = scmp.ne.s32.totalorder %s127, %s141
      %p143 = scmp.eq.s32.totalorder %s33, 0
      %p144 = por %p142, %p143
      %s146 = sadd.s32 %s145, 1
      %p149 = scmp.eq.s32.totalorder %s27, 1
      %p150 = scmp.ne.s32.totalorder %s145, %s147
      %p151 = scmp.eq.s32.totalorder %s27, 0
      %p152 = por %p150, %p151
      %p153 = scmp.ne.s32.totalorder %s145, %s147
      %p154 = scmp.eq.s32.totalorder %s32, 1
      %p155 = por %p153, %p154
      %p156 = scmp.ne.s32.totalorder %s147, %s148
      %p157 = scmp.eq.s32.totalorder %s32, 0
      %p158 = por %p156, %p157
      %p159 = scmp.ne.s32.totalorder %s147, %s148
      %p160 = scmp.eq.s32.totalorder %s33, 1
      %p161 = por %p159, %p160
      %p163 = scmp.ne.s32.totalorder %s148, %s162
      %p164 = scmp.eq.s32.totalorder %s33, 0
      %p165 = por %p163, %p164
      %s167 = sadd.s32 %s166, 1
      %p170 = scmp.eq.s32.totalorder %s27, 1
      %p171 = scmp.ne.s32.totalorder %s166, %s168
      %p172 = scmp.eq.s32.totalorder %s27, 0
      %p173 = por %p171, %p172
      %p174 = scmp.ne.s32.totalorder %s166, %s168
      %p175 = scmp.eq.s32.totalorder %s32, 1
      %p176 = por %p174, %p175
      %p177 = scmp.ne.s32.totalorder %s168, %s169
      %p178 = scmp.eq.s32.totalorder %s32, 0
      %p179 = por %p177, %p178
      %p180 = scmp.ne.s32.totalorder %s168, %s169
      %p181 = scmp.eq.s32.totalorder %s33, 1
      %p182 = por %p180, %p181
      %p184 = scmp.ne.s32.totalorder %s169, %s183
      %p185 = scmp.eq.s32.totalorder %s33, 0
      %p186 = por %p184, %p185
      %s188 = sadd.s32 %s187, 1
      %p191 = scmp.eq.s32.totalorder %s27, 1
      %p192 = scmp.ne.s32.totalorder %s187, %s189
      %p193 = scmp.eq.s32.totalorder %s27, 0
      %p194 = por %p192, %p193
      %p195 = scmp.ne.s32.totalorder %s187, %s189
      %p196 = scmp.eq.s32.totalorder %s32, 1
      %p197 = por %p195, %p196
      %p198 = scmp.ne.s32.totalorder %s189, %s190
      %p199 = scmp.eq.s32.totalorder %s32, 0
      %p200 = por %p198, %p199
      %p201 = scmp.ne.s32.totalorder %s189, %s190
      %p202 = scmp.eq.s32.totalorder %s33, 1
      %p203 = por %p201, %p202
      %p205 = scmp.ne.s32.totalorder %s190, %s204
      %p206 = scmp.eq.s32.totalorder %s33, 0
      %p207 = por %p205, %p206
      %s209 = sadd.s32 %s208, 1
      %p212 = scmp.eq.s32.totalorder %s27, 1
      %p213 = scmp.ne.s32.totalorder %s208, %s210
      %p214 = scmp.eq.s32.totalorder %s27, 0
      %p215 = por %p213, %p214
      %p216 = scmp.ne.s32.totalorder %s208, %s210
      %p217 = scmp.eq.s32.totalorder %s32, 1
      %p218 = por %p216, %p217
      %p219 = scmp.ne.s32.totalorder %s210, %s211
      %p220 = scmp.eq.s32.totalorder %s32, 0
      %p221 = por %p219, %p220
      %p222 = scmp.ne.s32.totalorder %s210, %s211
      %p223 = scmp.eq.s32.totalorder %s33, 1
      %p224 = por %p222, %p223
      %p226 = scmp.ne.s32.totalorder %s211, %s225
      %p227 = scmp.eq.s32.totalorder %s33, 0
      %p228 = por %p226, %p227
      %s230 = sadd.s32 %s229, 1
      %p233 = scmp.eq.s32.totalorder %s27, 1
      %p234 = scmp.ne.s32.totalorder %s229, %s231
      %p235 = scmp.eq.s32.totalorder %s27, 0
      %p236 = por %p234, %p235
      %p237 = scmp.ne.s32.totalorder %s229, %s231
      %p238 = scmp.eq.s32.totalorder %s32, 1
      %p239 = por %p237, %p238
      %p240 = scmp.ne.s32.totalorder %s231, %s232
      %p241 = scmp.eq.s32.totalorder %s32, 0
      %p242 = por %p240, %p241
      %p243 = scmp.ne.s32.totalorder %s231, %s232
      %p244 = scmp.eq.s32.totalorder %s33, 1
      %p245 = por %p243, %p244
      %p247 = scmp.ne.s32.totalorder %s232, %s246
      %p248 = scmp.eq.s32.totalorder %s33, 0
      %p249 = por %p247, %p248
      %s251 = sadd.s32 %s250, 1
      %p254 = scmp.eq.s32.totalorder %s27, 1
      %p255 = scmp.ne.s32.totalorder %s250, %s252
      %p256 = scmp.eq.s32.totalorder %s27, 0
      %p257 = por %p255, %p256
      %p258 = scmp.ne.s32.totalorder %s250, %s252
      %p259 = scmp.eq.s32.totalorder %s32, 1
      %p260 = por %p258, %p259
      %p261 = scmp.ne.s32.totalorder %s252, %s253
      %p262 = scmp.eq.s32.totalorder %s32, 0
      %p263 = por %p261, %p262
      %p264 = scmp.ne.s32.totalorder %s252, %s253
      %p265 = scmp.eq.s32.totalorder %s33, 1
      %p266 = por %p264, %p265
      %p268 = scmp.ne.s32.totalorder %s253, %s267
      %p269 = scmp.eq.s32.totalorder %s33, 0
      %p270 = por %p268, %p269
      %s272 = sadd.s32 %s271, 1
      %p275 = scmp.eq.s32.totalorder %s27, 1
      %p276 = scmp.ne.s32.totalorder %s271, %s273
      %p277 = scmp.eq.s32.totalorder %s27, 0
      %p278 = por %p276, %p277
      %p279 = scmp.ne.s32.totalorder %s271, %s273
      %p280 = scmp.eq.s32.totalorder %s32, 1
      %p281 = por %p279, %p280
      %p282 = scmp.ne.s32.totalorder %s273, %s274
      %p283 = scmp.eq.s32.totalorder %s32, 0
      %p284 = por %p282, %p283
      %p285 = scmp.ne.s32.totalorder %s273, %s274
      %p286 = scmp.eq.s32.totalorder %s33, 1
      %p287 = por %p285, %p286
      %p289 = scmp.ne.s32.totalorder %s274, %s288
      %p290 = scmp.eq.s32.totalorder %s33, 0
      %p291 = por %p289, %p290
      %s293 = sadd.s32 %s292, 1
      %p296 = scmp.eq.s32.totalorder %s27, 1
      %p297 = scmp.ne.s32.totalorder %s292, %s294
      %p298 = scmp.eq.s32.totalorder %s27, 0
      %p299 = por %p297, %p298
      %p300 = scmp.ne.s32.totalorder %s292, %s294
      %p301 = scmp.eq.s32.totalorder %s32, 1
      %p302 = por %p300, %p301
      %p303 = scmp.ne.s32.totalorder %s294, %s295
      %p304 = scmp.eq.s32.totalorder %s32, 0
      %p305 = por %p303, %p304
      %p306 = scmp.ne.s32.totalorder %s294, %s295
      %p307 = scmp.eq.s32.totalorder %s33, 1
      %p308 = por %p306, %p307
      %p310 = scmp.ne.s32.totalorder %s295, %s309
      %p311 = scmp.eq.s32.totalorder %s33, 0
      %p312 = por %p310, %p311
      %s313 = ssub.s32 %s27, %s34
      %p314 = scmp.eq.s32.totalorder %s313, 0
      %s316 = sadd.s32 %s315, 1
      %s317 = scalar_select %p314, %s315, %s316
      %p320 = pneg %p314
      %p321 = scmp.eq.s32.totalorder %s27, 1
      %p322 = por %p320, %p321
      %p323 = scmp.ne.s32.totalorder %s315, %s318
      %p324 = scmp.eq.s32.totalorder %s27, 0
      %p325 = por %p323, %p324
      %p326 = scmp.ne.s32.totalorder %s315, %s318
      %p327 = scmp.eq.s32.totalorder %s32, 1
      %p328 = por %p326, %p327
      %p329 = scmp.ne.s32.totalorder %s318, %s319
      %p330 = scmp.eq.s32.totalorder %s32, 0
      %p331 = por %p329, %p330
      %p332 = scmp.ne.s32.totalorder %s318, %s319
      %p333 = scmp.eq.s32.totalorder %s33, 1
      %p334 = por %p332, %p333
      %p336 = scmp.ne.s32.totalorder %s319, %s335
      %p337 = scmp.eq.s32.totalorder %s33, 0
      %p338 = por %p336, %p337
      %p339 = scmp.le.s32.totalorder 1, %s27
      %p340 = scmp.lt.s32.totalorder %s27, 3
      %p341 = pnand %p339, %p340
      %p342 = pneg %p341
      // Predicated region
      $region9: #{_lambda_.5} parent=5 // pred_check
        _
      $region10: #{_lambda_.5} parent=5 // pred_check_branch
        %344 = sbr.rel (%p341) target = $region12
      $region11: #{_lambda_.5} parent=5 // pred_region
        %s345 = ssub.s32 %s27, 1
        // Predicated region
        $region13: #{_lambda_.5} parent=11 // pred_check
          %p346 = pneg %p74
        $region14: #{_lambda_.5} parent=11 // pred_check_branch
          %348 = sbr.rel (%p346) target = $region16
        $region15: #{_lambda_.5} parent=11 // pred_region
          _
        $region16: #{_lambda_.5} parent=11 // pred_fallthru
          _
        // Predicated region
        $region17: #{_lambda_.5} parent=11 // pred_check
          %p349 = pneg %p95
        $region18: #{_lambda_.5} parent=11 // pred_check_branch
          %351 = sbr.rel (%p349) target = $region20
        $region19: #{_lambda_.5} parent=11 // pred_region
          _
        $region20: #{_lambda_.5} parent=11 // pred_fallthru
          _
        // Predicated region
        $region21: #{_lambda_.5} parent=11 // pred_check
          %p352 = pneg %p116
        $region22: #{_lambda_.5} parent=11 // pred_check_branch
          %354 = sbr.rel (%p352) target = $region24
        $region23: #{_lambda_.5} parent=11 // pred_region
          _
        $region24: #{_lambda_.5} parent=11 // pred_fallthru
          _
        // Predicated region
        $region25: #{_lambda_.5} parent=11 // pred_check
          %p355 = pneg %p137
        $region26: #{_lambda_.5} parent=11 // pred_check_branch
          %357 = sbr.rel (%p355) target = $region28
        $region27: #{_lambda_.5} parent=11 // pred_region
          %s359 = ssub.s32 6144, 6144
          %360 = vsyncadd [#allocation5], %s359
          %s361 = sshll.u32 [#allocation4], 4
          %s362 = int_to_ptr.vmem [resolvable:$true] %s361
          %367 = dma.hbm_to_vmem [thread:$0]  %s5, 6144, %s362, [#allocation5], 384, 384, 24
        $region28: #{_lambda_.5} parent=11 // pred_fallthru
          _
        // Predicated region
        $region29: #{_lambda_.5} parent=11 // pred_check
          %p368 = pneg %p158
        $region30: #{_lambda_.5} parent=11 // pred_check_branch
          %370 = sbr.rel (%p368) target = $region32
        $region31: #{_lambda_.5} parent=11 // pred_region
          _
        $region32: #{_lambda_.5} parent=11 // pred_fallthru
          _
        // Predicated region
        $region33: #{_lambda_.5} parent=11 // pred_check
          %p371 = pneg %p179
        $region34: #{_lambda_.5} parent=11 // pred_check_branch
          %373 = sbr.rel (%p371) target = $region36
        $region35: #{_lambda_.5} parent=11 // pred_region
          _
        $region36: #{_lambda_.5} parent=11 // pred_fallthru
          _
        // Predicated region
        $region37: #{_lambda_.5} parent=11 // pred_check
          %p374 = pneg %p200
        $region38: #{_lambda_.5} parent=11 // pred_check_branch
          %376 = sbr.rel (%p374) target = $region40
        $region39: #{_lambda_.5} parent=11 // pred_region
          _
        $region40: #{_lambda_.5} parent=11 // pred_fallthru
          _
        // Predicated region
        $region41: #{_lambda_.5} parent=11 // pred_check
          %p377 = pneg %p221
        $region42: #{_lambda_.5} parent=11 // pred_check_branch
          %379 = sbr.rel (%p377) target = $region44
        $region43: #{_lambda_.5} parent=11 // pred_region
          _
        $region44: #{_lambda_.5} parent=11 // pred_fallthru
          _
        // Predicated region
        $region45: #{_lambda_.5} parent=11 // pred_check
          %p380 = pneg %p242
        $region46: #{_lambda_.5} parent=11 // pred_check_branch
          %382 = sbr.rel (%p380) target = $region48
        $region47: #{_lambda_.5} parent=11 // pred_region
          _
        $region48: #{_lambda_.5} parent=11 // pred_fallthru
          _
        // Predicated region
        $region49: #{_lambda_.5} parent=11 // pred_check
          %p383 = pneg %p263
        $region50: #{_lambda_.5} parent=11 // pred_check_branch
          %385 = sbr.rel (%p383) target = $region52
        $region51: #{_lambda_.5} parent=11 // pred_region
          _
        $region52: #{_lambda_.5} parent=11 // pred_fallthru
          _
        // Predicated region
        $region53: #{_lambda_.5} parent=11 // pred_check
          %p386 = pneg %p284
        $region54: #{_lambda_.5} parent=11 // pred_check_branch
          %388 = sbr.rel (%p386) target = $region56
        $region55: #{_lambda_.5} parent=11 // pred_region
          _
        $region56: #{_lambda_.5} parent=11 // pred_fallthru
          _
        // Predicated region
        $region57: #{_lambda_.5} parent=11 // pred_check
          %p389 = pneg %p305
        $region58: #{_lambda_.5} parent=11 // pred_check_branch
          %391 = sbr.rel (%p389) target = $region60
        $region59: #{_lambda_.5} parent=11 // pred_region
          _
        $region60: #{_lambda_.5} parent=11 // pred_fallthru
          _
      $region12: #{_lambda_.5} parent=5 // pred_fallthru
        _
      %p392 = scmp.lt.s32.totalorder %s27, 2
      // Predicated region
      $region61: #{_lambda_.5} parent=5 // pred_check
        %p393 = pneg %p392
      $region62: #{_lambda_.5} parent=5 // pred_check_branch
        %395 = sbr.rel (%p393) target = $region64
      $region63: #{_lambda_.5} parent=5 // pred_region
        // Predicated region
        $region65: #{_lambda_.5} parent=63 // pred_check
          %p396 = pneg %p47
        $region66: #{_lambda_.5} parent=63 // pred_check_branch
          %398 = sbr.rel (%p396) target = $region68
        $region67: #{_lambda_.5} parent=63 // pred_region
          %p399 = scmp.lt.s32.totalorder %s27, 1
          %s400 = scalar_select %p399, %s27, 1
          %s401 = smul.addr %s400, 8
          %s402 = scalar_lea.vmem %s1, %s401
        $region68: #{_lambda_.5} parent=63 // pred_fallthru
          _
      $region64: #{_lambda_.5} parent=5 // pred_fallthru
        _
      %p403 = scmp.le.s32.totalorder 1, %s27
      %p404 = scmp.lt.s32.totalorder %s27, 3
      %p405 = pnand %p403, %p404
      %p406 = pneg %p405
      // Predicated region
      $region69: #{_lambda_.5} parent=5 // pred_check
        _
      $region70: #{_lambda_.5} parent=5 // pred_check_branch
        %408 = sbr.rel (%p405) target = $region72
      $region71: #{_lambda_.5} parent=5 // pred_region
        %s409 = ssub.s32 %s27, 1
        // Predicated region
        $region73: #{_lambda_.5} parent=71 // pred_check
          %p410 = pneg %p137
        $region74: #{_lambda_.5} parent=71 // pred_check_branch
          %412 = sbr.rel (%p410) target = $region76
        $region75: #{_lambda_.5} parent=71 // pred_region
          %413 = dma.done [#allocation5], 6144
        $region76: #{_lambda_.5} parent=71 // pred_fallthru
          _
        %p414 = scmp.lt.s32.totalorder %s32, 1
        %s415 = scalar_select %p414, %s32, 1
        %s416 = smul.addr %s415, 8
        %s417 = scalar_lea.vmem %s1, %s416
        %p418 = pneg %p53
        %p419 = pneg %p50
        %p420 = pneg %p74
        %p421 = pneg %p71
        %p422 = pneg %p95
        %p423 = pneg %p92
        %p424 = pneg %p116
        %p425 = pneg %p113
        %p426 = pneg %p137
        %p427 = pneg %p134
        %p428 = pneg %p158
        %p429 = pneg %p155
        %p430 = pneg %p179
        %p431 = pneg %p176
        %p432 = pneg %p200
        %p433 = pneg %p197
        %p434 = pneg %p221
        %p435 = pneg %p218
        %p436 = pneg %p242
        %p437 = pneg %p239
        %p438 = pneg %p263
        %p439 = pneg %p260
        %p440 = pneg %p284
        %p441 = pneg %p281
        %p442 = pneg %p305
        %p443 = pneg %p302
        %p444 = pneg %p331
        %p445 = pneg %p328
        %p446 = scmp.lt.s32.totalorder %s32, 1
        %s447 = scalar_select %p446, %s32, 1
        %s448 = smul.addr %s447, 8
        %s449 = scalar_lea.vmem %s14, %s448
        %p450 = scmp.lt.s32.totalorder %s32, 1
        %s451 = scalar_select %p450, %s32, 1
        %s452 = smul.addr %s451, 8
        %s453 = scalar_lea.vmem %s1, %s452
        %p454 = scmp.lt.s32.totalorder %s32, 1
        %s455 = scalar_select %p454, %s32, 1
        %s456 = smul.addr %s455, 8
        %s457 = scalar_lea.vmem %s14, %s456
        %v458 = vld [vmem:[%s453] sm:$0xff]
        %v459 = vld [vmem:[%s3] sm:$0x1]
        %v460 = vld [vmem:[%s4] sm:$0x1]
        %461 = vadd.xlane.f32.xlu0 %v458
        %v462 = vpop.xlane.xlu0 %461
        %v463 = vrcp.pop 128.0
        %v464 = vmul.f32 %v462, %v463
        %v465 = vsub.f32 %v458, %v464
        %v466 = vmul.f32 %v465, %v465
        %467 = vadd.xlane.f32.xlu0 %v466
        %v468 = vpop.xlane.xlu0 %467
        %v469 = vmul.f32 %v468, %v463
        %v470 = vadd.f32 %v469, 1e-05
        %v471 = vrsqrt.pop %v470
        %v472 = vmul.f32 %v465, %v471
        %v474 = vlaneseq
        %v475 = vshrl.u32 %v474, 7
        %v476 = vsub.s32 0, %v475
        %v477 = vrot.slane %v459, %v476
        %v479 = vmul.f32 %v472, %v477
        %v481 = vlaneseq
        %v482 = vshrl.u32 %v481, 7
        %v483 = vsub.s32 0, %v482
        %v484 = vrot.slane %v460, %v483
        %v486 = vadd.f32 %v479, %v484
        %s487 = sld [smem:[#allocation3 + %s32]]
        %v488 = vlaneseq
        %v489 = vshrl.u32 %v488, 7
        %v490 = vstv %s487
        %vm491 = vcmp.lt.s32.totalorder %v489, %v490
        %v492 = vlaneseq
        %v493 = vand.u32 %v492, 127
        %vm494 = vcmp.lt.s32.totalorder %v493, %v490
        %v495 = vsel %vm491, 1, 0
        %vm496 = vcmp.eq.s32.totalorder %v495, 1
        %v497 = vsel %vm494, 1, 0
        %vm498 = vcmp.eq.s32.totalorder %v497, 1
        %vm499 = vmand %vm496, %vm498
        %v500 = vld [vmem:[#allocation4] sm:$0xff]
        %v501 = vld [vmem:[#allocation4 + $0x8] sm:$0xff]
        %v502 = vld [vmem:[#allocation4 + $0x10] sm:$0xff]
        %v503 = vld [vmem:[#allocation4 + $0x18] sm:$0xff]
        %v504 = vld [vmem:[#allocation4 + $0x20] sm:$0xff]
        %v505 = vld [vmem:[#allocation4 + $0x28] sm:$0xff]
        %v506 = vld [vmem:[#allocation4 + $0x30] sm:$0xff]
        %v507 = vld [vmem:[#allocation4 + $0x38] sm:$0xff]
        %v508 = vld [vmem:[#allocation4 + $0x40] sm:$0xff]
        %v509 = vld [vmem:[#allocation4 + $0x48] sm:$0xff]
        %v510 = vld [vmem:[#allocation4 + $0x50] sm:$0xff]
        %v511 = vld [vmem:[#allocation4 + $0x58] sm:$0xff]
        %v512 = vld [vmem:[#allocation4 + $0x60] sm:$0xff]
        %v513 = vld [vmem:[#allocation4 + $0x68] sm:$0xff]
        %v514 = vld [vmem:[#allocation4 + $0x70] sm:$0xff]
        %v515 = vld [vmem:[#allocation4 + $0x78] sm:$0xff]
        %v516 = vld [vmem:[#allocation4 + $0x80] sm:$0xff]
        %v517 = vld [vmem:[#allocation4 + $0x88] sm:$0xff]
        %v518 = vld [vmem:[#allocation4 + $0x90] sm:$0xff]
        %v519 = vld [vmem:[#allocation4 + $0x98] sm:$0xff]
        %v520 = vld [vmem:[#allocation4 + $0xa0] sm:$0xff]
        %v521 = vld [vmem:[#allocation4 + $0xa8] sm:$0xff]
        %v522 = vld [vmem:[#allocation4 + $0xb0] sm:$0xff]
        %v523 = vld [vmem:[#allocation4 + $0xb8] sm:$0xff]
        %v524 = vld [vmem:[#allocation4 + $0xc0] sm:$0xff]
        %v525 = vld [vmem:[#allocation4 + $0xc8] sm:$0xff]
        %v526 = vld [vmem:[#allocation4 + $0xd0] sm:$0xff]
        %v527 = vld [vmem:[#allocation4 + $0xd8] sm:$0xff]
        %v528 = vld [vmem:[#allocation4 + $0xe0] sm:$0xff]
        %v529 = vld [vmem:[#allocation4 + $0xe8] sm:$0xff]
        %v530 = vld [vmem:[#allocation4 + $0xf0] sm:$0xff]
        %v531 = vld [vmem:[#allocation4 + $0xf8] sm:$0xff]
        %v532 = vld [vmem:[#allocation4 + $0x100] sm:$0xff]
        %v533 = vld [vmem:[#allocation4 + $0x108] sm:$0xff]
        %v534 = vld [vmem:[#allocation4 + $0x110] sm:$0xff]
        %v535 = vld [vmem:[#allocation4 + $0x118] sm:$0xff]
        %v536 = vld [vmem:[#allocation4 + $0x120] sm:$0xff]
        %v537 = vld [vmem:[#allocation4 + $0x128] sm:$0xff]
        %v538 = vld [vmem:[#allocation4 + $0x130] sm:$0xff]
        %v539 = vld [vmem:[#allocation4 + $0x138] sm:$0xff]
        %v540 = vld [vmem:[#allocation4 + $0x140] sm:$0xff]
        %v541 = vld [vmem:[#allocation4 + $0x148] sm:$0xff]
        %v542 = vld [vmem:[#allocation4 + $0x150] sm:$0xff]
        %v543 = vld [vmem:[#allocation4 + $0x158] sm:$0xff]
        %v544 = vld [vmem:[#allocation4 + $0x160] sm:$0xff]
        %v545 = vld [vmem:[#allocation4 + $0x168] sm:$0xff]
        %v546 = vld [vmem:[#allocation4 + $0x170] sm:$0xff]
        %v547 = vld [vmem:[#allocation4 + $0x178] sm:$0xff]
        %548 = vmatprep.subr.mxu0 %v501
        %549 = vmatpush1.msra.mxu0 %v500
        %550 = vmatprep.subr.mxu0 %v504
        %551 = vmatpush1.msra.mxu0 %v503
        %552 = vmatprep.subr.mxu0 %v507
        %553 = vmatpush1.msra.mxu0 %v506
        %554 = vmatprep.subr.mxu0 %v510
        %555 = vmatpush1.msra.mxu0 %v509
        %556 = vmatprep.subr.mxu0 %v513
        %557 = vmatpush1.msra.mxu0 %v512
        %558 = vmatprep.subr.mxu0 %v516
        %559 = vmatpush1.msra.mxu0 %v515
        %560 = vmatprep.subr.mxu0 %v519
        %561 = vmatpush1.msra.mxu0 %v518
        %562 = vmatprep.subr.mxu0 %v522
        %563 = vmatpush1.msra.mxu0 %v521
        %564 = vmatprep.subr.mxu0 %v525
        %565 = vmatpush1.msra.mxu0 %v524
        %566 = vmatprep.subr.mxu0 %v528
        %567 = vmatpush1.msra.mxu0 %v527
        %568 = vmatprep.subr.mxu0 %v531
        %569 = vmatpush1.msra.mxu0 %v530
        %570 = vmatprep.subr.mxu0 %v534
        %571 = vmatpush1.msra.mxu0 %v533
        %572 = vmatprep.subr.mxu0 %v537
        %573 = vmatpush1.msra.mxu0 %v536
        %574 = vmatprep.subr.mxu0 %v540
        %575 = vmatpush1.msra.mxu0 %v539
        %576 = vmatprep.subr.mxu0 %v543
        %577 = vmatpush1.msra.mxu0 %v542
        %578 = vmatprep.subr.mxu0 %v546
        %579 = vmatpush1.msra.mxu0 %v545
        %580 = vmatprep.subr.mxu0 0.0
        %581 = vmatpush1.msra.mxu0 0.0
        %582 = vmatprep.subr.mxu0 0.0
        %583 = vmatpush1.msra.mxu0 0.0
        %584 = vmatprep.subr.mxu0 0.0
        %585 = vmatpush1.msra.mxu0 0.0
        %586 = vmatprep.subr.mxu0 0.0
        %587 = vmatpush1.msra.mxu0 0.0
        %588 = vmatprep.subr.mxu0 0.0
        %589 = vmatpush1.msra.mxu0 0.0
        %590 = vmatprep.subr.mxu0 0.0
        %591 = vmatpush1.msra.mxu0 0.0
        %592 = vmatprep.subr.mxu0 0.0
        %593 = vmatpush1.msra.mxu0 0.0
        %594 = vmatprep.subr.mxu0 0.0
        %595 = vmatpush1.msra.mxu0 0.0
        %596 = vmatprep.subr.mxu0 0.0
        %597 = vmatpush1.msra.mxu0 0.0
        %598 = vmatprep.subr.mxu0 0.0
        %599 = vmatpush1.msra.mxu0 0.0
        %600 = vmatprep.subr.mxu0 0.0
        %601 = vmatpush1.msra.mxu0 0.0
        %602 = vmatprep.subr.mxu0 0.0
        %603 = vmatpush1.msra.mxu0 0.0
        %604 = vmatprep.subr.mxu0 0.0
        %605 = vmatpush1.msra.mxu0 0.0
        %606 = vmatprep.subr.mxu0 0.0
        %607 = vmatpush1.msra.mxu0 0.0
        %608 = vmatprep.subr.mxu0 0.0
        %609 = vmatpush1.msra.mxu0 0.0
        %610 = vmatprep.subr.mxu0 0.0
        %611 = vmatpush1.msra.mxu0 0.0
        %612 = vmatprep.mubr.f32.mxu0 0.0
        %613 = vmatmul.mubr.f32.gmra.mrb[0].mxu0 %v486
        %v614 = vpop.f32.mrb[0].mxu0
        %v615 = vadd.f32 0.0, %v614
        %v616 = vpop.f32.mrb[0].mxu0
        %v617 = vadd.f32 0.0, %v616
        %618 = vdwg.mxu0
        %619 = vmatprep.subr.mxu0 0.0
        %620 = vmatpush1.msra.mxu0 %v502
        %621 = vmatprep.subr.mxu0 0.0
        %622 = vmatpush1.msra.mxu0 %v505
        %623 = vmatprep.subr.mxu0 0.0
        %624 = vmatpush1.msra.mxu0 %v508
        %625 = vmatprep.subr.mxu0 0.0
        %626 = vmatpush1.msra.mxu0 %v511
        %627 = vmatprep.subr.mxu0 0.0
        %628 = vmatpush1.msra.mxu0 %v514
        %629 = vmatprep.subr.mxu0 0.0
        %630 = vmatpush1.msra.mxu0 %v517
        %631 = vmatprep.subr.mxu0 0.0
        %632 = vmatpush1.msra.mxu0 %v520
        %633 = vmatprep.subr.mxu0 0.0
        %634 = vmatpush1.msra.mxu0 %v523
        %635 = vmatprep.subr.mxu0 0.0
        %636 = vmatpush1.msra.mxu0 %v526
        %637 = vmatprep.subr.mxu0 0.0
        %638 = vmatpush1.msra.mxu0 %v529
        %639 = vmatprep.subr.mxu0 0.0
        %640 = vmatpush1.msra.mxu0 %v532
        %641 = vmatprep.subr.mxu0 0.0
        %642 = vmatpush1.msra.mxu0 %v535
        %643 = vmatprep.subr.mxu0 0.0
        %644 = vmatpush1.msra.mxu0 %v538
        %645 = vmatprep.subr.mxu0 0.0
        %646 = vmatpush1.msra.mxu0 %v541
        %647 = vmatprep.subr.mxu0 0.0
        %648 = vmatpush1.msra.mxu0 %v544
        %649 = vmatprep.subr.mxu0 0.0
        %650 = vmatpush1.msra.mxu0 %v547
        %651 = vmatprep.subr.mxu0 0.0
        %652 = vmatpush1.msra.mxu0 0.0
        %653 = vmatprep.subr.mxu0 0.0
        %654 = vmatpush1.msra.mxu0 0.0
        %655 = vmatprep.subr.mxu0 0.0
        %656 = vmatpush1.msra.mxu0 0.0
        %657 = vmatprep.subr.mxu0 0.0
        %658 = vmatpush1.msra.mxu0 0.0
        %659 = vmatprep.subr.mxu0 0.0
        %660 = vmatpush1.msra.mxu0 0.0
        %661 = vmatprep.subr.mxu0 0.0
        %662 = vmatpush1.msra.mxu0 0.0
        %663 = vmatprep.subr.mxu0 0.0
        %664 = vmatpush1.msra.mxu0 0.0
        %665 = vmatprep.subr.mxu0 0.0
        %666 = vmatpush1.msra.mxu0 0.0
        %667 = vmatprep.subr.mxu0 0.0
        %668 = vmatpush1.msra.mxu0 0.0
        %669 = vmatprep.subr.mxu0 0.0
        %670 = vmatpush1.msra.mxu0 0.0
        %671 = vmatprep.subr.mxu0 0.0
        %672 = vmatpush1.msra.mxu0 0.0
        %673 = vmatprep.subr.mxu0 0.0
        %674 = vmatpush1.msra.mxu0 0.0
        %675 = vmatprep.subr.mxu0 0.0
        %676 = vmatpush1.msra.mxu0 0.0
        %677 = vmatprep.subr.mxu0 0.0
        %678 = vmatpush1.msra.mxu0 0.0
        %679 = vmatprep.subr.mxu0 0.0
        %680 = vmatpush1.msra.mxu0 0.0
        %681 = vmatprep.subr.mxu0 0.0
        %682 = vmatpush1.msra.mxu0 0.0
        %683 = vmatprep.mubr.f32.mxu0 0.0
        %684 = vmatmul.mubr.f32.gmra.mrb[0].mxu0 %v486
        %v685 = vpop.f32.mrb[0].mxu0
        %v686 = vadd.f32 0.0, %v685
        %v687 = vpop.f32.mrb[0].mxu0
        %688 = vdwg.mxu0
        %vm689 = vcmask 261120
        %v691 = vsel %vm689, %v615, 0
        %v694 = vsel %vm689, %v617, 0
        %696 = vmatprep.subr.mxu0 0.0
        %697 = vmatpush1.xpose.msra.mxu0 %v694
        %698 = vmatprep.subr.mxu0 0.0
        %699 = vmatpush1.xpose.msra.mxu0 0.0
        %700 = vmatprep.subr.mxu0 0.0
        %701 = vmatpush1.xpose.msra.mxu0 0.0
        %702 = vmatprep.subr.mxu0 0.0
        %703 = vmatpush1.xpose.msra.mxu0 0.0
        %704 = vmatprep.subr.mxu0 0.0
        %705 = vmatpush1.xpose.msra.mxu0 0.0
        %706 = vmatprep.subr.mxu0 0.0
        %707 = vmatpush1.xpose.msra.mxu0 0.0
        %708 = vmatprep.subr.mxu0 0.0
        %709 = vmatpush1.xpose.msra.mxu0 0.0
        %710 = vmatprep.subr.mxu0 0.0
        %711 = vmatpush1.xpose.msra.mxu0 0.0
        %712 = vmatprep.subr.mxu0 0.0
        %713 = vmatpush1.xpose.msra.mxu0 0.0
        %714 = vmatprep.subr.mxu0 0.0
        %715 = vmatpush1.xpose.msra.mxu0 0.0
        %716 = vmatprep.subr.mxu0 0.0
        %717 = vmatpush1.xpose.msra.mxu0 0.0
        %718 = vmatprep.subr.mxu0 0.0
        %719 = vmatpush1.xpose.msra.mxu0 0.0
        %720 = vmatprep.subr.mxu0 0.0
        %721 = vmatpush1.xpose.msra.mxu0 0.0
        %722 = vmatprep.subr.mxu0 0.0
        %723 = vmatpush1.xpose.msra.mxu0 0.0
        %724 = vmatprep.subr.mxu0 0.0
        %725 = vmatpush1.xpose.msra.mxu0 0.0
        %726 = vmatprep.subr.mxu0 0.0
        %727 = vmatpush1.xpose.msra.mxu0 0.0
        %728 = vmatprep.subr.mxu0 0.0
        %729 = vmatpush1.xpose.msra.mxu0 0.0
        %730 = vmatprep.subr.mxu0 0.0
        %731 = vmatpush1.xpose.msra.mxu0 0.0
        %732 = vmatprep.subr.mxu0 0.0
        %733 = vmatpush1.xpose.msra.mxu0 0.0
        %734 = vmatprep.subr.mxu0 0.0
        %735 = vmatpush1.xpose.msra.mxu0 0.0
        %736 = vmatprep.subr.mxu0 0.0
        %737 = vmatpush1.xpose.msra.mxu0 0.0
        %738 = vmatprep.subr.mxu0 0.0
        %739 = vmatpush1.xpose.msra.mxu0 0.0
        %740 = vmatprep.subr.mxu0 0.0
        %741 = vmatpush1.xpose.msra.mxu0 0.0
        %742 = vmatprep.subr.mxu0 0.0
        %743 = vmatpush1.xpose.msra.mxu0 0.0
        %744 = vmatprep.subr.mxu0 0.0
        %745 = vmatpush1.xpose.msra.mxu0 0.0
        %746 = vmatprep.subr.mxu0 0.0
        %747 = vmatpush1.xpose.msra.mxu0 0.0
        %748 = vmatprep.subr.mxu0 0.0
        %749 = vmatpush1.xpose.msra.mxu0 0.0
        %750 = vmatprep.subr.mxu0 0.0
        %751 = vmatpush1.xpose.msra.mxu0 0.0
        %752 = vmatprep.subr.mxu0 0.0
        %753 = vmatpush1.xpose.msra.mxu0 0.0
        %754 = vmatprep.subr.mxu0 0.0
        %755 = vmatpush1.xpose.msra.mxu0 0.0
        %756 = vmatprep.subr.mxu0 0.0
        %757 = vmatpush1.xpose.msra.mxu0 0.0
        %758 = vmatprep.subr.mxu0 0.0
        %759 = vmatpush1.xpose.msra.mxu0 0.0
        %760 = vmatprep.mubr.f32.mxu0 0.0
        %761 = vmatmul.mubr.f32.gmra.mrb[0].mxu0 %v691
        %v762 = vpop.f32.mrb[0].mxu0
        %v763 = vadd.f32 0.0, %v762
        %v764 = vpop.f32.mrb[0].mxu0
        %765 = vdwg.mxu0
        %v766 = vmul.f32 %v763, 0.17677669
        %v767 = vld [vmem:[%s2] sm:$0xff]
        %v768 = vadd.f32 %v766, %v767
        %v769 = vsel %vm499, %v768, -3.4028235e+38
        %vm770 = vcmask 64512
        %v771 = vsel %vm770, %v769, -inf
        %772 = vmax.xlane.f32.xlu0 %v771
        %v773 = vpop.xlane.xlu0 %772
        %v774 = vsub.f32 %v769, %v773
        %v775 = vmul.f32 %v774, 1.442695
        %v776 = vpow.pop %v775
        %v777 = vsel %vm770, %v776, 0.0
        %778 = vadd.xlane.f32.xlu0 %v777
        %v779 = vpop.xlane.xlu0 %778
        %v780 = vrcp.pop %v779
        %v781 = vmul.f32 %v776, %v780
        %v783 = vsel %vm770, %v781, 0
        %785 = vmatprep.subr.mxu0 0.0
        %786 = vmatpush1.msra.mxu0 %v686
        %787 = vmatprep.subr.mxu0 0.0
        %788 = vmatpush1.msra.mxu0 0.0
        %789 = vmatprep.subr.mxu0 0.0
        %790 = vmatpush1.msra.mxu0 0.0
        %791 = vmatprep.subr.mxu0 0.0
        %792 = vmatpush1.msra.mxu0 0.0
        %793 = vmatprep.subr.mxu0 0.0
        %794 = vmatpush1.msra.mxu0 0.0
        %795 = vmatprep.subr.mxu0 0.0
        %796 = vmatpush1.msra.mxu0 0.0
        %797 = vmatprep.subr.mxu0 0.0
        %798 = vmatpush1.msra.mxu0 0.0
        %799 = vmatprep.subr.mxu0 0.0
        %800 = vmatpush1.msra.mxu0 0.0
        %801 = vmatprep.subr.mxu0 0.0
        %802 = vmatpush1.msra.mxu0 0.0
        %803 = vmatprep.subr.mxu0 0.0
        %804 = vmatpush1.msra.mxu0 0.0
        %805 = vmatprep.subr.mxu0 0.0
        %806 = vmatpush1.msra.mxu0 0.0
        %807 = vmatprep.subr.mxu0 0.0
        %808 = vmatpush1.msra.mxu0 0.0
        %809 = vmatprep.subr.mxu0 0.0
        %810 = vmatpush1.msra.mxu0 0.0
        %811 = vmatprep.subr.mxu0 0.0
        %812 = vmatpush1.msra.mxu0 0.0
        %813 = vmatprep.subr.mxu0 0.0
        %814 = vmatpush1.msra.mxu0 0.0
        %815 = vmatprep.subr.mxu0 0.0
        %816 = vmatpush1.msra.mxu0 0.0
        %817 = vmatprep.subr.mxu0 0.0
        %818 = vmatpush1.msra.mxu0 0.0
        %819 = vmatprep.subr.mxu0 0.0
        %820 = vmatpush1.msra.mxu0 0.0
        %821 = vmatprep.subr.mxu0 0.0
        %822 = vmatpush1.msra.mxu0 0.0
        %823 = vmatprep.subr.mxu0 0.0
        %824 = vmatpush1.msra.mxu0 0.0
        %825 = vmatprep.subr.mxu0 0.0
        %826 = vmatpush1.msra.mxu0 0.0
        %827 = vmatprep.subr.mxu0 0.0
        %828 = vmatpush1.msra.mxu0 0.0
        %829 = vmatprep.subr.mxu0 0.0
        %830 = vmatpush1.msra.mxu0 0.0
        %831 = vmatprep.subr.mxu0 0.0
        %832 = vmatpush1.msra.mxu0 0.0
        %833 = vmatprep.subr.mxu0 0.0
        %834 = vmatpush1.msra.mxu0 0.0
        %835 = vmatprep.subr.mxu0 0.0
        %836 = vmatpush1.msra.mxu0 0.0
        %837 = vmatprep.subr.mxu0 0.0
        %838 = vmatpush1.msra.mxu0 0.0
        %839 = vmatprep.subr.mxu0 0.0
        %840 = vmatpush1.msra.mxu0 0.0
        %841 = vmatprep.subr.mxu0 0.0
        %842 = vmatpush1.msra.mxu0 0.0
        %843 = vmatprep.subr.mxu0 0.0
        %844 = vmatpush1.msra.mxu0 0.0
        %845 = vmatprep.subr.mxu0 0.0
        %846 = vmatpush1.msra.mxu0 0.0
        %847 = vmatprep.subr.mxu0 0.0
        %848 = vmatpush1.msra.mxu0 0.0
        %849 = vmatprep.mubr.f32.mxu0 0.0
        %850 = vmatmul.mubr.f32.gmra.mrb[0].mxu0 %v783
        %v851 = vpop.f32.mrb[0].mxu0
        %v852 = vadd.f32 0.0, %v851
        %v853 = vpop.f32.mrb[0].mxu0
        %854 = vdwg.mxu0
        %855 = vrot.lane.b32.xlu0 %v615, 96
        %v856 = vpop.permute.xlu0 %855
        %857 = vrot.lane.b32.xlu0 %v617, 96
        %v858 = vpop.permute.xlu0 %857
        %v859 = vsel %vm689, %v856, 0
        %v861 = vsel %vm689, %v858, 0
        %863 = vmatprep.subr.mxu0 0.0
        %864 = vmatpush1.xpose.msra.mxu0 %v861
        %865 = vmatprep.subr.mxu0 0.0
        %866 = vmatpush1.xpose.msra.mxu0 0.0
        %867 = vmatprep.subr.mxu0 0.0
        %868 = vmatpush1.xpose.msra.mxu0 0.0
        %869 = vmatprep.subr.mxu0 0.0
        %870 = vmatpush1.xpose.msra.mxu0 0.0
        %871 = vmatprep.subr.mxu0 0.0
        %872 = vmatpush1.xpose.msra.mxu0 0.0
        %873 = vmatprep.subr.mxu0 0.0
        %874 = vmatpush1.xpose.msra.mxu0 0.0
        %875 = vmatprep.subr.mxu0 0.0
        %876 = vmatpush1.xpose.msra.mxu0 0.0
        %877 = vmatprep.subr.mxu0 0.0
        %878 = vmatpush1.xpose.msra.mxu0 0.0
        %879 = vmatprep.subr.mxu0 0.0
        %880 = vmatpush1.xpose.msra.mxu0 0.0
        %881 = vmatprep.subr.mxu0 0.0
        %882 = vmatpush1.xpose.msra.mxu0 0.0
        %883 = vmatprep.subr.mxu0 0.0
        %884 = vmatpush1.xpose.msra.mxu0 0.0
        %885 = vmatprep.subr.mxu0 0.0
        %886 = vmatpush1.xpose.msra.mxu0 0.0
        %887 = vmatprep.subr.mxu0 0.0
        %888 = vmatpush1.xpose.msra.mxu0 0.0
        %889 = vmatprep.subr.mxu0 0.0
        %890 = vmatpush1.xpose.msra.mxu0 0.0
        %891 = vmatprep.subr.mxu0 0.0
        %892 = vmatpush1.xpose.msra.mxu0 0.0
        %893 = vmatprep.subr.mxu0 0.0
        %894 = vmatpush1.xpose.msra.mxu0 0.0
        %895 = vmatprep.subr.mxu0 0.0
        %896 = vmatpush1.xpose.msra.mxu0 0.0
        %897 = vmatprep.subr.mxu0 0.0
        %898 = vmatpush1.xpose.msra.mxu0 0.0
        %899 = vmatprep.subr.mxu0 0.0
        %900 = vmatpush1.xpose.msra.mxu0 0.0
        %901 = vmatprep.subr.mxu0 0.0
        %902 = vmatpush1.xpose.msra.mxu0 0.0
        %903 = vmatprep.subr.mxu0 0.0
        %904 = vmatpush1.xpose.msra.mxu0 0.0
        %905 = vmatprep.subr.mxu0 0.0
        %906 = vmatpush1.xpose.msra.mxu0 0.0
        %907 = vmatprep.subr.mxu0 0.0
        %908 = vmatpush1.xpose.msra.mxu0 0.0
        %909 = vmatprep.subr.mxu0 0.0
        %910 = vmatpush1.xpose.msra.mxu0 0.0
        %911 = vmatprep.subr.mxu0 0.0
        %912 = vmatpush1.xpose.msra.mxu0 0.0
        %913 = vmatprep.subr.mxu0 0.0
        %914 = vmatpush1.xpose.msra.mxu0 0.0
        %915 = vmatprep.subr.mxu0 0.0
        %916 = vmatpush1.xpose.msra.mxu0 0.0
        %917 = vmatprep.subr.mxu0 0.0
        %918 = vmatpush1.xpose.msra.mxu0 0.0
        %919 = vmatprep.subr.mxu0 0.0
        %920 = vmatpush1.xpose.msra.mxu0 0.0
        %921 = vmatprep.subr.mxu0 0.0
        %922 = vmatpush1.xpose.msra.mxu0 0.0
        %923 = vmatprep.subr.mxu0 0.0
        %924 = vmatpush1.xpose.msra.mxu0 0.0
        %925 = vmatprep.subr.mxu0 0.0
        %926 = vmatpush1.xpose.msra.mxu0 0.0
        %927 = vmatprep.mubr.f32.mxu0 0.0
        %928 = vmatmul.mubr.f32.gmra.mrb[0].mxu0 %v859
        %v929 = vpop.f32.mrb[0].mxu0
        %v930 = vadd.f32 0.0, %v929
        %v931 = vpop.f32.mrb[0].mxu0
        %932 = vdwg.mxu0
        %v933 = vmul.f32 %v930, 0.17677669
        %s934 = scalar_lea.vmem %s2, 8
        %v935 = vld [vmem:[%s934] sm:$0xff]
        %v936 = vadd.f32 %v933, %v935
        %v937 = vsel %vm499, %v936, -3.4028235e+38
        %v938 = vsel %vm770, %v937, -inf
        %939 = vmax.xlane.f32.xlu0 %v938
        %v940 = vpop.xlane.xlu0 %939
        %v941 = vsub.f32 %v937, %v940
        %v942 = vmul.f32 %v941, 1.442695
        %v943 = vpow.pop %v942
        %v944 = vsel %vm770, %v943, 0.0
        %945 = vadd.xlane.f32.xlu0 %v944
        %v946 = vpop.xlane.xlu0 %945
        %v947 = vrcp.pop %v946
        %v948 = vmul.f32 %v943, %v947
        %950 = vrot.lane.b32.xlu0 %v686, 96
        %v951 = vpop.permute.xlu0 %950
        %v954 = vsel %vm770, %v948, 0
        %956 = vmatprep.subr.mxu0 0.0
        %957 = vmatpush1.msra.mxu0 %v951
        %958 = vmatprep.subr.mxu0 0.0
        %959 = vmatpush1.msra.mxu0 0.0
        %960 = vmatprep.subr.mxu0 0.0
        %961 = vmatpush1.msra.mxu0 0.0
        %962 = vmatprep.subr.mxu0 0.0
        %963 = vmatpush1.msra.mxu0 0.0
        %964 = vmatprep.subr.mxu0 0.0
        %965 = vmatpush1.msra.mxu0 0.0
        %966 = vmatprep.subr.mxu0 0.0
        %967 = vmatpush1.msra.mxu0 0.0
        %968 = vmatprep.subr.mxu0 0.0
        %969 = vmatpush1.msra.mxu0 0.0
        %970 = vmatprep.subr.mxu0 0.0
        %971 = vmatpush1.msra.mxu0 0.0
        %972 = vmatprep.subr.mxu0 0.0
        %973 = vmatpush1.msra.mxu0 0.0
        %974 = vmatprep.subr.mxu0 0.0
        %975 = vmatpush1.msra.mxu0 0.0
        %976 = vmatprep.subr.mxu0 0.0
        %977 = vmatpush1.msra.mxu0 0.0
        %978 = vmatprep.subr.mxu0 0.0
        %979 = vmatpush1.msra.mxu0 0.0
        %980 = vmatprep.subr.mxu0 0.0
        %981 = vmatpush1.msra.mxu0 0.0
        %982 = vmatprep.subr.mxu0 0.0
        %983 = vmatpush1.msra.mxu0 0.0
        %984 = vmatprep.subr.mxu0 0.0
        %985 = vmatpush1.msra.mxu0 0.0
        %986 = vmatprep.subr.mxu0 0.0
        %987 = vmatpush1.msra.mxu0 0.0
        %988 = vmatprep.subr.mxu0 0.0
        %989 = vmatpush1.msra.mxu0 0.0
        %990 = vmatprep.subr.mxu0 0.0
        %991 = vmatpush1.msra.mxu0 0.0
        %992 = vmatprep.subr.mxu0 0.0
        %993 = vmatpush1.msra.mxu0 0.0
        %994 = vmatprep.subr.mxu0 0.0
        %995 = vmatpush1.msra.mxu0 0.0
        %996 = vmatprep.subr.mxu0 0.0
        %997 = vmatpush1.msra.mxu0 0.0
        %998 = vmatprep.subr.mxu0 0.0
        %999 = vmatpush1.msra.mxu0 0.0
        %1000 = vmatprep.subr.mxu0 0.0
        %1001 = vmatpush1.msra.mxu0 0.0
        %1002 = vmatprep.subr.mxu0 0.0
        %1003 = vmatpush1.msra.mxu0 0.0
        %1004 = vmatprep.subr.mxu0 0.0
        %1005 = vmatpush1.msra.mxu0 0.0
        %1006 = vmatprep.subr.mxu0 0.0
        %1007 = vmatpush1.msra.mxu0 0.0
        %1008 = vmatprep.subr.mxu0 0.0
        %1009 = vmatpush1.msra.mxu0 0.0
        %1010 = vmatprep.subr.mxu0 0.0
        %1011 = vmatpush1.msra.mxu0 0.0
        %1012 = vmatprep.subr.mxu0 0.0
        %1013 = vmatpush1.msra.mxu0 0.0
        %1014 = vmatprep.subr.mxu0 0.0
        %1015 = vmatpush1.msra.mxu0 0.0
        %1016 = vmatprep.subr.mxu0 0.0
        %1017 = vmatpush1.msra.mxu0 0.0
        %1018 = vmatprep.subr.mxu0 0.0
        %1019 = vmatpush1.msra.mxu0 0.0
        %1020 = vmatprep.mubr.f32.mxu0 0.0
        %1021 = vmatmul.mubr.f32.gmra.mrb[0].mxu0 %v954
        %v1022 = vpop.f32.mrb[0].mxu0
        %v1023 = vadd.f32 0.0, %v1022
        %v1024 = vpop.f32.mrb[0].mxu0
        %1025 = vdwg.mxu0
        %1026 = vrot.lane.b32.xlu0 %v615, 64
        %v1027 = vpop.permute.xlu0 %1026
        %1028 = vrot.lane.b32.xlu0 %v617, 64
        %v1029 = vpop.permute.xlu0 %1028
        %v1030 = vsel %vm689, %v1027, 0
        %v1032 = vsel %vm689, %v1029, 0
        %1034 = vmatprep.subr.mxu0 0.0
        %1035 = vmatpush1.xpose.msra.mxu0 %v1032
        %1036 = vmatprep.subr.mxu0 0.0
        %1037 = vmatpush1.xpose.msra.mxu0 0.0
        %1038 = vmatprep.subr.mxu0 0.0
        %1039 = vmatpush1.xpose.msra.mxu0 0.0
        %1040 = vmatprep.subr.mxu0 0.0
        %1041 = vmatpush1.xpose.msra.mxu0 0.0
        %1042 = vmatprep.subr.mxu0 0.0
        %1043 = vmatpush1.xpose.msra.mxu0 0.0
        %1044 = vmatprep.subr.mxu0 0.0
        %1045 = vmatpush1.xpose.msra.mxu0 0.0
        %1046 = vmatprep.subr.mxu0 0.0
        %1047 = vmatpush1.xpose.msra.mxu0 0.0
        %1048 = vmatprep.subr.mxu0 0.0
        %1049 = vmatpush1.xpose.msra.mxu0 0.0
        %1050 = vmatprep.subr.mxu0 0.0
        %1051 = vmatpush1.xpose.msra.mxu0 0.0
        %1052 = vmatprep.subr.mxu0 0.0
        %1053 = vmatpush1.xpose.msra.mxu0 0.0
        %1054 = vmatprep.subr.mxu0 0.0
        %1055 = vmatpush1.xpose.msra.mxu0 0.0
        %1056 = vmatprep.subr.mxu0 0.0
        %1057 = vmatpush1.xpose.msra.mxu0 0.0
        %1058 = vmatprep.subr.mxu0 0.0
        %1059 = vmatpush1.xpose.msra.mxu0 0.0
        %1060 = vmatprep.subr.mxu0 0.0
        %1061 = vmatpush1.xpose.msra.mxu0 0.0
        %1062 = vmatprep.subr.mxu0 0.0
        %1063 = vmatpush1.xpose.msra.mxu0 0.0
        %1064 = vmatprep.subr.mxu0 0.0
        %1065 = vmatpush1.xpose.msra.mxu0 0.0
        %1066 = vmatprep.subr.mxu0 0.0
        %1067 = vmatpush1.xpose.msra.mxu0 0.0
        %1068 = vmatprep.subr.mxu0 0.0
        %1069 = vmatpush1.xpose.msra.mxu0 0.0
        %1070 = vmatprep.subr.mxu0 0.0
        %1071 = vmatpush1.xpose.msra.mxu0 0.0
        %1072 = vmatprep.subr.mxu0 0.0
        %1073 = vmatpush1.xpose.msra.mxu0 0.0
        %1074 = vmatprep.subr.mxu0 0.0
        %1075 = vmatpush1.xpose.msra.mxu0 0.0
        %1076 = vmatprep.subr.mxu0 0.0
        %1077 = vmatpush1.xpose.msra.mxu0 0.0
        %1078 = vmatprep.subr.mxu0 0.0
        %1079 = vmatpush1.xpose.msra.mxu0 0.0
        %1080 = vmatprep.subr.mxu0 0.0
        %1081 = vmatpush1.xpose.msra.mxu0 0.0
        %1082 = vmatprep.subr.mxu0 0.0
        %1083 = vmatpush1.xpose.msra.mxu0 0.0
        %1084 = vmatprep.subr.mxu0 0.0
        %1085 = vmatpush1.xpose.msra.mxu0 0.0
        %1086 = vmatprep.subr.mxu0 0.0
        %1087 = vmatpush1.xpose.msra.mxu0 0.0
        %1088 = vmatprep.subr.mxu0 0.0
        %1089 = vmatpush1.xpose.msra.mxu0 0.0
        %1090 = vmatprep.subr.mxu0 0.0
        %1091 = vmatpush1.xpose.msra.mxu0 0.0
        %1092 = vmatprep.subr.mxu0 0.0
        %1093 = vmatpush1.xpose.msra.mxu0 0.0
        %1094 = vmatprep.subr.mxu0 0.0
        %1095 = vmatpush1.xpose.msra.mxu0 0.0
        %1096 = vmatprep.subr.mxu0 0.0
        %1097 = vmatpush1.xpose.msra.mxu0 0.0
        %1098 = vmatprep.mubr.f32.mxu0 0.0
        %1099 = vmatmul.mubr.f32.gmra.mrb[0].mxu0 %v1030
        %v1100 = vpop.f32.mrb[0].mxu0
        %v1101 = vadd.f32 0.0, %v1100
        %v1102 = vpop.f32.mrb[0].mxu0
        %1103 = vdwg.mxu0
        %v1104 = vmul.f32 %v1101, 0.17677669
        %s1105 = scalar_lea.vmem %s2, 16
        %v1106 = vld [vmem:[%s1105] sm:$0xff]
        %v1107 = vadd.f32 %v1104, %v1106
        %v1108 = vsel %vm499, %v1107, -3.4028235e+38
        %v1109 = vsel %vm770, %v1108, -inf
        %1110 = vmax.xlane.f32.xlu0 %v1109
        %v1111 = vpop.xlane.xlu0 %1110
        %v1112 = vsub.f32 %v1108, %v1111
        %v1113 = vmul.f32 %v1112, 1.442695
        %v1114 = vpow.pop %v1113
        %v1115 = vsel %vm770, %v1114, 0.0
        %1116 = vadd.xlane.f32.xlu0 %v1115
        %v1117 = vpop.xlane.xlu0 %1116
        %v1118 = vrcp.pop %v1117
        %v1119 = vmul.f32 %v1114, %v1118
        %1120 = vrot.lane.b32.xlu0 %v686, 64
        %v1121 = vpop.permute.xlu0 %1120
        %v1124 = vsel %vm770, %v1119, 0
        %1126 = vmatprep.subr.mxu0 0.0
        %1127 = vmatpush1.msra.mxu0 %v1121
        %1128 = vmatprep.subr.mxu0 0.0
        %1129 = vmatpush1.msra.mxu0 0.0
        %1130 = vmatprep.subr.mxu0 0.0
        %1131 = vmatpush1.msra.mxu0 0.0
        %1132 = vmatprep.subr.mxu0 0.0
        %1133 = vmatpush1.msra.mxu0 0.0
        %1134 = vmatprep.subr.mxu0 0.0
        %1135 = vmatpush1.msra.mxu0 0.0
        %1136 = vmatprep.subr.mxu0 0.0
        %1137 = vmatpush1.msra.mxu0 0.0
        %1138 = vmatprep.subr.mxu0 0.0
        %1139 = vmatpush1.msra.mxu0 0.0
        %1140 = vmatprep.subr.mxu0 0.0
        %1141 = vmatpush1.msra.mxu0 0.0
        %1142 = vmatprep.subr.mxu0 0.0
        %1143 = vmatpush1.msra.mxu0 0.0
        %1144 = vmatprep.subr.mxu0 0.0
        %1145 = vmatpush1.msra.mxu0 0.0
        %1146 = vmatprep.subr.mxu0 0.0
        %1147 = vmatpush1.msra.mxu0 0.0
        %1148 = vmatprep.subr.mxu0 0.0
        %1149 = vmatpush1.msra.mxu0 0.0
        %1150 = vmatprep.subr.mxu0 0.0
        %1151 = vmatpush1.msra.mxu0 0.0
        %1152 = vmatprep.subr.mxu0 0.0
        %1153 = vmatpush1.msra.mxu0 0.0
        %1154 = vmatprep.subr.mxu0 0.0
        %1155 = vmatpush1.msra.mxu0 0.0
        %1156 = vmatprep.subr.mxu0 0.0
        %1157 = vmatpush1.msra.mxu0 0.0
        %1158 = vmatprep.subr.mxu0 0.0
        %1159 = vmatpush1.msra.mxu0 0.0
        %1160 = vmatprep.subr.mxu0 0.0
        %1161 = vmatpush1.msra.mxu0 0.0
        %1162 = vmatprep.subr.mxu0 0.0
        %1163 = vmatpush1.msra.mxu0 0.0
        %1164 = vmatprep.subr.mxu0 0.0
        %1165 = vmatpush1.msra.mxu0 0.0
        %1166 = vmatprep.subr.mxu0 0.0
        %1167 = vmatpush1.msra.mxu0 0.0
        %1168 = vmatprep.subr.mxu0 0.0
        %1169 = vmatpush1.msra.mxu0 0.0
        %1170 = vmatprep.subr.mxu0 0.0
        %1171 = vmatpush1.msra.mxu0 0.0
        %1172 = vmatprep.subr.mxu0 0.0
        %1173 = vmatpush1.msra.mxu0 0.0
        %1174 = vmatprep.subr.mxu0 0.0
        %1175 = vmatpush1.msra.mxu0 0.0
        %1176 = vmatprep.subr.mxu0 0.0
        %1177 = vmatpush1.msra.mxu0 0.0
        %1178 = vmatprep.subr.mxu0 0.0
        %1179 = vmatpush1.msra.mxu0 0.0
        %1180 = vmatprep.subr.mxu0 0.0
        %1181 = vmatpush1.msra.mxu0 0.0
        %1182 = vmatprep.subr.mxu0 0.0
        %1183 = vmatpush1.msra.mxu0 0.0
        %1184 = vmatprep.subr.mxu0 0.0
        %1185 = vmatpush1.msra.mxu0 0.0
        %1186 = vmatprep.subr.mxu0 0.0
        %1187 = vmatpush1.msra.mxu0 0.0
        %1188 = vmatprep.subr.mxu0 0.0
        %1189 = vmatpush1.msra.mxu0 0.0
        %1190 = vmatprep.mubr.f32.mxu0 0.0
        %1191 = vmatmul.mubr.f32.gmra.mrb[0].mxu0 %v1124
        %v1192 = vpop.f32.mrb[0].mxu0
        %v1193 = vadd.f32 0.0, %v1192
        %v1194 = vpop.f32.mrb[0].mxu0
        %1195 = vdwg.mxu0
        %1196 = vrot.lane.b32.xlu0 %v615, 32
        %v1197 = vpop.permute.xlu0 %1196
        %1198 = vrot.lane.b32.xlu0 %v617, 32
        %v1199 = vpop.permute.xlu0 %1198
        %v1200 = vsel %vm689, %v1197, 0
        %v1202 = vsel %vm689, %v1199, 0
        %1204 = vmatprep.subr.mxu0 0.0
        %1205 = vmatpush1.xpose.msra.mxu0 %v1202
        %1206 = vmatprep.subr.mxu0 0.0
        %1207 = vmatpush1.xpose.msra.mxu0 0.0
        %1208 = vmatprep.subr.mxu0 0.0
        %1209 = vmatpush1.xpose.msra.mxu0 0.0
        %1210 = vmatprep.subr.mxu0 0.0
        %1211 = vmatpush1.xpose.msra.mxu0 0.0
        %1212 = vmatprep.subr.mxu0 0.0
        %1213 = vmatpush1.xpose.msra.mxu0 0.0
        %1214 = vmatprep.subr.mxu0 0.0
        %1215 = vmatpush1.xpose.msra.mxu0 0.0
        %1216 = vmatprep.subr.mxu0 0.0
        %1217 = vmatpush1.xpose.msra.mxu0 0.0
        %1218 = vmatprep.subr.mxu0 0.0
        %1219 = vmatpush1.xpose.msra.mxu0 0.0
        %1220 = vmatprep.subr.mxu0 0.0
        %1221 = vmatpush1.xpose.msra.mxu0 0.0
        %1222 = vmatprep.subr.mxu0 0.0
        %1223 = vmatpush1.xpose.msra.mxu0 0.0
        %1224 = vmatprep.subr.mxu0 0.0
        %1225 = vmatpush1.xpose.msra.mxu0 0.0
        %1226 = vmatprep.subr.mxu0 0.0
        %1227 = vmatpush1.xpose.msra.mxu0 0.0
        %1228 = vmatprep.subr.mxu0 0.0
        %1229 = vmatpush1.xpose.msra.mxu0 0.0
        %1230 = vmatprep.subr.mxu0 0.0
        %1231 = vmatpush1.xpose.msra.mxu0 0.0
        %1232 = vmatprep.subr.mxu0 0.0
        %1233 = vmatpush1.xpose.msra.mxu0 0.0
        %1234 = vmatprep.subr.mxu0 0.0
        %1235 = vmatpush1.xpose.msra.mxu0 0.0
        %1236 = vmatprep.subr.mxu0 0.0
        %1237 = vmatpush1.xpose.msra.mxu0 0.0
        %1238 = vmatprep.subr.mxu0 0.0
        %1239 = vmatpush1.xpose.msra.mxu0 0.0
        %1240 = vmatprep.subr.mxu0 0.0
        %1241 = vmatpush1.xpose.msra.mxu0 0.0
        %1242 = vmatprep.subr.mxu0 0.0
        %1243 = vmatpush1.xpose.msra.mxu0 0.0
        %1244 = vmatprep.subr.mxu0 0.0
        %1245 = vmatpush1.xpose.msra.mxu0 0.0
        %1246 = vmatprep.subr.mxu0 0.0
        %1247 = vmatpush1.xpose.msra.mxu0 0.0
        %1248 = vmatprep.subr.mxu0 0.0
        %1249 = vmatpush1.xpose.msra.mxu0 0.0
        %1250 = vmatprep.subr.mxu0 0.0
        %1251 = vmatpush1.xpose.msra.mxu0 0.0
        %1252 = vmatprep.subr.mxu0 0.0
        %1253 = vmatpush1.xpose.msra.mxu0 0.0
        %1254 = vmatprep.subr.mxu0 0.0
        %1255 = vmatpush1.xpose.msra.mxu0 0.0
        %1256 = vmatprep.subr.mxu0 0.0
        %1257 = vmatpush1.xpose.msra.mxu0 0.0
        %1258 = vmatprep.subr.mxu0 0.0
        %1259 = vmatpush1.xpose.msra.mxu0 0.0
        %1260 = vmatprep.subr.mxu0 0.0
        %1261 = vmatpush1.xpose.msra.mxu0 0.0
        %1262 = vmatprep.subr.mxu0 0.0
        %1263 = vmatpush1.xpose.msra.mxu0 0.0
        %1264 = vmatprep.subr.mxu0 0.0
        %1265 = vmatpush1.xpose.msra.mxu0 0.0
        %1266 = vmatprep.subr.mxu0 0.0
        %1267 = vmatpush1.xpose.msra.mxu0 0.0
        %1268 = vmatprep.mubr.f32.mxu0 0.0
        %1269 = vmatmul.mubr.f32.gmra.mrb[0].mxu0 %v1200
        %v1270 = vpop.f32.mrb[0].mxu0
        %v1271 = vadd.f32 0.0, %v1270
        %v1272 = vpop.f32.mrb[0].mxu0
        %1273 = vdwg.mxu0
        %v1274 = vmul.f32 %v1271, 0.17677669
        %s1275 = scalar_lea.vmem %s2, 24
        %v1276 = vld [vmem:[%s1275] sm:$0xff]
        %v1277 = vadd.f32 %v1274, %v1276
        %v1278 = vsel %vm499, %v1277, -3.4028235e+38
        %v1279 = vsel %vm770, %v1278, -inf
        %1280 = vmax.xlane.f32.xlu0 %v1279
        %v1281 = vpop.xlane.xlu0 %1280
        %v1282 = vsub.f32 %v1278, %v1281
        %v1283 = vmul.f32 %v1282, 1.442695
        %v1284 = vpow.pop %v1283
        %v1285 = vsel %vm770, %v1284, 0.0
        %1286 = vadd.xlane.f32.xlu0 %v1285
        %v1287 = vpop.xlane.xlu0 %1286
        %v1288 = vrcp.pop %v1287
        %v1289 = vmul.f32 %v1284, %v1288
        %1290 = vrot.lane.b32.xlu0 %v686, 32
        %v1291 = vpop.permute.xlu0 %1290
        %v1294 = vsel %vm770, %v1289, 0
        %1296 = vmatprep.subr.mxu0 0.0
        %1297 = vmatpush1.msra.mxu0 %v1291
        %1298 = vmatprep.subr.mxu0 0.0
        %1299 = vmatpush1.msra.mxu0 0.0
        %1300 = vmatprep.subr.mxu0 0.0
        %1301 = vmatpush1.msra.mxu0 0.0
        %1302 = vmatprep.subr.mxu0 0.0
        %1303 = vmatpush1.msra.mxu0 0.0
        %1304 = vmatprep.subr.mxu0 0.0
        %1305 = vmatpush1.msra.mxu0 0.0
        %1306 = vmatprep.subr.mxu0 0.0
        %1307 = vmatpush1.msra.mxu0 0.0
        %1308 = vmatprep.subr.mxu0 0.0
        %1309 = vmatpush1.msra.mxu0 0.0
        %1310 = vmatprep.subr.mxu0 0.0
        %1311 = vmatpush1.msra.mxu0 0.0
        %1312 = vmatprep.subr.mxu0 0.0
        %1313 = vmatpush1.msra.mxu0 0.0
        %1314 = vmatprep.subr.mxu0 0.0
        %1315 = vmatpush1.msra.mxu0 0.0
        %1316 = vmatprep.subr.mxu0 0.0
        %1317 = vmatpush1.msra.mxu0 0.0
        %1318 = vmatprep.subr.mxu0 0.0
        %1319 = vmatpush1.msra.mxu0 0.0
        %1320 = vmatprep.subr.mxu0 0.0
        %1321 = vmatpush1.msra.mxu0 0.0
        %1322 = vmatprep.subr.mxu0 0.0
        %1323 = vmatpush1.msra.mxu0 0.0
        %1324 = vmatprep.subr.mxu0 0.0
        %1325 = vmatpush1.msra.mxu0 0.0
        %1326 = vmatprep.subr.mxu0 0.0
        %1327 = vmatpush1.msra.mxu0 0.0
        %1328 = vmatprep.subr.mxu0 0.0
        %1329 = vmatpush1.msra.mxu0 0.0
        %1330 = vmatprep.subr.mxu0 0.0
        %1331 = vmatpush1.msra.mxu0 0.0
        %1332 = vmatprep.subr.mxu0 0.0
        %1333 = vmatpush1.msra.mxu0 0.0
        %1334 = vmatprep.subr.mxu0 0.0
        %1335 = vmatpush1.msra.mxu0 0.0
        %1336 = vmatprep.subr.mxu0 0.0
        %1337 = vmatpush1.msra.mxu0 0.0
        %1338 = vmatprep.subr.mxu0 0.0
        %1339 = vmatpush1.msra.mxu0 0.0
        %1340 = vmatprep.subr.mxu0 0.0
        %1341 = vmatpush1.msra.mxu0 0.0
        %1342 = vmatprep.subr.mxu0 0.0
        %1343 = vmatpush1.msra.mxu0 0.0
        %1344 = vmatprep.subr.mxu0 0.0
        %1345 = vmatpush1.msra.mxu0 0.0
        %1346 = vmatprep.subr.mxu0 0.0
        %1347 = vmatpush1.msra.mxu0 0.0
        %1348 = vmatprep.subr.mxu0 0.0
        %1349 = vmatpush1.msra.mxu0 0.0
        %1350 = vmatprep.subr.mxu0 0.0
        %1351 = vmatpush1.msra.mxu0 0.0
        %1352 = vmatprep.subr.mxu0 0.0
        %1353 = vmatpush1.msra.mxu0 0.0
        %1354 = vmatprep.subr.mxu0 0.0
        %1355 = vmatpush1.msra.mxu0 0.0
        %1356 = vmatprep.subr.mxu0 0.0
        %1357 = vmatpush1.msra.mxu0 0.0
        %1358 = vmatprep.subr.mxu0 0.0
        %1359 = vmatpush1.msra.mxu0 0.0
        %1360 = vmatprep.mubr.f32.mxu0 0.0
        %1361 = vmatmul.mubr.f32.gmra.mrb[0].mxu0 %v1294
        %v1362 = vpop.f32.mrb[0].mxu0
        %v1363 = vadd.f32 0.0, %v1362
        %v1364 = vpop.f32.mrb[0].mxu0
        %1365 = vdwg.mxu0
        %1367 = vrot.lane.b32.xlu0 %v1023, 32
        %v1368 = vpop.permute.xlu0 %1367
        %1371 = vrot.lane.b32.xlu0 %v1193, 64
        %v1372 = vpop.permute.xlu0 %1371
        %1375 = vrot.lane.b32.xlu0 %v1363, 96
        %v1376 = vpop.permute.xlu0 %1375
        %v1378 = vsel %vm689, %v852, %v1368
        %vm1379 = vcmask 523264
        %v1380 = vsel %vm1379, %v1378, %v1372
        %vm1381 = vcmask 785408
        %v1382 = vsel %vm1381, %v1380, %v1376
        %v1383 = vld [vmem:[%s6] sm:$0xff]
        %v1384 = vld [vmem:[%s6 + $0x8] sm:$0xff]
        %v1385 = vld [vmem:[%s6 + $0x10] sm:$0xff]
        %v1386 = vld [vmem:[%s6 + $0x18] sm:$0xff]
        %v1387 = vld [vmem:[%s6 + $0x20] sm:$0xff]
        %v1388 = vld [vmem:[%s6 + $0x28] sm:$0xff]
        %v1389 = vld [vmem:[%s6 + $0x30] sm:$0xff]
        %v1390 = vld [vmem:[%s6 + $0x38] sm:$0xff]
        %v1391 = vld [vmem:[%s6 + $0x40] sm:$0xff]
        %v1392 = vld [vmem:[%s6 + $0x48] sm:$0xff]
        %v1393 = vld [vmem:[%s6 + $0x50] sm:$0xff]
        %v1394 = vld [vmem:[%s6 + $0x58] sm:$0xff]
        %v1395 = vld [vmem:[%s6 + $0x60] sm:$0xff]
        %v1396 = vld [vmem:[%s6 + $0x68] sm:$0xff]
        %v1397 = vld [vmem:[%s6 + $0x70] sm:$0xff]
        %v1398 = vld [vmem:[%s6 + $0x78] sm:$0xff]
        %1399 = vmatprep.subr.mxu0 0.0
        %1400 = vmatpush1.msra.mxu0 %v1383
        %1401 = vmatprep.subr.mxu0 0.0
        %1402 = vmatpush1.msra.mxu0 %v1384
        %1403 = vmatprep.subr.mxu0 0.0
        %1404 = vmatpush1.msra.mxu0 %v1385
        %1405 = vmatprep.subr.mxu0 0.0
        %1406 = vmatpush1.msra.mxu0 %v1386
        %1407 = vmatprep.subr.mxu0 0.0
        %1408 = vmatpush1.msra.mxu0 %v1387
        %1409 = vmatprep.subr.mxu0 0.0
        %1410 = vmatpush1.msra.mxu0 %v1388
        %1411 = vmatprep.subr.mxu0 0.0
        %1412 = vmatpush1.msra.mxu0 %v1389
        %1413 = vmatprep.subr.mxu0 0.0
        %1414 = vmatpush1.msra.mxu0 %v1390
        %1415 = vmatprep.subr.mxu0 0.0
        %1416 = vmatpush1.msra.mxu0 %v1391
        %1417 = vmatprep.subr.mxu0 0.0
        %1418 = vmatpush1.msra.mxu0 %v1392
        %1419 = vmatprep.subr.mxu0 0.0
        %1420 = vmatpush1.msra.mxu0 %v1393
        %1421 = vmatprep.subr.mxu0 0.0
        %1422 = vmatpush1.msra.mxu0 %v1394
        %1423 = vmatprep.subr.mxu0 0.0
        %1424 = vmatpush1.msra.mxu0 %v1395
        %1425 = vmatprep.subr.mxu0 0.0
        %1426 = vmatpush1.msra.mxu0 %v1396
        %1427 = vmatprep.subr.mxu0 0.0
        %1428 = vmatpush1.msra.mxu0 %v1397
        %1429 = vmatprep.subr.mxu0 0.0
        %1430 = vmatpush1.msra.mxu0 %v1398
        %1431 = vmatprep.subr.mxu0 0.0
        %1432 = vmatpush1.msra.mxu0 0.0
        %1433 = vmatprep.subr.mxu0 0.0
        %1434 = vmatpush1.msra.mxu0 0.0
        %1435 = vmatprep.subr.mxu0 0.0
        %1436 = vmatpush1.msra.mxu0 0.0
        %1437 = vmatprep.subr.mxu0 0.0
        %1438 = vmatpush1.msra.mxu0 0.0
        %1439 = vmatprep.subr.mxu0 0.0
        %1440 = vmatpush1.msra.mxu0 0.0
        %1441 = vmatprep.subr.mxu0 0.0
        %1442 = vmatpush1.msra.mxu0 0.0
        %1443 = vmatprep.subr.mxu0 0.0
        %1444 = vmatpush1.msra.mxu0 0.0
        %1445 = vmatprep.subr.mxu0 0.0
        %1446 = vmatpush1.msra.mxu0 0.0
        %1447 = vmatprep.subr.mxu0 0.0
        %1448 = vmatpush1.msra.mxu0 0.0
        %1449 = vmatprep.subr.mxu0 0.0
        %1450 = vmatpush1.msra.mxu0 0.0
        %1451 = vmatprep.subr.mxu0 0.0
        %1452 = vmatpush1.msra.mxu0 0.0
        %1453 = vmatprep.subr.mxu0 0.0
        %1454 = vmatpush1.msra.mxu0 0.0
        %1455 = vmatprep.subr.mxu0 0.0
        %1456 = vmatpush1.msra.mxu0 0.0
        %1457 = vmatprep.subr.mxu0 0.0
        %1458 = vmatpush1.msra.mxu0 0.0
        %1459 = vmatprep.subr.mxu0 0.0
        %1460 = vmatpush1.msra.mxu0 0.0
        %1461 = vmatprep.subr.mxu0 0.0
        %1462 = vmatpush1.msra.mxu0 0.0
        %1463 = vmatprep.mubr.f32.mxu0 0.0
        %1464 = vmatmul.mubr.f32.gmra.mrb[0].mxu0 %v1382
        %v1465 = vpop.f32.mrb[0].mxu0
        %v1466 = vadd.f32 0.0, %v1465
        %v1467 = vpop.f32.mrb[0].mxu0
        %1468 = vdwg.mxu0
        %v1469 = vadd.f32 %v458, %v1466
        %v1470 = vld [vmem:[%s7] sm:$0x1]
        %v1472 = vlaneseq
        %v1473 = vshrl.u32 %v1472, 7
        %v1474 = vsub.s32 0, %v1473
        %v1475 = vrot.slane %v1470, %v1474
        %v1477 = vadd.f32 %v1469, %v1475
        %v1478 = vld [vmem:[%s8] sm:$0x1]
        %v1479 = vld [vmem:[%s9] sm:$0x1]
        %1480 = vadd.xlane.f32.xlu0 %v1477
        %v1481 = vpop.xlane.xlu0 %1480
        %v1482 = vmul.f32 %v1481, %v463
        %v1483 = vsub.f32 %v1477, %v1482
        %v1484 = vmul.f32 %v1483, %v1483
        %1485 = vadd.xlane.f32.xlu0 %v1484
        %v1486 = vpop.xlane.xlu0 %1485
        %v1487 = vmul.f32 %v1486, %v463
        %v1488 = vadd.f32 %v1487, 1e-05
        %v1489 = vrsqrt.pop %v1488
        %v1490 = vmul.f32 %v1483, %v1489
        %v1492 = vlaneseq
        %v1493 = vshrl.u32 %v1492, 7
        %v1494 = vsub.s32 0, %v1493
        %v1495 = vrot.slane %v1478, %v1494
        %v1497 = vmul.f32 %v1490, %v1495
        %v1499 = vlaneseq
        %v1500 = vshrl.u32 %v1499, 7
        %v1501 = vsub.s32 0, %v1500
        %v1502 = vrot.slane %v1479, %v1501
        %v1504 = vadd.f32 %v1497, %v1502
        %v1505 = vld [vmem:[%s10] sm:$0xff]
        %v1506 = vld [vmem:[%s10 + $0x8] sm:$0xff]
        %v1507 = vld [vmem:[%s10 + $0x10] sm:$0xff]
        %v1508 = vld [vmem:[%s10 + $0x18] sm:$0xff]
        %v1509 = vld [vmem:[%s10 + $0x20] sm:$0xff]
        %v1510 = vld [vmem:[%s10 + $0x28] sm:$0xff]
        %v1511 = vld [vmem:[%s10 + $0x30] sm:$0xff]
        %v1512 = vld [vmem:[%s10 + $0x38] sm:$0xff]
        %v1513 = vld [vmem:[%s10 + $0x40] sm:$0xff]
        %v1514 = vld [vmem:[%s10 + $0x48] sm:$0xff]
        %v1515 = vld [vmem:[%s10 + $0x50] sm:$0xff]
        %v1516 = vld [vmem:[%s10 + $0x58] sm:$0xff]
        %v1517 = vld [vmem:[%s10 + $0x60] sm:$0xff]
        %v1518 = vld [vmem:[%s10 + $0x68] sm:$0xff]
        %v1519 = vld [vmem:[%s10 + $0x70] sm:$0xff]
        %v1520 = vld [vmem:[%s10 + $0x78] sm:$0xff]
        %v1521 = vld [vmem:[%s10 + $0x80] sm:$0xff]
        %v1522 = vld [vmem:[%s10 + $0x88] sm:$0xff]
        %v1523 = vld [vmem:[%s10 + $0x90] sm:$0xff]
        %v1524 = vld [vmem:[%s10 + $0x98] sm:$0xff]
        %v1525 = vld [vmem:[%s10 + $0xa0] sm:$0xff]
        %v1526 = vld [vmem:[%s10 + $0xa8] sm:$0xff]
        %v1527 = vld [vmem:[%s10 + $0xb0] sm:$0xff]
        %v1528 = vld [vmem:[%s10 + $0xb8] sm:$0xff]
        %v1529 = vld [vmem:[%s10 + $0xc0] sm:$0xff]
        %v1530 = vld [vmem:[%s10 + $0xc8] sm:$0xff]
        %v1531 = vld [vmem:[%s10 + $0xd0] sm:$0xff]
        %v1532 = vld [vmem:[%s10 + $0xd8] sm:$0xff]
        %v1533 = vld [vmem:[%s10 + $0xe0] sm:$0xff]
        %v1534 = vld [vmem:[%s10 + $0xe8] sm:$0xff]
        %v1535 = vld [vmem:[%s10 + $0xf0] sm:$0xff]
        %v1536 = vld [vmem:[%s10 + $0xf8] sm:$0xff]
        %v1537 = vld [vmem:[%s10 + $0x100] sm:$0xff]
        %v1538 = vld [vmem:[%s10 + $0x108] sm:$0xff]
        %v1539 = vld [vmem:[%s10 + $0x110] sm:$0xff]
        %v1540 = vld [vmem:[%s10 + $0x118] sm:$0xff]
        %v1541 = vld [vmem:[%s10 + $0x120] sm:$0xff]
        %v1542 = vld [vmem:[%s10 + $0x128] sm:$0xff]
        %v1543 = vld [vmem:[%s10 + $0x130] sm:$0xff]
        %v1544 = vld [vmem:[%s10 + $0x138] sm:$0xff]
        %v1545 = vld [vmem:[%s10 + $0x140] sm:$0xff]
        %v1546 = vld [vmem:[%s10 + $0x148] sm:$0xff]
        %v1547 = vld [vmem:[%s10 + $0x150] sm:$0xff]
        %v1548 = vld [vmem:[%s10 + $0x158] sm:$0xff]
        %v1549 = vld [vmem:[%s10 + $0x160] sm:$0xff]
        %v1550 = vld [vmem:[%s10 + $0x168] sm:$0xff]
        %v1551 = vld [vmem:[%s10 + $0x170] sm:$0xff]
        %v1552 = vld [vmem:[%s10 + $0x178] sm:$0xff]
        %v1553 = vld [vmem:[%s10 + $0x180] sm:$0xff]
        %v1554 = vld [vmem:[%s10 + $0x188] sm:$0xff]
        %v1555 = vld [vmem:[%s10 + $0x190] sm:$0xff]
        %v1556 = vld [vmem:[%s10 + $0x198] sm:$0xff]
        %v1557 = vld [vmem:[%s10 + $0x1a0] sm:$0xff]
        %v1558 = vld [vmem:[%s10 + $0x1a8] sm:$0xff]
        %v1559 = vld [vmem:[%s10 + $0x1b0] sm:$0xff]
        %v1560 = vld [vmem:[%s10 + $0x1b8] sm:$0xff]
        %v1561 = vld [vmem:[%s10 + $0x1c0] sm:$0xff]
        %v1562 = vld [vmem:[%s10 + $0x1c8] sm:$0xff]
        %v1563 = vld [vmem:[%s10 + $0x1d0] sm:$0xff]
        %v1564 = vld [vmem:[%s10 + $0x1d8] sm:$0xff]
        %v1565 = vld [vmem:[%s10 + $0x1e0] sm:$0xff]
        %v1566 = vld [vmem:[%s10 + $0x1e8] sm:$0xff]
        %v1567 = vld [vmem:[%s10 + $0x1f0] sm:$0xff]
        %v1568 = vld [vmem:[%s10 + $0x1f8] sm:$0xff]
        %v1569 = vld [vmem:[%s11] sm:$0xf]
        %v1571 = vlaneseq
        %v1572 = vshrl.u32 %v1571, 7
        %v1573 = vsub.s32 0, %v1572
        %v1574 = vrot.slane %v1569, %v1573
        %v1575 = vlaneseq
        %v1576 = vshrl.u32 %v1575, 7
        %v1577 = vsub.s32 1, %v1576
        %v1578 = vrot.slane %v1569, %v1577
        %v1579 = vlaneseq
        %v1580 = vshrl.u32 %v1579, 7
        %v1581 = vsub.s32 2, %v1580
        %v1582 = vrot.slane %v1569, %v1581
        %v1583 = vlaneseq
        %v1584 = vshrl.u32 %v1583, 7
        %v1585 = vsub.s32 3, %v1584
        %v1586 = vrot.slane %v1569, %v1585
        %1591 = vmatprep.subr.mxu0 %v1506
        %1592 = vmatpush1.msra.mxu0 %v1505
        %1593 = vmatprep.subr.mxu0 %v1510
        %1594 = vmatpush1.msra.mxu0 %v1509
        %1595 = vmatprep.subr.mxu0 %v1514
        %1596 = vmatpush1.msra.mxu0 %v1513
        %1597 = vmatprep.subr.mxu0 %v1518
        %1598 = vmatpush1.msra.mxu0 %v1517
        %1599 = vmatprep.subr.mxu0 %v1522
        %1600 = vmatpush1.msra.mxu0 %v1521
        %1601 = vmatprep.subr.mxu0 %v1526
        %1602 = vmatpush1.msra.mxu0 %v1525
        %1603 = vmatprep.subr.mxu0 %v1530
        %1604 = vmatpush1.msra.mxu0 %v1529
        %1605 = vmatprep.subr.mxu0 %v1534
        %1606 = vmatpush1.msra.mxu0 %v1533
        %1607 = vmatprep.subr.mxu0 %v1538
        %1608 = vmatpush1.msra.mxu0 %v1537
        %1609 = vmatprep.subr.mxu0 %v1542
        %1610 = vmatpush1.msra.mxu0 %v1541
        %1611 = vmatprep.subr.mxu0 %v1546
        %1612 = vmatpush1.msra.mxu0 %v1545
        %1613 = vmatprep.subr.mxu0 %v1550
        %1614 = vmatpush1.msra.mxu0 %v1549
        %1615 = vmatprep.subr.mxu0 %v1554
        %1616 = vmatpush1.msra.mxu0 %v1553
        %1617 = vmatprep.subr.mxu0 %v1558
        %1618 = vmatpush1.msra.mxu0 %v1557
        %1619 = vmatprep.subr.mxu0 %v1562
        %1620 = vmatpush1.msra.mxu0 %v1561
        %1621 = vmatprep.subr.mxu0 %v1566
        %1622 = vmatpush1.msra.mxu0 %v1565
        %1623 = vmatprep.subr.mxu0 0.0
        %1624 = vmatpush1.msra.mxu0 0.0
        %1625 = vmatprep.subr.mxu0 0.0
        %1626 = vmatpush1.msra.mxu0 0.0
        %1627 = vmatprep.subr.mxu0 0.0
        %1628 = vmatpush1.msra.mxu0 0.0
        %1629 = vmatprep.subr.mxu0 0.0
        %1630 = vmatpush1.msra.mxu0 0.0
        %1631 = vmatprep.subr.mxu0 0.0
        %1632 = vmatpush1.msra.mxu0 0.0
        %1633 = vmatprep.subr.mxu0 0.0
        %1634 = vmatpush1.msra.mxu0 0.0
        %1635 = vmatprep.subr.mxu0 0.0
        %1636 = vmatpush1.msra.mxu0 0.0
        %1637 = vmatprep.subr.mxu0 0.0
        %1638 = vmatpush1.msra.mxu0 0.0
        %1639 = vmatprep.subr.mxu0 0.0
        %1640 = vmatpush1.msra.mxu0 0.0
        %1641 = vmatprep.subr.mxu0 0.0
        %1642 = vmatpush1.msra.mxu0 0.0
        %1643 = vmatprep.subr.mxu0 0.0
        %1644 = vmatpush1.msra.mxu0 0.0
        %1645 = vmatprep.subr.mxu0 0.0
        %1646 = vmatpush1.msra.mxu0 0.0
        %1647 = vmatprep.subr.mxu0 0.0
        %1648 = vmatpush1.msra.mxu0 0.0
        %1649 = vmatprep.subr.mxu0 0.0
        %1650 = vmatpush1.msra.mxu0 0.0
        %1651 = vmatprep.subr.mxu0 0.0
        %1652 = vmatpush1.msra.mxu0 0.0
        %1653 = vmatprep.subr.mxu0 0.0
        %1654 = vmatpush1.msra.mxu0 0.0
        %1655 = vmatprep.mubr.f32.mxu0 0.0
        %1656 = vmatmul.mubr.f32.gmra.mrb[0].mxu0 %v1504
        %v1657 = vpop.f32.mrb[0].mxu0
        %v1658 = vadd.f32 %v1574, %v1657
        %v1659 = vpop.f32.mrb[0].mxu0
        %v1660 = vadd.f32 %v1578, %v1659
        %1661 = vdwg.mxu0
        %1662 = vmatprep.subr.mxu0 %v1508
        %1663 = vmatpush1.msra.mxu0 %v1507
        %1664 = vmatprep.subr.mxu0 %v1512
        %1665 = vmatpush1.msra.mxu0 %v1511
        %1666 = vmatprep.subr.mxu0 %v1516
        %1667 = vmatpush1.msra.mxu0 %v1515
        %1668 = vmatprep.subr.mxu0 %v1520
        %1669 = vmatpush1.msra.mxu0 %v1519
        %1670 = vmatprep.subr.mxu0 %v1524
        %1671 = vmatpush1.msra.mxu0 %v1523
        %1672 = vmatprep.subr.mxu0 %v1528
        %1673 = vmatpush1.msra.mxu0 %v1527
        %1674 = vmatprep.subr.mxu0 %v1532
        %1675 = vmatpush1.msra.mxu0 %v1531
        %1676 = vmatprep.subr.mxu0 %v1536
        %1677 = vmatpush1.msra.mxu0 %v1535
        %1678 = vmatprep.subr.mxu0 %v1540
        %1679 = vmatpush1.msra.mxu0 %v1539
        %1680 = vmatprep.subr.mxu0 %v1544
        %1681 = vmatpush1.msra.mxu0 %v1543
        %1682 = vmatprep.subr.mxu0 %v1548
        %1683 = vmatpush1.msra.mxu0 %v1547
        %1684 = vmatprep.subr.mxu0 %v1552
        %1685 = vmatpush1.msra.mxu0 %v1551
        %1686 = vmatprep.subr.mxu0 %v1556
        %1687 = vmatpush1.msra.mxu0 %v1555
        %1688 = vmatprep.subr.mxu0 %v1560
        %1689 = vmatpush1.msra.mxu0 %v1559
        %1690 = vmatprep.subr.mxu0 %v1564
        %1691 = vmatpush1.msra.mxu0 %v1563
        %1692 = vmatprep.subr.mxu0 %v1568
        %1693 = vmatpush1.msra.mxu0 %v1567
        %1694 = vmatprep.subr.mxu0 0.0
        %1695 = vmatpush1.msra.mxu0 0.0
        %1696 = vmatprep.subr.mxu0 0.0
        %1697 = vmatpush1.msra.mxu0 0.0
        %1698 = vmatprep.subr.mxu0 0.0
        %1699 = vmatpush1.msra.mxu0 0.0
        %1700 = vmatprep.subr.mxu0 0.0
        %1701 = vmatpush1.msra.mxu0 0.0
        %1702 = vmatprep.subr.mxu0 0.0
        %1703 = vmatpush1.msra.mxu0 0.0
        %1704 = vmatprep.subr.mxu0 0.0
        %1705 = vmatpush1.msra.mxu0 0.0
        %1706 = vmatprep.subr.mxu0 0.0
        %1707 = vmatpush1.msra.mxu0 0.0
        %1708 = vmatprep.subr.mxu0 0.0
        %1709 = vmatpush1.msra.mxu0 0.0
        %1710 = vmatprep.subr.mxu0 0.0
        %1711 = vmatpush1.msra.mxu0 0.0
        %1712 = vmatprep.subr.mxu0 0.0
        %1713 = vmatpush1.msra.mxu0 0.0
        %1714 = vmatprep.subr.mxu0 0.0
        %1715 = vmatpush1.msra.mxu0 0.0
        %1716 = vmatprep.subr.mxu0 0.0
        %1717 = vmatpush1.msra.mxu0 0.0
        %1718 = vmatprep.subr.mxu0 0.0
        %1719 = vmatpush1.msra.mxu0 0.0
        %1720 = vmatprep.subr.mxu0 0.0
        %1721 = vmatpush1.msra.mxu0 0.0
        %1722 = vmatprep.subr.mxu0 0.0
        %1723 = vmatpush1.msra.mxu0 0.0
        %1724 = vmatprep.subr.mxu0 0.0
        %1725 = vmatpush1.msra.mxu0 0.0
        %1726 = vmatprep.mubr.f32.mxu0 0.0
        %1727 = vmatmul.mubr.f32.gmra.mrb[0].mxu0 %v1504
        %v1728 = vpop.f32.mrb[0].mxu0
        %v1729 = vadd.f32 %v1582, %v1728
        %v1730 = vpop.f32.mrb[0].mxu0
        %v1731 = vadd.f32 %v1586, %v1730
        %1732 = vdwg.mxu0
        %v1733 = vmul.f32 %v1658, 0.5
        %v1734 = vmul.f32 %v1660, 0.5
        %v1735 = vmul.f32 %v1729, 0.5
        %v1736 = vmul.f32 %v1731, 0.5
        %v1737 = vmul.f32 %v1658, 0.70710677
        %v1738 = vmul.f32 %v1660, 0.70710677
        %v1739 = vmul.f32 %v1729, 0.70710677
        %v1740 = vmul.f32 %v1731, 0.70710677
        %v1741 = vand.u32 2147483647, %v1737
        %v1742 = vand.u32 2147483647, %v1738
        %v1743 = vand.u32 2147483647, %v1739
        %v1744 = vand.u32 2147483647, %v1740
        %v1745 = vmul.f32 %v1741, 0.3275911
        %v1746 = vmul.f32 %v1742, 0.3275911
        %v1747 = vmul.f32 %v1743, 0.3275911
        %v1748 = vmul.f32 %v1744, 0.3275911
        %v1749 = vadd.f32 %v1745, 1.0
        %v1750 = vadd.f32 %v1746, 1.0
        %v1751 = vadd.f32 %v1747, 1.0
        %v1752 = vadd.f32 %v1748, 1.0
        %v1753 = vrcp.pop %v1749
        %v1754 = vmul.f32 1.0, %v1753
        %v1755 = vrcp.pop %v1750
        %v1756 = vmul.f32 1.0, %v1755
        %v1757 = vrcp.pop %v1751
        %v1758 = vmul.f32 1.0, %v1757
        %v1759 = vrcp.pop %v1752
        %v1760 = vmul.f32 1.0, %v1759
        %v1761 = vmul.f32 %v1754, 1.0614054
        %v1762 = vmul.f32 %v1756, 1.0614054
        %v1763 = vmul.f32 %v1758, 1.0614054
        %v1764 = vmul.f32 %v1760, 1.0614054
        %v1765 = vadd.f32 %v1761, -1.4531521
        %v1766 = vadd.f32 %v1762, -1.4531521
        %v1767 = vadd.f32 %v1763, -1.4531521
        %v1768 = vadd.f32 %v1764, -1.4531521
        %v1769 = vmul.f32 %v1765, %v1754
        %v1770 = vmul.f32 %v1766, %v1756
        %v1771 = vmul.f32 %v1767, %v1758
        %v1772 = vmul.f32 %v1768, %v1760
        %v1773 = vadd.f32 %v1769, 1.4214138
        %v1774 = vadd.f32 %v1770, 1.4214138
        %v1775 = vadd.f32 %v1771, 1.4214138
        %v1776 = vadd.f32 %v1772, 1.4214138
        %v1777 = vmul.f32 %v1773, %v1754
        %v1778 = vmul.f32 %v1774, %v1756
        %v1779 = vmul.f32 %v1775, %v1758
        %v1780 = vmul.f32 %v1776, %v1760
        %v1781 = vadd.f32 %v1777, -0.28449672
        %v1782 = vadd.f32 %v1778, -0.28449672
        %v1783 = vadd.f32 %v1779, -0.28449672
        %v1784 = vadd.f32 %v1780, -0.28449672
        %v1785 = vmul.f32 %v1781, %v1754
        %v1786 = vmul.f32 %v1782, %v1756
        %v1787 = vmul.f32 %v1783, %v1758
        %v1788 = vmul.f32 %v1784, %v1760
        %v1789 = vadd.f32 %v1785, 0.2548296
        %v1790 = vadd.f32 %v1786, 0.2548296
        %v1791 = vadd.f32 %v1787, 0.2548296
        %v1792 = vadd.f32 %v1788, 0.2548296
        %v1793 = vmul.f32 %v1789, %v1754
        %v1794 = vmul.f32 %v1790, %v1756
        %v1795 = vmul.f32 %v1791, %v1758
        %v1796 = vmul.f32 %v1792, %v1760
        %v1797 = vsub.f32 0.0, %v1741
        %v1798 = vsub.f32 0.0, %v1742
        %v1799 = vsub.f32 0.0, %v1743
        %v1800 = vsub.f32 0.0, %v1744
        %v1801 = vmul.f32 %v1797, %v1741
        %v1802 = vmul.f32 %v1798, %v1742
        %v1803 = vmul.f32 %v1799, %v1743
        %v1804 = vmul.f32 %v1800, %v1744
        %v1805 = vmul.f32 %v1801, 1.442695
        %v1806 = vpow.pop %v1805
        %v1807 = vmul.f32 %v1802, 1.442695
        %v1808 = vpow.pop %v1807
        %v1809 = vmul.f32 %v1803, 1.442695
        %v1810 = vpow.pop %v1809
        %v1811 = vmul.f32 %v1804, 1.442695
        %v1812 = vpow.pop %v1811
        %v1813 = vmul.f32 %v1793, %v1806
        %v1814 = vmul.f32 %v1794, %v1808
        %v1815 = vmul.f32 %v1795, %v1810
        %v1816 = vmul.f32 %v1796, %v1812
        %v1817 = vsub.f32 1.0, %v1813
        %v1818 = vsub.f32 1.0, %v1814
        %v1819 = vsub.f32 1.0, %v1815
        %v1820 = vsub.f32 1.0, %v1816
        %vm1821 = vcmp.lt.f32.partialorder %v1737, 0.0
        %vm1822 = vcmp.lt.f32.partialorder %v1738, 0.0
        %vm1823 = vcmp.lt.f32.partialorder %v1739, 0.0
        %vm1824 = vcmp.lt.f32.partialorder %v1740, 0.0
        %v1825 = vsub.f32 0.0, %v1817
        %v1826 = vsub.f32 0.0, %v1818
        %v1827 = vsub.f32 0.0, %v1819
        %v1828 = vsub.f32 0.0, %v1820
        %v1829 = vsel %vm1821, %v1825, %v1817
        %v1830 = vsel %vm1822, %v1826, %v1818
        %v1831 = vsel %vm1823, %v1827, %v1819
        %v1832 = vsel %vm1824, %v1828, %v1820
        %v1833 = vadd.f32 %v1829, 1.0
        %v1834 = vadd.f32 %v1830, 1.0
        %v1835 = vadd.f32 %v1831, 1.0
        %v1836 = vadd.f32 %v1832, 1.0
        %v1837 = vmul.f32 %v1733, %v1833
        %v1838 = vmul.f32 %v1734, %v1834
        %v1839 = vmul.f32 %v1735, %v1835
        %v1840 = vmul.f32 %v1736, %v1836
        %v1841 = vld [vmem:[%s12] sm:$0xff]
        %v1842 = vld [vmem:[%s12 + $0x8] sm:$0xff]
        %v1843 = vld [vmem:[%s12 + $0x10] sm:$0xff]
        %v1844 = vld [vmem:[%s12 + $0x18] sm:$0xff]
        %v1845 = vld [vmem:[%s12 + $0x20] sm:$0xff]
        %v1846 = vld [vmem:[%s12 + $0x28] sm:$0xff]
        %v1847 = vld [vmem:[%s12 + $0x30] sm:$0xff]
        %v1848 = vld [vmem:[%s12 + $0x38] sm:$0xff]
        %v1849 = vld [vmem:[%s12 + $0x40] sm:$0xff]
        %v1850 = vld [vmem:[%s12 + $0x48] sm:$0xff]
        %v1851 = vld [vmem:[%s12 + $0x50] sm:$0xff]
        %v1852 = vld [vmem:[%s12 + $0x58] sm:$0xff]
        %v1853 = vld [vmem:[%s12 + $0x60] sm:$0xff]
        %v1854 = vld [vmem:[%s12 + $0x68] sm:$0xff]
        %v1855 = vld [vmem:[%s12 + $0x70] sm:$0xff]
        %v1856 = vld [vmem:[%s12 + $0x78] sm:$0xff]
        %v1857 = vld [vmem:[%s12 + $0x80] sm:$0xff]
        %v1858 = vld [vmem:[%s12 + $0x88] sm:$0xff]
        %v1859 = vld [vmem:[%s12 + $0x90] sm:$0xff]
        %v1860 = vld [vmem:[%s12 + $0x98] sm:$0xff]
        %v1861 = vld [vmem:[%s12 + $0xa0] sm:$0xff]
        %v1862 = vld [vmem:[%s12 + $0xa8] sm:$0xff]
        %v1863 = vld [vmem:[%s12 + $0xb0] sm:$0xff]
        %v1864 = vld [vmem:[%s12 + $0xb8] sm:$0xff]
        %v1865 = vld [vmem:[%s12 + $0xc0] sm:$0xff]
        %v1866 = vld [vmem:[%s12 + $0xc8] sm:$0xff]
        %v1867 = vld [vmem:[%s12 + $0xd0] sm:$0xff]
        %v1868 = vld [vmem:[%s12 + $0xd8] sm:$0xff]
        %v1869 = vld [vmem:[%s12 + $0xe0] sm:$0xff]
        %v1870 = vld [vmem:[%s12 + $0xe8] sm:$0xff]
        %v1871 = vld [vmem:[%s12 + $0xf0] sm:$0xff]
        %v1872 = vld [vmem:[%s12 + $0xf8] sm:$0xff]
        %v1873 = vld [vmem:[%s12 + $0x100] sm:$0xff]
        %v1874 = vld [vmem:[%s12 + $0x108] sm:$0xff]
        %v1875 = vld [vmem:[%s12 + $0x110] sm:$0xff]
        %v1876 = vld [vmem:[%s12 + $0x118] sm:$0xff]
        %v1877 = vld [vmem:[%s12 + $0x120] sm:$0xff]
        %v1878 = vld [vmem:[%s12 + $0x128] sm:$0xff]
        %v1879 = vld [vmem:[%s12 + $0x130] sm:$0xff]
        %v1880 = vld [vmem:[%s12 + $0x138] sm:$0xff]
        %v1881 = vld [vmem:[%s12 + $0x140] sm:$0xff]
        %v1882 = vld [vmem:[%s12 + $0x148] sm:$0xff]
        %v1883 = vld [vmem:[%s12 + $0x150] sm:$0xff]
        %v1884 = vld [vmem:[%s12 + $0x158] sm:$0xff]
        %v1885 = vld [vmem:[%s12 + $0x160] sm:$0xff]
        %v1886 = vld [vmem:[%s12 + $0x168] sm:$0xff]
        %v1887 = vld [vmem:[%s12 + $0x170] sm:$0xff]
        %v1888 = vld [vmem:[%s12 + $0x178] sm:$0xff]
        %v1889 = vld [vmem:[%s12 + $0x180] sm:$0xff]
        %v1890 = vld [vmem:[%s12 + $0x188] sm:$0xff]
        %v1891 = vld [vmem:[%s12 + $0x190] sm:$0xff]
        %v1892 = vld [vmem:[%s12 + $0x198] sm:$0xff]
        %v1893 = vld [vmem:[%s12 + $0x1a0] sm:$0xff]
        %v1894 = vld [vmem:[%s12 + $0x1a8] sm:$0xff]
        %v1895 = vld [vmem:[%s12 + $0x1b0] sm:$0xff]
        %v1896 = vld [vmem:[%s12 + $0x1b8] sm:$0xff]
        %v1897 = vld [vmem:[%s12 + $0x1c0] sm:$0xff]
        %v1898 = vld [vmem:[%s12 + $0x1c8] sm:$0xff]
        %v1899 = vld [vmem:[%s12 + $0x1d0] sm:$0xff]
        %v1900 = vld [vmem:[%s12 + $0x1d8] sm:$0xff]
        %v1901 = vld [vmem:[%s12 + $0x1e0] sm:$0xff]
        %v1902 = vld [vmem:[%s12 + $0x1e8] sm:$0xff]
        %v1903 = vld [vmem:[%s12 + $0x1f0] sm:$0xff]
        %v1904 = vld [vmem:[%s12 + $0x1f8] sm:$0xff]
        %1905 = vmatprep.subr.mxu0 0.0
        %1906 = vmatpush1.msra.mxu0 %v1841
        %1907 = vmatprep.subr.mxu0 0.0
        %1908 = vmatpush1.msra.mxu0 %v1842
        %1909 = vmatprep.subr.mxu0 0.0
        %1910 = vmatpush1.msra.mxu0 %v1843
        %1911 = vmatprep.subr.mxu0 0.0
        %1912 = vmatpush1.msra.mxu0 %v1844
        %1913 = vmatprep.subr.mxu0 0.0
        %1914 = vmatpush1.msra.mxu0 %v1845
        %1915 = vmatprep.subr.mxu0 0.0
        %1916 = vmatpush1.msra.mxu0 %v1846
        %1917 = vmatprep.subr.mxu0 0.0
        %1918 = vmatpush1.msra.mxu0 %v1847
        %1919 = vmatprep.subr.mxu0 0.0
        %1920 = vmatpush1.msra.mxu0 %v1848
        %1921 = vmatprep.subr.mxu0 0.0
        %1922 = vmatpush1.msra.mxu0 %v1849
        %1923 = vmatprep.subr.mxu0 0.0
        %1924 = vmatpush1.msra.mxu0 %v1850
        %1925 = vmatprep.subr.mxu0 0.0
        %1926 = vmatpush1.msra.mxu0 %v1851
        %1927 = vmatprep.subr.mxu0 0.0
        %1928 = vmatpush1.msra.mxu0 %v1852
        %1929 = vmatprep.subr.mxu0 0.0
        %1930 = vmatpush1.msra.mxu0 %v1853
        %1931 = vmatprep.subr.mxu0 0.0
        %1932 = vmatpush1.msra.mxu0 %v1854
        %1933 = vmatprep.subr.mxu0 0.0
        %1934 = vmatpush1.msra.mxu0 %v1855
        %1935 = vmatprep.subr.mxu0 0.0
        %1936 = vmatpush1.msra.mxu0 %v1856
        %1937 = vmatprep.subr.mxu0 0.0
        %1938 = vmatpush1.msra.mxu0 %v1857
        %1939 = vmatprep.subr.mxu0 0.0
        %1940 = vmatpush1.msra.mxu0 %v1858
        %1941 = vmatprep.subr.mxu0 0.0
        %1942 = vmatpush1.msra.mxu0 %v1859
        %1943 = vmatprep.subr.mxu0 0.0
        %1944 = vmatpush1.msra.mxu0 %v1860
        %1945 = vmatprep.subr.mxu0 0.0
        %1946 = vmatpush1.msra.mxu0 %v1861
        %1947 = vmatprep.subr.mxu0 0.0
        %1948 = vmatpush1.msra.mxu0 %v1862
        %1949 = vmatprep.subr.mxu0 0.0
        %1950 = vmatpush1.msra.mxu0 %v1863
        %1951 = vmatprep.subr.mxu0 0.0
        %1952 = vmatpush1.msra.mxu0 %v1864
        %1953 = vmatprep.subr.mxu0 0.0
        %1954 = vmatpush1.msra.mxu0 %v1865
        %1955 = vmatprep.subr.mxu0 0.0
        %1956 = vmatpush1.msra.mxu0 %v1866
        %1957 = vmatprep.subr.mxu0 0.0
        %1958 = vmatpush1.msra.mxu0 %v1867
        %1959 = vmatprep.subr.mxu0 0.0
        %1960 = vmatpush1.msra.mxu0 %v1868
        %1961 = vmatprep.subr.mxu0 0.0
        %1962 = vmatpush1.msra.mxu0 %v1869
        %1963 = vmatprep.subr.mxu0 0.0
        %1964 = vmatpush1.msra.mxu0 %v1870
        %1965 = vmatprep.subr.mxu0 0.0
        %1966 = vmatpush1.msra.mxu0 %v1871
        %1967 = vmatprep.subr.mxu0 0.0
        %1968 = vmatpush1.msra.mxu0 %v1872
        %1969 = vmatprep.mubr.f32.mxu0 %v1838
        %1970 = vmatmul.mubr.f32.gmra.mrb[0].mxu0 %v1837
        %v1971 = vpop.f32.mrb[0].mxu0
        %v1972 = vadd.f32 0.0, %v1971
        %v1973 = vpop.f32.mrb[0].mxu0
        %1974 = vdwg.mxu0
        %1975 = vmatprep.subr.mxu0 0.0
        %1976 = vmatpush1.msra.mxu0 %v1873
        %1977 = vmatprep.subr.mxu0 0.0
        %1978 = vmatpush1.msra.mxu0 %v1874
        %1979 = vmatprep.subr.mxu0 0.0
        %1980 = vmatpush1.msra.mxu0 %v1875
        %1981 = vmatprep.subr.mxu0 0.0
        %1982 = vmatpush1.msra.mxu0 %v1876
        %1983 = vmatprep.subr.mxu0 0.0
        %1984 = vmatpush1.msra.mxu0 %v1877
        %1985 = vmatprep.subr.mxu0 0.0
        %1986 = vmatpush1.msra.mxu0 %v1878
        %1987 = vmatprep.subr.mxu0 0.0
        %1988 = vmatpush1.msra.mxu0 %v1879
        %1989 = vmatprep.subr.mxu0 0.0
        %1990 = vmatpush1.msra.mxu0 %v1880
        %1991 = vmatprep.subr.mxu0 0.0
        %1992 = vmatpush1.msra.mxu0 %v1881
        %1993 = vmatprep.subr.mxu0 0.0
        %1994 = vmatpush1.msra.mxu0 %v1882
        %1995 = vmatprep.subr.mxu0 0.0
        %1996 = vmatpush1.msra.mxu0 %v1883
        %1997 = vmatprep.subr.mxu0 0.0
        %1998 = vmatpush1.msra.mxu0 %v1884
        %1999 = vmatprep.subr.mxu0 0.0
        %2000 = vmatpush1.msra.mxu0 %v1885
        %2001 = vmatprep.subr.mxu0 0.0
        %2002 = vmatpush1.msra.mxu0 %v1886
        %2003 = vmatprep.subr.mxu0 0.0
        %2004 = vmatpush1.msra.mxu0 %v1887
        %2005 = vmatprep.subr.mxu0 0.0
        %2006 = vmatpush1.msra.mxu0 %v1888
        %2007 = vmatprep.subr.mxu0 0.0
        %2008 = vmatpush1.msra.mxu0 %v1889
        %2009 = vmatprep.subr.mxu0 0.0
        %2010 = vmatpush1.msra.mxu0 %v1890
        %2011 = vmatprep.subr.mxu0 0.0
        %2012 = vmatpush1.msra.mxu0 %v1891
        %2013 = vmatprep.subr.mxu0 0.0
        %2014 = vmatpush1.msra.mxu0 %v1892
        %2015 = vmatprep.subr.mxu0 0.0
        %2016 = vmatpush1.msra.mxu0 %v1893
        %2017 = vmatprep.subr.mxu0 0.0
        %2018 = vmatpush1.msra.mxu0 %v1894
        %2019 = vmatprep.subr.mxu0 0.0
        %2020 = vmatpush1.msra.mxu0 %v1895
        %2021 = vmatprep.subr.mxu0 0.0
        %2022 = vmatpush1.msra.mxu0 %v1896
        %2023 = vmatprep.subr.mxu0 0.0
        %2024 = vmatpush1.msra.mxu0 %v1897
        %2025 = vmatprep.subr.mxu0 0.0
        %2026 = vmatpush1.msra.mxu0 %v1898
        %2027 = vmatprep.subr.mxu0 0.0
        %2028 = vmatpush1.msra.mxu0 %v1899
        %2029 = vmatprep.subr.mxu0 0.0
        %2030 = vmatpush1.msra.mxu0 %v1900
        %2031 = vmatprep.subr.mxu0 0.0
        %2032 = vmatpush1.msra.mxu0 %v1901
        %2033 = vmatprep.subr.mxu0 0.0
        %2034 = vmatpush1.msra.mxu0 %v1902
        %2035 = vmatprep.subr.mxu0 0.0
        %2036 = vmatpush1.msra.mxu0 %v1903
        %2037 = vmatprep.subr.mxu0 0.0
        %2038 = vmatpush1.msra.mxu0 %v1904
        %2039 = vmatprep.mubr.f32.mxu0 %v1840
        %2040 = vmatmul.mubr.f32.gmra.mrb[0].mxu0 %v1839
        %v2041 = vpop.f32.mrb[0].mxu0
        %v2042 = vadd.f32 %v1972, %v2041
        %v2043 = vpop.f32.mrb[0].mxu0
        %2044 = vdwg.mxu0
        %v2045 = vadd.f32 %v1477, %v2042
        %v2046 = vld [vmem:[%s13] sm:$0x1]
        %v2048 = vlaneseq
        %v2049 = vshrl.u32 %v2048, 7
        %v2050 = vsub.s32 0, %v2049
        %v2051 = vrot.slane %v2046, %v2050
        %v2053 = vadd.f32 %v2045, %v2051
        %2054 = vst [vmem:[%s457] sm:$0xff] %v2053
        %p2055 = scmp.lt.s32.totalorder %s32, 1
        %s2056 = scalar_select %p2055, %s32, 1
        %s2057 = smul.addr %s2056, 8
        %s2058 = scalar_lea.vmem %s14, %s2057
        // Predicated region
        $region77: #{_lambda_.5} parent=71 // pred_check
          %p2059 = pneg %p328
        $region78: #{_lambda_.5} parent=71 // pred_check_branch
          %2061 = sbr.rel (%p2059) target = $region80
        $region79: #{_lambda_.5} parent=71 // pred_region
          _
        $region80: #{_lambda_.5} parent=71 // pred_fallthru
          _
      $region72: #{_lambda_.5} parent=5 // pred_fallthru
        _
      %p2062 = scmp.le.s32.totalorder 2, %s27
      // Predicated region
      $region81: #{_lambda_.5} parent=5 // pred_check
        %p2063 = pneg %p2062
      $region82: #{_lambda_.5} parent=5 // pred_check_branch
        %2065 = sbr.rel (%p2063) target = $region84
      $region83: #{_lambda_.5} parent=5 // pred_region
        %s2066 = ssub.s32 %s27, 2
        // Predicated region
        $region85: #{_lambda_.5} parent=83 // pred_check
          %p2067 = pneg %p334
        $region86: #{_lambda_.5} parent=83 // pred_check_branch
          %2069 = sbr.rel (%p2067) target = $region88
        $region87: #{_lambda_.5} parent=83 // pred_region
          %p2070 = scmp.lt.s32.totalorder %s33, 1
          %s2071 = scalar_select %p2070, %s33, 1
          %s2072 = smul.addr %s2071, 8
          %s2073 = scalar_lea.vmem %s14, %s2072
        $region88: #{_lambda_.5} parent=83 // pred_fallthru
          _
      $region84: #{_lambda_.5} parent=5 // pred_fallthru
        _
    $region6: #{_lambda_.5} parent=1 // loop_footer
      %s31 = sadd.s32 1, %s27
    $region7: #{_lambda_.5} parent=1 // loop_footer_branch
      %26 = sbr.rel target = $region3
    $region8: #{_lambda_.5} parent=1 // loop_exit
      _
    %2074 = vsyncpa [#allocation5], 1
    %s2075 = scalar_lea.sflag [#allocation5], 1
    %2076 = vsyncpa %s2075, 1

</llo_original>
